<compile_context>
chip_gen: v7x
topology: tpu7x:2x2x1
jax: 0.10.0
libtpu: 0.0.40
codegen_flags: <defaults>
</compile_context>

<pallas_src>
import functools

import jax
import jax.numpy as jnp
from jax.experimental import pallas as pl
from jax.experimental.pallas import tpu as pltpu

HIDDEN = 256
BN_EPS = 1e-5
LANES = 128
M1_TILE = 112          # conv1 row tile (multiple of 8, <=128)


def _pick_tile(n, max_tile=128, min_tile=32):
    """Largest multiple-of-8 tile <= max_tile that divides n (else n)."""
    for t in range(max_tile, min_tile - 1, -8):
        if n % t == 0:
            return t
    return n


def detection_head_kernel(patches_ref, mask_ref, w1_ref, s1_ref, sh1_ref,
                          w2_ref, s2_ref, sh2_ref, w3_ref, b3_ref,
                          out_ref, h1pad_ref, *, H, W, m1, m2):
    Wp = W + 2
    hidden = h1pad_ref.shape[1]
    R = h1pad_ref.shape[0]            # padded-flat rows (multiple of m1)
    n_out = H * Wp                    # output rows computed per image (mult of m2)

    # ---- conv1: im2col matmul (K = 9*Cin) + folded BN + ReLU ------------------
    # Evaluated at every padded-grid position; the halo (and guard rows) are
    # zeroed via the mask so the scratch ends up exactly h1 with a zero border.
    w1 = w1_ref[...]                  # [9*Cin, hidden] bf16
    s1 = s1_ref[...]
    sh1 = sh1_ref[...]
    for t in range(R // m1):
        r0 = t * m1
        acc = jnp.dot(patches_ref[0, r0:r0 + m1, :], w1,
                      preferred_element_type=jnp.float32)
        h = jnp.maximum(acc * s1 + sh1, 0.0)
        h = h * mask_ref[r0:r0 + m1, :]                    # zero the 1-px halo
        h1pad_ref[r0:r0 + m1, :] = h.astype(h1pad_ref.dtype)

    # ---- conv2: nine row-shifted matmuls on the flat scratch + BN + ReLU,
    #      then lane-padded 1x1 detection conv ---------------------------------
    s2 = s2_ref[...]
    sh2 = sh2_ref[...]
    w3 = w3_ref[...]                  # [hidden, 128] bf16 (lane-padded)
    b3 = b3_ref[...]                  # [1, 128] f32
    for t in range(n_out // m2):
        r0 = t * m2
        # first tap (dy=0, dx=0) initializes the accumulator
        acc = jnp.dot(h1pad_ref[r0:r0 + m2, :], w2_ref[0, 0],
                      preferred_element_type=jnp.float32)
        for dy in range(3):
            for dx in range(3):
                if dy == 0 and dx == 0:
                    continue
                off = r0 + dy * Wp + dx                    # leading-axis shift only
                acc = acc + jnp.dot(h1pad_ref[off:off + m2, :], w2_ref[dy, dx],
                                    preferred_element_type=jnp.float32)
        h2 = jnp.maximum(acc * s2 + sh2, 0.0).astype(w3.dtype)
        det = jnp.dot(h2, w3, preferred_element_type=jnp.float32) + b3
        out_ref[0, r0:r0 + m2, :] = det.astype(out_ref.dtype)


def detection_head_forward(x_nchw, params, num_classes, num_anchors, hidden=HIDDEN):
    B, Cin, H, W = x_nchw.shape
    Hp, Wp = H + 2, W + 2
    aout = num_anchors * (5 + num_classes)
    aout_pad = ((aout + LANES - 1) // LANES) * LANES       # lane-dense output width

    # ---- layout-only glue: NHWC, im2col patches at every padded position -----
    x = jnp.transpose(x_nchw, (0, 2, 3, 1))                # NHWC
    xp2 = jnp.pad(x, ((0, 0), (2, 2), (2, 2), (0, 0)))     # pad=2 so halo rows exist
    slabs = [xp2[:, dy:dy + Hp, dx:dx + Wp, :]
             for dy in range(3) for dx in range(3)]
    patches = jnp.concatenate(slabs, axis=-1)              # [B, Hp, Wp, 9*Cin]
    patches = patches.reshape(B, Hp * Wp, 9 * Cin)

    # scratch row count: >= Hp*Wp + 2 guard rows, rounded to a multiple of M1_TILE
    R = -(-(Hp * Wp + 2) // M1_TILE) * M1_TILE
    patches = jnp.pad(patches, ((0, 0), (0, R - Hp * Wp), (0, 0)))
    patches = patches.astype(jnp.bfloat16)

    # interior mask over the padded-flat rows (1 inside HxW, 0 on halo/guards)
    rid = jnp.arange(R)
    yy, xx = rid // Wp, rid % Wp
    inside = ((yy >= 1) & (yy <= H) & (xx >= 1) & (xx <= W) & (rid < Hp * Wp))
    inside = inside.astype(jnp.float32).reshape(R, 1)

    # ---- pack weights: bf16 matmul operands, lane-padded detection conv ------
    w1r = params["w1"].reshape(9 * Cin, hidden).astype(jnp.bfloat16)
    w2 = params["w2"].astype(jnp.bfloat16)                 # [3,3,hidden,hidden]
    w3p = jnp.zeros((hidden, aout_pad), jnp.bfloat16)
    w3p = w3p.at[:, :aout].set(params["w3"].astype(jnp.bfloat16))
    b3p = jnp.zeros((1, aout_pad), jnp.float32)
    b3p = b3p.at[:, :aout].set(params["b3"].reshape(1, aout))
    s1 = params["s1"].reshape(1, hidden)
    sh1 = params["sh1"].reshape(1, hidden)
    s2 = params["s2"].reshape(1, hidden)
    sh2 = params["sh2"].reshape(1, hidden)

    n_out = H * Wp                                         # rows computed in-kernel
    m2 = _pick_tile(n_out)
    kernel = functools.partial(detection_head_kernel, H=H, W=W, m1=M1_TILE, m2=m2)

    out = pl.pallas_call(
        kernel,
        out_shape=jax.ShapeDtypeStruct((B, n_out, aout_pad), jnp.float32),
        grid=(B,),
        in_specs=[
            pl.BlockSpec((1, R, 9 * Cin), lambda b: (b, 0, 0)),
            pl.BlockSpec((R, 1), lambda b: (0, 0)),
            pl.BlockSpec((9 * Cin, hidden), lambda b: (0, 0)),
            pl.BlockSpec((1, hidden), lambda b: (0, 0)),
            pl.BlockSpec((1, hidden), lambda b: (0, 0)),
            pl.BlockSpec((3, 3, hidden, hidden), lambda b: (0, 0, 0, 0)),
            pl.BlockSpec((1, hidden), lambda b: (0, 0)),
            pl.BlockSpec((1, hidden), lambda b: (0, 0)),
            pl.BlockSpec((hidden, aout_pad), lambda b: (0, 0)),
            pl.BlockSpec((1, aout_pad), lambda b: (0, 0)),
        ],
        out_specs=pl.BlockSpec((1, n_out, aout_pad), lambda b: (b, 0, 0)),
        scratch_shapes=[pltpu.VMEM((R, hidden), jnp.bfloat16)],
        compiler_params=pltpu.CompilerParams(dimension_semantics=("parallel",)),
    )(patches, inside, w1r, s1, sh1, w2, s2, sh2, w3p, b3p)

    # kernel rows are y*(W+2)+x; drop the W-padding columns and the lane pad,
    # then match PyTorch's permute + view: [B, H*W*A, 5+C]
    out = out.reshape(B, H, Wp, aout_pad)[:, :, :W, :aout]
    return out.reshape(B, H * W * num_anchors, 5 + num_classes)


def make_params(key, in_channels, num_classes, num_anchors, hidden=HIDDEN):
    k1, k2, k3 = jax.random.split(key, 3)
    aout = num_anchors * (5 + num_classes)

    def kaiming(k, kh, kw, cin, cout):        # kaiming_normal_, mode='fan_out', relu
        fan_out = cout * kh * kw
        std = (2.0 / fan_out) ** 0.5
        return std * jax.random.normal(k, (kh, kw, cin, cout), jnp.float32)

    w1 = kaiming(k1, 3, 3, in_channels, hidden)
    w2 = kaiming(k2, 3, 3, hidden, hidden)
    w3 = kaiming(k3, 1, 1, hidden, aout)[0, 0]                 # [hidden, aout]

    b1 = jnp.zeros((hidden,), jnp.float32)
    b2 = jnp.zeros((hidden,), jnp.float32)
    # detection bias: zeros, objectness slot (index 4 per anchor) = -2.0
    b3 = jnp.zeros((num_anchors, 5 + num_classes), jnp.float32).at[:, 4].set(-2.0)
    b3 = b3.reshape(aout)

    # BatchNorm (inference) defaults: gamma=1, beta=0, mean=0, var=1
    gamma = jnp.ones((hidden,), jnp.float32)
    beta = jnp.zeros((hidden,), jnp.float32)
    mean = jnp.zeros((hidden,), jnp.float32)
    var = jnp.ones((hidden,), jnp.float32)
    s = gamma / jnp.sqrt(var + BN_EPS)
    s1, sh1 = s, (b1 - mean) * s + beta
    s2, sh2 = s, (b2 - mean) * s + beta

    return dict(
        w1=w1, s1=s1.reshape(1, hidden), sh1=sh1.reshape(1, hidden),
        w2=w2, s2=s2.reshape(1, hidden), sh2=sh2.reshape(1, hidden),
        w3=w3, b3=b3.reshape(1, aout),
    )


def ref_forward(x_nchw, params, num_classes, num_anchors):
    """Pure-JAX reference (XLA convs, bf16 operands / f32 accumulation to match
    the kernel's MXU precision)."""
    x = jnp.transpose(x_nchw, (0, 2, 3, 1))

    def conv3(h, w):
        return jax.lax.conv_general_dilated(
            h.astype(jnp.bfloat16), w.astype(jnp.bfloat16), (1, 1), "SAME",
            dimension_numbers=("NHWC", "HWIO", "NHWC"),
            preferred_element_type=jnp.float32)

    h = jnp.maximum(conv3(x, params["w1"]) * params["s1"].reshape(-1)
                    + params["sh1"].reshape(-1), 0.0)
    h = jnp.maximum(conv3(h, params["w2"]) * params["s2"].reshape(-1)
                    + params["sh2"].reshape(-1), 0.0)
    det = jnp.einsum("bhwc,cf->bhwf", h.astype(jnp.bfloat16),
                     params["w3"].astype(jnp.bfloat16),
                     preferred_element_type=jnp.float32) + params["b3"].reshape(-1)
    B, H, W, _ = det.shape
    return det.reshape(B, H * W * num_anchors, 5 + num_classes)


if __name__ == "__main__":
    B, Cin, H, W = 2, 4, 16, 16
    num_classes, num_anchors = 3, 3

    key = jax.random.PRNGKey(0)
    kx, kp = jax.random.split(key)
    x = jax.random.normal(kx, (B, Cin, H, W), jnp.float32)
    params = make_params(kp, Cin, num_classes, num_anchors)

    fwd = jax.jit(detection_head_forward, static_argnums=(2, 3))
    out = jax.block_until_ready(fwd(x, params, num_classes, num_anchors))

    ref = ref_forward(x, params, num_classes, num_anchors)
    assert out.shape == (B, H * W * num_anchors, 5 + num_classes), out.shape
    max_err = float(jnp.max(jnp.abs(out - ref)))
    assert jnp.allclose(out, ref, atol=2e-2, rtol=2e-2), max_err
    print("KERNEL_OK")
</pallas_src>

<mosaic_0001>
module attributes {stable_mosaic.version = 11 : i64} {
  func.func @detection_head_kernel(%arg0: i32, %arg1: memref<1x336x36xbf16, #tpu.memory_space<vmem>>, %arg2: memref<336x1xf32, #tpu.memory_space<vmem>>, %arg3: memref<36x256xbf16, #tpu.memory_space<vmem>>, %arg4: memref<1x256xf32, #tpu.memory_space<vmem>>, %arg5: memref<1x256xf32, #tpu.memory_space<vmem>>, %arg6: memref<3x3x256x256xbf16, #tpu.memory_space<vmem>>, %arg7: memref<1x256xf32, #tpu.memory_space<vmem>>, %arg8: memref<1x256xf32, #tpu.memory_space<vmem>>, %arg9: memref<256x128xbf16, #tpu.memory_space<vmem>>, %arg10: memref<1x128xf32, #tpu.memory_space<vmem>>, %arg11: memref<1x288x128xf32, #tpu.memory_space<vmem>>, %arg12: memref<336x256xbf16, #tpu.memory_space<vmem>>) attributes {dimension_semantics = [#tpu.dimension_semantics<parallel>], iteration_bounds = array<i64: 2>, scalar_prefetch = 0 : i64, scratch_operands = 1 : i64, tpu.core_type = #tpu.core_type<tc>, window_params = [{transform_indices = @transform_0, window_bounds = array<i64: 1, 336, 36>}, {pipeline_mode = #tpu.pipeline_mode<synchronous>, transform_indices = @transform_1, window_bounds = array<i64: 336, 1>}, {pipeline_mode = #tpu.pipeline_mode<synchronous>, transform_indices = @transform_2, window_bounds = array<i64: 36, 256>}, {pipeline_mode = #tpu.pipeline_mode<synchronous>, transform_indices = @transform_3, window_bounds = array<i64: 1, 256>}, {pipeline_mode = #tpu.pipeline_mode<synchronous>, transform_indices = @transform_4, window_bounds = array<i64: 1, 256>}, {pipeline_mode = #tpu.pipeline_mode<synchronous>, transform_indices = @transform_5, window_bounds = array<i64: 3, 3, 256, 256>}, {pipeline_mode = #tpu.pipeline_mode<synchronous>, transform_indices = @transform_6, window_bounds = array<i64: 1, 256>}, {pipeline_mode = #tpu.pipeline_mode<synchronous>, transform_indices = @transform_7, window_bounds = array<i64: 1, 256>}, {pipeline_mode = #tpu.pipeline_mode<synchronous>, transform_indices = @transform_8, window_bounds = array<i64: 256, 128>}, {pipeline_mode = #tpu.pipeline_mode<synchronous>, transform_indices = @transform_9, window_bounds = array<i64: 1, 128>}, {transform_indices = @transform_10, window_bounds = array<i64: 1, 288, 128>}]} {
    %c0 = arith.constant 0 : index
    %c0_0 = arith.constant 0 : index
    %0 = vector.load %arg3[%c0, %c0_0] : memref<36x256xbf16, #tpu.memory_space<vmem>>, vector<36x256xbf16>
    %c0_1 = arith.constant 0 : index
    %c0_2 = arith.constant 0 : index
    %1 = vector.load %arg4[%c0_1, %c0_2] : memref<1x256xf32, #tpu.memory_space<vmem>>, vector<1x256xf32>
    %c0_3 = arith.constant 0 : index
    %c0_4 = arith.constant 0 : index
    %2 = vector.load %arg5[%c0_3, %c0_4] : memref<1x256xf32, #tpu.memory_space<vmem>>, vector<1x256xf32>
    %c0_5 = arith.constant 0 : index
    %c0_6 = arith.constant 0 : index
    %c0_7 = arith.constant 0 : index
    %3 = vector.load %arg1[%c0_5, %c0_6, %c0_7] : memref<1x336x36xbf16, #tpu.memory_space<vmem>>, vector<1x112x36xbf16>
    %4 = vector.shape_cast %3 : vector<1x112x36xbf16> to vector<112x36xbf16>
    %cst = arith.constant dense<0.000000e+00> : vector<112x256xf32>
    %5 = tpu.matmul %4, %0, %cst {dimension_numbers = #tpu.dot_dimension_numbers<[1], [0], [0], [1], [0, 0, 1, 1], [], []>} : vector<112x36xbf16>, vector<36x256xbf16>, vector<112x256xf32> -> vector<112x256xf32>
    %6 = vector.broadcast %1 : vector<1x256xf32> to vector<112x256xf32>
    %7 = arith.mulf %5, %6 : vector<112x256xf32>
    %8 = vector.broadcast %2 : vector<1x256xf32> to vector<112x256xf32>
    %9 = arith.addf %7, %8 : vector<112x256xf32>
    %cst_8 = arith.constant 0.000000e+00 : f32
    %10 = vector.broadcast %cst_8 : f32 to vector<112x256xf32>
    %11 = arith.maximumf %9, %10 : vector<112x256xf32>
    %c0_9 = arith.constant 0 : index
    %c0_10 = arith.constant 0 : index
    %12 = vector.load %arg2[%c0_9, %c0_10] : memref<336x1xf32, #tpu.memory_space<vmem>>, vector<112x1xf32>
    %13 = vector.broadcast %12 : vector<112x1xf32> to vector<112x256xf32>
    %14 = arith.mulf %11, %13 : vector<112x256xf32>
    %15 = arith.truncf %14 : vector<112x256xf32> to vector<112x256xbf16>
    %c0_11 = arith.constant 0 : index
    %c0_12 = arith.constant 0 : index
    %16 = vector.load %arg12[%c0_11, %c0_12] : memref<336x256xbf16, #tpu.memory_space<vmem>>, vector<112x256xbf16>
    tpu.vector_store %arg12[%c0_11, %c0_12], %15 {strides = array<i32>} : memref<336x256xbf16, #tpu.memory_space<vmem>>, vector<112x256xbf16>,
    %c0_13 = arith.constant 0 : index
    %c112 = arith.constant 112 : index
    %c0_14 = arith.constant 0 : index
    %17 = vector.load %arg1[%c0_13, %c112, %c0_14] : memref<1x336x36xbf16, #tpu.memory_space<vmem>>, vector<1x112x36xbf16>
    %18 = vector.shape_cast %17 : vector<1x112x36xbf16> to vector<112x36xbf16>
    %cst_15 = arith.constant dense<0.000000e+00> : vector<112x256xf32>
    %19 = tpu.matmul %18, %0, %cst_15 {dimension_numbers = #tpu.dot_dimension_numbers<[1], [0], [0], [1], [0, 0, 1, 1], [], []>} : vector<112x36xbf16>, vector<36x256xbf16>, vector<112x256xf32> -> vector<112x256xf32>
    %20 = vector.broadcast %1 : vector<1x256xf32> to vector<112x256xf32>
    %21 = arith.mulf %19, %20 : vector<112x256xf32>
    %22 = vector.broadcast %2 : vector<1x256xf32> to vector<112x256xf32>
    %23 = arith.addf %21, %22 : vector<112x256xf32>
    %cst_16 = arith.constant 0.000000e+00 : f32
    %24 = vector.broadcast %cst_16 : f32 to vector<112x256xf32>
    %25 = arith.maximumf %23, %24 : vector<112x256xf32>
    %c112_17 = arith.constant 112 : index
    %c0_18 = arith.constant 0 : index
    %26 = vector.load %arg2[%c112_17, %c0_18] : memref<336x1xf32, #tpu.memory_space<vmem>>, vector<112x1xf32>
    %27 = vector.broadcast %26 : vector<112x1xf32> to vector<112x256xf32>
    %28 = arith.mulf %25, %27 : vector<112x256xf32>
    %29 = arith.truncf %28 : vector<112x256xf32> to vector<112x256xbf16>
    %c112_19 = arith.constant 112 : index
    %c0_20 = arith.constant 0 : index
    %30 = vector.load %arg12[%c112_19, %c0_20] : memref<336x256xbf16, #tpu.memory_space<vmem>>, vector<112x256xbf16>
    tpu.vector_store %arg12[%c112_19, %c0_20], %29 {strides = array<i32>} : memref<336x256xbf16, #tpu.memory_space<vmem>>, vector<112x256xbf16>,
    %c0_21 = arith.constant 0 : index
    %c224 = arith.constant 224 : index
    %c0_22 = arith.constant 0 : index
    %31 = vector.load %arg1[%c0_21, %c224, %c0_22] : memref<1x336x36xbf16, #tpu.memory_space<vmem>>, vector<1x112x36xbf16>
    %32 = vector.shape_cast %31 : vector<1x112x36xbf16> to vector<112x36xbf16>
    %cst_23 = arith.constant dense<0.000000e+00> : vector<112x256xf32>
    %33 = tpu.matmul %32, %0, %cst_23 {dimension_numbers = #tpu.dot_dimension_numbers<[1], [0], [0], [1], [0, 0, 1, 1], [], []>} : vector<112x36xbf16>, vector<36x256xbf16>, vector<112x256xf32> -> vector<112x256xf32>
    %34 = vector.broadcast %1 : vector<1x256xf32> to vector<112x256xf32>
    %35 = arith.mulf %33, %34 : vector<112x256xf32>
    %36 = vector.broadcast %2 : vector<1x256xf32> to vector<112x256xf32>
    %37 = arith.addf %35, %36 : vector<112x256xf32>
    %cst_24 = arith.constant 0.000000e+00 : f32
    %38 = vector.broadcast %cst_24 : f32 to vector<112x256xf32>
    %39 = arith.maximumf %37, %38 : vector<112x256xf32>
    %c224_25 = arith.constant 224 : index
    %c0_26 = arith.constant 0 : index
    %40 = vector.load %arg2[%c224_25, %c0_26] : memref<336x1xf32, #tpu.memory_space<vmem>>, vector<112x1xf32>
    %41 = vector.broadcast %40 : vector<112x1xf32> to vector<112x256xf32>
    %42 = arith.mulf %39, %41 : vector<112x256xf32>
    %43 = arith.truncf %42 : vector<112x256xf32> to vector<112x256xbf16>
    %c224_27 = arith.constant 224 : index
    %c0_28 = arith.constant 0 : index
    %44 = vector.load %arg12[%c224_27, %c0_28] : memref<336x256xbf16, #tpu.memory_space<vmem>>, vector<112x256xbf16>
    tpu.vector_store %arg12[%c224_27, %c0_28], %43 {strides = array<i32>} : memref<336x256xbf16, #tpu.memory_space<vmem>>, vector<112x256xbf16>,
    %c0_29 = arith.constant 0 : index
    %c0_30 = arith.constant 0 : index
    %45 = vector.load %arg7[%c0_29, %c0_30] : memref<1x256xf32, #tpu.memory_space<vmem>>, vector<1x256xf32>
    %c0_31 = arith.constant 0 : index
    %c0_32 = arith.constant 0 : index
    %46 = vector.load %arg8[%c0_31, %c0_32] : memref<1x256xf32, #tpu.memory_space<vmem>>, vector<1x256xf32>
    %c0_33 = arith.constant 0 : index
    %c0_34 = arith.constant 0 : index
    %47 = vector.load %arg9[%c0_33, %c0_34] : memref<256x128xbf16, #tpu.memory_space<vmem>>, vector<256x128xbf16>
    %c0_35 = arith.constant 0 : index
    %c0_36 = arith.constant 0 : index
    %48 = vector.load %arg10[%c0_35, %c0_36] : memref<1x128xf32, #tpu.memory_space<vmem>>, vector<1x128xf32>
    %c0_37 = arith.constant 0 : index
    %c0_38 = arith.constant 0 : index
    %49 = vector.load %arg12[%c0_37, %c0_38] : memref<336x256xbf16, #tpu.memory_space<vmem>>, vector<96x256xbf16>
    %c0_39 = arith.constant 0 : index
    %c0_40 = arith.constant 0 : index
    %c0_41 = arith.constant 0 : index
    %c0_42 = arith.constant 0 : index
    %50 = vector.load %arg6[%c0_39, %c0_40, %c0_41, %c0_42] : memref<3x3x256x256xbf16, #tpu.memory_space<vmem>>, vector<1x1x256x256xbf16>
    %51 = vector.shape_cast %50 : vector<1x1x256x256xbf16> to vector<256x256xbf16>
    %cst_43 = arith.constant dense<0.000000e+00> : vector<96x256xf32>
    %52 = tpu.matmul %49, %51, %cst_43 {dimension_numbers = #tpu.dot_dimension_numbers<[1], [0], [0], [1], [0, 0, 1, 1], [], []>} : vector<96x256xbf16>, vector<256x256xbf16>, vector<96x256xf32> -> vector<96x256xf32>
    %c1 = arith.constant 1 : index
    %c0_44 = arith.constant 0 : index
    %53 = vector.load %arg12[%c1, %c0_44] : memref<336x256xbf16, #tpu.memory_space<vmem>>, vector<96x256xbf16>
    %c0_45 = arith.constant 0 : index
    %c1_46 = arith.constant 1 : index
    %c0_47 = arith.constant 0 : index
    %c0_48 = arith.constant 0 : index
    %54 = vector.load %arg6[%c0_45, %c1_46, %c0_47, %c0_48] : memref<3x3x256x256xbf16, #tpu.memory_space<vmem>>, vector<1x1x256x256xbf16>
    %55 = vector.shape_cast %54 : vector<1x1x256x256xbf16> to vector<256x256xbf16>
    %cst_49 = arith.constant dense<0.000000e+00> : vector<96x256xf32>
    %56 = tpu.matmul %53, %55, %cst_49 {dimension_numbers = #tpu.dot_dimension_numbers<[1], [0], [0], [1], [0, 0, 1, 1], [], []>} : vector<96x256xbf16>, vector<256x256xbf16>, vector<96x256xf32> -> vector<96x256xf32>
    %57 = arith.addf %52, %56 : vector<96x256xf32>
    %c2 = arith.constant 2 : index
    %c0_50 = arith.constant 0 : index
    %58 = vector.load %arg12[%c2, %c0_50] : memref<336x256xbf16, #tpu.memory_space<vmem>>, vector<96x256xbf16>
    %c0_51 = arith.constant 0 : index
    %c2_52 = arith.constant 2 : index
    %c0_53 = arith.constant 0 : index
    %c0_54 = arith.constant 0 : index
    %59 = vector.load %arg6[%c0_51, %c2_52, %c0_53, %c0_54] : memref<3x3x256x256xbf16, #tpu.memory_space<vmem>>, vector<1x1x256x256xbf16>
    %60 = vector.shape_cast %59 : vector<1x1x256x256xbf16> to vector<256x256xbf16>
    %cst_55 = arith.constant dense<0.000000e+00> : vector<96x256xf32>
    %61 = tpu.matmul %58, %60, %cst_55 {dimension_numbers = #tpu.dot_dimension_numbers<[1], [0], [0], [1], [0, 0, 1, 1], [], []>} : vector<96x256xbf16>, vector<256x256xbf16>, vector<96x256xf32> -> vector<96x256xf32>
    %62 = arith.addf %57, %61 : vector<96x256xf32>
    %c18 = arith.constant 18 : index
    %c0_56 = arith.constant 0 : index
    %63 = vector.load %arg12[%c18, %c0_56] : memref<336x256xbf16, #tpu.memory_space<vmem>>, vector<96x256xbf16>
    %c1_57 = arith.constant 1 : index
    %c0_58 = arith.constant 0 : index
    %c0_59 = arith.constant 0 : index
    %c0_60 = arith.constant 0 : index
    %64 = vector.load %arg6[%c1_57, %c0_58, %c0_59, %c0_60] : memref<3x3x256x256xbf16, #tpu.memory_space<vmem>>, vector<1x1x256x256xbf16>
    %65 = vector.shape_cast %64 : vector<1x1x256x256xbf16> to vector<256x256xbf16>
    %cst_61 = arith.constant dense<0.000000e+00> : vector<96x256xf32>
    %66 = tpu.matmul %63, %65, %cst_61 {dimension_numbers = #tpu.dot_dimension_numbers<[1], [0], [0], [1], [0, 0, 1, 1], [], []>} : vector<96x256xbf16>, vector<256x256xbf16>, vector<96x256xf32> -> vector<96x256xf32>
    %67 = arith.addf %62, %66 : vector<96x256xf32>
    %c19 = arith.constant 19 : index
    %c0_62 = arith.constant 0 : index
    %68 = vector.load %arg12[%c19, %c0_62] : memref<336x256xbf16, #tpu.memory_space<vmem>>, vector<96x256xbf16>
    %c1_63 = arith.constant 1 : index
    %c1_64 = arith.constant 1 : index
    %c0_65 = arith.constant 0 : index
    %c0_66 = arith.constant 0 : index
    %69 = vector.load %arg6[%c1_63, %c1_64, %c0_65, %c0_66] : memref<3x3x256x256xbf16, #tpu.memory_space<vmem>>, vector<1x1x256x256xbf16>
    %70 = vector.shape_cast %69 : vector<1x1x256x256xbf16> to vector<256x256xbf16>
    %cst_67 = arith.constant dense<0.000000e+00> : vector<96x256xf32>
    %71 = tpu.matmul %68, %70, %cst_67 {dimension_numbers = #tpu.dot_dimension_numbers<[1], [0], [0], [1], [0, 0, 1, 1], [], []>} : vector<96x256xbf16>, vector<256x256xbf16>, vector<96x256xf32> -> vector<96x256xf32>
    %72 = arith.addf %67, %71 : vector<96x256xf32>
    %c20 = arith.constant 20 : index
    %c0_68 = arith.constant 0 : index
    %73 = vector.load %arg12[%c20, %c0_68] : memref<336x256xbf16, #tpu.memory_space<vmem>>, vector<96x256xbf16>
    %c1_69 = arith.constant 1 : index
    %c2_70 = arith.constant 2 : index
    %c0_71 = arith.constant 0 : index
    %c0_72 = arith.constant 0 : index
    %74 = vector.load %arg6[%c1_69, %c2_70, %c0_71, %c0_72] : memref<3x3x256x256xbf16, #tpu.memory_space<vmem>>, vector<1x1x256x256xbf16>
    %75 = vector.shape_cast %74 : vector<1x1x256x256xbf16> to vector<256x256xbf16>
    %cst_73 = arith.constant dense<0.000000e+00> : vector<96x256xf32>
    %76 = tpu.matmul %73, %75, %cst_73 {dimension_numbers = #tpu.dot_dimension_numbers<[1], [0], [0], [1], [0, 0, 1, 1], [], []>} : vector<96x256xbf16>, vector<256x256xbf16>, vector<96x256xf32> -> vector<96x256xf32>
    %77 = arith.addf %72, %76 : vector<96x256xf32>
    %c36 = arith.constant 36 : index
    %c0_74 = arith.constant 0 : index
    %78 = vector.load %arg12[%c36, %c0_74] : memref<336x256xbf16, #tpu.memory_space<vmem>>, vector<96x256xbf16>
    %c2_75 = arith.constant 2 : index
    %c0_76 = arith.constant 0 : index
    %c0_77 = arith.constant 0 : index
    %c0_78 = arith.constant 0 : index
    %79 = vector.load %arg6[%c2_75, %c0_76, %c0_77, %c0_78] : memref<3x3x256x256xbf16, #tpu.memory_space<vmem>>, vector<1x1x256x256xbf16>
    %80 = vector.shape_cast %79 : vector<1x1x256x256xbf16> to vector<256x256xbf16>
    %cst_79 = arith.constant dense<0.000000e+00> : vector<96x256xf32>
    %81 = tpu.matmul %78, %80, %cst_79 {dimension_numbers = #tpu.dot_dimension_numbers<[1], [0], [0], [1], [0, 0, 1, 1], [], []>} : vector<96x256xbf16>, vector<256x256xbf16>, vector<96x256xf32> -> vector<96x256xf32>
    %82 = arith.addf %77, %81 : vector<96x256xf32>
    %c37 = arith.constant 37 : index
    %c0_80 = arith.constant 0 : index
    %83 = vector.load %arg12[%c37, %c0_80] : memref<336x256xbf16, #tpu.memory_space<vmem>>, vector<96x256xbf16>
    %c2_81 = arith.constant 2 : index
    %c1_82 = arith.constant 1 : index
    %c0_83 = arith.constant 0 : index
    %c0_84 = arith.constant 0 : index
    %84 = vector.load %arg6[%c2_81, %c1_82, %c0_83, %c0_84] : memref<3x3x256x256xbf16, #tpu.memory_space<vmem>>, vector<1x1x256x256xbf16>
    %85 = vector.shape_cast %84 : vector<1x1x256x256xbf16> to vector<256x256xbf16>
    %cst_85 = arith.constant dense<0.000000e+00> : vector<96x256xf32>
    %86 = tpu.matmul %83, %85, %cst_85 {dimension_numbers = #tpu.dot_dimension_numbers<[1], [0], [0], [1], [0, 0, 1, 1], [], []>} : vector<96x256xbf16>, vector<256x256xbf16>, vector<96x256xf32> -> vector<96x256xf32>
    %87 = arith.addf %82, %86 : vector<96x256xf32>
    %c38 = arith.constant 38 : index
    %c0_86 = arith.constant 0 : index
    %88 = vector.load %arg12[%c38, %c0_86] : memref<336x256xbf16, #tpu.memory_space<vmem>>, vector<96x256xbf16>
    %c2_87 = arith.constant 2 : index
    %c2_88 = arith.constant 2 : index
    %c0_89 = arith.constant 0 : index
    %c0_90 = arith.constant 0 : index
    %89 = vector.load %arg6[%c2_87, %c2_88, %c0_89, %c0_90] : memref<3x3x256x256xbf16, #tpu.memory_space<vmem>>, vector<1x1x256x256xbf16>
    %90 = vector.shape_cast %89 : vector<1x1x256x256xbf16> to vector<256x256xbf16>
    %cst_91 = arith.constant dense<0.000000e+00> : vector<96x256xf32>
    %91 = tpu.matmul %88, %90, %cst_91 {dimension_numbers = #tpu.dot_dimension_numbers<[1], [0], [0], [1], [0, 0, 1, 1], [], []>} : vector<96x256xbf16>, vector<256x256xbf16>, vector<96x256xf32> -> vector<96x256xf32>
    %92 = arith.addf %87, %91 : vector<96x256xf32>
    %93 = vector.broadcast %45 : vector<1x256xf32> to vector<96x256xf32>
    %94 = arith.mulf %92, %93 : vector<96x256xf32>
    %95 = vector.broadcast %46 : vector<1x256xf32> to vector<96x256xf32>
    %96 = arith.addf %94, %95 : vector<96x256xf32>
    %cst_92 = arith.constant 0.000000e+00 : f32
    %97 = vector.broadcast %cst_92 : f32 to vector<96x256xf32>
    %98 = arith.maximumf %96, %97 : vector<96x256xf32>
    %99 = arith.truncf %98 : vector<96x256xf32> to vector<96x256xbf16>
    %cst_93 = arith.constant dense<0.000000e+00> : vector<96x128xf32>
    %100 = tpu.matmul %99, %47, %cst_93 {dimension_numbers = #tpu.dot_dimension_numbers<[1], [0], [0], [1], [0, 0, 1, 1], [], []>} : vector<96x256xbf16>, vector<256x128xbf16>, vector<96x128xf32> -> vector<96x128xf32>
    %101 = vector.broadcast %48 : vector<1x128xf32> to vector<96x128xf32>
    %102 = arith.addf %100, %101 : vector<96x128xf32>
    %c0_94 = arith.constant 0 : index
    %c0_95 = arith.constant 0 : index
    %c0_96 = arith.constant 0 : index
    %103 = vector.load %arg11[%c0_94, %c0_95, %c0_96] : memref<1x288x128xf32, #tpu.memory_space<vmem>>, vector<1x96x128xf32>
    %104 = vector.shape_cast %103 : vector<1x96x128xf32> to vector<96x128xf32>
    %105 = vector.shape_cast %102 : vector<96x128xf32> to vector<1x96x128xf32>
    tpu.vector_store %arg11[%c0_94, %c0_95, %c0_96], %105 {strides = array<i32>} : memref<1x288x128xf32, #tpu.memory_space<vmem>>, vector<1x96x128xf32>,
    %c96 = arith.constant 96 : index
    %c0_97 = arith.constant 0 : index
    %106 = vector.load %arg12[%c96, %c0_97] : memref<336x256xbf16, #tpu.memory_space<vmem>>, vector<96x256xbf16>
    %c0_98 = arith.constant 0 : index
    %c0_99 = arith.constant 0 : index
    %c0_100 = arith.constant 0 : index
    %c0_101 = arith.constant 0 : index
    %107 = vector.load %arg6[%c0_98, %c0_99, %c0_100, %c0_101] : memref<3x3x256x256xbf16, #tpu.memory_space<vmem>>, vector<1x1x256x256xbf16>
    %108 = vector.shape_cast %107 : vector<1x1x256x256xbf16> to vector<256x256xbf16>
    %cst_102 = arith.constant dense<0.000000e+00> : vector<96x256xf32>
    %109 = tpu.matmul %106, %108, %cst_102 {dimension_numbers = #tpu.dot_dimension_numbers<[1], [0], [0], [1], [0, 0, 1, 1], [], []>} : vector<96x256xbf16>, vector<256x256xbf16>, vector<96x256xf32> -> vector<96x256xf32>
    %c97 = arith.constant 97 : index
    %c0_103 = arith.constant 0 : index
    %110 = vector.load %arg12[%c97, %c0_103] : memref<336x256xbf16, #tpu.memory_space<vmem>>, vector<96x256xbf16>
    %c0_104 = arith.constant 0 : index
    %c1_105 = arith.constant 1 : index
    %c0_106 = arith.constant 0 : index
    %c0_107 = arith.constant 0 : index
    %111 = vector.load %arg6[%c0_104, %c1_105, %c0_106, %c0_107] : memref<3x3x256x256xbf16, #tpu.memory_space<vmem>>, vector<1x1x256x256xbf16>
    %112 = vector.shape_cast %111 : vector<1x1x256x256xbf16> to vector<256x256xbf16>
    %cst_108 = arith.constant dense<0.000000e+00> : vector<96x256xf32>
    %113 = tpu.matmul %110, %112, %cst_108 {dimension_numbers = #tpu.dot_dimension_numbers<[1], [0], [0], [1], [0, 0, 1, 1], [], []>} : vector<96x256xbf16>, vector<256x256xbf16>, vector<96x256xf32> -> vector<96x256xf32>
    %114 = arith.addf %109, %113 : vector<96x256xf32>
    %c98 = arith.constant 98 : index
    %c0_109 = arith.constant 0 : index
    %115 = vector.load %arg12[%c98, %c0_109] : memref<336x256xbf16, #tpu.memory_space<vmem>>, vector<96x256xbf16>
    %c0_110 = arith.constant 0 : index
    %c2_111 = arith.constant 2 : index
    %c0_112 = arith.constant 0 : index
    %c0_113 = arith.constant 0 : index
    %116 = vector.load %arg6[%c0_110, %c2_111, %c0_112, %c0_113] : memref<3x3x256x256xbf16, #tpu.memory_space<vmem>>, vector<1x1x256x256xbf16>
    %117 = vector.shape_cast %116 : vector<1x1x256x256xbf16> to vector<256x256xbf16>
    %cst_114 = arith.constant dense<0.000000e+00> : vector<96x256xf32>
    %118 = tpu.matmul %115, %117, %cst_114 {dimension_numbers = #tpu.dot_dimension_numbers<[1], [0], [0], [1], [0, 0, 1, 1], [], []>} : vector<96x256xbf16>, vector<256x256xbf16>, vector<96x256xf32> -> vector<96x256xf32>
    %119 = arith.addf %114, %118 : vector<96x256xf32>
    %c114 = arith.constant 114 : index
    %c0_115 = arith.constant 0 : index
    %120 = vector.load %arg12[%c114, %c0_115] : memref<336x256xbf16, #tpu.memory_space<vmem>>, vector<96x256xbf16>
    %c1_116 = arith.constant 1 : index
    %c0_117 = arith.constant 0 : index
    %c0_118 = arith.constant 0 : index
    %c0_119 = arith.constant 0 : index
    %121 = vector.load %arg6[%c1_116, %c0_117, %c0_118, %c0_119] : memref<3x3x256x256xbf16, #tpu.memory_space<vmem>>, vector<1x1x256x256xbf16>
    %122 = vector.shape_cast %121 : vector<1x1x256x256xbf16> to vector<256x256xbf16>
    %cst_120 = arith.constant dense<0.000000e+00> : vector<96x256xf32>
    %123 = tpu.matmul %120, %122, %cst_120 {dimension_numbers = #tpu.dot_dimension_numbers<[1], [0], [0], [1], [0, 0, 1, 1], [], []>} : vector<96x256xbf16>, vector<256x256xbf16>, vector<96x256xf32> -> vector<96x256xf32>
    %124 = arith.addf %119, %123 : vector<96x256xf32>
    %c115 = arith.constant 115 : index
    %c0_121 = arith.constant 0 : index
    %125 = vector.load %arg12[%c115, %c0_121] : memref<336x256xbf16, #tpu.memory_space<vmem>>, vector<96x256xbf16>
    %c1_122 = arith.constant 1 : index
    %c1_123 = arith.constant 1 : index
    %c0_124 = arith.constant 0 : index
    %c0_125 = arith.constant 0 : index
    %126 = vector.load %arg6[%c1_122, %c1_123, %c0_124, %c0_125] : memref<3x3x256x256xbf16, #tpu.memory_space<vmem>>, vector<1x1x256x256xbf16>
    %127 = vector.shape_cast %126 : vector<1x1x256x256xbf16> to vector<256x256xbf16>
    %cst_126 = arith.constant dense<0.000000e+00> : vector<96x256xf32>
    %128 = tpu.matmul %125, %127, %cst_126 {dimension_numbers = #tpu.dot_dimension_numbers<[1], [0], [0], [1], [0, 0, 1, 1], [], []>} : vector<96x256xbf16>, vector<256x256xbf16>, vector<96x256xf32> -> vector<96x256xf32>
    %129 = arith.addf %124, %128 : vector<96x256xf32>
    %c116 = arith.constant 116 : index
    %c0_127 = arith.constant 0 : index
    %130 = vector.load %arg12[%c116, %c0_127] : memref<336x256xbf16, #tpu.memory_space<vmem>>, vector<96x256xbf16>
    %c1_128 = arith.constant 1 : index
    %c2_129 = arith.constant 2 : index
    %c0_130 = arith.constant 0 : index
    %c0_131 = arith.constant 0 : index
    %131 = vector.load %arg6[%c1_128, %c2_129, %c0_130, %c0_131] : memref<3x3x256x256xbf16, #tpu.memory_space<vmem>>, vector<1x1x256x256xbf16>
    %132 = vector.shape_cast %131 : vector<1x1x256x256xbf16> to vector<256x256xbf16>
    %cst_132 = arith.constant dense<0.000000e+00> : vector<96x256xf32>
    %133 = tpu.matmul %130, %132, %cst_132 {dimension_numbers = #tpu.dot_dimension_numbers<[1], [0], [0], [1], [0, 0, 1, 1], [], []>} : vector<96x256xbf16>, vector<256x256xbf16>, vector<96x256xf32> -> vector<96x256xf32>
    %134 = arith.addf %129, %133 : vector<96x256xf32>
    %c132 = arith.constant 132 : index
    %c0_133 = arith.constant 0 : index
    %135 = vector.load %arg12[%c132, %c0_133] : memref<336x256xbf16, #tpu.memory_space<vmem>>, vector<96x256xbf16>
    %c2_134 = arith.constant 2 : index
    %c0_135 = arith.constant 0 : index
    %c0_136 = arith.constant 0 : index
    %c0_137 = arith.constant 0 : index
    %136 = vector.load %arg6[%c2_134, %c0_135, %c0_136, %c0_137] : memref<3x3x256x256xbf16, #tpu.memory_space<vmem>>, vector<1x1x256x256xbf16>
    %137 = vector.shape_cast %136 : vector<1x1x256x256xbf16> to vector<256x256xbf16>
    %cst_138 = arith.constant dense<0.000000e+00> : vector<96x256xf32>
    %138 = tpu.matmul %135, %137, %cst_138 {dimension_numbers = #tpu.dot_dimension_numbers<[1], [0], [0], [1], [0, 0, 1, 1], [], []>} : vector<96x256xbf16>, vector<256x256xbf16>, vector<96x256xf32> -> vector<96x256xf32>
    %139 = arith.addf %134, %138 : vector<96x256xf32>
    %c133 = arith.constant 133 : index
    %c0_139 = arith.constant 0 : index
    %140 = vector.load %arg12[%c133, %c0_139] : memref<336x256xbf16, #tpu.memory_space<vmem>>, vector<96x256xbf16>
    %c2_140 = arith.constant 2 : index
    %c1_141 = arith.constant 1 : index
    %c0_142 = arith.constant 0 : index
    %c0_143 = arith.constant 0 : index
    %141 = vector.load %arg6[%c2_140, %c1_141, %c0_142, %c0_143] : memref<3x3x256x256xbf16, #tpu.memory_space<vmem>>, vector<1x1x256x256xbf16>
    %142 = vector.shape_cast %141 : vector<1x1x256x256xbf16> to vector<256x256xbf16>
    %cst_144 = arith.constant dense<0.000000e+00> : vector<96x256xf32>
    %143 = tpu.matmul %140, %142, %cst_144 {dimension_numbers = #tpu.dot_dimension_numbers<[1], [0], [0], [1], [0, 0, 1, 1], [], []>} : vector<96x256xbf16>, vector<256x256xbf16>, vector<96x256xf32> -> vector<96x256xf32>
    %144 = arith.addf %139, %143 : vector<96x256xf32>
    %c134 = arith.constant 134 : index
    %c0_145 = arith.constant 0 : index
    %145 = vector.load %arg12[%c134, %c0_145] : memref<336x256xbf16, #tpu.memory_space<vmem>>, vector<96x256xbf16>
    %c2_146 = arith.constant 2 : index
    %c2_147 = arith.constant 2 : index
    %c0_148 = arith.constant 0 : index
    %c0_149 = arith.constant 0 : index
    %146 = vector.load %arg6[%c2_146, %c2_147, %c0_148, %c0_149] : memref<3x3x256x256xbf16, #tpu.memory_space<vmem>>, vector<1x1x256x256xbf16>
    %147 = vector.shape_cast %146 : vector<1x1x256x256xbf16> to vector<256x256xbf16>
    %cst_150 = arith.constant dense<0.000000e+00> : vector<96x256xf32>
    %148 = tpu.matmul %145, %147, %cst_150 {dimension_numbers = #tpu.dot_dimension_numbers<[1], [0], [0], [1], [0, 0, 1, 1], [], []>} : vector<96x256xbf16>, vector<256x256xbf16>, vector<96x256xf32> -> vector<96x256xf32>
    %149 = arith.addf %144, %148 : vector<96x256xf32>
    %150 = vector.broadcast %45 : vector<1x256xf32> to vector<96x256xf32>
    %151 = arith.mulf %149, %150 : vector<96x256xf32>
    %152 = vector.broadcast %46 : vector<1x256xf32> to vector<96x256xf32>
    %153 = arith.addf %151, %152 : vector<96x256xf32>
    %cst_151 = arith.constant 0.000000e+00 : f32
    %154 = vector.broadcast %cst_151 : f32 to vector<96x256xf32>
    %155 = arith.maximumf %153, %154 : vector<96x256xf32>
    %156 = arith.truncf %155 : vector<96x256xf32> to vector<96x256xbf16>
    %cst_152 = arith.constant dense<0.000000e+00> : vector<96x128xf32>
    %157 = tpu.matmul %156, %47, %cst_152 {dimension_numbers = #tpu.dot_dimension_numbers<[1], [0], [0], [1], [0, 0, 1, 1], [], []>} : vector<96x256xbf16>, vector<256x128xbf16>, vector<96x128xf32> -> vector<96x128xf32>
    %158 = vector.broadcast %48 : vector<1x128xf32> to vector<96x128xf32>
    %159 = arith.addf %157, %158 : vector<96x128xf32>
    %c0_153 = arith.constant 0 : index
    %c96_154 = arith.constant 96 : index
    %c0_155 = arith.constant 0 : index
    %160 = vector.load %arg11[%c0_153, %c96_154, %c0_155] : memref<1x288x128xf32, #tpu.memory_space<vmem>>, vector<1x96x128xf32>
    %161 = vector.shape_cast %160 : vector<1x96x128xf32> to vector<96x128xf32>
    %162 = vector.shape_cast %159 : vector<96x128xf32> to vector<1x96x128xf32>
    tpu.vector_store %arg11[%c0_153, %c96_154, %c0_155], %162 {strides = array<i32>} : memref<1x288x128xf32, #tpu.memory_space<vmem>>, vector<1x96x128xf32>,
    %c192 = arith.constant 192 : index
    %c0_156 = arith.constant 0 : index
    %163 = vector.load %arg12[%c192, %c0_156] : memref<336x256xbf16, #tpu.memory_space<vmem>>, vector<96x256xbf16>
    %c0_157 = arith.constant 0 : index
    %c0_158 = arith.constant 0 : index
    %c0_159 = arith.constant 0 : index
    %c0_160 = arith.constant 0 : index
    %164 = vector.load %arg6[%c0_157, %c0_158, %c0_159, %c0_160] : memref<3x3x256x256xbf16, #tpu.memory_space<vmem>>, vector<1x1x256x256xbf16>
    %165 = vector.shape_cast %164 : vector<1x1x256x256xbf16> to vector<256x256xbf16>
    %cst_161 = arith.constant dense<0.000000e+00> : vector<96x256xf32>
    %166 = tpu.matmul %163, %165, %cst_161 {dimension_numbers = #tpu.dot_dimension_numbers<[1], [0], [0], [1], [0, 0, 1, 1], [], []>} : vector<96x256xbf16>, vector<256x256xbf16>, vector<96x256xf32> -> vector<96x256xf32>
    %c193 = arith.constant 193 : index
    %c0_162 = arith.constant 0 : index
    %167 = vector.load %arg12[%c193, %c0_162] : memref<336x256xbf16, #tpu.memory_space<vmem>>, vector<96x256xbf16>
    %c0_163 = arith.constant 0 : index
    %c1_164 = arith.constant 1 : index
    %c0_165 = arith.constant 0 : index
    %c0_166 = arith.constant 0 : index
    %168 = vector.load %arg6[%c0_163, %c1_164, %c0_165, %c0_166] : memref<3x3x256x256xbf16, #tpu.memory_space<vmem>>, vector<1x1x256x256xbf16>
    %169 = vector.shape_cast %168 : vector<1x1x256x256xbf16> to vector<256x256xbf16>
    %cst_167 = arith.constant dense<0.000000e+00> : vector<96x256xf32>
    %170 = tpu.matmul %167, %169, %cst_167 {dimension_numbers = #tpu.dot_dimension_numbers<[1], [0], [0], [1], [0, 0, 1, 1], [], []>} : vector<96x256xbf16>, vector<256x256xbf16>, vector<96x256xf32> -> vector<96x256xf32>
    %171 = arith.addf %166, %170 : vector<96x256xf32>
    %c194 = arith.constant 194 : index
    %c0_168 = arith.constant 0 : index
    %172 = vector.load %arg12[%c194, %c0_168] : memref<336x256xbf16, #tpu.memory_space<vmem>>, vector<96x256xbf16>
    %c0_169 = arith.constant 0 : index
    %c2_170 = arith.constant 2 : index
    %c0_171 = arith.constant 0 : index
    %c0_172 = arith.constant 0 : index
    %173 = vector.load %arg6[%c0_169, %c2_170, %c0_171, %c0_172] : memref<3x3x256x256xbf16, #tpu.memory_space<vmem>>, vector<1x1x256x256xbf16>
    %174 = vector.shape_cast %173 : vector<1x1x256x256xbf16> to vector<256x256xbf16>
    %cst_173 = arith.constant dense<0.000000e+00> : vector<96x256xf32>
    %175 = tpu.matmul %172, %174, %cst_173 {dimension_numbers = #tpu.dot_dimension_numbers<[1], [0], [0], [1], [0, 0, 1, 1], [], []>} : vector<96x256xbf16>, vector<256x256xbf16>, vector<96x256xf32> -> vector<96x256xf32>
    %176 = arith.addf %171, %175 : vector<96x256xf32>
    %c210 = arith.constant 210 : index
    %c0_174 = arith.constant 0 : index
    %177 = vector.load %arg12[%c210, %c0_174] : memref<336x256xbf16, #tpu.memory_space<vmem>>, vector<96x256xbf16>
    %c1_175 = arith.constant 1 : index
    %c0_176 = arith.constant 0 : index
    %c0_177 = arith.constant 0 : index
    %c0_178 = arith.constant 0 : index
    %178 = vector.load %arg6[%c1_175, %c0_176, %c0_177, %c0_178] : memref<3x3x256x256xbf16, #tpu.memory_space<vmem>>, vector<1x1x256x256xbf16>
    %179 = vector.shape_cast %178 : vector<1x1x256x256xbf16> to vector<256x256xbf16>
    %cst_179 = arith.constant dense<0.000000e+00> : vector<96x256xf32>
    %180 = tpu.matmul %177, %179, %cst_179 {dimension_numbers = #tpu.dot_dimension_numbers<[1], [0], [0], [1], [0, 0, 1, 1], [], []>} : vector<96x256xbf16>, vector<256x256xbf16>, vector<96x256xf32> -> vector<96x256xf32>
    %181 = arith.addf %176, %180 : vector<96x256xf32>
    %c211 = arith.constant 211 : index
    %c0_180 = arith.constant 0 : index
    %182 = vector.load %arg12[%c211, %c0_180] : memref<336x256xbf16, #tpu.memory_space<vmem>>, vector<96x256xbf16>
    %c1_181 = arith.constant 1 : index
    %c1_182 = arith.constant 1 : index
    %c0_183 = arith.constant 0 : index
    %c0_184 = arith.constant 0 : index
    %183 = vector.load %arg6[%c1_181, %c1_182, %c0_183, %c0_184] : memref<3x3x256x256xbf16, #tpu.memory_space<vmem>>, vector<1x1x256x256xbf16>
    %184 = vector.shape_cast %183 : vector<1x1x256x256xbf16> to vector<256x256xbf16>
    %cst_185 = arith.constant dense<0.000000e+00> : vector<96x256xf32>
    %185 = tpu.matmul %182, %184, %cst_185 {dimension_numbers = #tpu.dot_dimension_numbers<[1], [0], [0], [1], [0, 0, 1, 1], [], []>} : vector<96x256xbf16>, vector<256x256xbf16>, vector<96x256xf32> -> vector<96x256xf32>
    %186 = arith.addf %181, %185 : vector<96x256xf32>
    %c212 = arith.constant 212 : index
    %c0_186 = arith.constant 0 : index
    %187 = vector.load %arg12[%c212, %c0_186] : memref<336x256xbf16, #tpu.memory_space<vmem>>, vector<96x256xbf16>
    %c1_187 = arith.constant 1 : index
    %c2_188 = arith.constant 2 : index
    %c0_189 = arith.constant 0 : index
    %c0_190 = arith.constant 0 : index
    %188 = vector.load %arg6[%c1_187, %c2_188, %c0_189, %c0_190] : memref<3x3x256x256xbf16, #tpu.memory_space<vmem>>, vector<1x1x256x256xbf16>
    %189 = vector.shape_cast %188 : vector<1x1x256x256xbf16> to vector<256x256xbf16>
    %cst_191 = arith.constant dense<0.000000e+00> : vector<96x256xf32>
    %190 = tpu.matmul %187, %189, %cst_191 {dimension_numbers = #tpu.dot_dimension_numbers<[1], [0], [0], [1], [0, 0, 1, 1], [], []>} : vector<96x256xbf16>, vector<256x256xbf16>, vector<96x256xf32> -> vector<96x256xf32>
    %191 = arith.addf %186, %190 : vector<96x256xf32>
    %c228 = arith.constant 228 : index
    %c0_192 = arith.constant 0 : index
    %192 = vector.load %arg12[%c228, %c0_192] : memref<336x256xbf16, #tpu.memory_space<vmem>>, vector<96x256xbf16>
    %c2_193 = arith.constant 2 : index
    %c0_194 = arith.constant 0 : index
    %c0_195 = arith.constant 0 : index
    %c0_196 = arith.constant 0 : index
    %193 = vector.load %arg6[%c2_193, %c0_194, %c0_195, %c0_196] : memref<3x3x256x256xbf16, #tpu.memory_space<vmem>>, vector<1x1x256x256xbf16>
    %194 = vector.shape_cast %193 : vector<1x1x256x256xbf16> to vector<256x256xbf16>
    %cst_197 = arith.constant dense<0.000000e+00> : vector<96x256xf32>
    %195 = tpu.matmul %192, %194, %cst_197 {dimension_numbers = #tpu.dot_dimension_numbers<[1], [0], [0], [1], [0, 0, 1, 1], [], []>} : vector<96x256xbf16>, vector<256x256xbf16>, vector<96x256xf32> -> vector<96x256xf32>
    %196 = arith.addf %191, %195 : vector<96x256xf32>
    %c229 = arith.constant 229 : index
    %c0_198 = arith.constant 0 : index
    %197 = vector.load %arg12[%c229, %c0_198] : memref<336x256xbf16, #tpu.memory_space<vmem>>, vector<96x256xbf16>
    %c2_199 = arith.constant 2 : index
    %c1_200 = arith.constant 1 : index
    %c0_201 = arith.constant 0 : index
    %c0_202 = arith.constant 0 : index
    %198 = vector.load %arg6[%c2_199, %c1_200, %c0_201, %c0_202] : memref<3x3x256x256xbf16, #tpu.memory_space<vmem>>, vector<1x1x256x256xbf16>
    %199 = vector.shape_cast %198 : vector<1x1x256x256xbf16> to vector<256x256xbf16>
    %cst_203 = arith.constant dense<0.000000e+00> : vector<96x256xf32>
    %200 = tpu.matmul %197, %199, %cst_203 {dimension_numbers = #tpu.dot_dimension_numbers<[1], [0], [0], [1], [0, 0, 1, 1], [], []>} : vector<96x256xbf16>, vector<256x256xbf16>, vector<96x256xf32> -> vector<96x256xf32>
    %201 = arith.addf %196, %200 : vector<96x256xf32>
    %c230 = arith.constant 230 : index
    %c0_204 = arith.constant 0 : index
    %202 = vector.load %arg12[%c230, %c0_204] : memref<336x256xbf16, #tpu.memory_space<vmem>>, vector<96x256xbf16>
    %c2_205 = arith.constant 2 : index
    %c2_206 = arith.constant 2 : index
    %c0_207 = arith.constant 0 : index
    %c0_208 = arith.constant 0 : index
    %203 = vector.load %arg6[%c2_205, %c2_206, %c0_207, %c0_208] : memref<3x3x256x256xbf16, #tpu.memory_space<vmem>>, vector<1x1x256x256xbf16>
    %204 = vector.shape_cast %203 : vector<1x1x256x256xbf16> to vector<256x256xbf16>
    %cst_209 = arith.constant dense<0.000000e+00> : vector<96x256xf32>
    %205 = tpu.matmul %202, %204, %cst_209 {dimension_numbers = #tpu.dot_dimension_numbers<[1], [0], [0], [1], [0, 0, 1, 1], [], []>} : vector<96x256xbf16>, vector<256x256xbf16>, vector<96x256xf32> -> vector<96x256xf32>
    %206 = arith.addf %201, %205 : vector<96x256xf32>
    %207 = vector.broadcast %45 : vector<1x256xf32> to vector<96x256xf32>
    %208 = arith.mulf %206, %207 : vector<96x256xf32>
    %209 = vector.broadcast %46 : vector<1x256xf32> to vector<96x256xf32>
    %210 = arith.addf %208, %209 : vector<96x256xf32>
    %cst_210 = arith.constant 0.000000e+00 : f32
    %211 = vector.broadcast %cst_210 : f32 to vector<96x256xf32>
    %212 = arith.maximumf %210, %211 : vector<96x256xf32>
    %213 = arith.truncf %212 : vector<96x256xf32> to vector<96x256xbf16>
    %cst_211 = arith.constant dense<0.000000e+00> : vector<96x128xf32>
    %214 = tpu.matmul %213, %47, %cst_211 {dimension_numbers = #tpu.dot_dimension_numbers<[1], [0], [0], [1], [0, 0, 1, 1], [], []>} : vector<96x256xbf16>, vector<256x128xbf16>, vector<96x128xf32> -> vector<96x128xf32>
    %215 = vector.broadcast %48 : vector<1x128xf32> to vector<96x128xf32>
    %216 = arith.addf %214, %215 : vector<96x128xf32>
    %c0_212 = arith.constant 0 : index
    %c192_213 = arith.constant 192 : index
    %c0_214 = arith.constant 0 : index
    %217 = vector.load %arg11[%c0_212, %c192_213, %c0_214] : memref<1x288x128xf32, #tpu.memory_space<vmem>>, vector<1x96x128xf32>
    %218 = vector.shape_cast %217 : vector<1x96x128xf32> to vector<96x128xf32>
    %219 = vector.shape_cast %216 : vector<96x128xf32> to vector<1x96x128xf32>
    tpu.vector_store %arg11[%c0_212, %c192_213, %c0_214], %219 {strides = array<i32>} : memref<1x288x128xf32, #tpu.memory_space<vmem>>, vector<1x96x128xf32>,
    return
  }
  func.func @transform_0(%arg0: i32) -> (i32, i32, i32) {
    %c0_i32 = arith.constant 0 : i32
    %c0_i32_0 = arith.constant 0 : i32
    %c0_i32_1 = arith.constant 0 : i32
    return %arg0, %c0_i32, %c0_i32_0 : i32, i32, i32
  }
  func.func @transform_1(%arg0: i32) -> (i32, i32) {
    %c0_i32 = arith.constant 0 : i32
    %c0_i32_0 = arith.constant 0 : i32
    %c0_i32_1 = arith.constant 0 : i32
    return %c0_i32, %c0_i32_0 : i32, i32
  }
  func.func @transform_2(%arg0: i32) -> (i32, i32) {
    %c0_i32 = arith.constant 0 : i32
    %c0_i32_0 = arith.constant 0 : i32
    %c0_i32_1 = arith.constant 0 : i32
    return %c0_i32, %c0_i32_0 : i32, i32
  }
  func.func @transform_3(%arg0: i32) -> (i32, i32) {
    %c0_i32 = arith.constant 0 : i32
    %c0_i32_0 = arith.constant 0 : i32
    %c0_i32_1 = arith.constant 0 : i32
    return %c0_i32, %c0_i32_0 : i32, i32
  }
  func.func @transform_4(%arg0: i32) -> (i32, i32) {
    %c0_i32 = arith.constant 0 : i32
    %c0_i32_0 = arith.constant 0 : i32
    %c0_i32_1 = arith.constant 0 : i32
    return %c0_i32, %c0_i32_0 : i32, i32
  }
  func.func @transform_5(%arg0: i32) -> (i32, i32, i32, i32) {
    %c0_i32 = arith.constant 0 : i32
    %c0_i32_0 = arith.constant 0 : i32
    %c0_i32_1 = arith.constant 0 : i32
    %c0_i32_2 = arith.constant 0 : i32
    %c0_i32_3 = arith.constant 0 : i32
    return %c0_i32, %c0_i32_0, %c0_i32_1, %c0_i32_2 : i32, i32, i32, i32
  }
  func.func @transform_6(%arg0: i32) -> (i32, i32) {
    %c0_i32 = arith.constant 0 : i32
    %c0_i32_0 = arith.constant 0 : i32
    %c0_i32_1 = arith.constant 0 : i32
    return %c0_i32, %c0_i32_0 : i32, i32
  }
  func.func @transform_7(%arg0: i32) -> (i32, i32) {
    %c0_i32 = arith.constant 0 : i32
    %c0_i32_0 = arith.constant 0 : i32
    %c0_i32_1 = arith.constant 0 : i32
    return %c0_i32, %c0_i32_0 : i32, i32
  }
  func.func @transform_8(%arg0: i32) -> (i32, i32) {
    %c0_i32 = arith.constant 0 : i32
    %c0_i32_0 = arith.constant 0 : i32
    %c0_i32_1 = arith.constant 0 : i32
    return %c0_i32, %c0_i32_0 : i32, i32
  }
  func.func @transform_9(%arg0: i32) -> (i32, i32) {
    %c0_i32 = arith.constant 0 : i32
    %c0_i32_0 = arith.constant 0 : i32
    %c0_i32_1 = arith.constant 0 : i32
    return %c0_i32, %c0_i32_0 : i32, i32
  }
  func.func @transform_10(%arg0: i32) -> (i32, i32, i32) {
    %c0_i32 = arith.constant 0 : i32
    %c0_i32_0 = arith.constant 0 : i32
    %c0_i32_1 = arith.constant 0 : i32
    return %arg0, %c0_i32, %c0_i32_0 : i32, i32, i32
  }
}

</mosaic_0001>

<llo_original>
// kernel: detection_head_forward.1
$region0: #{detection_head_forward.1}
  #allocation0 [shape = 'u32[]', space=smem, size = 0x4, offset = 0x4, fixed_abs, tag = 'smem constant byte address 0x4 - core index']
  #allocation1 [shape = 'u32[144,128]{1,0:T(1,128)}', space=vmem, size = 0x12000, scoped, tag = 'internal scratch']
  #allocation2 [shape = 'bf16[336,256]{1,0:T(16,128)(2,1)}', space=vmem, size = 0x2a000, scoped, tag = 'scratch operand']
  %s0 = inlined_call_operand.vmem [shape: bf16[2,336,36], index: 0, kind: input, shape index: {}]
  %s1 = inlined_call_operand.vmem [shape: f32[336,1], index: 1, kind: input, shape index: {}]
  %s2 = inlined_call_operand.vmem [shape: bf16[36,256], index: 2, kind: input, shape index: {}]
  %s3 = inlined_call_operand.vmem [shape: f32[1,256], index: 3, kind: input, shape index: {}]
  %s4 = inlined_call_operand.vmem [shape: f32[1,256], index: 4, kind: input, shape index: {}]
  %s5 = inlined_call_operand.vmem [shape: bf16[3,3,256,256], index: 5, kind: input, shape index: {}]
  %s6 = inlined_call_operand.vmem [shape: f32[1,256], index: 6, kind: input, shape index: {}]
  %s7 = inlined_call_operand.vmem [shape: f32[1,256], index: 7, kind: input, shape index: {}]
  %s8 = inlined_call_operand.vmem [shape: bf16[256,128], index: 8, kind: input, shape index: {}]
  %s9 = inlined_call_operand.vmem [shape: f32[1,128], index: 9, kind: input, shape index: {}]
  %s10 = inlined_call_operand.vmem [shape: f32[2,288,128], index: 10, kind: output, shape index: {}]
  %s11 = sld [smem:[#allocation0]]
  $region73: #{detection_head_forward.1} parent=0
    _
  %s13 = ssub.s32 1, %s11
  %s14 = scalar_select 0, %s13, %s11
  loop: start=0, step=1, limit=4
  $region2: #{detection_head_forward.1} parent=0 // loop_pre_header
    _
  $region3: #{detection_head_forward.1} parent=0 // loop_header
    %s16 = sphi 0, %s20
    %p17 = scmp.ge.s32.totalorder %s16, 4
    %s26 = sphi 0, %s28
    %s29 = sphi 0, %s26
    %s30 = sphi 0, %s29
    %s46 = sphi 0, %s30
    %s50 = sphi 0, %s50
    %s52 = sphi 0, %s50
    %s53 = sphi 0, %s52
    %s67 = sphi 0, %s53
    %s71 = sphi 0, %s71
    %s73 = sphi 0, %s71
    %s74 = sphi 0, %s73
    %s88 = sphi 0, %s74
    %s92 = sphi 0, %s92
    %s94 = sphi 0, %s92
    %s95 = sphi 0, %s94
    %s109 = sphi 0, %s95
    %s113 = sphi 0, %s113
    %s115 = sphi 0, %s113
    %s116 = sphi 0, %s115
    %s130 = sphi 0, %s116
    %s134 = sphi 0, %s134
    %s136 = sphi 0, %s134
    %s137 = sphi 0, %s136
    %s151 = sphi 0, %s137
    %s155 = sphi 0, %s155
    %s157 = sphi 0, %s155
    %s158 = sphi 0, %s157
    %s172 = sphi 0, %s158
    %s176 = sphi 0, %s176
    %s178 = sphi 0, %s176
    %s179 = sphi 0, %s178
    %s193 = sphi 0, %s179
    %s197 = sphi 0, %s197
    %s199 = sphi 0, %s197
    %s200 = sphi 0, %s199
    %s214 = sphi 0, %s200
    %s218 = sphi 0, %s218
    %s220 = sphi 0, %s218
    %s221 = sphi 0, %s220
    %s235 = sphi 0, %s221
    %s241 = sphi 0, %s243
    %s244 = sphi 0, %s241
    %s245 = sphi 0, %s244
    %s261 = sphi 0, %s245
  $region4: #{detection_head_forward.1} parent=0 // loop_header_branch
    %19 = sbr.rel (%p17) target = $region8
  $region5: #{detection_head_forward.1} parent=0 // loop_body
    %s21 = ssub.s32 %s16, 1
    %s22 = ssub.s32 %s16, 2
    %s23 = sadd.s32 %s16, 1
    %s24 = ssub.s32 %s16, %s23
    %p25 = scmp.eq.s32.totalorder %s24, 0
    %s27 = sadd.s32 %s26, 1
    %s28 = scalar_select %p25, %s26, %s27
    %p31 = pneg %p25
    %p32 = scmp.eq.s32.totalorder %s16, 1
    %p33 = por %p31, %p32
    %p34 = scmp.ne.s32.totalorder %s26, %s29
    %p35 = scmp.eq.s32.totalorder %s16, 0
    %p36 = por %p34, %p35
    %p37 = scmp.ne.s32.totalorder %s26, %s29
    %p38 = scmp.eq.s32.totalorder %s21, 1
    %p39 = por %p37, %p38
    %p40 = scmp.ne.s32.totalorder %s29, %s30
    %p41 = scmp.eq.s32.totalorder %s21, 0
    %p42 = por %p40, %p41
    %p43 = scmp.ne.s32.totalorder %s29, %s30
    %p44 = scmp.eq.s32.totalorder %s22, 1
    %p45 = por %p43, %p44
    %p47 = scmp.ne.s32.totalorder %s30, %s46
    %p48 = scmp.eq.s32.totalorder %s22, 0
    %p49 = por %p47, %p48
    %s51 = sadd.s32 %s50, 1
    %p54 = scmp.eq.s32.totalorder %s16, 1
    %p55 = scmp.ne.s32.totalorder %s50, %s52
    %p56 = scmp.eq.s32.totalorder %s16, 0
    %p57 = por %p55, %p56
    %p58 = scmp.ne.s32.totalorder %s50, %s52
    %p59 = scmp.eq.s32.totalorder %s21, 1
    %p60 = por %p58, %p59
    %p61 = scmp.ne.s32.totalorder %s52, %s53
    %p62 = scmp.eq.s32.totalorder %s21, 0
    %p63 = por %p61, %p62
    %p64 = scmp.ne.s32.totalorder %s52, %s53
    %p65 = scmp.eq.s32.totalorder %s22, 1
    %p66 = por %p64, %p65
    %p68 = scmp.ne.s32.totalorder %s53, %s67
    %p69 = scmp.eq.s32.totalorder %s22, 0
    %p70 = por %p68, %p69
    %s72 = sadd.s32 %s71, 1
    %p75 = scmp.eq.s32.totalorder %s16, 1
    %p76 = scmp.ne.s32.totalorder %s71, %s73
    %p77 = scmp.eq.s32.totalorder %s16, 0
    %p78 = por %p76, %p77
    %p79 = scmp.ne.s32.totalorder %s71, %s73
    %p80 = scmp.eq.s32.totalorder %s21, 1
    %p81 = por %p79, %p80
    %p82 = scmp.ne.s32.totalorder %s73, %s74
    %p83 = scmp.eq.s32.totalorder %s21, 0
    %p84 = por %p82, %p83
    %p85 = scmp.ne.s32.totalorder %s73, %s74
    %p86 = scmp.eq.s32.totalorder %s22, 1
    %p87 = por %p85, %p86
    %p89 = scmp.ne.s32.totalorder %s74, %s88
    %p90 = scmp.eq.s32.totalorder %s22, 0
    %p91 = por %p89, %p90
    %s93 = sadd.s32 %s92, 1
    %p96 = scmp.eq.s32.totalorder %s16, 1
    %p97 = scmp.ne.s32.totalorder %s92, %s94
    %p98 = scmp.eq.s32.totalorder %s16, 0
    %p99 = por %p97, %p98
    %p100 = scmp.ne.s32.totalorder %s92, %s94
    %p101 = scmp.eq.s32.totalorder %s21, 1
    %p102 = por %p100, %p101
    %p103 = scmp.ne.s32.totalorder %s94, %s95
    %p104 = scmp.eq.s32.totalorder %s21, 0
    %p105 = por %p103, %p104
    %p106 = scmp.ne.s32.totalorder %s94, %s95
    %p107 = scmp.eq.s32.totalorder %s22, 1
    %p108 = por %p106, %p107
    %p110 = scmp.ne.s32.totalorder %s95, %s109
    %p111 = scmp.eq.s32.totalorder %s22, 0
    %p112 = por %p110, %p111
    %s114 = sadd.s32 %s113, 1
    %p117 = scmp.eq.s32.totalorder %s16, 1
    %p118 = scmp.ne.s32.totalorder %s113, %s115
    %p119 = scmp.eq.s32.totalorder %s16, 0
    %p120 = por %p118, %p119
    %p121 = scmp.ne.s32.totalorder %s113, %s115
    %p122 = scmp.eq.s32.totalorder %s21, 1
    %p123 = por %p121, %p122
    %p124 = scmp.ne.s32.totalorder %s115, %s116
    %p125 = scmp.eq.s32.totalorder %s21, 0
    %p126 = por %p124, %p125
    %p127 = scmp.ne.s32.totalorder %s115, %s116
    %p128 = scmp.eq.s32.totalorder %s22, 1
    %p129 = por %p127, %p128
    %p131 = scmp.ne.s32.totalorder %s116, %s130
    %p132 = scmp.eq.s32.totalorder %s22, 0
    %p133 = por %p131, %p132
    %s135 = sadd.s32 %s134, 1
    %p138 = scmp.eq.s32.totalorder %s16, 1
    %p139 = scmp.ne.s32.totalorder %s134, %s136
    %p140 = scmp.eq.s32.totalorder %s16, 0
    %p141 = por %p139, %p140
    %p142 = scmp.ne.s32.totalorder %s134, %s136
    %p143 = scmp.eq.s32.totalorder %s21, 1
    %p144 = por %p142, %p143
    %p145 = scmp.ne.s32.totalorder %s136, %s137
    %p146 = scmp.eq.s32.totalorder %s21, 0
    %p147 = por %p145, %p146
    %p148 = scmp.ne.s32.totalorder %s136, %s137
    %p149 = scmp.eq.s32.totalorder %s22, 1
    %p150 = por %p148, %p149
    %p152 = scmp.ne.s32.totalorder %s137, %s151
    %p153 = scmp.eq.s32.totalorder %s22, 0
    %p154 = por %p152, %p153
    %s156 = sadd.s32 %s155, 1
    %p159 = scmp.eq.s32.totalorder %s16, 1
    %p160 = scmp.ne.s32.totalorder %s155, %s157
    %p161 = scmp.eq.s32.totalorder %s16, 0
    %p162 = por %p160, %p161
    %p163 = scmp.ne.s32.totalorder %s155, %s157
    %p164 = scmp.eq.s32.totalorder %s21, 1
    %p165 = por %p163, %p164
    %p166 = scmp.ne.s32.totalorder %s157, %s158
    %p167 = scmp.eq.s32.totalorder %s21, 0
    %p168 = por %p166, %p167
    %p169 = scmp.ne.s32.totalorder %s157, %s158
    %p170 = scmp.eq.s32.totalorder %s22, 1
    %p171 = por %p169, %p170
    %p173 = scmp.ne.s32.totalorder %s158, %s172
    %p174 = scmp.eq.s32.totalorder %s22, 0
    %p175 = por %p173, %p174
    %s177 = sadd.s32 %s176, 1
    %p180 = scmp.eq.s32.totalorder %s16, 1
    %p181 = scmp.ne.s32.totalorder %s176, %s178
    %p182 = scmp.eq.s32.totalorder %s16, 0
    %p183 = por %p181, %p182
    %p184 = scmp.ne.s32.totalorder %s176, %s178
    %p185 = scmp.eq.s32.totalorder %s21, 1
    %p186 = por %p184, %p185
    %p187 = scmp.ne.s32.totalorder %s178, %s179
    %p188 = scmp.eq.s32.totalorder %s21, 0
    %p189 = por %p187, %p188
    %p190 = scmp.ne.s32.totalorder %s178, %s179
    %p191 = scmp.eq.s32.totalorder %s22, 1
    %p192 = por %p190, %p191
    %p194 = scmp.ne.s32.totalorder %s179, %s193
    %p195 = scmp.eq.s32.totalorder %s22, 0
    %p196 = por %p194, %p195
    %s198 = sadd.s32 %s197, 1
    %p201 = scmp.eq.s32.totalorder %s16, 1
    %p202 = scmp.ne.s32.totalorder %s197, %s199
    %p203 = scmp.eq.s32.totalorder %s16, 0
    %p204 = por %p202, %p203
    %p205 = scmp.ne.s32.totalorder %s197, %s199
    %p206 = scmp.eq.s32.totalorder %s21, 1
    %p207 = por %p205, %p206
    %p208 = scmp.ne.s32.totalorder %s199, %s200
    %p209 = scmp.eq.s32.totalorder %s21, 0
    %p210 = por %p208, %p209
    %p211 = scmp.ne.s32.totalorder %s199, %s200
    %p212 = scmp.eq.s32.totalorder %s22, 1
    %p213 = por %p211, %p212
    %p215 = scmp.ne.s32.totalorder %s200, %s214
    %p216 = scmp.eq.s32.totalorder %s22, 0
    %p217 = por %p215, %p216
    %s219 = sadd.s32 %s218, 1
    %p222 = scmp.eq.s32.totalorder %s16, 1
    %p223 = scmp.ne.s32.totalorder %s218, %s220
    %p224 = scmp.eq.s32.totalorder %s16, 0
    %p225 = por %p223, %p224
    %p226 = scmp.ne.s32.totalorder %s218, %s220
    %p227 = scmp.eq.s32.totalorder %s21, 1
    %p228 = por %p226, %p227
    %p229 = scmp.ne.s32.totalorder %s220, %s221
    %p230 = scmp.eq.s32.totalorder %s21, 0
    %p231 = por %p229, %p230
    %p232 = scmp.ne.s32.totalorder %s220, %s221
    %p233 = scmp.eq.s32.totalorder %s22, 1
    %p234 = por %p232, %p233
    %p236 = scmp.ne.s32.totalorder %s221, %s235
    %p237 = scmp.eq.s32.totalorder %s22, 0
    %p238 = por %p236, %p237
    %s239 = ssub.s32 %s16, %s23
    %p240 = scmp.eq.s32.totalorder %s239, 0
    %s242 = sadd.s32 %s241, 1
    %s243 = scalar_select %p240, %s241, %s242
    %p246 = pneg %p240
    %p247 = scmp.eq.s32.totalorder %s16, 1
    %p248 = por %p246, %p247
    %p249 = scmp.ne.s32.totalorder %s241, %s244
    %p250 = scmp.eq.s32.totalorder %s16, 0
    %p251 = por %p249, %p250
    %p252 = scmp.ne.s32.totalorder %s241, %s244
    %p253 = scmp.eq.s32.totalorder %s21, 1
    %p254 = por %p252, %p253
    %p255 = scmp.ne.s32.totalorder %s244, %s245
    %p256 = scmp.eq.s32.totalorder %s21, 0
    %p257 = por %p255, %p256
    %p258 = scmp.ne.s32.totalorder %s244, %s245
    %p259 = scmp.eq.s32.totalorder %s22, 1
    %p260 = por %p258, %p259
    %p262 = scmp.ne.s32.totalorder %s245, %s261
    %p263 = scmp.eq.s32.totalorder %s22, 0
    %p264 = por %p262, %p263
    %p265 = scmp.le.s32.totalorder 1, %s16
    %p266 = scmp.lt.s32.totalorder %s16, 3
    %p267 = pnand %p265, %p266
    %p268 = pneg %p267
    // Predicated region
    $region9: #{detection_head_forward.1} parent=5 // pred_check
      _
    $region10: #{detection_head_forward.1} parent=5 // pred_check_branch
      %270 = sbr.rel (%p267) target = $region12
    $region11: #{detection_head_forward.1} parent=5 // pred_region
      %s271 = ssub.s32 %s16, 1
      // Predicated region
      $region13: #{detection_head_forward.1} parent=11 // pred_check
        %p272 = pneg %p63
      $region14: #{detection_head_forward.1} parent=11 // pred_check_branch
        %274 = sbr.rel (%p272) target = $region16
      $region15: #{detection_head_forward.1} parent=11 // pred_region
        _
      $region16: #{detection_head_forward.1} parent=11 // pred_fallthru
        _
      // Predicated region
      $region17: #{detection_head_forward.1} parent=11 // pred_check
        %p275 = pneg %p84
      $region18: #{detection_head_forward.1} parent=11 // pred_check_branch
        %277 = sbr.rel (%p275) target = $region20
      $region19: #{detection_head_forward.1} parent=11 // pred_region
        _
      $region20: #{detection_head_forward.1} parent=11 // pred_fallthru
        _
      // Predicated region
      $region21: #{detection_head_forward.1} parent=11 // pred_check
        %p278 = pneg %p105
      $region22: #{detection_head_forward.1} parent=11 // pred_check_branch
        %280 = sbr.rel (%p278) target = $region24
      $region23: #{detection_head_forward.1} parent=11 // pred_region
        _
      $region24: #{detection_head_forward.1} parent=11 // pred_fallthru
        _
      // Predicated region
      $region25: #{detection_head_forward.1} parent=11 // pred_check
        %p281 = pneg %p126
      $region26: #{detection_head_forward.1} parent=11 // pred_check_branch
        %283 = sbr.rel (%p281) target = $region28
      $region27: #{detection_head_forward.1} parent=11 // pred_region
        _
      $region28: #{detection_head_forward.1} parent=11 // pred_fallthru
        _
      // Predicated region
      $region29: #{detection_head_forward.1} parent=11 // pred_check
        %p284 = pneg %p147
      $region30: #{detection_head_forward.1} parent=11 // pred_check_branch
        %286 = sbr.rel (%p284) target = $region32
      $region31: #{detection_head_forward.1} parent=11 // pred_region
        _
      $region32: #{detection_head_forward.1} parent=11 // pred_fallthru
        _
      // Predicated region
      $region33: #{detection_head_forward.1} parent=11 // pred_check
        %p287 = pneg %p168
      $region34: #{detection_head_forward.1} parent=11 // pred_check_branch
        %289 = sbr.rel (%p287) target = $region36
      $region35: #{detection_head_forward.1} parent=11 // pred_region
        _
      $region36: #{detection_head_forward.1} parent=11 // pred_fallthru
        _
      // Predicated region
      $region37: #{detection_head_forward.1} parent=11 // pred_check
        %p290 = pneg %p189
      $region38: #{detection_head_forward.1} parent=11 // pred_check_branch
        %292 = sbr.rel (%p290) target = $region40
      $region39: #{detection_head_forward.1} parent=11 // pred_region
        _
      $region40: #{detection_head_forward.1} parent=11 // pred_fallthru
        _
      // Predicated region
      $region41: #{detection_head_forward.1} parent=11 // pred_check
        %p293 = pneg %p210
      $region42: #{detection_head_forward.1} parent=11 // pred_check_branch
        %295 = sbr.rel (%p293) target = $region44
      $region43: #{detection_head_forward.1} parent=11 // pred_region
        _
      $region44: #{detection_head_forward.1} parent=11 // pred_fallthru
        _
      // Predicated region
      $region45: #{detection_head_forward.1} parent=11 // pred_check
        %p296 = pneg %p231
      $region46: #{detection_head_forward.1} parent=11 // pred_check_branch
        %298 = sbr.rel (%p296) target = $region48
      $region47: #{detection_head_forward.1} parent=11 // pred_region
        _
      $region48: #{detection_head_forward.1} parent=11 // pred_fallthru
        _
    $region12: #{detection_head_forward.1} parent=5 // pred_fallthru
      _
    %p299 = scmp.lt.s32.totalorder %s16, 2
    // Predicated region
    $region49: #{detection_head_forward.1} parent=5 // pred_check
      %p300 = pneg %p299
    $region50: #{detection_head_forward.1} parent=5 // pred_check_branch
      %302 = sbr.rel (%p300) target = $region52
    $region51: #{detection_head_forward.1} parent=5 // pred_region
      // Predicated region
      $region53: #{detection_head_forward.1} parent=51 // pred_check
        %p303 = pneg %p36
      $region54: #{detection_head_forward.1} parent=51 // pred_check_branch
        %305 = sbr.rel (%p303) target = $region56
      $region55: #{detection_head_forward.1} parent=51 // pred_region
        %p306 = scmp.lt.s32.totalorder %s16, 1
        %s307 = scalar_select %p306, %s16, 1
        %s308 = smul.addr %s307, 42
        %s309 = smul.addr %s308, 4
        %s310 = scalar_lea.vmem %s0, %s309
      $region56: #{detection_head_forward.1} parent=51 // pred_fallthru
        _
    $region52: #{detection_head_forward.1} parent=5 // pred_fallthru
      _
    %p311 = scmp.le.s32.totalorder 1, %s16
    %p312 = scmp.lt.s32.totalorder %s16, 3
    %p313 = pnand %p311, %p312
    %p314 = pneg %p313
    // Predicated region
    $region57: #{detection_head_forward.1} parent=5 // pred_check
      _
    $region58: #{detection_head_forward.1} parent=5 // pred_check_branch
      %316 = sbr.rel (%p313) target = $region60
    $region59: #{detection_head_forward.1} parent=5 // pred_region
      %s317 = ssub.s32 %s16, 1
      %p318 = scmp.lt.s32.totalorder %s21, 1
      %s319 = scalar_select %p318, %s21, 1
      %s320 = smul.addr %s319, 42
      %s321 = smul.addr %s320, 4
      %s322 = scalar_lea.vmem %s0, %s321
      %p323 = pneg %p42
      %p324 = pneg %p39
      %p325 = pneg %p63
      %p326 = pneg %p60
      %p327 = pneg %p84
      %p328 = pneg %p81
      %p329 = pneg %p105
      %p330 = pneg %p102
      %p331 = pneg %p126
      %p332 = pneg %p123
      %p333 = pneg %p147
      %p334 = pneg %p144
      %p335 = pneg %p168
      %p336 = pneg %p165
      %p337 = pneg %p189
      %p338 = pneg %p186
      %p339 = pneg %p210
      %p340 = pneg %p207
      %p341 = pneg %p231
      %p342 = pneg %p228
      %p343 = pneg %p257
      %p344 = pneg %p254
      %p345 = scmp.lt.s32.totalorder %s21, 1
      %s346 = scalar_select %p345, %s21, 1
      %s347 = smul.addr %s346, 36
      %s348 = smul.addr %s347, 8
      %s349 = scalar_lea.vmem %s10, %s348
      %p350 = scmp.lt.s32.totalorder %s21, 1
      %s351 = scalar_select %p350, %s21, 1
      %s352 = smul.addr %s351, 42
      %s353 = smul.addr %s352, 4
      %s354 = scalar_lea.vmem %s0, %s353
      %p355 = scmp.lt.s32.totalorder %s21, 1
      %s356 = scalar_select %p355, %s21, 1
      %s357 = smul.addr %s356, 36
      %s358 = smul.addr %s357, 8
      %s359 = scalar_lea.vmem %s10, %s358
      %v361 = vld [vmem:[%s2] sm:$0xff]
      %v362 = vld [vmem:[%s2 + $0x8] sm:$0xff]
      %v363 = vld [vmem:[%s2 + $0x10] sm:$0xff]
      %v364 = vld [vmem:[%s2 + $0x18] sm:$0xff]
      %v365 = vld [vmem:[%s2 + $0x20] sm:$0x33]
      %v366 = vld [vmem:[%s3] sm:$0x3]
      %v367 = vld [vmem:[%s4] sm:$0x3]
      %v368 = vld [vmem:[%s354] sm:$0xf]
      %v369 = vld [vmem:[%s354 + $0x4] sm:$0xf]
      %v370 = vld [vmem:[%s354 + $0x8] sm:$0xf]
      %v371 = vld [vmem:[%s354 + $0xc] sm:$0xf]
      %v372 = vld [vmem:[%s354 + $0x10] sm:$0xf]
      %v373 = vld [vmem:[%s354 + $0x14] sm:$0xf]
      %v374 = vld [vmem:[%s354 + $0x18] sm:$0xf]
      %v375 = vld [vmem:[%s354 + $0x1c] sm:$0xf]
      %v376 = vld [vmem:[%s354 + $0x20] sm:$0xf]
      %v377 = vld [vmem:[%s354 + $0x24] sm:$0xf]
      %v378 = vld [vmem:[%s354 + $0x28] sm:$0xf]
      %v379 = vld [vmem:[%s354 + $0x2c] sm:$0xf]
      %v380 = vld [vmem:[%s354 + $0x30] sm:$0xf]
      %v381 = vld [vmem:[%s354 + $0x34] sm:$0xf]
      %v396 = vunpack.c.l.b16 %v368
      %v397 = vunpack.c.l.b16 %v369
      %v398 = vunpack.c.l.b16 %v370
      %v399 = vunpack.c.l.b16 %v371
      %v400 = vunpack.c.l.b16 %v372
      %v401 = vunpack.c.l.b16 %v373
      %v402 = vunpack.c.l.b16 %v374
      %v403 = vunpack.c.l.b16 %v375
      %v404 = vunpack.c.l.b16 %v376
      %v405 = vunpack.c.l.b16 %v377
      %v406 = vunpack.c.l.b16 %v378
      %v407 = vunpack.c.l.b16 %v379
      %v408 = vunpack.c.l.b16 %v380
      %v409 = vunpack.c.l.b16 %v381
      %v410 = vpack.c.b16 %v397, %v396
      %v411 = vpack.c.b16 %v399, %v398
      %v412 = vpack.c.b16 %v401, %v400
      %v413 = vpack.c.b16 %v403, %v402
      %v414 = vpack.c.b16 %v405, %v404
      %v415 = vpack.c.b16 %v407, %v406
      %v416 = vpack.c.b16 %v409, %v408
      %v422 = vunpack.c.l.b16 %v361
      %v423 = vunpack.c.h.b16 %v361
      %v424 = vunpack.c.l.b16 %v362
      %v425 = vunpack.c.h.b16 %v362
      %v426 = vunpack.c.l.b16 %v363
      %v427 = vunpack.c.h.b16 %v363
      %v428 = vunpack.c.l.b16 %v364
      %v429 = vunpack.c.h.b16 %v364
      %v430 = vunpack.c.l.b16 %v365
      %v431 = vunpack.c.h.b16 %v365
      %v432 = vpack.c.b16 %v424, %v422
      %v433 = vpack.c.b16 %v425, %v423
      %v434 = vpack.c.b16 %v428, %v426
      %v435 = vpack.c.b16 %v429, %v427
      %v436 = vpack.c.b16 %v430, %v430
      %v437 = vpack.c.b16 %v431, %v431
      %vm442 = vcmask 293888
      %v444 = vsel %vm442, %v410, 0
      %v447 = vsel %vm442, %v411, 0
      %v450 = vsel %vm442, %v412, 0
      %v453 = vsel %vm442, %v413, 0
      %v456 = vsel %vm442, %v414, 0
      %v459 = vsel %vm442, %v415, 0
      %v462 = vsel %vm442, %v416, 0
      %vm464 = vcmask 1041408
      %v466 = vsel %vm464, %v436, 0
      %v469 = vsel %vm464, %v437, 0
      %471 = vmatprep.subr.bf16.mxu0 %v433
      %472 = vmatpush1.bf16.msra.mxu0 %v432
      %473 = vmatprep.subr.bf16.mxu0 %v435
      %474 = vmatpush1.bf16.msra.mxu0 %v434
      %475 = vmatprep.subr.bf16.mxu0 %v469
      %476 = vmatpush1.bf16.msra.mxu0 %v466
      %477 = vmatprep.subr.bf16.mxu0 0
      %478 = vmatpush1.bf16.msra.mxu0 0
      %479 = vmatprep.subr.bf16.mxu0 0
      %480 = vmatpush1.bf16.msra.mxu0 0
      %481 = vmatprep.subr.bf16.mxu0 0
      %482 = vmatpush1.bf16.msra.mxu0 0
      %483 = vmatprep.subr.bf16.mxu0 0
      %484 = vmatpush1.bf16.msra.mxu0 0
      %485 = vmatprep.subr.bf16.mxu0 0
      %486 = vmatpush1.bf16.msra.mxu0 0
      %487 = vmatprep.subr.bf16.mxu0 0
      %488 = vmatpush1.bf16.msra.mxu0 0
      %489 = vmatprep.subr.bf16.mxu0 0
      %490 = vmatpush1.bf16.msra.mxu0 0
      %491 = vmatprep.subr.bf16.mxu0 0
      %492 = vmatpush1.bf16.msra.mxu0 0
      %493 = vmatprep.subr.bf16.mxu0 0
      %494 = vmatpush1.bf16.msra.mxu0 0
      %495 = vmatprep.subr.bf16.mxu0 0
      %496 = vmatpush1.bf16.msra.mxu0 0
      %497 = vmatprep.subr.bf16.mxu0 0
      %498 = vmatpush1.bf16.msra.mxu0 0
      %499 = vmatprep.subr.bf16.mxu0 0
      %500 = vmatpush1.bf16.msra.mxu0 0
      %501 = vmatprep.subr.bf16.mxu0 0
      %502 = vmatpush1.bf16.msra.mxu0 0
      %503 = vmatprep.mubr.bf16.mxu0 0
      %504 = vmatmul.mubr.bf16.gmra.mrb[0].mxu0 %v444
      %v505 = vpop.f32.mrb[0].mxu0
      %v506 = vadd.f32 0.0, %v505
      %v507 = vpop.f32.mrb[0].mxu0
      %v508 = vadd.f32 0.0, %v507
      %v509 = vpop.f32.mrb[0].mxu0
      %v510 = vadd.f32 0.0, %v509
      %v511 = vpop.f32.mrb[0].mxu0
      %v512 = vadd.f32 0.0, %v511
      %513 = vmatprep.mubr.bf16.mxu0 0
      %514 = vmatmul.mubr.bf16.gmra.mrb[0].mxu0 %v447
      %v515 = vpop.f32.mrb[0].mxu0
      %v516 = vadd.f32 0.0, %v515
      %v517 = vpop.f32.mrb[0].mxu0
      %v518 = vadd.f32 0.0, %v517
      %v519 = vpop.f32.mrb[0].mxu0
      %v520 = vadd.f32 0.0, %v519
      %v521 = vpop.f32.mrb[0].mxu0
      %v522 = vadd.f32 0.0, %v521
      %523 = vmatprep.mubr.bf16.mxu0 0
      %524 = vmatmul.mubr.bf16.gmra.mrb[0].mxu0 %v450
      %v525 = vpop.f32.mrb[0].mxu0
      %v526 = vadd.f32 0.0, %v525
      %v527 = vpop.f32.mrb[0].mxu0
      %v528 = vadd.f32 0.0, %v527
      %v529 = vpop.f32.mrb[0].mxu0
      %v530 = vadd.f32 0.0, %v529
      %v531 = vpop.f32.mrb[0].mxu0
      %v532 = vadd.f32 0.0, %v531
      %533 = vmatprep.mubr.bf16.mxu0 0
      %534 = vmatmul.mubr.bf16.gmra.mrb[0].mxu0 %v453
      %v535 = vpop.f32.mrb[0].mxu0
      %v536 = vadd.f32 0.0, %v535
      %v537 = vpop.f32.mrb[0].mxu0
      %v538 = vadd.f32 0.0, %v537
      %v539 = vpop.f32.mrb[0].mxu0
      %v540 = vadd.f32 0.0, %v539
      %v541 = vpop.f32.mrb[0].mxu0
      %v542 = vadd.f32 0.0, %v541
      %543 = vmatprep.mubr.bf16.mxu0 0
      %544 = vmatmul.mubr.bf16.gmra.mrb[0].mxu0 %v456
      %v545 = vpop.f32.mrb[0].mxu0
      %v546 = vadd.f32 0.0, %v545
      %v547 = vpop.f32.mrb[0].mxu0
      %v548 = vadd.f32 0.0, %v547
      %v549 = vpop.f32.mrb[0].mxu0
      %v550 = vadd.f32 0.0, %v549
      %v551 = vpop.f32.mrb[0].mxu0
      %v552 = vadd.f32 0.0, %v551
      %553 = vmatprep.mubr.bf16.mxu0 0
      %554 = vmatmul.mubr.bf16.gmra.mrb[0].mxu0 %v459
      %v555 = vpop.f32.mrb[0].mxu0
      %v556 = vadd.f32 0.0, %v555
      %v557 = vpop.f32.mrb[0].mxu0
      %v558 = vadd.f32 0.0, %v557
      %v559 = vpop.f32.mrb[0].mxu0
      %v560 = vadd.f32 0.0, %v559
      %v561 = vpop.f32.mrb[0].mxu0
      %v562 = vadd.f32 0.0, %v561
      %563 = vmatprep.mubr.bf16.mxu0 0
      %564 = vmatmul.mubr.bf16.gmra.mrb[0].mxu0 %v462
      %v565 = vpop.f32.mrb[0].mxu0
      %v566 = vadd.f32 0.0, %v565
      %v567 = vpop.f32.mrb[0].mxu0
      %v568 = vadd.f32 0.0, %v567
      %v569 = vpop.f32.mrb[0].mxu0
      %v570 = vadd.f32 0.0, %v569
      %v571 = vpop.f32.mrb[0].mxu0
      %v572 = vadd.f32 0.0, %v571
      %573 = vdwg.mxu0
      %v575 = vlaneseq
      %v576 = vshrl.u32 %v575, 7
      %v577 = vsub.s32 0, %v576
      %v578 = vrot.slane %v366, %v577
      %v579 = vlaneseq
      %v580 = vshrl.u32 %v579, 7
      %v581 = vsub.s32 1, %v580
      %v582 = vrot.slane %v366, %v581
      %v585 = vmul.f32 %v506, %v578
      %v586 = vmul.f32 %v508, %v582
      %v587 = vmul.f32 %v510, %v578
      %v588 = vmul.f32 %v512, %v582
      %v589 = vmul.f32 %v516, %v578
      %v590 = vmul.f32 %v518, %v582
      %v591 = vmul.f32 %v520, %v578
      %v592 = vmul.f32 %v522, %v582
      %v593 = vmul.f32 %v526, %v578
      %v594 = vmul.f32 %v528, %v582
      %v595 = vmul.f32 %v530, %v578
      %v596 = vmul.f32 %v532, %v582
      %v597 = vmul.f32 %v536, %v578
      %v598 = vmul.f32 %v538, %v582
      %v599 = vmul.f32 %v540, %v578
      %v600 = vmul.f32 %v542, %v582
      %v601 = vmul.f32 %v546, %v578
      %v602 = vmul.f32 %v548, %v582
      %v603 = vmul.f32 %v550, %v578
      %v604 = vmul.f32 %v552, %v582
      %v605 = vmul.f32 %v556, %v578
      %v606 = vmul.f32 %v558, %v582
      %v607 = vmul.f32 %v560, %v578
      %v608 = vmul.f32 %v562, %v582
      %v609 = vmul.f32 %v566, %v578
      %v610 = vmul.f32 %v568, %v582
      %v611 = vmul.f32 %v570, %v578
      %v612 = vmul.f32 %v572, %v582
      %v614 = vlaneseq
      %v615 = vshrl.u32 %v614, 7
      %v616 = vsub.s32 0, %v615
      %v617 = vrot.slane %v367, %v616
      %v618 = vlaneseq
      %v619 = vshrl.u32 %v618, 7
      %v620 = vsub.s32 1, %v619
      %v621 = vrot.slane %v367, %v620
      %v624 = vadd.f32 %v585, %v617
      %v625 = vadd.f32 %v586, %v621
      %v626 = vadd.f32 %v587, %v617
      %v627 = vadd.f32 %v588, %v621
      %v628 = vadd.f32 %v589, %v617
      %v629 = vadd.f32 %v590, %v621
      %v630 = vadd.f32 %v591, %v617
      %v631 = vadd.f32 %v592, %v621
      %v632 = vadd.f32 %v593, %v617
      %v633 = vadd.f32 %v594, %v621
      %v634 = vadd.f32 %v595, %v617
      %v635 = vadd.f32 %v596, %v621
      %v636 = vadd.f32 %v597, %v617
      %v637 = vadd.f32 %v598, %v621
      %v638 = vadd.f32 %v599, %v617
      %v639 = vadd.f32 %v600, %v621
      %v640 = vadd.f32 %v601, %v617
      %v641 = vadd.f32 %v602, %v621
      %v642 = vadd.f32 %v603, %v617
      %v643 = vadd.f32 %v604, %v621
      %v644 = vadd.f32 %v605, %v617
      %v645 = vadd.f32 %v606, %v621
      %v646 = vadd.f32 %v607, %v617
      %v647 = vadd.f32 %v608, %v621
      %v648 = vadd.f32 %v609, %v617
      %v649 = vadd.f32 %v610, %v621
      %v650 = vadd.f32 %v611, %v617
      %v651 = vadd.f32 %v612, %v621
      %v652 = vmax.f32 %v624, 0.0
      %v653 = vmax.f32 %v625, 0.0
      %v654 = vmax.f32 %v626, 0.0
      %v655 = vmax.f32 %v627, 0.0
      %v656 = vmax.f32 %v628, 0.0
      %v657 = vmax.f32 %v629, 0.0
      %v658 = vmax.f32 %v630, 0.0
      %v659 = vmax.f32 %v631, 0.0
      %v660 = vmax.f32 %v632, 0.0
      %v661 = vmax.f32 %v633, 0.0
      %v662 = vmax.f32 %v634, 0.0
      %v663 = vmax.f32 %v635, 0.0
      %v664 = vmax.f32 %v636, 0.0
      %v665 = vmax.f32 %v637, 0.0
      %v666 = vmax.f32 %v638, 0.0
      %v667 = vmax.f32 %v639, 0.0
      %v668 = vmax.f32 %v640, 0.0
      %v669 = vmax.f32 %v641, 0.0
      %v670 = vmax.f32 %v642, 0.0
      %v671 = vmax.f32 %v643, 0.0
      %v672 = vmax.f32 %v644, 0.0
      %v673 = vmax.f32 %v645, 0.0
      %v674 = vmax.f32 %v646, 0.0
      %v675 = vmax.f32 %v647, 0.0
      %v676 = vmax.f32 %v648, 0.0
      %v677 = vmax.f32 %v649, 0.0
      %v678 = vmax.f32 %v650, 0.0
      %v679 = vmax.f32 %v651, 0.0
      %v680 = vld [vmem:[%s1] sm:$0xff]
      %v681 = vld [vmem:[%s1 + $0x8] sm:$0xff]
      %v682 = vld [vmem:[%s1 + $0x10] sm:$0xff]
      %v683 = vld [vmem:[%s1 + $0x18] sm:$0xff]
      %v684 = vld [vmem:[%s1 + $0x20] sm:$0xff]
      %v685 = vld [vmem:[%s1 + $0x28] sm:$0xff]
      %v686 = vld [vmem:[%s1 + $0x30] sm:$0xff]
      %v687 = vld [vmem:[%s1 + $0x38] sm:$0xff]
      %v688 = vld [vmem:[%s1 + $0x40] sm:$0xff]
      %v689 = vld [vmem:[%s1 + $0x48] sm:$0xff]
      %v690 = vld [vmem:[%s1 + $0x50] sm:$0xff]
      %v691 = vld [vmem:[%s1 + $0x58] sm:$0xff]
      %v692 = vld [vmem:[%s1 + $0x60] sm:$0xff]
      %v693 = vld [vmem:[%s1 + $0x68] sm:$0xff]
      %695 = vset.pattern.permute.xlu0 0
      %696 = vperm.xlu0 %695, %v680
      %v697 = vpop.permute.xlu0 %696
      %700 = vset.pattern.permute.xlu0 0
      %701 = vperm.xlu0 %700, %v681
      %v702 = vpop.permute.xlu0 %701
      %705 = vset.pattern.permute.xlu0 0
      %706 = vperm.xlu0 %705, %v682
      %v707 = vpop.permute.xlu0 %706
      %710 = vset.pattern.permute.xlu0 0
      %711 = vperm.xlu0 %710, %v683
      %v712 = vpop.permute.xlu0 %711
      %715 = vset.pattern.permute.xlu0 0
      %716 = vperm.xlu0 %715, %v684
      %v717 = vpop.permute.xlu0 %716
      %720 = vset.pattern.permute.xlu0 0
      %721 = vperm.xlu0 %720, %v685
      %v722 = vpop.permute.xlu0 %721
      %725 = vset.pattern.permute.xlu0 0
      %726 = vperm.xlu0 %725, %v686
      %v727 = vpop.permute.xlu0 %726
      %730 = vset.pattern.permute.xlu0 0
      %731 = vperm.xlu0 %730, %v687
      %v732 = vpop.permute.xlu0 %731
      %735 = vset.pattern.permute.xlu0 0
      %736 = vperm.xlu0 %735, %v688
      %v737 = vpop.permute.xlu0 %736
      %740 = vset.pattern.permute.xlu0 0
      %741 = vperm.xlu0 %740, %v689
      %v742 = vpop.permute.xlu0 %741
      %745 = vset.pattern.permute.xlu0 0
      %746 = vperm.xlu0 %745, %v690
      %v747 = vpop.permute.xlu0 %746
      %750 = vset.pattern.permute.xlu0 0
      %751 = vperm.xlu0 %750, %v691
      %v752 = vpop.permute.xlu0 %751
      %755 = vset.pattern.permute.xlu0 0
      %756 = vperm.xlu0 %755, %v692
      %v757 = vpop.permute.xlu0 %756
      %760 = vset.pattern.permute.xlu0 0
      %761 = vperm.xlu0 %760, %v693
      %v762 = vpop.permute.xlu0 %761
      %v764 = vmul.f32 %v652, %v697
      %v765 = vmul.f32 %v653, %v697
      %v766 = vmul.f32 %v654, %v702
      %v767 = vmul.f32 %v655, %v702
      %v768 = vmul.f32 %v656, %v707
      %v769 = vmul.f32 %v657, %v707
      %v770 = vmul.f32 %v658, %v712
      %v771 = vmul.f32 %v659, %v712
      %v772 = vmul.f32 %v660, %v717
      %v773 = vmul.f32 %v661, %v717
      %v774 = vmul.f32 %v662, %v722
      %v775 = vmul.f32 %v663, %v722
      %v776 = vmul.f32 %v664, %v727
      %v777 = vmul.f32 %v665, %v727
      %v778 = vmul.f32 %v666, %v732
      %v779 = vmul.f32 %v667, %v732
      %v780 = vmul.f32 %v668, %v737
      %v781 = vmul.f32 %v669, %v737
      %v782 = vmul.f32 %v670, %v742
      %v783 = vmul.f32 %v671, %v742
      %v784 = vmul.f32 %v672, %v747
      %v785 = vmul.f32 %v673, %v747
      %v786 = vmul.f32 %v674, %v752
      %v787 = vmul.f32 %v675, %v752
      %v788 = vmul.f32 %v676, %v757
      %v789 = vmul.f32 %v677, %v757
      %v790 = vmul.f32 %v678, %v762
      %v791 = vmul.f32 %v679, %v762
      %v792 = vpack.c.bf16 %v766, %v764
      %v793 = vpack.c.bf16 %v767, %v765
      %v794 = vpack.c.bf16 %v770, %v768
      %v795 = vpack.c.bf16 %v771, %v769
      %v796 = vpack.c.bf16 %v774, %v772
      %v797 = vpack.c.bf16 %v775, %v773
      %v798 = vpack.c.bf16 %v778, %v776
      %v799 = vpack.c.bf16 %v779, %v777
      %v800 = vpack.c.bf16 %v782, %v780
      %v801 = vpack.c.bf16 %v783, %v781
      %v802 = vpack.c.bf16 %v786, %v784
      %v803 = vpack.c.bf16 %v787, %v785
      %v804 = vpack.c.bf16 %v790, %v788
      %v805 = vpack.c.bf16 %v791, %v789
      %806 = vst [vmem:[#allocation2] sm:$0xff] %v792
      %807 = vst [vmem:[#allocation2 + $0x8] sm:$0xff] %v793
      %808 = vst [vmem:[#allocation2 + $0x10] sm:$0xff] %v794
      %809 = vst [vmem:[#allocation2 + $0x18] sm:$0xff] %v795
      %810 = vst [vmem:[#allocation2 + $0x20] sm:$0xff] %v796
      %811 = vst [vmem:[#allocation2 + $0x28] sm:$0xff] %v797
      %812 = vst [vmem:[#allocation2 + $0x30] sm:$0xff] %v798
      %813 = vst [vmem:[#allocation2 + $0x38] sm:$0xff] %v799
      %814 = vst [vmem:[#allocation2 + $0x40] sm:$0xff] %v800
      %815 = vst [vmem:[#allocation2 + $0x48] sm:$0xff] %v801
      %816 = vst [vmem:[#allocation2 + $0x50] sm:$0xff] %v802
      %817 = vst [vmem:[#allocation2 + $0x58] sm:$0xff] %v803
      %818 = vst [vmem:[#allocation2 + $0x60] sm:$0xff] %v804
      %819 = vst [vmem:[#allocation2 + $0x68] sm:$0xff] %v805
      %v820 = vld [vmem:[%s354 + $0x38] sm:$0xf]
      %v821 = vld [vmem:[%s354 + $0x3c] sm:$0xf]
      %v822 = vld [vmem:[%s354 + $0x40] sm:$0xf]
      %v823 = vld [vmem:[%s354 + $0x44] sm:$0xf]
      %v824 = vld [vmem:[%s354 + $0x48] sm:$0xf]
      %v825 = vld [vmem:[%s354 + $0x4c] sm:$0xf]
      %v826 = vld [vmem:[%s354 + $0x50] sm:$0xf]
      %v827 = vld [vmem:[%s354 + $0x54] sm:$0xf]
      %v828 = vld [vmem:[%s354 + $0x58] sm:$0xf]
      %v829 = vld [vmem:[%s354 + $0x5c] sm:$0xf]
      %v830 = vld [vmem:[%s354 + $0x60] sm:$0xf]
      %v831 = vld [vmem:[%s354 + $0x64] sm:$0xf]
      %v832 = vld [vmem:[%s354 + $0x68] sm:$0xf]
      %v833 = vld [vmem:[%s354 + $0x6c] sm:$0xf]
      %v848 = vunpack.c.l.b16 %v820
      %v849 = vunpack.c.l.b16 %v821
      %v850 = vunpack.c.l.b16 %v822
      %v851 = vunpack.c.l.b16 %v823
      %v852 = vunpack.c.l.b16 %v824
      %v853 = vunpack.c.l.b16 %v825
      %v854 = vunpack.c.l.b16 %v826
      %v855 = vunpack.c.l.b16 %v827
      %v856 = vunpack.c.l.b16 %v828
      %v857 = vunpack.c.l.b16 %v829
      %v858 = vunpack.c.l.b16 %v830
      %v859 = vunpack.c.l.b16 %v831
      %v860 = vunpack.c.l.b16 %v832
      %v861 = vunpack.c.l.b16 %v833
      %v862 = vpack.c.b16 %v849, %v848
      %v863 = vpack.c.b16 %v851, %v850
      %v864 = vpack.c.b16 %v853, %v852
      %v865 = vpack.c.b16 %v855, %v854
      %v866 = vpack.c.b16 %v857, %v856
      %v867 = vpack.c.b16 %v859, %v858
      %v868 = vpack.c.b16 %v861, %v860
      %v870 = vsel %vm442, %v862, 0
      %v873 = vsel %vm442, %v863, 0
      %v876 = vsel %vm442, %v864, 0
      %v879 = vsel %vm442, %v865, 0
      %v882 = vsel %vm442, %v866, 0
      %v885 = vsel %vm442, %v867, 0
      %v888 = vsel %vm442, %v868, 0
      %890 = vmatprep.subr.bf16.mxu0 %v433
      %891 = vmatpush1.bf16.msra.mxu0 %v432
      %892 = vmatprep.subr.bf16.mxu0 %v435
      %893 = vmatpush1.bf16.msra.mxu0 %v434
      %894 = vmatprep.subr.bf16.mxu0 %v469
      %895 = vmatpush1.bf16.msra.mxu0 %v466
      %896 = vmatprep.subr.bf16.mxu0 0
      %897 = vmatpush1.bf16.msra.mxu0 0
      %898 = vmatprep.subr.bf16.mxu0 0
      %899 = vmatpush1.bf16.msra.mxu0 0
      %900 = vmatprep.subr.bf16.mxu0 0
      %901 = vmatpush1.bf16.msra.mxu0 0
      %902 = vmatprep.subr.bf16.mxu0 0
      %903 = vmatpush1.bf16.msra.mxu0 0
      %904 = vmatprep.subr.bf16.mxu0 0
      %905 = vmatpush1.bf16.msra.mxu0 0
      %906 = vmatprep.subr.bf16.mxu0 0
      %907 = vmatpush1.bf16.msra.mxu0 0
      %908 = vmatprep.subr.bf16.mxu0 0
      %909 = vmatpush1.bf16.msra.mxu0 0
      %910 = vmatprep.subr.bf16.mxu0 0
      %911 = vmatpush1.bf16.msra.mxu0 0
      %912 = vmatprep.subr.bf16.mxu0 0
      %913 = vmatpush1.bf16.msra.mxu0 0
      %914 = vmatprep.subr.bf16.mxu0 0
      %915 = vmatpush1.bf16.msra.mxu0 0
      %916 = vmatprep.subr.bf16.mxu0 0
      %917 = vmatpush1.bf16.msra.mxu0 0
      %918 = vmatprep.subr.bf16.mxu0 0
      %919 = vmatpush1.bf16.msra.mxu0 0
      %920 = vmatprep.subr.bf16.mxu0 0
      %921 = vmatpush1.bf16.msra.mxu0 0
      %922 = vmatprep.mubr.bf16.mxu0 0
      %923 = vmatmul.mubr.bf16.gmra.mrb[0].mxu0 %v870
      %v924 = vpop.f32.mrb[0].mxu0
      %v925 = vadd.f32 0.0, %v924
      %v926 = vpop.f32.mrb[0].mxu0
      %v927 = vadd.f32 0.0, %v926
      %v928 = vpop.f32.mrb[0].mxu0
      %v929 = vadd.f32 0.0, %v928
      %v930 = vpop.f32.mrb[0].mxu0
      %v931 = vadd.f32 0.0, %v930
      %932 = vmatprep.mubr.bf16.mxu0 0
      %933 = vmatmul.mubr.bf16.gmra.mrb[0].mxu0 %v873
      %v934 = vpop.f32.mrb[0].mxu0
      %v935 = vadd.f32 0.0, %v934
      %v936 = vpop.f32.mrb[0].mxu0
      %v937 = vadd.f32 0.0, %v936
      %v938 = vpop.f32.mrb[0].mxu0
      %v939 = vadd.f32 0.0, %v938
      %v940 = vpop.f32.mrb[0].mxu0
      %v941 = vadd.f32 0.0, %v940
      %942 = vmatprep.mubr.bf16.mxu0 0
      %943 = vmatmul.mubr.bf16.gmra.mrb[0].mxu0 %v876
      %v944 = vpop.f32.mrb[0].mxu0
      %v945 = vadd.f32 0.0, %v944
      %v946 = vpop.f32.mrb[0].mxu0
      %v947 = vadd.f32 0.0, %v946
      %v948 = vpop.f32.mrb[0].mxu0
      %v949 = vadd.f32 0.0, %v948
      %v950 = vpop.f32.mrb[0].mxu0
      %v951 = vadd.f32 0.0, %v950
      %952 = vmatprep.mubr.bf16.mxu0 0
      %953 = vmatmul.mubr.bf16.gmra.mrb[0].mxu0 %v879
      %v954 = vpop.f32.mrb[0].mxu0
      %v955 = vadd.f32 0.0, %v954
      %v956 = vpop.f32.mrb[0].mxu0
      %v957 = vadd.f32 0.0, %v956
      %v958 = vpop.f32.mrb[0].mxu0
      %v959 = vadd.f32 0.0, %v958
      %v960 = vpop.f32.mrb[0].mxu0
      %v961 = vadd.f32 0.0, %v960
      %962 = vmatprep.mubr.bf16.mxu0 0
      %963 = vmatmul.mubr.bf16.gmra.mrb[0].mxu0 %v882
      %v964 = vpop.f32.mrb[0].mxu0
      %v965 = vadd.f32 0.0, %v964
      %v966 = vpop.f32.mrb[0].mxu0
      %v967 = vadd.f32 0.0, %v966
      %v968 = vpop.f32.mrb[0].mxu0
      %v969 = vadd.f32 0.0, %v968
      %v970 = vpop.f32.mrb[0].mxu0
      %v971 = vadd.f32 0.0, %v970
      %972 = vmatprep.mubr.bf16.mxu0 0
      %973 = vmatmul.mubr.bf16.gmra.mrb[0].mxu0 %v885
      %v974 = vpop.f32.mrb[0].mxu0
      %v975 = vadd.f32 0.0, %v974
      %v976 = vpop.f32.mrb[0].mxu0
      %v977 = vadd.f32 0.0, %v976
      %v978 = vpop.f32.mrb[0].mxu0
      %v979 = vadd.f32 0.0, %v978
      %v980 = vpop.f32.mrb[0].mxu0
      %v981 = vadd.f32 0.0, %v980
      %982 = vmatprep.mubr.bf16.mxu0 0
      %983 = vmatmul.mubr.bf16.gmra.mrb[0].mxu0 %v888
      %v984 = vpop.f32.mrb[0].mxu0
      %v985 = vadd.f32 0.0, %v984
      %v986 = vpop.f32.mrb[0].mxu0
      %v987 = vadd.f32 0.0, %v986
      %v988 = vpop.f32.mrb[0].mxu0
      %v989 = vadd.f32 0.0, %v988
      %v990 = vpop.f32.mrb[0].mxu0
      %v991 = vadd.f32 0.0, %v990
      %992 = vdwg.mxu0
      %v993 = vmul.f32 %v925, %v578
      %v994 = vmul.f32 %v927, %v582
      %v995 = vmul.f32 %v929, %v578
      %v996 = vmul.f32 %v931, %v582
      %v997 = vmul.f32 %v935, %v578
      %v998 = vmul.f32 %v937, %v582
      %v999 = vmul.f32 %v939, %v578
      %v1000 = vmul.f32 %v941, %v582
      %v1001 = vmul.f32 %v945, %v578
      %v1002 = vmul.f32 %v947, %v582
      %v1003 = vmul.f32 %v949, %v578
      %v1004 = vmul.f32 %v951, %v582
      %v1005 = vmul.f32 %v955, %v578
      %v1006 = vmul.f32 %v957, %v582
      %v1007 = vmul.f32 %v959, %v578
      %v1008 = vmul.f32 %v961, %v582
      %v1009 = vmul.f32 %v965, %v578
      %v1010 = vmul.f32 %v967, %v582
      %v1011 = vmul.f32 %v969, %v578
      %v1012 = vmul.f32 %v971, %v582
      %v1013 = vmul.f32 %v975, %v578
      %v1014 = vmul.f32 %v977, %v582
      %v1015 = vmul.f32 %v979, %v578
      %v1016 = vmul.f32 %v981, %v582
      %v1017 = vmul.f32 %v985, %v578
      %v1018 = vmul.f32 %v987, %v582
      %v1019 = vmul.f32 %v989, %v578
      %v1020 = vmul.f32 %v991, %v582
      %v1021 = vadd.f32 %v993, %v617
      %v1022 = vadd.f32 %v994, %v621
      %v1023 = vadd.f32 %v995, %v617
      %v1024 = vadd.f32 %v996, %v621
      %v1025 = vadd.f32 %v997, %v617
      %v1026 = vadd.f32 %v998, %v621
      %v1027 = vadd.f32 %v999, %v617
      %v1028 = vadd.f32 %v1000, %v621
      %v1029 = vadd.f32 %v1001, %v617
      %v1030 = vadd.f32 %v1002, %v621
      %v1031 = vadd.f32 %v1003, %v617
      %v1032 = vadd.f32 %v1004, %v621
      %v1033 = vadd.f32 %v1005, %v617
      %v1034 = vadd.f32 %v1006, %v621
      %v1035 = vadd.f32 %v1007, %v617
      %v1036 = vadd.f32 %v1008, %v621
      %v1037 = vadd.f32 %v1009, %v617
      %v1038 = vadd.f32 %v1010, %v621
      %v1039 = vadd.f32 %v1011, %v617
      %v1040 = vadd.f32 %v1012, %v621
      %v1041 = vadd.f32 %v1013, %v617
      %v1042 = vadd.f32 %v1014, %v621
      %v1043 = vadd.f32 %v1015, %v617
      %v1044 = vadd.f32 %v1016, %v621
      %v1045 = vadd.f32 %v1017, %v617
      %v1046 = vadd.f32 %v1018, %v621
      %v1047 = vadd.f32 %v1019, %v617
      %v1048 = vadd.f32 %v1020, %v621
      %v1049 = vmax.f32 %v1021, 0.0
      %v1050 = vmax.f32 %v1022, 0.0
      %v1051 = vmax.f32 %v1023, 0.0
      %v1052 = vmax.f32 %v1024, 0.0
      %v1053 = vmax.f32 %v1025, 0.0
      %v1054 = vmax.f32 %v1026, 0.0
      %v1055 = vmax.f32 %v1027, 0.0
      %v1056 = vmax.f32 %v1028, 0.0
      %v1057 = vmax.f32 %v1029, 0.0
      %v1058 = vmax.f32 %v1030, 0.0
      %v1059 = vmax.f32 %v1031, 0.0
      %v1060 = vmax.f32 %v1032, 0.0
      %v1061 = vmax.f32 %v1033, 0.0
      %v1062 = vmax.f32 %v1034, 0.0
      %v1063 = vmax.f32 %v1035, 0.0
      %v1064 = vmax.f32 %v1036, 0.0
      %v1065 = vmax.f32 %v1037, 0.0
      %v1066 = vmax.f32 %v1038, 0.0
      %v1067 = vmax.f32 %v1039, 0.0
      %v1068 = vmax.f32 %v1040, 0.0
      %v1069 = vmax.f32 %v1041, 0.0
      %v1070 = vmax.f32 %v1042, 0.0
      %v1071 = vmax.f32 %v1043, 0.0
      %v1072 = vmax.f32 %v1044, 0.0
      %v1073 = vmax.f32 %v1045, 0.0
      %v1074 = vmax.f32 %v1046, 0.0
      %v1075 = vmax.f32 %v1047, 0.0
      %v1076 = vmax.f32 %v1048, 0.0
      %v1077 = vld [vmem:[%s1 + $0x70] sm:$0xff]
      %v1078 = vld [vmem:[%s1 + $0x78] sm:$0xff]
      %v1079 = vld [vmem:[%s1 + $0x80] sm:$0xff]
      %v1080 = vld [vmem:[%s1 + $0x88] sm:$0xff]
      %v1081 = vld [vmem:[%s1 + $0x90] sm:$0xff]
      %v1082 = vld [vmem:[%s1 + $0x98] sm:$0xff]
      %v1083 = vld [vmem:[%s1 + $0xa0] sm:$0xff]
      %v1084 = vld [vmem:[%s1 + $0xa8] sm:$0xff]
      %v1085 = vld [vmem:[%s1 + $0xb0] sm:$0xff]
      %v1086 = vld [vmem:[%s1 + $0xb8] sm:$0xff]
      %v1087 = vld [vmem:[%s1 + $0xc0] sm:$0xff]
      %v1088 = vld [vmem:[%s1 + $0xc8] sm:$0xff]
      %v1089 = vld [vmem:[%s1 + $0xd0] sm:$0xff]
      %v1090 = vld [vmem:[%s1 + $0xd8] sm:$0xff]
      %1092 = vset.pattern.permute.xlu0 0
      %1093 = vperm.xlu0 %1092, %v1077
      %v1094 = vpop.permute.xlu0 %1093
      %1097 = vset.pattern.permute.xlu0 0
      %1098 = vperm.xlu0 %1097, %v1078
      %v1099 = vpop.permute.xlu0 %1098
      %1102 = vset.pattern.permute.xlu0 0
      %1103 = vperm.xlu0 %1102, %v1079
      %v1104 = vpop.permute.xlu0 %1103
      %1107 = vset.pattern.permute.xlu0 0
      %1108 = vperm.xlu0 %1107, %v1080
      %v1109 = vpop.permute.xlu0 %1108
      %1112 = vset.pattern.permute.xlu0 0
      %1113 = vperm.xlu0 %1112, %v1081
      %v1114 = vpop.permute.xlu0 %1113
      %1117 = vset.pattern.permute.xlu0 0
      %1118 = vperm.xlu0 %1117, %v1082
      %v1119 = vpop.permute.xlu0 %1118
      %1122 = vset.pattern.permute.xlu0 0
      %1123 = vperm.xlu0 %1122, %v1083
      %v1124 = vpop.permute.xlu0 %1123
      %1127 = vset.pattern.permute.xlu0 0
      %1128 = vperm.xlu0 %1127, %v1084
      %v1129 = vpop.permute.xlu0 %1128
      %1132 = vset.pattern.permute.xlu0 0
      %1133 = vperm.xlu0 %1132, %v1085
      %v1134 = vpop.permute.xlu0 %1133
      %1137 = vset.pattern.permute.xlu0 0
      %1138 = vperm.xlu0 %1137, %v1086
      %v1139 = vpop.permute.xlu0 %1138
      %1142 = vset.pattern.permute.xlu0 0
      %1143 = vperm.xlu0 %1142, %v1087
      %v1144 = vpop.permute.xlu0 %1143
      %1147 = vset.pattern.permute.xlu0 0
      %1148 = vperm.xlu0 %1147, %v1088
      %v1149 = vpop.permute.xlu0 %1148
      %1152 = vset.pattern.permute.xlu0 0
      %1153 = vperm.xlu0 %1152, %v1089
      %v1154 = vpop.permute.xlu0 %1153
      %1157 = vset.pattern.permute.xlu0 0
      %1158 = vperm.xlu0 %1157, %v1090
      %v1159 = vpop.permute.xlu0 %1158
      %v1161 = vmul.f32 %v1049, %v1094
      %v1162 = vmul.f32 %v1050, %v1094
      %v1163 = vmul.f32 %v1051, %v1099
      %v1164 = vmul.f32 %v1052, %v1099
      %v1165 = vmul.f32 %v1053, %v1104
      %v1166 = vmul.f32 %v1054, %v1104
      %v1167 = vmul.f32 %v1055, %v1109
      %v1168 = vmul.f32 %v1056, %v1109
      %v1169 = vmul.f32 %v1057, %v1114
      %v1170 = vmul.f32 %v1058, %v1114
      %v1171 = vmul.f32 %v1059, %v1119
      %v1172 = vmul.f32 %v1060, %v1119
      %v1173 = vmul.f32 %v1061, %v1124
      %v1174 = vmul.f32 %v1062, %v1124
      %v1175 = vmul.f32 %v1063, %v1129
      %v1176 = vmul.f32 %v1064, %v1129
      %v1177 = vmul.f32 %v1065, %v1134
      %v1178 = vmul.f32 %v1066, %v1134
      %v1179 = vmul.f32 %v1067, %v1139
      %v1180 = vmul.f32 %v1068, %v1139
      %v1181 = vmul.f32 %v1069, %v1144
      %v1182 = vmul.f32 %v1070, %v1144
      %v1183 = vmul.f32 %v1071, %v1149
      %v1184 = vmul.f32 %v1072, %v1149
      %v1185 = vmul.f32 %v1073, %v1154
      %v1186 = vmul.f32 %v1074, %v1154
      %v1187 = vmul.f32 %v1075, %v1159
      %v1188 = vmul.f32 %v1076, %v1159
      %v1189 = vpack.c.bf16 %v1163, %v1161
      %v1190 = vpack.c.bf16 %v1164, %v1162
      %v1191 = vpack.c.bf16 %v1167, %v1165
      %v1192 = vpack.c.bf16 %v1168, %v1166
      %v1193 = vpack.c.bf16 %v1171, %v1169
      %v1194 = vpack.c.bf16 %v1172, %v1170
      %v1195 = vpack.c.bf16 %v1175, %v1173
      %v1196 = vpack.c.bf16 %v1176, %v1174
      %v1197 = vpack.c.bf16 %v1179, %v1177
      %v1198 = vpack.c.bf16 %v1180, %v1178
      %v1199 = vpack.c.bf16 %v1183, %v1181
      %v1200 = vpack.c.bf16 %v1184, %v1182
      %v1201 = vpack.c.bf16 %v1187, %v1185
      %v1202 = vpack.c.bf16 %v1188, %v1186
      %1203 = vst [vmem:[#allocation2 + $0x70] sm:$0xff] %v1189
      %1204 = vst [vmem:[#allocation2 + $0x78] sm:$0xff] %v1190
      %1205 = vst [vmem:[#allocation2 + $0x80] sm:$0xff] %v1191
      %1206 = vst [vmem:[#allocation2 + $0x88] sm:$0xff] %v1192
      %1207 = vst [vmem:[#allocation2 + $0x90] sm:$0xff] %v1193
      %1208 = vst [vmem:[#allocation2 + $0x98] sm:$0xff] %v1194
      %1209 = vst [vmem:[#allocation2 + $0xa0] sm:$0xff] %v1195
      %1210 = vst [vmem:[#allocation2 + $0xa8] sm:$0xff] %v1196
      %1211 = vst [vmem:[#allocation2 + $0xb0] sm:$0xff] %v1197
      %1212 = vst [vmem:[#allocation2 + $0xb8] sm:$0xff] %v1198
      %1213 = vst [vmem:[#allocation2 + $0xc0] sm:$0xff] %v1199
      %1214 = vst [vmem:[#allocation2 + $0xc8] sm:$0xff] %v1200
      %1215 = vst [vmem:[#allocation2 + $0xd0] sm:$0xff] %v1201
      %1216 = vst [vmem:[#allocation2 + $0xd8] sm:$0xff] %v1202
      %v1217 = vld [vmem:[%s354 + $0x70] sm:$0xf]
      %v1218 = vld [vmem:[%s354 + $0x74] sm:$0xf]
      %v1219 = vld [vmem:[%s354 + $0x78] sm:$0xf]
      %v1220 = vld [vmem:[%s354 + $0x7c] sm:$0xf]
      %v1221 = vld [vmem:[%s354 + $0x80] sm:$0xf]
      %v1222 = vld [vmem:[%s354 + $0x84] sm:$0xf]
      %v1223 = vld [vmem:[%s354 + $0x88] sm:$0xf]
      %v1224 = vld [vmem:[%s354 + $0x8c] sm:$0xf]
      %v1225 = vld [vmem:[%s354 + $0x90] sm:$0xf]
      %v1226 = vld [vmem:[%s354 + $0x94] sm:$0xf]
      %v1227 = vld [vmem:[%s354 + $0x98] sm:$0xf]
      %v1228 = vld [vmem:[%s354 + $0x9c] sm:$0xf]
      %v1229 = vld [vmem:[%s354 + $0xa0] sm:$0xf]
      %v1230 = vld [vmem:[%s354 + $0xa4] sm:$0xf]
      %v1245 = vunpack.c.l.b16 %v1217
      %v1246 = vunpack.c.l.b16 %v1218
      %v1247 = vunpack.c.l.b16 %v1219
      %v1248 = vunpack.c.l.b16 %v1220
      %v1249 = vunpack.c.l.b16 %v1221
      %v1250 = vunpack.c.l.b16 %v1222
      %v1251 = vunpack.c.l.b16 %v1223
      %v1252 = vunpack.c.l.b16 %v1224
      %v1253 = vunpack.c.l.b16 %v1225
      %v1254 = vunpack.c.l.b16 %v1226
      %v1255 = vunpack.c.l.b16 %v1227
      %v1256 = vunpack.c.l.b16 %v1228
      %v1257 = vunpack.c.l.b16 %v1229
      %v1258 = vunpack.c.l.b16 %v1230
      %v1259 = vpack.c.b16 %v1246, %v1245
      %v1260 = vpack.c.b16 %v1248, %v1247
      %v1261 = vpack.c.b16 %v1250, %v1249
      %v1262 = vpack.c.b16 %v1252, %v1251
      %v1263 = vpack.c.b16 %v1254, %v1253
      %v1264 = vpack.c.b16 %v1256, %v1255
      %v1265 = vpack.c.b16 %v1258, %v1257
      %v1267 = vsel %vm442, %v1259, 0
      %v1270 = vsel %vm442, %v1260, 0
      %v1273 = vsel %vm442, %v1261, 0
      %v1276 = vsel %vm442, %v1262, 0
      %v1279 = vsel %vm442, %v1263, 0
      %v1282 = vsel %vm442, %v1264, 0
      %v1285 = vsel %vm442, %v1265, 0
      %1287 = vmatprep.subr.bf16.mxu0 %v433
      %1288 = vmatpush1.bf16.msra.mxu0 %v432
      %1289 = vmatprep.subr.bf16.mxu0 %v435
      %1290 = vmatpush1.bf16.msra.mxu0 %v434
      %1291 = vmatprep.subr.bf16.mxu0 %v469
      %1292 = vmatpush1.bf16.msra.mxu0 %v466
      %1293 = vmatprep.subr.bf16.mxu0 0
      %1294 = vmatpush1.bf16.msra.mxu0 0
      %1295 = vmatprep.subr.bf16.mxu0 0
      %1296 = vmatpush1.bf16.msra.mxu0 0
      %1297 = vmatprep.subr.bf16.mxu0 0
      %1298 = vmatpush1.bf16.msra.mxu0 0
      %1299 = vmatprep.subr.bf16.mxu0 0
      %1300 = vmatpush1.bf16.msra.mxu0 0
      %1301 = vmatprep.subr.bf16.mxu0 0
      %1302 = vmatpush1.bf16.msra.mxu0 0
      %1303 = vmatprep.subr.bf16.mxu0 0
      %1304 = vmatpush1.bf16.msra.mxu0 0
      %1305 = vmatprep.subr.bf16.mxu0 0
      %1306 = vmatpush1.bf16.msra.mxu0 0
      %1307 = vmatprep.subr.bf16.mxu0 0
      %1308 = vmatpush1.bf16.msra.mxu0 0
      %1309 = vmatprep.subr.bf16.mxu0 0
      %1310 = vmatpush1.bf16.msra.mxu0 0
      %1311 = vmatprep.subr.bf16.mxu0 0
      %1312 = vmatpush1.bf16.msra.mxu0 0
      %1313 = vmatprep.subr.bf16.mxu0 0
      %1314 = vmatpush1.bf16.msra.mxu0 0
      %1315 = vmatprep.subr.bf16.mxu0 0
      %1316 = vmatpush1.bf16.msra.mxu0 0
      %1317 = vmatprep.subr.bf16.mxu0 0
      %1318 = vmatpush1.bf16.msra.mxu0 0
      %1319 = vmatprep.mubr.bf16.mxu0 0
      %1320 = vmatmul.mubr.bf16.gmra.mrb[0].mxu0 %v1267
      %v1321 = vpop.f32.mrb[0].mxu0
      %v1322 = vadd.f32 0.0, %v1321
      %v1323 = vpop.f32.mrb[0].mxu0
      %v1324 = vadd.f32 0.0, %v1323
      %v1325 = vpop.f32.mrb[0].mxu0
      %v1326 = vadd.f32 0.0, %v1325
      %v1327 = vpop.f32.mrb[0].mxu0
      %v1328 = vadd.f32 0.0, %v1327
      %1329 = vmatprep.mubr.bf16.mxu0 0
      %1330 = vmatmul.mubr.bf16.gmra.mrb[0].mxu0 %v1270
      %v1331 = vpop.f32.mrb[0].mxu0
      %v1332 = vadd.f32 0.0, %v1331
      %v1333 = vpop.f32.mrb[0].mxu0
      %v1334 = vadd.f32 0.0, %v1333
      %v1335 = vpop.f32.mrb[0].mxu0
      %v1336 = vadd.f32 0.0, %v1335
      %v1337 = vpop.f32.mrb[0].mxu0
      %v1338 = vadd.f32 0.0, %v1337
      %1339 = vmatprep.mubr.bf16.mxu0 0
      %1340 = vmatmul.mubr.bf16.gmra.mrb[0].mxu0 %v1273
      %v1341 = vpop.f32.mrb[0].mxu0
      %v1342 = vadd.f32 0.0, %v1341
      %v1343 = vpop.f32.mrb[0].mxu0
      %v1344 = vadd.f32 0.0, %v1343
      %v1345 = vpop.f32.mrb[0].mxu0
      %v1346 = vadd.f32 0.0, %v1345
      %v1347 = vpop.f32.mrb[0].mxu0
      %v1348 = vadd.f32 0.0, %v1347
      %1349 = vmatprep.mubr.bf16.mxu0 0
      %1350 = vmatmul.mubr.bf16.gmra.mrb[0].mxu0 %v1276
      %v1351 = vpop.f32.mrb[0].mxu0
      %v1352 = vadd.f32 0.0, %v1351
      %v1353 = vpop.f32.mrb[0].mxu0
      %v1354 = vadd.f32 0.0, %v1353
      %v1355 = vpop.f32.mrb[0].mxu0
      %v1356 = vadd.f32 0.0, %v1355
      %v1357 = vpop.f32.mrb[0].mxu0
      %v1358 = vadd.f32 0.0, %v1357
      %1359 = vmatprep.mubr.bf16.mxu0 0
      %1360 = vmatmul.mubr.bf16.gmra.mrb[0].mxu0 %v1279
      %v1361 = vpop.f32.mrb[0].mxu0
      %v1362 = vadd.f32 0.0, %v1361
      %v1363 = vpop.f32.mrb[0].mxu0
      %v1364 = vadd.f32 0.0, %v1363
      %v1365 = vpop.f32.mrb[0].mxu0
      %v1366 = vadd.f32 0.0, %v1365
      %v1367 = vpop.f32.mrb[0].mxu0
      %v1368 = vadd.f32 0.0, %v1367
      %1369 = vmatprep.mubr.bf16.mxu0 0
      %1370 = vmatmul.mubr.bf16.gmra.mrb[0].mxu0 %v1282
      %v1371 = vpop.f32.mrb[0].mxu0
      %v1372 = vadd.f32 0.0, %v1371
      %v1373 = vpop.f32.mrb[0].mxu0
      %v1374 = vadd.f32 0.0, %v1373
      %v1375 = vpop.f32.mrb[0].mxu0
      %v1376 = vadd.f32 0.0, %v1375
      %v1377 = vpop.f32.mrb[0].mxu0
      %v1378 = vadd.f32 0.0, %v1377
      %1379 = vmatprep.mubr.bf16.mxu0 0
      %1380 = vmatmul.mubr.bf16.gmra.mrb[0].mxu0 %v1285
      %v1381 = vpop.f32.mrb[0].mxu0
      %v1382 = vadd.f32 0.0, %v1381
      %v1383 = vpop.f32.mrb[0].mxu0
      %v1384 = vadd.f32 0.0, %v1383
      %v1385 = vpop.f32.mrb[0].mxu0
      %v1386 = vadd.f32 0.0, %v1385
      %v1387 = vpop.f32.mrb[0].mxu0
      %v1388 = vadd.f32 0.0, %v1387
      %1389 = vdwg.mxu0
      %v1390 = vmul.f32 %v1322, %v578
      %v1391 = vmul.f32 %v1324, %v582
      %v1392 = vmul.f32 %v1326, %v578
      %v1393 = vmul.f32 %v1328, %v582
      %v1394 = vmul.f32 %v1332, %v578
      %v1395 = vmul.f32 %v1334, %v582
      %v1396 = vmul.f32 %v1336, %v578
      %v1397 = vmul.f32 %v1338, %v582
      %v1398 = vmul.f32 %v1342, %v578
      %v1399 = vmul.f32 %v1344, %v582
      %v1400 = vmul.f32 %v1346, %v578
      %v1401 = vmul.f32 %v1348, %v582
      %v1402 = vmul.f32 %v1352, %v578
      %v1403 = vmul.f32 %v1354, %v582
      %v1404 = vmul.f32 %v1356, %v578
      %v1405 = vmul.f32 %v1358, %v582
      %v1406 = vmul.f32 %v1362, %v578
      %v1407 = vmul.f32 %v1364, %v582
      %v1408 = vmul.f32 %v1366, %v578
      %v1409 = vmul.f32 %v1368, %v582
      %v1410 = vmul.f32 %v1372, %v578
      %v1411 = vmul.f32 %v1374, %v582
      %v1412 = vmul.f32 %v1376, %v578
      %v1413 = vmul.f32 %v1378, %v582
      %v1414 = vmul.f32 %v1382, %v578
      %v1415 = vmul.f32 %v1384, %v582
      %v1416 = vmul.f32 %v1386, %v578
      %v1417 = vmul.f32 %v1388, %v582
      %v1418 = vadd.f32 %v1390, %v617
      %v1419 = vadd.f32 %v1391, %v621
      %v1420 = vadd.f32 %v1392, %v617
      %v1421 = vadd.f32 %v1393, %v621
      %v1422 = vadd.f32 %v1394, %v617
      %v1423 = vadd.f32 %v1395, %v621
      %v1424 = vadd.f32 %v1396, %v617
      %v1425 = vadd.f32 %v1397, %v621
      %v1426 = vadd.f32 %v1398, %v617
      %v1427 = vadd.f32 %v1399, %v621
      %v1428 = vadd.f32 %v1400, %v617
      %v1429 = vadd.f32 %v1401, %v621
      %v1430 = vadd.f32 %v1402, %v617
      %v1431 = vadd.f32 %v1403, %v621
      %v1432 = vadd.f32 %v1404, %v617
      %v1433 = vadd.f32 %v1405, %v621
      %v1434 = vadd.f32 %v1406, %v617
      %v1435 = vadd.f32 %v1407, %v621
      %v1436 = vadd.f32 %v1408, %v617
      %v1437 = vadd.f32 %v1409, %v621
      %v1438 = vadd.f32 %v1410, %v617
      %v1439 = vadd.f32 %v1411, %v621
      %v1440 = vadd.f32 %v1412, %v617
      %v1441 = vadd.f32 %v1413, %v621
      %v1442 = vadd.f32 %v1414, %v617
      %v1443 = vadd.f32 %v1415, %v621
      %v1444 = vadd.f32 %v1416, %v617
      %v1445 = vadd.f32 %v1417, %v621
      %v1446 = vmax.f32 %v1418, 0.0
      %v1447 = vmax.f32 %v1419, 0.0
      %v1448 = vmax.f32 %v1420, 0.0
      %v1449 = vmax.f32 %v1421, 0.0
      %v1450 = vmax.f32 %v1422, 0.0
      %v1451 = vmax.f32 %v1423, 0.0
      %v1452 = vmax.f32 %v1424, 0.0
      %v1453 = vmax.f32 %v1425, 0.0
      %v1454 = vmax.f32 %v1426, 0.0
      %v1455 = vmax.f32 %v1427, 0.0
      %v1456 = vmax.f32 %v1428, 0.0
      %v1457 = vmax.f32 %v1429, 0.0
      %v1458 = vmax.f32 %v1430, 0.0
      %v1459 = vmax.f32 %v1431, 0.0
      %v1460 = vmax.f32 %v1432, 0.0
      %v1461 = vmax.f32 %v1433, 0.0
      %v1462 = vmax.f32 %v1434, 0.0
      %v1463 = vmax.f32 %v1435, 0.0
      %v1464 = vmax.f32 %v1436, 0.0
      %v1465 = vmax.f32 %v1437, 0.0
      %v1466 = vmax.f32 %v1438, 0.0
      %v1467 = vmax.f32 %v1439, 0.0
      %v1468 = vmax.f32 %v1440, 0.0
      %v1469 = vmax.f32 %v1441, 0.0
      %v1470 = vmax.f32 %v1442, 0.0
      %v1471 = vmax.f32 %v1443, 0.0
      %v1472 = vmax.f32 %v1444, 0.0
      %v1473 = vmax.f32 %v1445, 0.0
      %v1474 = vld [vmem:[%s1 + $0xe0] sm:$0xff]
      %v1475 = vld [vmem:[%s1 + $0xe8] sm:$0xff]
      %v1476 = vld [vmem:[%s1 + $0xf0] sm:$0xff]
      %v1477 = vld [vmem:[%s1 + $0xf8] sm:$0xff]
      %v1478 = vld [vmem:[%s1 + $0x100] sm:$0xff]
      %v1479 = vld [vmem:[%s1 + $0x108] sm:$0xff]
      %v1480 = vld [vmem:[%s1 + $0x110] sm:$0xff]
      %v1481 = vld [vmem:[%s1 + $0x118] sm:$0xff]
      %v1482 = vld [vmem:[%s1 + $0x120] sm:$0xff]
      %v1483 = vld [vmem:[%s1 + $0x128] sm:$0xff]
      %v1484 = vld [vmem:[%s1 + $0x130] sm:$0xff]
      %v1485 = vld [vmem:[%s1 + $0x138] sm:$0xff]
      %v1486 = vld [vmem:[%s1 + $0x140] sm:$0xff]
      %v1487 = vld [vmem:[%s1 + $0x148] sm:$0xff]
      %1489 = vset.pattern.permute.xlu0 0
      %1490 = vperm.xlu0 %1489, %v1474
      %v1491 = vpop.permute.xlu0 %1490
      %1494 = vset.pattern.permute.xlu0 0
      %1495 = vperm.xlu0 %1494, %v1475
      %v1496 = vpop.permute.xlu0 %1495
      %1499 = vset.pattern.permute.xlu0 0
      %1500 = vperm.xlu0 %1499, %v1476
      %v1501 = vpop.permute.xlu0 %1500
      %1504 = vset.pattern.permute.xlu0 0
      %1505 = vperm.xlu0 %1504, %v1477
      %v1506 = vpop.permute.xlu0 %1505
      %1509 = vset.pattern.permute.xlu0 0
      %1510 = vperm.xlu0 %1509, %v1478
      %v1511 = vpop.permute.xlu0 %1510
      %1514 = vset.pattern.permute.xlu0 0
      %1515 = vperm.xlu0 %1514, %v1479
      %v1516 = vpop.permute.xlu0 %1515
      %1519 = vset.pattern.permute.xlu0 0
      %1520 = vperm.xlu0 %1519, %v1480
      %v1521 = vpop.permute.xlu0 %1520
      %1524 = vset.pattern.permute.xlu0 0
      %1525 = vperm.xlu0 %1524, %v1481
      %v1526 = vpop.permute.xlu0 %1525
      %1529 = vset.pattern.permute.xlu0 0
      %1530 = vperm.xlu0 %1529, %v1482
      %v1531 = vpop.permute.xlu0 %1530
      %1534 = vset.pattern.permute.xlu0 0
      %1535 = vperm.xlu0 %1534, %v1483
      %v1536 = vpop.permute.xlu0 %1535
      %1539 = vset.pattern.permute.xlu0 0
      %1540 = vperm.xlu0 %1539, %v1484
      %v1541 = vpop.permute.xlu0 %1540
      %1544 = vset.pattern.permute.xlu0 0
      %1545 = vperm.xlu0 %1544, %v1485
      %v1546 = vpop.permute.xlu0 %1545
      %1549 = vset.pattern.permute.xlu0 0
      %1550 = vperm.xlu0 %1549, %v1486
      %v1551 = vpop.permute.xlu0 %1550
      %1554 = vset.pattern.permute.xlu0 0
      %1555 = vperm.xlu0 %1554, %v1487
      %v1556 = vpop.permute.xlu0 %1555
      %v1558 = vmul.f32 %v1446, %v1491
      %v1559 = vmul.f32 %v1447, %v1491
      %v1560 = vmul.f32 %v1448, %v1496
      %v1561 = vmul.f32 %v1449, %v1496
      %v1562 = vmul.f32 %v1450, %v1501
      %v1563 = vmul.f32 %v1451, %v1501
      %v1564 = vmul.f32 %v1452, %v1506
      %v1565 = vmul.f32 %v1453, %v1506
      %v1566 = vmul.f32 %v1454, %v1511
      %v1567 = vmul.f32 %v1455, %v1511
      %v1568 = vmul.f32 %v1456, %v1516
      %v1569 = vmul.f32 %v1457, %v1516
      %v1570 = vmul.f32 %v1458, %v1521
      %v1571 = vmul.f32 %v1459, %v1521
      %v1572 = vmul.f32 %v1460, %v1526
      %v1573 = vmul.f32 %v1461, %v1526
      %v1574 = vmul.f32 %v1462, %v1531
      %v1575 = vmul.f32 %v1463, %v1531
      %v1576 = vmul.f32 %v1464, %v1536
      %v1577 = vmul.f32 %v1465, %v1536
      %v1578 = vmul.f32 %v1466, %v1541
      %v1579 = vmul.f32 %v1467, %v1541
      %v1580 = vmul.f32 %v1468, %v1546
      %v1581 = vmul.f32 %v1469, %v1546
      %v1582 = vmul.f32 %v1470, %v1551
      %v1583 = vmul.f32 %v1471, %v1551
      %v1584 = vmul.f32 %v1472, %v1556
      %v1585 = vmul.f32 %v1473, %v1556
      %v1586 = vpack.c.bf16 %v1560, %v1558
      %v1587 = vpack.c.bf16 %v1561, %v1559
      %v1588 = vpack.c.bf16 %v1564, %v1562
      %v1589 = vpack.c.bf16 %v1565, %v1563
      %v1590 = vpack.c.bf16 %v1568, %v1566
      %v1591 = vpack.c.bf16 %v1569, %v1567
      %v1592 = vpack.c.bf16 %v1572, %v1570
      %v1593 = vpack.c.bf16 %v1573, %v1571
      %v1594 = vpack.c.bf16 %v1576, %v1574
      %v1595 = vpack.c.bf16 %v1577, %v1575
      %v1596 = vpack.c.bf16 %v1580, %v1578
      %v1597 = vpack.c.bf16 %v1581, %v1579
      %v1598 = vpack.c.bf16 %v1584, %v1582
      %v1599 = vpack.c.bf16 %v1585, %v1583
      %1600 = vst [vmem:[#allocation2 + $0xe0] sm:$0xff] %v1586
      %1601 = vst [vmem:[#allocation2 + $0xe8] sm:$0xff] %v1587
      %1602 = vst [vmem:[#allocation2 + $0xf0] sm:$0xff] %v1588
      %1603 = vst [vmem:[#allocation2 + $0xf8] sm:$0xff] %v1589
      %1604 = vst [vmem:[#allocation2 + $0x100] sm:$0xff] %v1590
      %1605 = vst [vmem:[#allocation2 + $0x108] sm:$0xff] %v1591
      %1606 = vst [vmem:[#allocation2 + $0x110] sm:$0xff] %v1592
      %1607 = vst [vmem:[#allocation2 + $0x118] sm:$0xff] %v1593
      %1608 = vst [vmem:[#allocation2 + $0x120] sm:$0xff] %v1594
      %1609 = vst [vmem:[#allocation2 + $0x128] sm:$0xff] %v1595
      %1610 = vst [vmem:[#allocation2 + $0x130] sm:$0xff] %v1596
      %1611 = vst [vmem:[#allocation2 + $0x138] sm:$0xff] %v1597
      %1612 = vst [vmem:[#allocation2 + $0x140] sm:$0xff] %v1598
      %1613 = vst [vmem:[#allocation2 + $0x148] sm:$0xff] %v1599
      %v1614 = vld [vmem:[%s6] sm:$0x3]
      %v1615 = vld [vmem:[%s7] sm:$0x3]
      %v1616 = vld [vmem:[%s8] sm:$0xf]
      %v1617 = vld [vmem:[%s8 + $0x4] sm:$0xf]
      %v1618 = vld [vmem:[%s8 + $0x8] sm:$0xf]
      %v1619 = vld [vmem:[%s8 + $0xc] sm:$0xf]
      %v1620 = vld [vmem:[%s8 + $0x10] sm:$0xf]
      %v1621 = vld [vmem:[%s8 + $0x14] sm:$0xf]
      %v1622 = vld [vmem:[%s8 + $0x18] sm:$0xf]
      %v1623 = vld [vmem:[%s8 + $0x1c] sm:$0xf]
      %v1624 = vld [vmem:[%s8 + $0x20] sm:$0xf]
      %v1625 = vld [vmem:[%s8 + $0x24] sm:$0xf]
      %v1626 = vld [vmem:[%s8 + $0x28] sm:$0xf]
      %v1627 = vld [vmem:[%s8 + $0x2c] sm:$0xf]
      %v1628 = vld [vmem:[%s8 + $0x30] sm:$0xf]
      %v1629 = vld [vmem:[%s8 + $0x34] sm:$0xf]
      %v1630 = vld [vmem:[%s8 + $0x38] sm:$0xf]
      %v1631 = vld [vmem:[%s8 + $0x3c] sm:$0xf]
      %v1632 = vld [vmem:[%s8 + $0x40] sm:$0xf]
      %v1633 = vld [vmem:[%s8 + $0x44] sm:$0xf]
      %v1634 = vld [vmem:[%s8 + $0x48] sm:$0xf]
      %v1635 = vld [vmem:[%s8 + $0x4c] sm:$0xf]
      %v1636 = vld [vmem:[%s8 + $0x50] sm:$0xf]
      %v1637 = vld [vmem:[%s8 + $0x54] sm:$0xf]
      %v1638 = vld [vmem:[%s8 + $0x58] sm:$0xf]
      %v1639 = vld [vmem:[%s8 + $0x5c] sm:$0xf]
      %v1640 = vld [vmem:[%s8 + $0x60] sm:$0xf]
      %v1641 = vld [vmem:[%s8 + $0x64] sm:$0xf]
      %v1642 = vld [vmem:[%s8 + $0x68] sm:$0xf]
      %v1643 = vld [vmem:[%s8 + $0x6c] sm:$0xf]
      %v1644 = vld [vmem:[%s8 + $0x70] sm:$0xf]
      %v1645 = vld [vmem:[%s8 + $0x74] sm:$0xf]
      %v1646 = vld [vmem:[%s8 + $0x78] sm:$0xf]
      %v1647 = vld [vmem:[%s8 + $0x7c] sm:$0xf]
      %v1648 = vld [vmem:[%s9] sm:$0x1]
      %v1649 = vld [vmem:[#allocation2] sm:$0xff]
      %v1650 = vld [vmem:[#allocation2 + $0x8] sm:$0xff]
      %v1651 = vld [vmem:[#allocation2 + $0x10] sm:$0xff]
      %v1652 = vld [vmem:[#allocation2 + $0x18] sm:$0xff]
      %v1653 = vld [vmem:[#allocation2 + $0x20] sm:$0xff]
      %v1654 = vld [vmem:[#allocation2 + $0x28] sm:$0xff]
      %v1655 = vld [vmem:[#allocation2 + $0x30] sm:$0xff]
      %v1656 = vld [vmem:[#allocation2 + $0x38] sm:$0xff]
      %v1657 = vld [vmem:[#allocation2 + $0x40] sm:$0xff]
      %v1658 = vld [vmem:[#allocation2 + $0x48] sm:$0xff]
      %v1659 = vld [vmem:[#allocation2 + $0x50] sm:$0xff]
      %v1660 = vld [vmem:[#allocation2 + $0x58] sm:$0xff]
      %v1661 = vld [vmem:[%s5] sm:$0xff]
      %v1662 = vld [vmem:[%s5 + $0x8] sm:$0xff]
      %v1663 = vld [vmem:[%s5 + $0x10] sm:$0xff]
      %v1664 = vld [vmem:[%s5 + $0x18] sm:$0xff]
      %v1665 = vld [vmem:[%s5 + $0x20] sm:$0xff]
      %v1666 = vld [vmem:[%s5 + $0x28] sm:$0xff]
      %v1667 = vld [vmem:[%s5 + $0x30] sm:$0xff]
      %v1668 = vld [vmem:[%s5 + $0x38] sm:$0xff]
      %v1669 = vld [vmem:[%s5 + $0x40] sm:$0xff]
      %v1670 = vld [vmem:[%s5 + $0x48] sm:$0xff]
      %v1671 = vld [vmem:[%s5 + $0x50] sm:$0xff]
      %v1672 = vld [vmem:[%s5 + $0x58] sm:$0xff]
      %v1673 = vld [vmem:[%s5 + $0x60] sm:$0xff]
      %v1674 = vld [vmem:[%s5 + $0x68] sm:$0xff]
      %v1675 = vld [vmem:[%s5 + $0x70] sm:$0xff]
      %v1676 = vld [vmem:[%s5 + $0x78] sm:$0xff]
      %v1677 = vld [vmem:[%s5 + $0x80] sm:$0xff]
      %v1678 = vld [vmem:[%s5 + $0x88] sm:$0xff]
      %v1679 = vld [vmem:[%s5 + $0x90] sm:$0xff]
      %v1680 = vld [vmem:[%s5 + $0x98] sm:$0xff]
      %v1681 = vld [vmem:[%s5 + $0xa0] sm:$0xff]
      %v1682 = vld [vmem:[%s5 + $0xa8] sm:$0xff]
      %v1683 = vld [vmem:[%s5 + $0xb0] sm:$0xff]
      %v1684 = vld [vmem:[%s5 + $0xb8] sm:$0xff]
      %v1685 = vld [vmem:[%s5 + $0xc0] sm:$0xff]
      %v1686 = vld [vmem:[%s5 + $0xc8] sm:$0xff]
      %v1687 = vld [vmem:[%s5 + $0xd0] sm:$0xff]
      %v1688 = vld [vmem:[%s5 + $0xd8] sm:$0xff]
      %v1689 = vld [vmem:[%s5 + $0xe0] sm:$0xff]
      %v1690 = vld [vmem:[%s5 + $0xe8] sm:$0xff]
      %v1691 = vld [vmem:[%s5 + $0xf0] sm:$0xff]
      %v1692 = vld [vmem:[%s5 + $0xf8] sm:$0xff]
      %v1693 = vld [vmem:[#allocation2 + $0x60] sm:$0x1]
      %v1694 = vld [vmem:[#allocation2 + $0x68] sm:$0x1]
      %s1695 = scalar_lea.vmem %s5, 256
      %v1696 = vld [vmem:[%s1695] sm:$0xff]
      %v1697 = vld [vmem:[%s1695 + $0x8] sm:$0xff]
      %v1698 = vld [vmem:[%s1695 + $0x10] sm:$0xff]
      %v1699 = vld [vmem:[%s1695 + $0x18] sm:$0xff]
      %v1700 = vld [vmem:[%s1695 + $0x20] sm:$0xff]
      %v1701 = vld [vmem:[%s1695 + $0x28] sm:$0xff]
      %v1702 = vld [vmem:[%s1695 + $0x30] sm:$0xff]
      %v1703 = vld [vmem:[%s1695 + $0x38] sm:$0xff]
      %v1704 = vld [vmem:[%s1695 + $0x40] sm:$0xff]
      %v1705 = vld [vmem:[%s1695 + $0x48] sm:$0xff]
      %v1706 = vld [vmem:[%s1695 + $0x50] sm:$0xff]
      %v1707 = vld [vmem:[%s1695 + $0x58] sm:$0xff]
      %v1708 = vld [vmem:[%s1695 + $0x60] sm:$0xff]
      %v1709 = vld [vmem:[%s1695 + $0x68] sm:$0xff]
      %v1710 = vld [vmem:[%s1695 + $0x70] sm:$0xff]
      %v1711 = vld [vmem:[%s1695 + $0x78] sm:$0xff]
      %v1712 = vld [vmem:[%s1695 + $0x80] sm:$0xff]
      %v1713 = vld [vmem:[%s1695 + $0x88] sm:$0xff]
      %v1714 = vld [vmem:[%s1695 + $0x90] sm:$0xff]
      %v1715 = vld [vmem:[%s1695 + $0x98] sm:$0xff]
      %v1716 = vld [vmem:[%s1695 + $0xa0] sm:$0xff]
      %v1717 = vld [vmem:[%s1695 + $0xa8] sm:$0xff]
      %v1718 = vld [vmem:[%s1695 + $0xb0] sm:$0xff]
      %v1719 = vld [vmem:[%s1695 + $0xb8] sm:$0xff]
      %v1720 = vld [vmem:[%s1695 + $0xc0] sm:$0xff]
      %v1721 = vld [vmem:[%s1695 + $0xc8] sm:$0xff]
      %v1722 = vld [vmem:[%s1695 + $0xd0] sm:$0xff]
      %v1723 = vld [vmem:[%s1695 + $0xd8] sm:$0xff]
      %v1724 = vld [vmem:[%s1695 + $0xe0] sm:$0xff]
      %v1725 = vld [vmem:[%s1695 + $0xe8] sm:$0xff]
      %v1726 = vld [vmem:[%s1695 + $0xf0] sm:$0xff]
      %v1727 = vld [vmem:[%s1695 + $0xf8] sm:$0xff]
      %vm1728 = vsmask.f32 7424
      %v1730 = vshrl.u32 %v1649, 16
      %v1732 = vshll.u32 %v1649, 16
      %v1734 = vrot.slane %v1732, 1
      %v1735 = vor.u32 %v1730, %v1734
      %v1737 = vshll.u32 %v1651, 16
      %v1739 = vrot.slane %v1737, 1
      %v1740 = vsel %vm1728, %v1735, %v1739
      %v1742 = vshrl.u32 %v1650, 16
      %v1744 = vshll.u32 %v1650, 16
      %v1746 = vrot.slane %v1744, 1
      %v1747 = vor.u32 %v1742, %v1746
      %v1749 = vshll.u32 %v1652, 16
      %v1751 = vrot.slane %v1749, 1
      %v1752 = vsel %vm1728, %v1747, %v1751
      %v1753 = vshrl.u32 %v1651, 16
      %v1755 = vor.u32 %v1753, %v1739
      %v1757 = vshll.u32 %v1653, 16
      %v1759 = vrot.slane %v1757, 1
      %v1760 = vsel %vm1728, %v1755, %v1759
      %v1761 = vshrl.u32 %v1652, 16
      %v1763 = vor.u32 %v1761, %v1751
      %v1765 = vshll.u32 %v1654, 16
      %v1767 = vrot.slane %v1765, 1
      %v1768 = vsel %vm1728, %v1763, %v1767
      %v1769 = vshrl.u32 %v1653, 16
      %v1771 = vor.u32 %v1769, %v1759
      %v1773 = vshll.u32 %v1655, 16
      %v1775 = vrot.slane %v1773, 1
      %v1776 = vsel %vm1728, %v1771, %v1775
      %v1777 = vshrl.u32 %v1654, 16
      %v1779 = vor.u32 %v1777, %v1767
      %v1781 = vshll.u32 %v1656, 16
      %v1783 = vrot.slane %v1781, 1
      %v1784 = vsel %vm1728, %v1779, %v1783
      %v1785 = vshrl.u32 %v1655, 16
      %v1787 = vor.u32 %v1785, %v1775
      %v1789 = vshll.u32 %v1657, 16
      %v1791 = vrot.slane %v1789, 1
      %v1792 = vsel %vm1728, %v1787, %v1791
      %v1793 = vshrl.u32 %v1656, 16
      %v1795 = vor.u32 %v1793, %v1783
      %v1797 = vshll.u32 %v1658, 16
      %v1799 = vrot.slane %v1797, 1
      %v1800 = vsel %vm1728, %v1795, %v1799
      %v1801 = vshrl.u32 %v1657, 16
      %v1803 = vor.u32 %v1801, %v1791
      %v1805 = vshll.u32 %v1659, 16
      %v1807 = vrot.slane %v1805, 1
      %v1808 = vsel %vm1728, %v1803, %v1807
      %v1809 = vshrl.u32 %v1658, 16
      %v1811 = vor.u32 %v1809, %v1799
      %v1813 = vshll.u32 %v1660, 16
      %v1815 = vrot.slane %v1813, 1
      %v1816 = vsel %vm1728, %v1811, %v1815
      %v1817 = vshrl.u32 %v1659, 16
      %v1819 = vor.u32 %v1817, %v1807
      %v1821 = vshll.u32 %v1693, 16
      %v1823 = vrot.slane %v1821, 1
      %v1824 = vsel %vm1728, %v1819, %v1823
      %v1825 = vshrl.u32 %v1660, 16
      %v1827 = vor.u32 %v1825, %v1815
      %v1829 = vshll.u32 %v1694, 16
      %v1831 = vrot.slane %v1829, 1
      %v1832 = vsel %vm1728, %v1827, %v1831
      %v1877 = vunpack.c.l.b16 %v1696
      %v1878 = vunpack.c.h.b16 %v1696
      %v1879 = vunpack.c.l.b16 %v1697
      %v1880 = vunpack.c.h.b16 %v1697
      %v1881 = vunpack.c.l.b16 %v1698
      %v1882 = vunpack.c.h.b16 %v1698
      %v1883 = vunpack.c.l.b16 %v1699
      %v1884 = vunpack.c.h.b16 %v1699
      %v1885 = vunpack.c.l.b16 %v1700
      %v1886 = vunpack.c.h.b16 %v1700
      %v1887 = vunpack.c.l.b16 %v1701
      %v1888 = vunpack.c.h.b16 %v1701
      %v1889 = vunpack.c.l.b16 %v1702
      %v1890 = vunpack.c.h.b16 %v1702
      %v1891 = vunpack.c.l.b16 %v1703
      %v1892 = vunpack.c.h.b16 %v1703
      %v1893 = vunpack.c.l.b16 %v1704
      %v1894 = vunpack.c.h.b16 %v1704
      %v1895 = vunpack.c.l.b16 %v1705
      %v1896 = vunpack.c.h.b16 %v1705
      %v1897 = vunpack.c.l.b16 %v1706
      %v1898 = vunpack.c.h.b16 %v1706
      %v1899 = vunpack.c.l.b16 %v1707
      %v1900 = vunpack.c.h.b16 %v1707
      %v1901 = vunpack.c.l.b16 %v1708
      %v1902 = vunpack.c.h.b16 %v1708
      %v1903 = vunpack.c.l.b16 %v1709
      %v1904 = vunpack.c.h.b16 %v1709
      %v1905 = vunpack.c.l.b16 %v1710
      %v1906 = vunpack.c.h.b16 %v1710
      %v1907 = vunpack.c.l.b16 %v1711
      %v1908 = vunpack.c.h.b16 %v1711
      %v1909 = vunpack.c.l.b16 %v1712
      %v1910 = vunpack.c.h.b16 %v1712
      %v1911 = vunpack.c.l.b16 %v1713
      %v1912 = vunpack.c.h.b16 %v1713
      %v1913 = vunpack.c.l.b16 %v1714
      %v1914 = vunpack.c.h.b16 %v1714
      %v1915 = vunpack.c.l.b16 %v1715
      %v1916 = vunpack.c.h.b16 %v1715
      %v1917 = vunpack.c.l.b16 %v1716
      %v1918 = vunpack.c.h.b16 %v1716
      %v1919 = vunpack.c.l.b16 %v1717
      %v1920 = vunpack.c.h.b16 %v1717
      %v1921 = vunpack.c.l.b16 %v1718
      %v1922 = vunpack.c.h.b16 %v1718
      %v1923 = vunpack.c.l.b16 %v1719
      %v1924 = vunpack.c.h.b16 %v1719
      %v1925 = vunpack.c.l.b16 %v1720
      %v1926 = vunpack.c.h.b16 %v1720
      %v1927 = vunpack.c.l.b16 %v1721
      %v1928 = vunpack.c.h.b16 %v1721
      %v1929 = vunpack.c.l.b16 %v1722
      %v1930 = vunpack.c.h.b16 %v1722
      %v1931 = vunpack.c.l.b16 %v1723
      %v1932 = vunpack.c.h.b16 %v1723
      %v1933 = vunpack.c.l.b16 %v1724
      %v1934 = vunpack.c.h.b16 %v1724
      %v1935 = vunpack.c.l.b16 %v1725
      %v1936 = vunpack.c.h.b16 %v1725
      %v1937 = vunpack.c.l.b16 %v1726
      %v1938 = vunpack.c.h.b16 %v1726
      %v1939 = vunpack.c.l.b16 %v1727
      %v1940 = vunpack.c.h.b16 %v1727
      %v1941 = vpack.c.b16 %v1879, %v1877
      %v1942 = vpack.c.b16 %v1880, %v1878
      %v1943 = vpack.c.b16 %v1883, %v1881
      %v1944 = vpack.c.b16 %v1884, %v1882
      %v1945 = vpack.c.b16 %v1887, %v1885
      %v1946 = vpack.c.b16 %v1888, %v1886
      %v1947 = vpack.c.b16 %v1891, %v1889
      %v1948 = vpack.c.b16 %v1892, %v1890
      %v1949 = vpack.c.b16 %v1895, %v1893
      %v1950 = vpack.c.b16 %v1896, %v1894
      %v1951 = vpack.c.b16 %v1899, %v1897
      %v1952 = vpack.c.b16 %v1900, %v1898
      %v1953 = vpack.c.b16 %v1903, %v1901
      %v1954 = vpack.c.b16 %v1904, %v1902
      %v1955 = vpack.c.b16 %v1907, %v1905
      %v1956 = vpack.c.b16 %v1908, %v1906
      %v1957 = vpack.c.b16 %v1911, %v1909
      %v1958 = vpack.c.b16 %v1912, %v1910
      %v1959 = vpack.c.b16 %v1915, %v1913
      %v1960 = vpack.c.b16 %v1916, %v1914
      %v1961 = vpack.c.b16 %v1919, %v1917
      %v1962 = vpack.c.b16 %v1920, %v1918
      %v1963 = vpack.c.b16 %v1923, %v1921
      %v1964 = vpack.c.b16 %v1924, %v1922
      %v1965 = vpack.c.b16 %v1927, %v1925
      %v1966 = vpack.c.b16 %v1928, %v1926
      %v1967 = vpack.c.b16 %v1931, %v1929
      %v1968 = vpack.c.b16 %v1932, %v1930
      %v1969 = vpack.c.b16 %v1935, %v1933
      %v1970 = vpack.c.b16 %v1936, %v1934
      %v1971 = vpack.c.b16 %v1939, %v1937
      %v1972 = vpack.c.b16 %v1940, %v1938
      %2005 = vmatprep.subr.bf16.mxu0 %v1942
      %2006 = vmatpush1.bf16.msra.mxu0 %v1941
      %2007 = vmatprep.subr.bf16.mxu0 %v1944
      %2008 = vmatpush1.bf16.msra.mxu0 %v1943
      %2009 = vmatprep.subr.bf16.mxu0 %v1946
      %2010 = vmatpush1.bf16.msra.mxu0 %v1945
      %2011 = vmatprep.subr.bf16.mxu0 %v1948
      %2012 = vmatpush1.bf16.msra.mxu0 %v1947
      %2013 = vmatprep.subr.bf16.mxu0 %v1950
      %2014 = vmatpush1.bf16.msra.mxu0 %v1949
      %2015 = vmatprep.subr.bf16.mxu0 %v1952
      %2016 = vmatpush1.bf16.msra.mxu0 %v1951
      %2017 = vmatprep.subr.bf16.mxu0 %v1954
      %2018 = vmatpush1.bf16.msra.mxu0 %v1953
      %2019 = vmatprep.subr.bf16.mxu0 %v1956
      %2020 = vmatpush1.bf16.msra.mxu0 %v1955
      %2021 = vmatprep.subr.bf16.mxu0 %v1958
      %2022 = vmatpush1.bf16.msra.mxu0 %v1957
      %2023 = vmatprep.subr.bf16.mxu0 %v1960
      %2024 = vmatpush1.bf16.msra.mxu0 %v1959
      %2025 = vmatprep.subr.bf16.mxu0 %v1962
      %2026 = vmatpush1.bf16.msra.mxu0 %v1961
      %2027 = vmatprep.subr.bf16.mxu0 %v1964
      %2028 = vmatpush1.bf16.msra.mxu0 %v1963
      %2029 = vmatprep.subr.bf16.mxu0 %v1966
      %2030 = vmatpush1.bf16.msra.mxu0 %v1965
      %2031 = vmatprep.subr.bf16.mxu0 %v1968
      %2032 = vmatpush1.bf16.msra.mxu0 %v1967
      %2033 = vmatprep.subr.bf16.mxu0 %v1970
      %2034 = vmatpush1.bf16.msra.mxu0 %v1969
      %2035 = vmatprep.subr.bf16.mxu0 %v1972
      %2036 = vmatpush1.bf16.msra.mxu0 %v1971
      %2037 = vmatprep.mubr.bf16.mxu0 %v1752
      %2038 = vmatmul.mubr.bf16.gmra.mrb[0].mxu0 %v1740
      %v2039 = vpop.f32.mrb[0].mxu0
      %v2040 = vadd.f32 0.0, %v2039
      %v2041 = vpop.f32.mrb[0].mxu0
      %v2042 = vadd.f32 0.0, %v2041
      %v2043 = vpop.f32.mrb[0].mxu0
      %v2044 = vadd.f32 0.0, %v2043
      %v2045 = vpop.f32.mrb[0].mxu0
      %v2046 = vadd.f32 0.0, %v2045
      %2047 = vmatprep.mubr.bf16.mxu0 %v1768
      %2048 = vmatmul.mubr.bf16.gmra.mrb[0].mxu0 %v1760
      %v2049 = vpop.f32.mrb[0].mxu0
      %v2050 = vadd.f32 0.0, %v2049
      %v2051 = vpop.f32.mrb[0].mxu0
      %v2052 = vadd.f32 0.0, %v2051
      %v2053 = vpop.f32.mrb[0].mxu0
      %v2054 = vadd.f32 0.0, %v2053
      %v2055 = vpop.f32.mrb[0].mxu0
      %v2056 = vadd.f32 0.0, %v2055
      %2057 = vmatprep.mubr.bf16.mxu0 %v1784
      %2058 = vmatmul.mubr.bf16.gmra.mrb[0].mxu0 %v1776
      %v2059 = vpop.f32.mrb[0].mxu0
      %v2060 = vadd.f32 0.0, %v2059
      %v2061 = vpop.f32.mrb[0].mxu0
      %v2062 = vadd.f32 0.0, %v2061
      %v2063 = vpop.f32.mrb[0].mxu0
      %v2064 = vadd.f32 0.0, %v2063
      %v2065 = vpop.f32.mrb[0].mxu0
      %v2066 = vadd.f32 0.0, %v2065
      %2067 = vmatprep.mubr.bf16.mxu0 %v1800
      %2068 = vmatmul.mubr.bf16.gmra.mrb[0].mxu0 %v1792
      %v2069 = vpop.f32.mrb[0].mxu0
      %v2070 = vadd.f32 0.0, %v2069
      %v2071 = vpop.f32.mrb[0].mxu0
      %v2072 = vadd.f32 0.0, %v2071
      %v2073 = vpop.f32.mrb[0].mxu0
      %v2074 = vadd.f32 0.0, %v2073
      %v2075 = vpop.f32.mrb[0].mxu0
      %v2076 = vadd.f32 0.0, %v2075
      %2077 = vmatprep.mubr.bf16.mxu0 %v1816
      %2078 = vmatmul.mubr.bf16.gmra.mrb[0].mxu0 %v1808
      %v2079 = vpop.f32.mrb[0].mxu0
      %v2080 = vadd.f32 0.0, %v2079
      %v2081 = vpop.f32.mrb[0].mxu0
      %v2082 = vadd.f32 0.0, %v2081
      %v2083 = vpop.f32.mrb[0].mxu0
      %v2084 = vadd.f32 0.0, %v2083
      %v2085 = vpop.f32.mrb[0].mxu0
      %v2086 = vadd.f32 0.0, %v2085
      %2087 = vmatprep.mubr.bf16.mxu0 %v1832
      %2088 = vmatmul.mubr.bf16.gmra.mrb[0].mxu0 %v1824
      %v2089 = vpop.f32.mrb[0].mxu0
      %v2090 = vadd.f32 0.0, %v2089
      %v2091 = vpop.f32.mrb[0].mxu0
      %v2092 = vadd.f32 0.0, %v2091
      %v2093 = vpop.f32.mrb[0].mxu0
      %v2094 = vadd.f32 0.0, %v2093
      %v2095 = vpop.f32.mrb[0].mxu0
      %v2096 = vadd.f32 0.0, %v2095
      %2097 = vdwg.mxu0
      %v2130 = vunpack.c.l.b16 %v1661
      %v2131 = vunpack.c.h.b16 %v1661
      %v2132 = vunpack.c.l.b16 %v1662
      %v2133 = vunpack.c.h.b16 %v1662
      %v2134 = vunpack.c.l.b16 %v1663
      %v2135 = vunpack.c.h.b16 %v1663
      %v2136 = vunpack.c.l.b16 %v1664
      %v2137 = vunpack.c.h.b16 %v1664
      %v2138 = vunpack.c.l.b16 %v1665
      %v2139 = vunpack.c.h.b16 %v1665
      %v2140 = vunpack.c.l.b16 %v1666
      %v2141 = vunpack.c.h.b16 %v1666
      %v2142 = vunpack.c.l.b16 %v1667
      %v2143 = vunpack.c.h.b16 %v1667
      %v2144 = vunpack.c.l.b16 %v1668
      %v2145 = vunpack.c.h.b16 %v1668
      %v2146 = vunpack.c.l.b16 %v1669
      %v2147 = vunpack.c.h.b16 %v1669
      %v2148 = vunpack.c.l.b16 %v1670
      %v2149 = vunpack.c.h.b16 %v1670
      %v2150 = vunpack.c.l.b16 %v1671
      %v2151 = vunpack.c.h.b16 %v1671
      %v2152 = vunpack.c.l.b16 %v1672
      %v2153 = vunpack.c.h.b16 %v1672
      %v2154 = vunpack.c.l.b16 %v1673
      %v2155 = vunpack.c.h.b16 %v1673
      %v2156 = vunpack.c.l.b16 %v1674
      %v2157 = vunpack.c.h.b16 %v1674
      %v2158 = vunpack.c.l.b16 %v1675
      %v2159 = vunpack.c.h.b16 %v1675
      %v2160 = vunpack.c.l.b16 %v1676
      %v2161 = vunpack.c.h.b16 %v1676
      %v2162 = vunpack.c.l.b16 %v1677
      %v2163 = vunpack.c.h.b16 %v1677
      %v2164 = vunpack.c.l.b16 %v1678
      %v2165 = vunpack.c.h.b16 %v1678
      %v2166 = vunpack.c.l.b16 %v1679
      %v2167 = vunpack.c.h.b16 %v1679
      %v2168 = vunpack.c.l.b16 %v1680
      %v2169 = vunpack.c.h.b16 %v1680
      %v2170 = vunpack.c.l.b16 %v1681
      %v2171 = vunpack.c.h.b16 %v1681
      %v2172 = vunpack.c.l.b16 %v1682
      %v2173 = vunpack.c.h.b16 %v1682
      %v2174 = vunpack.c.l.b16 %v1683
      %v2175 = vunpack.c.h.b16 %v1683
      %v2176 = vunpack.c.l.b16 %v1684
      %v2177 = vunpack.c.h.b16 %v1684
      %v2178 = vunpack.c.l.b16 %v1685
      %v2179 = vunpack.c.h.b16 %v1685
      %v2180 = vunpack.c.l.b16 %v1686
      %v2181 = vunpack.c.h.b16 %v1686
      %v2182 = vunpack.c.l.b16 %v1687
      %v2183 = vunpack.c.h.b16 %v1687
      %v2184 = vunpack.c.l.b16 %v1688
      %v2185 = vunpack.c.h.b16 %v1688
      %v2186 = vunpack.c.l.b16 %v1689
      %v2187 = vunpack.c.h.b16 %v1689
      %v2188 = vunpack.c.l.b16 %v1690
      %v2189 = vunpack.c.h.b16 %v1690
      %v2190 = vunpack.c.l.b16 %v1691
      %v2191 = vunpack.c.h.b16 %v1691
      %v2192 = vunpack.c.l.b16 %v1692
      %v2193 = vunpack.c.h.b16 %v1692
      %v2194 = vpack.c.b16 %v2132, %v2130
      %v2195 = vpack.c.b16 %v2133, %v2131
      %v2196 = vpack.c.b16 %v2136, %v2134
      %v2197 = vpack.c.b16 %v2137, %v2135
      %v2198 = vpack.c.b16 %v2140, %v2138
      %v2199 = vpack.c.b16 %v2141, %v2139
      %v2200 = vpack.c.b16 %v2144, %v2142
      %v2201 = vpack.c.b16 %v2145, %v2143
      %v2202 = vpack.c.b16 %v2148, %v2146
      %v2203 = vpack.c.b16 %v2149, %v2147
      %v2204 = vpack.c.b16 %v2152, %v2150
      %v2205 = vpack.c.b16 %v2153, %v2151
      %v2206 = vpack.c.b16 %v2156, %v2154
      %v2207 = vpack.c.b16 %v2157, %v2155
      %v2208 = vpack.c.b16 %v2160, %v2158
      %v2209 = vpack.c.b16 %v2161, %v2159
      %v2210 = vpack.c.b16 %v2164, %v2162
      %v2211 = vpack.c.b16 %v2165, %v2163
      %v2212 = vpack.c.b16 %v2168, %v2166
      %v2213 = vpack.c.b16 %v2169, %v2167
      %v2214 = vpack.c.b16 %v2172, %v2170
      %v2215 = vpack.c.b16 %v2173, %v2171
      %v2216 = vpack.c.b16 %v2176, %v2174
      %v2217 = vpack.c.b16 %v2177, %v2175
      %v2218 = vpack.c.b16 %v2180, %v2178
      %v2219 = vpack.c.b16 %v2181, %v2179
      %v2220 = vpack.c.b16 %v2184, %v2182
      %v2221 = vpack.c.b16 %v2185, %v2183
      %v2222 = vpack.c.b16 %v2188, %v2186
      %v2223 = vpack.c.b16 %v2189, %v2187
      %v2224 = vpack.c.b16 %v2192, %v2190
      %v2225 = vpack.c.b16 %v2193, %v2191
      %2258 = vmatprep.subr.bf16.mxu0 %v2195
      %2259 = vmatpush1.bf16.msra.mxu0 %v2194
      %2260 = vmatprep.subr.bf16.mxu0 %v2197
      %2261 = vmatpush1.bf16.msra.mxu0 %v2196
      %2262 = vmatprep.subr.bf16.mxu0 %v2199
      %2263 = vmatpush1.bf16.msra.mxu0 %v2198
      %2264 = vmatprep.subr.bf16.mxu0 %v2201
      %2265 = vmatpush1.bf16.msra.mxu0 %v2200
      %2266 = vmatprep.subr.bf16.mxu0 %v2203
      %2267 = vmatpush1.bf16.msra.mxu0 %v2202
      %2268 = vmatprep.subr.bf16.mxu0 %v2205
      %2269 = vmatpush1.bf16.msra.mxu0 %v2204
      %2270 = vmatprep.subr.bf16.mxu0 %v2207
      %2271 = vmatpush1.bf16.msra.mxu0 %v2206
      %2272 = vmatprep.subr.bf16.mxu0 %v2209
      %2273 = vmatpush1.bf16.msra.mxu0 %v2208
      %2274 = vmatprep.subr.bf16.mxu0 %v2211
      %2275 = vmatpush1.bf16.msra.mxu0 %v2210
      %2276 = vmatprep.subr.bf16.mxu0 %v2213
      %2277 = vmatpush1.bf16.msra.mxu0 %v2212
      %2278 = vmatprep.subr.bf16.mxu0 %v2215
      %2279 = vmatpush1.bf16.msra.mxu0 %v2214
      %2280 = vmatprep.subr.bf16.mxu0 %v2217
      %2281 = vmatpush1.bf16.msra.mxu0 %v2216
      %2282 = vmatprep.subr.bf16.mxu0 %v2219
      %2283 = vmatpush1.bf16.msra.mxu0 %v2218
      %2284 = vmatprep.subr.bf16.mxu0 %v2221
      %2285 = vmatpush1.bf16.msra.mxu0 %v2220
      %2286 = vmatprep.subr.bf16.mxu0 %v2223
      %2287 = vmatpush1.bf16.msra.mxu0 %v2222
      %2288 = vmatprep.subr.bf16.mxu0 %v2225
      %2289 = vmatpush1.bf16.msra.mxu0 %v2224
      %2290 = vmatprep.mubr.bf16.mxu0 %v1650
      %2291 = vmatmul.mubr.bf16.gmra.mrb[0].mxu0 %v1649
      %v2292 = vpop.f32.mrb[0].mxu0
      %v2293 = vadd.f32 %v2040, %v2292
      %v2294 = vpop.f32.mrb[0].mxu0
      %v2295 = vadd.f32 %v2042, %v2294
      %v2296 = vpop.f32.mrb[0].mxu0
      %v2297 = vadd.f32 %v2044, %v2296
      %v2298 = vpop.f32.mrb[0].mxu0
      %v2299 = vadd.f32 %v2046, %v2298
      %2300 = vmatprep.mubr.bf16.mxu0 %v1652
      %2301 = vmatmul.mubr.bf16.gmra.mrb[0].mxu0 %v1651
      %v2302 = vpop.f32.mrb[0].mxu0
      %v2303 = vadd.f32 %v2050, %v2302
      %v2304 = vpop.f32.mrb[0].mxu0
      %v2305 = vadd.f32 %v2052, %v2304
      %v2306 = vpop.f32.mrb[0].mxu0
      %v2307 = vadd.f32 %v2054, %v2306
      %v2308 = vpop.f32.mrb[0].mxu0
      %v2309 = vadd.f32 %v2056, %v2308
      %2310 = vmatprep.mubr.bf16.mxu0 %v1654
      %2311 = vmatmul.mubr.bf16.gmra.mrb[0].mxu0 %v1653
      %v2312 = vpop.f32.mrb[0].mxu0
      %v2313 = vadd.f32 %v2060, %v2312
      %v2314 = vpop.f32.mrb[0].mxu0
      %v2315 = vadd.f32 %v2062, %v2314
      %v2316 = vpop.f32.mrb[0].mxu0
      %v2317 = vadd.f32 %v2064, %v2316
      %v2318 = vpop.f32.mrb[0].mxu0
      %v2319 = vadd.f32 %v2066, %v2318
      %2320 = vmatprep.mubr.bf16.mxu0 %v1656
      %2321 = vmatmul.mubr.bf16.gmra.mrb[0].mxu0 %v1655
      %v2322 = vpop.f32.mrb[0].mxu0
      %v2323 = vadd.f32 %v2070, %v2322
      %v2324 = vpop.f32.mrb[0].mxu0
      %v2325 = vadd.f32 %v2072, %v2324
      %v2326 = vpop.f32.mrb[0].mxu0
      %v2327 = vadd.f32 %v2074, %v2326
      %v2328 = vpop.f32.mrb[0].mxu0
      %v2329 = vadd.f32 %v2076, %v2328
      %2330 = vmatprep.mubr.bf16.mxu0 %v1658
      %2331 = vmatmul.mubr.bf16.gmra.mrb[0].mxu0 %v1657
      %v2332 = vpop.f32.mrb[0].mxu0
      %v2333 = vadd.f32 %v2080, %v2332
      %v2334 = vpop.f32.mrb[0].mxu0
      %v2335 = vadd.f32 %v2082, %v2334
      %v2336 = vpop.f32.mrb[0].mxu0
      %v2337 = vadd.f32 %v2084, %v2336
      %v2338 = vpop.f32.mrb[0].mxu0
      %v2339 = vadd.f32 %v2086, %v2338
      %2340 = vmatprep.mubr.bf16.mxu0 %v1660
      %2341 = vmatmul.mubr.bf16.gmra.mrb[0].mxu0 %v1659
      %v2342 = vpop.f32.mrb[0].mxu0
      %v2343 = vadd.f32 %v2090, %v2342
      %v2344 = vpop.f32.mrb[0].mxu0
      %v2345 = vadd.f32 %v2092, %v2344
      %v2346 = vpop.f32.mrb[0].mxu0
      %v2347 = vadd.f32 %v2094, %v2346
      %v2348 = vpop.f32.mrb[0].mxu0
      %v2349 = vadd.f32 %v2096, %v2348
      %2350 = vdwg.mxu0
      %v2351 = vld [vmem:[#allocation2] sm:$0xfe]
      %v2352 = vld [vmem:[#allocation2 + $0x8] sm:$0xfe]
      %s2353 = scalar_lea.vmem %s5, 512
      %v2354 = vld [vmem:[%s2353] sm:$0xff]
      %v2355 = vld [vmem:[%s2353 + $0x8] sm:$0xff]
      %v2356 = vld [vmem:[%s2353 + $0x10] sm:$0xff]
      %v2357 = vld [vmem:[%s2353 + $0x18] sm:$0xff]
      %v2358 = vld [vmem:[%s2353 + $0x20] sm:$0xff]
      %v2359 = vld [vmem:[%s2353 + $0x28] sm:$0xff]
      %v2360 = vld [vmem:[%s2353 + $0x30] sm:$0xff]
      %v2361 = vld [vmem:[%s2353 + $0x38] sm:$0xff]
      %v2362 = vld [vmem:[%s2353 + $0x40] sm:$0xff]
      %v2363 = vld [vmem:[%s2353 + $0x48] sm:$0xff]
      %v2364 = vld [vmem:[%s2353 + $0x50] sm:$0xff]
      %v2365 = vld [vmem:[%s2353 + $0x58] sm:$0xff]
      %v2366 = vld [vmem:[%s2353 + $0x60] sm:$0xff]
      %v2367 = vld [vmem:[%s2353 + $0x68] sm:$0xff]
      %v2368 = vld [vmem:[%s2353 + $0x70] sm:$0xff]
      %v2369 = vld [vmem:[%s2353 + $0x78] sm:$0xff]
      %v2370 = vld [vmem:[%s2353 + $0x80] sm:$0xff]
      %v2371 = vld [vmem:[%s2353 + $0x88] sm:$0xff]
      %v2372 = vld [vmem:[%s2353 + $0x90] sm:$0xff]
      %v2373 = vld [vmem:[%s2353 + $0x98] sm:$0xff]
      %v2374 = vld [vmem:[%s2353 + $0xa0] sm:$0xff]
      %v2375 = vld [vmem:[%s2353 + $0xa8] sm:$0xff]
      %v2376 = vld [vmem:[%s2353 + $0xb0] sm:$0xff]
      %v2377 = vld [vmem:[%s2353 + $0xb8] sm:$0xff]
      %v2378 = vld [vmem:[%s2353 + $0xc0] sm:$0xff]
      %v2379 = vld [vmem:[%s2353 + $0xc8] sm:$0xff]
      %v2380 = vld [vmem:[%s2353 + $0xd0] sm:$0xff]
      %v2381 = vld [vmem:[%s2353 + $0xd8] sm:$0xff]
      %v2382 = vld [vmem:[%s2353 + $0xe0] sm:$0xff]
      %v2383 = vld [vmem:[%s2353 + $0xe8] sm:$0xff]
      %v2384 = vld [vmem:[%s2353 + $0xf0] sm:$0xff]
      %v2385 = vld [vmem:[%s2353 + $0xf8] sm:$0xff]
      %vm2400 = vcmask 1046528
      %v2401 = vrot.slane %v2351, 1
      %v2402 = vrot.slane %v1651, 1
      %v2403 = vsel %vm2400, %v2401, %v2402
      %v2404 = vrot.slane %v2352, 1
      %v2405 = vrot.slane %v1652, 1
      %v2406 = vsel %vm2400, %v2404, %v2405
      %v2407 = vrot.slane %v1653, 1
      %v2408 = vsel %vm2400, %v2402, %v2407
      %v2409 = vrot.slane %v1654, 1
      %v2410 = vsel %vm2400, %v2405, %v2409
      %v2411 = vrot.slane %v1655, 1
      %v2412 = vsel %vm2400, %v2407, %v2411
      %v2413 = vrot.slane %v1656, 1
      %v2414 = vsel %vm2400, %v2409, %v2413
      %v2415 = vrot.slane %v1657, 1
      %v2416 = vsel %vm2400, %v2411, %v2415
      %v2417 = vrot.slane %v1658, 1
      %v2418 = vsel %vm2400, %v2413, %v2417
      %v2419 = vrot.slane %v1659, 1
      %v2420 = vsel %vm2400, %v2415, %v2419
      %v2421 = vrot.slane %v1660, 1
      %v2422 = vsel %vm2400, %v2417, %v2421
      %v2423 = vrot.slane %v1693, 1
      %v2424 = vsel %vm2400, %v2419, %v2423
      %v2425 = vrot.slane %v1694, 1
      %v2426 = vsel %vm2400, %v2421, %v2425
      %v2471 = vunpack.c.l.b16 %v2354
      %v2472 = vunpack.c.h.b16 %v2354
      %v2473 = vunpack.c.l.b16 %v2355
      %v2474 = vunpack.c.h.b16 %v2355
      %v2475 = vunpack.c.l.b16 %v2356
      %v2476 = vunpack.c.h.b16 %v2356
      %v2477 = vunpack.c.l.b16 %v2357
      %v2478 = vunpack.c.h.b16 %v2357
      %v2479 = vunpack.c.l.b16 %v2358
      %v2480 = vunpack.c.h.b16 %v2358
      %v2481 = vunpack.c.l.b16 %v2359
      %v2482 = vunpack.c.h.b16 %v2359
      %v2483 = vunpack.c.l.b16 %v2360
      %v2484 = vunpack.c.h.b16 %v2360
      %v2485 = vunpack.c.l.b16 %v2361
      %v2486 = vunpack.c.h.b16 %v2361
      %v2487 = vunpack.c.l.b16 %v2362
      %v2488 = vunpack.c.h.b16 %v2362
      %v2489 = vunpack.c.l.b16 %v2363
      %v2490 = vunpack.c.h.b16 %v2363
      %v2491 = vunpack.c.l.b16 %v2364
      %v2492 = vunpack.c.h.b16 %v2364
      %v2493 = vunpack.c.l.b16 %v2365
      %v2494 = vunpack.c.h.b16 %v2365
      %v2495 = vunpack.c.l.b16 %v2366
      %v2496 = vunpack.c.h.b16 %v2366
      %v2497 = vunpack.c.l.b16 %v2367
      %v2498 = vunpack.c.h.b16 %v2367
      %v2499 = vunpack.c.l.b16 %v2368
      %v2500 = vunpack.c.h.b16 %v2368
      %v2501 = vunpack.c.l.b16 %v2369
      %v2502 = vunpack.c.h.b16 %v2369
      %v2503 = vunpack.c.l.b16 %v2370
      %v2504 = vunpack.c.h.b16 %v2370
      %v2505 = vunpack.c.l.b16 %v2371
      %v2506 = vunpack.c.h.b16 %v2371
      %v2507 = vunpack.c.l.b16 %v2372
      %v2508 = vunpack.c.h.b16 %v2372
      %v2509 = vunpack.c.l.b16 %v2373
      %v2510 = vunpack.c.h.b16 %v2373
      %v2511 = vunpack.c.l.b16 %v2374
      %v2512 = vunpack.c.h.b16 %v2374
      %v2513 = vunpack.c.l.b16 %v2375
      %v2514 = vunpack.c.h.b16 %v2375
      %v2515 = vunpack.c.l.b16 %v2376
      %v2516 = vunpack.c.h.b16 %v2376
      %v2517 = vunpack.c.l.b16 %v2377
      %v2518 = vunpack.c.h.b16 %v2377
      %v2519 = vunpack.c.l.b16 %v2378
      %v2520 = vunpack.c.h.b16 %v2378
      %v2521 = vunpack.c.l.b16 %v2379
      %v2522 = vunpack.c.h.b16 %v2379
      %v2523 = vunpack.c.l.b16 %v2380
      %v2524 = vunpack.c.h.b16 %v2380
      %v2525 = vunpack.c.l.b16 %v2381
      %v2526 = vunpack.c.h.b16 %v2381
      %v2527 = vunpack.c.l.b16 %v2382
      %v2528 = vunpack.c.h.b16 %v2382
      %v2529 = vunpack.c.l.b16 %v2383
      %v2530 = vunpack.c.h.b16 %v2383
      %v2531 = vunpack.c.l.b16 %v2384
      %v2532 = vunpack.c.h.b16 %v2384
      %v2533 = vunpack.c.l.b16 %v2385
      %v2534 = vunpack.c.h.b16 %v2385
      %v2535 = vpack.c.b16 %v2473, %v2471
      %v2536 = vpack.c.b16 %v2474, %v2472
      %v2537 = vpack.c.b16 %v2477, %v2475
      %v2538 = vpack.c.b16 %v2478, %v2476
      %v2539 = vpack.c.b16 %v2481, %v2479
      %v2540 = vpack.c.b16 %v2482, %v2480
      %v2541 = vpack.c.b16 %v2485, %v2483
      %v2542 = vpack.c.b16 %v2486, %v2484
      %v2543 = vpack.c.b16 %v2489, %v2487
      %v2544 = vpack.c.b16 %v2490, %v2488
      %v2545 = vpack.c.b16 %v2493, %v2491
      %v2546 = vpack.c.b16 %v2494, %v2492
      %v2547 = vpack.c.b16 %v2497, %v2495
      %v2548 = vpack.c.b16 %v2498, %v2496
      %v2549 = vpack.c.b16 %v2501, %v2499
      %v2550 = vpack.c.b16 %v2502, %v2500
      %v2551 = vpack.c.b16 %v2505, %v2503
      %v2552 = vpack.c.b16 %v2506, %v2504
      %v2553 = vpack.c.b16 %v2509, %v2507
      %v2554 = vpack.c.b16 %v2510, %v2508
      %v2555 = vpack.c.b16 %v2513, %v2511
      %v2556 = vpack.c.b16 %v2514, %v2512
      %v2557 = vpack.c.b16 %v2517, %v2515
      %v2558 = vpack.c.b16 %v2518, %v2516
      %v2559 = vpack.c.b16 %v2521, %v2519
      %v2560 = vpack.c.b16 %v2522, %v2520
      %v2561 = vpack.c.b16 %v2525, %v2523
      %v2562 = vpack.c.b16 %v2526, %v2524
      %v2563 = vpack.c.b16 %v2529, %v2527
      %v2564 = vpack.c.b16 %v2530, %v2528
      %v2565 = vpack.c.b16 %v2533, %v2531
      %v2566 = vpack.c.b16 %v2534, %v2532
      %2599 = vmatprep.subr.bf16.mxu0 %v2536
      %2600 = vmatpush1.bf16.msra.mxu0 %v2535
      %2601 = vmatprep.subr.bf16.mxu0 %v2538
      %2602 = vmatpush1.bf16.msra.mxu0 %v2537
      %2603 = vmatprep.subr.bf16.mxu0 %v2540
      %2604 = vmatpush1.bf16.msra.mxu0 %v2539
      %2605 = vmatprep.subr.bf16.mxu0 %v2542
      %2606 = vmatpush1.bf16.msra.mxu0 %v2541
      %2607 = vmatprep.subr.bf16.mxu0 %v2544
      %2608 = vmatpush1.bf16.msra.mxu0 %v2543
      %2609 = vmatprep.subr.bf16.mxu0 %v2546
      %2610 = vmatpush1.bf16.msra.mxu0 %v2545
      %2611 = vmatprep.subr.bf16.mxu0 %v2548
      %2612 = vmatpush1.bf16.msra.mxu0 %v2547
      %2613 = vmatprep.subr.bf16.mxu0 %v2550
      %2614 = vmatpush1.bf16.msra.mxu0 %v2549
      %2615 = vmatprep.subr.bf16.mxu0 %v2552
      %2616 = vmatpush1.bf16.msra.mxu0 %v2551
      %2617 = vmatprep.subr.bf16.mxu0 %v2554
      %2618 = vmatpush1.bf16.msra.mxu0 %v2553
      %2619 = vmatprep.subr.bf16.mxu0 %v2556
      %2620 = vmatpush1.bf16.msra.mxu0 %v2555
      %2621 = vmatprep.subr.bf16.mxu0 %v2558
      %2622 = vmatpush1.bf16.msra.mxu0 %v2557
      %2623 = vmatprep.subr.bf16.mxu0 %v2560
      %2624 = vmatpush1.bf16.msra.mxu0 %v2559
      %2625 = vmatprep.subr.bf16.mxu0 %v2562
      %2626 = vmatpush1.bf16.msra.mxu0 %v2561
      %2627 = vmatprep.subr.bf16.mxu0 %v2564
      %2628 = vmatpush1.bf16.msra.mxu0 %v2563
      %2629 = vmatprep.subr.bf16.mxu0 %v2566
      %2630 = vmatpush1.bf16.msra.mxu0 %v2565
      %2631 = vmatprep.mubr.bf16.mxu0 %v2406
      %2632 = vmatmul.mubr.bf16.gmra.mrb[0].mxu0 %v2403
      %v2633 = vpop.f32.mrb[0].mxu0
      %v2634 = vadd.f32 0.0, %v2633
      %v2635 = vpop.f32.mrb[0].mxu0
      %v2636 = vadd.f32 0.0, %v2635
      %v2637 = vpop.f32.mrb[0].mxu0
      %v2638 = vadd.f32 0.0, %v2637
      %v2639 = vpop.f32.mrb[0].mxu0
      %v2640 = vadd.f32 0.0, %v2639
      %2641 = vmatprep.mubr.bf16.mxu0 %v2410
      %2642 = vmatmul.mubr.bf16.gmra.mrb[0].mxu0 %v2408
      %v2643 = vpop.f32.mrb[0].mxu0
      %v2644 = vadd.f32 0.0, %v2643
      %v2645 = vpop.f32.mrb[0].mxu0
      %v2646 = vadd.f32 0.0, %v2645
      %v2647 = vpop.f32.mrb[0].mxu0
      %v2648 = vadd.f32 0.0, %v2647
      %v2649 = vpop.f32.mrb[0].mxu0
      %v2650 = vadd.f32 0.0, %v2649
      %2651 = vmatprep.mubr.bf16.mxu0 %v2414
      %2652 = vmatmul.mubr.bf16.gmra.mrb[0].mxu0 %v2412
      %v2653 = vpop.f32.mrb[0].mxu0
      %v2654 = vadd.f32 0.0, %v2653
      %v2655 = vpop.f32.mrb[0].mxu0
      %v2656 = vadd.f32 0.0, %v2655
      %v2657 = vpop.f32.mrb[0].mxu0
      %v2658 = vadd.f32 0.0, %v2657
      %v2659 = vpop.f32.mrb[0].mxu0
      %v2660 = vadd.f32 0.0, %v2659
      %2661 = vmatprep.mubr.bf16.mxu0 %v2418
      %2662 = vmatmul.mubr.bf16.gmra.mrb[0].mxu0 %v2416
      %v2663 = vpop.f32.mrb[0].mxu0
      %v2664 = vadd.f32 0.0, %v2663
      %v2665 = vpop.f32.mrb[0].mxu0
      %v2666 = vadd.f32 0.0, %v2665
      %v2667 = vpop.f32.mrb[0].mxu0
      %v2668 = vadd.f32 0.0, %v2667
      %v2669 = vpop.f32.mrb[0].mxu0
      %v2670 = vadd.f32 0.0, %v2669
      %2671 = vmatprep.mubr.bf16.mxu0 %v2422
      %2672 = vmatmul.mubr.bf16.gmra.mrb[0].mxu0 %v2420
      %v2673 = vpop.f32.mrb[0].mxu0
      %v2674 = vadd.f32 0.0, %v2673
      %v2675 = vpop.f32.mrb[0].mxu0
      %v2676 = vadd.f32 0.0, %v2675
      %v2677 = vpop.f32.mrb[0].mxu0
      %v2678 = vadd.f32 0.0, %v2677
      %v2679 = vpop.f32.mrb[0].mxu0
      %v2680 = vadd.f32 0.0, %v2679
      %2681 = vmatprep.mubr.bf16.mxu0 %v2426
      %2682 = vmatmul.mubr.bf16.gmra.mrb[0].mxu0 %v2424
      %v2683 = vpop.f32.mrb[0].mxu0
      %v2684 = vadd.f32 0.0, %v2683
      %v2685 = vpop.f32.mrb[0].mxu0
      %v2686 = vadd.f32 0.0, %v2685
      %v2687 = vpop.f32.mrb[0].mxu0
      %v2688 = vadd.f32 0.0, %v2687
      %v2689 = vpop.f32.mrb[0].mxu0
      %v2690 = vadd.f32 0.0, %v2689
      %2691 = vdwg.mxu0
      %v2692 = vadd.f32 %v2293, %v2634
      %v2693 = vadd.f32 %v2295, %v2636
      %v2694 = vadd.f32 %v2297, %v2638
      %v2695 = vadd.f32 %v2299, %v2640
      %v2696 = vadd.f32 %v2303, %v2644
      %v2697 = vadd.f32 %v2305, %v2646
      %v2698 = vadd.f32 %v2307, %v2648
      %v2699 = vadd.f32 %v2309, %v2650
      %v2700 = vadd.f32 %v2313, %v2654
      %v2701 = vadd.f32 %v2315, %v2656
      %v2702 = vadd.f32 %v2317, %v2658
      %v2703 = vadd.f32 %v2319, %v2660
      %v2704 = vadd.f32 %v2323, %v2664
      %v2705 = vadd.f32 %v2325, %v2666
      %v2706 = vadd.f32 %v2327, %v2668
      %v2707 = vadd.f32 %v2329, %v2670
      %v2708 = vadd.f32 %v2333, %v2674
      %v2709 = vadd.f32 %v2335, %v2676
      %v2710 = vadd.f32 %v2337, %v2678
      %v2711 = vadd.f32 %v2339, %v2680
      %v2712 = vadd.f32 %v2343, %v2684
      %v2713 = vadd.f32 %v2345, %v2686
      %v2714 = vadd.f32 %v2347, %v2688
      %v2715 = vadd.f32 %v2349, %v2690
      %v2716 = vld [vmem:[#allocation2 + $0x10] sm:$0xfe]
      %v2717 = vld [vmem:[#allocation2 + $0x18] sm:$0xfe]
      %v2718 = vld [vmem:[#allocation2 + $0x20] sm:$0xff]
      %v2719 = vld [vmem:[#allocation2 + $0x28] sm:$0xff]
      %v2720 = vld [vmem:[#allocation2 + $0x30] sm:$0xff]
      %v2721 = vld [vmem:[#allocation2 + $0x38] sm:$0xff]
      %v2722 = vld [vmem:[#allocation2 + $0x40] sm:$0xff]
      %v2723 = vld [vmem:[#allocation2 + $0x48] sm:$0xff]
      %v2724 = vld [vmem:[#allocation2 + $0x50] sm:$0xff]
      %v2725 = vld [vmem:[#allocation2 + $0x58] sm:$0xff]
      %v2726 = vld [vmem:[#allocation2 + $0x60] sm:$0xff]
      %v2727 = vld [vmem:[#allocation2 + $0x68] sm:$0xff]
      %v2728 = vld [vmem:[#allocation2 + $0x70] sm:$0x1]
      %v2729 = vld [vmem:[#allocation2 + $0x78] sm:$0x1]
      %s2730 = scalar_lea.vmem %s5, 768
      %v2731 = vld [vmem:[%s2730] sm:$0xff]
      %v2732 = vld [vmem:[%s2730 + $0x8] sm:$0xff]
      %v2733 = vld [vmem:[%s2730 + $0x10] sm:$0xff]
      %v2734 = vld [vmem:[%s2730 + $0x18] sm:$0xff]
      %v2735 = vld [vmem:[%s2730 + $0x20] sm:$0xff]
      %v2736 = vld [vmem:[%s2730 + $0x28] sm:$0xff]
      %v2737 = vld [vmem:[%s2730 + $0x30] sm:$0xff]
      %v2738 = vld [vmem:[%s2730 + $0x38] sm:$0xff]
      %v2739 = vld [vmem:[%s2730 + $0x40] sm:$0xff]
      %v2740 = vld [vmem:[%s2730 + $0x48] sm:$0xff]
      %v2741 = vld [vmem:[%s2730 + $0x50] sm:$0xff]
      %v2742 = vld [vmem:[%s2730 + $0x58] sm:$0xff]
      %v2743 = vld [vmem:[%s2730 + $0x60] sm:$0xff]
      %v2744 = vld [vmem:[%s2730 + $0x68] sm:$0xff]
      %v2745 = vld [vmem:[%s2730 + $0x70] sm:$0xff]
      %v2746 = vld [vmem:[%s2730 + $0x78] sm:$0xff]
      %v2747 = vld [vmem:[%s2730 + $0x80] sm:$0xff]
      %v2748 = vld [vmem:[%s2730 + $0x88] sm:$0xff]
      %v2749 = vld [vmem:[%s2730 + $0x90] sm:$0xff]
      %v2750 = vld [vmem:[%s2730 + $0x98] sm:$0xff]
      %v2751 = vld [vmem:[%s2730 + $0xa0] sm:$0xff]
      %v2752 = vld [vmem:[%s2730 + $0xa8] sm:$0xff]
      %v2753 = vld [vmem:[%s2730 + $0xb0] sm:$0xff]
      %v2754 = vld [vmem:[%s2730 + $0xb8] sm:$0xff]
      %v2755 = vld [vmem:[%s2730 + $0xc0] sm:$0xff]
      %v2756 = vld [vmem:[%s2730 + $0xc8] sm:$0xff]
      %v2757 = vld [vmem:[%s2730 + $0xd0] sm:$0xff]
      %v2758 = vld [vmem:[%s2730 + $0xd8] sm:$0xff]
      %v2759 = vld [vmem:[%s2730 + $0xe0] sm:$0xff]
      %v2760 = vld [vmem:[%s2730 + $0xe8] sm:$0xff]
      %v2761 = vld [vmem:[%s2730 + $0xf0] sm:$0xff]
      %v2762 = vld [vmem:[%s2730 + $0xf8] sm:$0xff]
      %v2777 = vrot.slane %v2716, 1
      %v2778 = vrot.slane %v2718, 1
      %v2779 = vsel %vm2400, %v2777, %v2778
      %v2780 = vrot.slane %v2717, 1
      %v2781 = vrot.slane %v2719, 1
      %v2782 = vsel %vm2400, %v2780, %v2781
      %v2783 = vrot.slane %v2720, 1
      %v2784 = vsel %vm2400, %v2778, %v2783
      %v2785 = vrot.slane %v2721, 1
      %v2786 = vsel %vm2400, %v2781, %v2785
      %v2787 = vrot.slane %v2722, 1
      %v2788 = vsel %vm2400, %v2783, %v2787
      %v2789 = vrot.slane %v2723, 1
      %v2790 = vsel %vm2400, %v2785, %v2789
      %v2791 = vrot.slane %v2724, 1
      %v2792 = vsel %vm2400, %v2787, %v2791
      %v2793 = vrot.slane %v2725, 1
      %v2794 = vsel %vm2400, %v2789, %v2793
      %v2795 = vrot.slane %v2726, 1
      %v2796 = vsel %vm2400, %v2791, %v2795
      %v2797 = vrot.slane %v2727, 1
      %v2798 = vsel %vm2400, %v2793, %v2797
      %v2799 = vrot.slane %v2728, 1
      %v2800 = vsel %vm2400, %v2795, %v2799
      %v2801 = vrot.slane %v2729, 1
      %v2802 = vsel %vm2400, %v2797, %v2801
      %v2847 = vunpack.c.l.b16 %v2731
      %v2848 = vunpack.c.h.b16 %v2731
      %v2849 = vunpack.c.l.b16 %v2732
      %v2850 = vunpack.c.h.b16 %v2732
      %v2851 = vunpack.c.l.b16 %v2733
      %v2852 = vunpack.c.h.b16 %v2733
      %v2853 = vunpack.c.l.b16 %v2734
      %v2854 = vunpack.c.h.b16 %v2734
      %v2855 = vunpack.c.l.b16 %v2735
      %v2856 = vunpack.c.h.b16 %v2735
      %v2857 = vunpack.c.l.b16 %v2736
      %v2858 = vunpack.c.h.b16 %v2736
      %v2859 = vunpack.c.l.b16 %v2737
      %v2860 = vunpack.c.h.b16 %v2737
      %v2861 = vunpack.c.l.b16 %v2738
      %v2862 = vunpack.c.h.b16 %v2738
      %v2863 = vunpack.c.l.b16 %v2739
      %v2864 = vunpack.c.h.b16 %v2739
      %v2865 = vunpack.c.l.b16 %v2740
      %v2866 = vunpack.c.h.b16 %v2740
      %v2867 = vunpack.c.l.b16 %v2741
      %v2868 = vunpack.c.h.b16 %v2741
      %v2869 = vunpack.c.l.b16 %v2742
      %v2870 = vunpack.c.h.b16 %v2742
      %v2871 = vunpack.c.l.b16 %v2743
      %v2872 = vunpack.c.h.b16 %v2743
      %v2873 = vunpack.c.l.b16 %v2744
      %v2874 = vunpack.c.h.b16 %v2744
      %v2875 = vunpack.c.l.b16 %v2745
      %v2876 = vunpack.c.h.b16 %v2745
      %v2877 = vunpack.c.l.b16 %v2746
      %v2878 = vunpack.c.h.b16 %v2746
      %v2879 = vunpack.c.l.b16 %v2747
      %v2880 = vunpack.c.h.b16 %v2747
      %v2881 = vunpack.c.l.b16 %v2748
      %v2882 = vunpack.c.h.b16 %v2748
      %v2883 = vunpack.c.l.b16 %v2749
      %v2884 = vunpack.c.h.b16 %v2749
      %v2885 = vunpack.c.l.b16 %v2750
      %v2886 = vunpack.c.h.b16 %v2750
      %v2887 = vunpack.c.l.b16 %v2751
      %v2888 = vunpack.c.h.b16 %v2751
      %v2889 = vunpack.c.l.b16 %v2752
      %v2890 = vunpack.c.h.b16 %v2752
      %v2891 = vunpack.c.l.b16 %v2753
      %v2892 = vunpack.c.h.b16 %v2753
      %v2893 = vunpack.c.l.b16 %v2754
      %v2894 = vunpack.c.h.b16 %v2754
      %v2895 = vunpack.c.l.b16 %v2755
      %v2896 = vunpack.c.h.b16 %v2755
      %v2897 = vunpack.c.l.b16 %v2756
      %v2898 = vunpack.c.h.b16 %v2756
      %v2899 = vunpack.c.l.b16 %v2757
      %v2900 = vunpack.c.h.b16 %v2757
      %v2901 = vunpack.c.l.b16 %v2758
      %v2902 = vunpack.c.h.b16 %v2758
      %v2903 = vunpack.c.l.b16 %v2759
      %v2904 = vunpack.c.h.b16 %v2759
      %v2905 = vunpack.c.l.b16 %v2760
      %v2906 = vunpack.c.h.b16 %v2760
      %v2907 = vunpack.c.l.b16 %v2761
      %v2908 = vunpack.c.h.b16 %v2761
      %v2909 = vunpack.c.l.b16 %v2762
      %v2910 = vunpack.c.h.b16 %v2762
      %v2911 = vpack.c.b16 %v2849, %v2847
      %v2912 = vpack.c.b16 %v2850, %v2848
      %v2913 = vpack.c.b16 %v2853, %v2851
      %v2914 = vpack.c.b16 %v2854, %v2852
      %v2915 = vpack.c.b16 %v2857, %v2855
      %v2916 = vpack.c.b16 %v2858, %v2856
      %v2917 = vpack.c.b16 %v2861, %v2859
      %v2918 = vpack.c.b16 %v2862, %v2860
      %v2919 = vpack.c.b16 %v2865, %v2863
      %v2920 = vpack.c.b16 %v2866, %v2864
      %v2921 = vpack.c.b16 %v2869, %v2867
      %v2922 = vpack.c.b16 %v2870, %v2868
      %v2923 = vpack.c.b16 %v2873, %v2871
      %v2924 = vpack.c.b16 %v2874, %v2872
      %v2925 = vpack.c.b16 %v2877, %v2875
      %v2926 = vpack.c.b16 %v2878, %v2876
      %v2927 = vpack.c.b16 %v2881, %v2879
      %v2928 = vpack.c.b16 %v2882, %v2880
      %v2929 = vpack.c.b16 %v2885, %v2883
      %v2930 = vpack.c.b16 %v2886, %v2884
      %v2931 = vpack.c.b16 %v2889, %v2887
      %v2932 = vpack.c.b16 %v2890, %v2888
      %v2933 = vpack.c.b16 %v2893, %v2891
      %v2934 = vpack.c.b16 %v2894, %v2892
      %v2935 = vpack.c.b16 %v2897, %v2895
      %v2936 = vpack.c.b16 %v2898, %v2896
      %v2937 = vpack.c.b16 %v2901, %v2899
      %v2938 = vpack.c.b16 %v2902, %v2900
      %v2939 = vpack.c.b16 %v2905, %v2903
      %v2940 = vpack.c.b16 %v2906, %v2904
      %v2941 = vpack.c.b16 %v2909, %v2907
      %v2942 = vpack.c.b16 %v2910, %v2908
      %2975 = vmatprep.subr.bf16.mxu0 %v2912
      %2976 = vmatpush1.bf16.msra.mxu0 %v2911
      %2977 = vmatprep.subr.bf16.mxu0 %v2914
      %2978 = vmatpush1.bf16.msra.mxu0 %v2913
      %2979 = vmatprep.subr.bf16.mxu0 %v2916
      %2980 = vmatpush1.bf16.msra.mxu0 %v2915
      %2981 = vmatprep.subr.bf16.mxu0 %v2918
      %2982 = vmatpush1.bf16.msra.mxu0 %v2917
      %2983 = vmatprep.subr.bf16.mxu0 %v2920
      %2984 = vmatpush1.bf16.msra.mxu0 %v2919
      %2985 = vmatprep.subr.bf16.mxu0 %v2922
      %2986 = vmatpush1.bf16.msra.mxu0 %v2921
      %2987 = vmatprep.subr.bf16.mxu0 %v2924
      %2988 = vmatpush1.bf16.msra.mxu0 %v2923
      %2989 = vmatprep.subr.bf16.mxu0 %v2926
      %2990 = vmatpush1.bf16.msra.mxu0 %v2925
      %2991 = vmatprep.subr.bf16.mxu0 %v2928
      %2992 = vmatpush1.bf16.msra.mxu0 %v2927
      %2993 = vmatprep.subr.bf16.mxu0 %v2930
      %2994 = vmatpush1.bf16.msra.mxu0 %v2929
      %2995 = vmatprep.subr.bf16.mxu0 %v2932
      %2996 = vmatpush1.bf16.msra.mxu0 %v2931
      %2997 = vmatprep.subr.bf16.mxu0 %v2934
      %2998 = vmatpush1.bf16.msra.mxu0 %v2933
      %2999 = vmatprep.subr.bf16.mxu0 %v2936
      %3000 = vmatpush1.bf16.msra.mxu0 %v2935
      %3001 = vmatprep.subr.bf16.mxu0 %v2938
      %3002 = vmatpush1.bf16.msra.mxu0 %v2937
      %3003 = vmatprep.subr.bf16.mxu0 %v2940
      %3004 = vmatpush1.bf16.msra.mxu0 %v2939
      %3005 = vmatprep.subr.bf16.mxu0 %v2942
      %3006 = vmatpush1.bf16.msra.mxu0 %v2941
      %3007 = vmatprep.mubr.bf16.mxu0 %v2782
      %3008 = vmatmul.mubr.bf16.gmra.mrb[0].mxu0 %v2779
      %v3009 = vpop.f32.mrb[0].mxu0
      %v3010 = vadd.f32 0.0, %v3009
      %v3011 = vpop.f32.mrb[0].mxu0
      %v3012 = vadd.f32 0.0, %v3011
      %v3013 = vpop.f32.mrb[0].mxu0
      %v3014 = vadd.f32 0.0, %v3013
      %v3015 = vpop.f32.mrb[0].mxu0
      %v3016 = vadd.f32 0.0, %v3015
      %3017 = vmatprep.mubr.bf16.mxu0 %v2786
      %3018 = vmatmul.mubr.bf16.gmra.mrb[0].mxu0 %v2784
      %v3019 = vpop.f32.mrb[0].mxu0
      %v3020 = vadd.f32 0.0, %v3019
      %v3021 = vpop.f32.mrb[0].mxu0
      %v3022 = vadd.f32 0.0, %v3021
      %v3023 = vpop.f32.mrb[0].mxu0
      %v3024 = vadd.f32 0.0, %v3023
      %v3025 = vpop.f32.mrb[0].mxu0
      %v3026 = vadd.f32 0.0, %v3025
      %3027 = vmatprep.mubr.bf16.mxu0 %v2790
      %3028 = vmatmul.mubr.bf16.gmra.mrb[0].mxu0 %v2788
      %v3029 = vpop.f32.mrb[0].mxu0
      %v3030 = vadd.f32 0.0, %v3029
      %v3031 = vpop.f32.mrb[0].mxu0
      %v3032 = vadd.f32 0.0, %v3031
      %v3033 = vpop.f32.mrb[0].mxu0
      %v3034 = vadd.f32 0.0, %v3033
      %v3035 = vpop.f32.mrb[0].mxu0
      %v3036 = vadd.f32 0.0, %v3035
      %3037 = vmatprep.mubr.bf16.mxu0 %v2794
      %3038 = vmatmul.mubr.bf16.gmra.mrb[0].mxu0 %v2792
      %v3039 = vpop.f32.mrb[0].mxu0
      %v3040 = vadd.f32 0.0, %v3039
      %v3041 = vpop.f32.mrb[0].mxu0
      %v3042 = vadd.f32 0.0, %v3041
      %v3043 = vpop.f32.mrb[0].mxu0
      %v3044 = vadd.f32 0.0, %v3043
      %v3045 = vpop.f32.mrb[0].mxu0
      %v3046 = vadd.f32 0.0, %v3045
      %3047 = vmatprep.mubr.bf16.mxu0 %v2798
      %3048 = vmatmul.mubr.bf16.gmra.mrb[0].mxu0 %v2796
      %v3049 = vpop.f32.mrb[0].mxu0
      %v3050 = vadd.f32 0.0, %v3049
      %v3051 = vpop.f32.mrb[0].mxu0
      %v3052 = vadd.f32 0.0, %v3051
      %v3053 = vpop.f32.mrb[0].mxu0
      %v3054 = vadd.f32 0.0, %v3053
      %v3055 = vpop.f32.mrb[0].mxu0
      %v3056 = vadd.f32 0.0, %v3055
      %3057 = vmatprep.mubr.bf16.mxu0 %v2802
      %3058 = vmatmul.mubr.bf16.gmra.mrb[0].mxu0 %v2800
      %v3059 = vpop.f32.mrb[0].mxu0
      %v3060 = vadd.f32 0.0, %v3059
      %v3061 = vpop.f32.mrb[0].mxu0
      %v3062 = vadd.f32 0.0, %v3061
      %v3063 = vpop.f32.mrb[0].mxu0
      %v3064 = vadd.f32 0.0, %v3063
      %v3065 = vpop.f32.mrb[0].mxu0
      %v3066 = vadd.f32 0.0, %v3065
      %3067 = vdwg.mxu0
      %v3068 = vadd.f32 %v2692, %v3010
      %v3069 = vadd.f32 %v2693, %v3012
      %v3070 = vadd.f32 %v2694, %v3014
      %v3071 = vadd.f32 %v2695, %v3016
      %v3072 = vadd.f32 %v2696, %v3020
      %v3073 = vadd.f32 %v2697, %v3022
      %v3074 = vadd.f32 %v2698, %v3024
      %v3075 = vadd.f32 %v2699, %v3026
      %v3076 = vadd.f32 %v2700, %v3030
      %v3077 = vadd.f32 %v2701, %v3032
      %v3078 = vadd.f32 %v2702, %v3034
      %v3079 = vadd.f32 %v2703, %v3036
      %v3080 = vadd.f32 %v2704, %v3040
      %v3081 = vadd.f32 %v2705, %v3042
      %v3082 = vadd.f32 %v2706, %v3044
      %v3083 = vadd.f32 %v2707, %v3046
      %v3084 = vadd.f32 %v2708, %v3050
      %v3085 = vadd.f32 %v2709, %v3052
      %v3086 = vadd.f32 %v2710, %v3054
      %v3087 = vadd.f32 %v2711, %v3056
      %v3088 = vadd.f32 %v2712, %v3060
      %v3089 = vadd.f32 %v2713, %v3062
      %v3090 = vadd.f32 %v2714, %v3064
      %v3091 = vadd.f32 %v2715, %v3066
      %v3092 = vld [vmem:[#allocation2 + $0x70] sm:$0x3]
      %v3093 = vld [vmem:[#allocation2 + $0x78] sm:$0x3]
      %s3094 = scalar_lea.vmem %s5, 1024
      %v3095 = vld [vmem:[%s3094] sm:$0xff]
      %v3096 = vld [vmem:[%s3094 + $0x8] sm:$0xff]
      %v3097 = vld [vmem:[%s3094 + $0x10] sm:$0xff]
      %v3098 = vld [vmem:[%s3094 + $0x18] sm:$0xff]
      %v3099 = vld [vmem:[%s3094 + $0x20] sm:$0xff]
      %v3100 = vld [vmem:[%s3094 + $0x28] sm:$0xff]
      %v3101 = vld [vmem:[%s3094 + $0x30] sm:$0xff]
      %v3102 = vld [vmem:[%s3094 + $0x38] sm:$0xff]
      %v3103 = vld [vmem:[%s3094 + $0x40] sm:$0xff]
      %v3104 = vld [vmem:[%s3094 + $0x48] sm:$0xff]
      %v3105 = vld [vmem:[%s3094 + $0x50] sm:$0xff]
      %v3106 = vld [vmem:[%s3094 + $0x58] sm:$0xff]
      %v3107 = vld [vmem:[%s3094 + $0x60] sm:$0xff]
      %v3108 = vld [vmem:[%s3094 + $0x68] sm:$0xff]
      %v3109 = vld [vmem:[%s3094 + $0x70] sm:$0xff]
      %v3110 = vld [vmem:[%s3094 + $0x78] sm:$0xff]
      %v3111 = vld [vmem:[%s3094 + $0x80] sm:$0xff]
      %v3112 = vld [vmem:[%s3094 + $0x88] sm:$0xff]
      %v3113 = vld [vmem:[%s3094 + $0x90] sm:$0xff]
      %v3114 = vld [vmem:[%s3094 + $0x98] sm:$0xff]
      %v3115 = vld [vmem:[%s3094 + $0xa0] sm:$0xff]
      %v3116 = vld [vmem:[%s3094 + $0xa8] sm:$0xff]
      %v3117 = vld [vmem:[%s3094 + $0xb0] sm:$0xff]
      %v3118 = vld [vmem:[%s3094 + $0xb8] sm:$0xff]
      %v3119 = vld [vmem:[%s3094 + $0xc0] sm:$0xff]
      %v3120 = vld [vmem:[%s3094 + $0xc8] sm:$0xff]
      %v3121 = vld [vmem:[%s3094 + $0xd0] sm:$0xff]
      %v3122 = vld [vmem:[%s3094 + $0xd8] sm:$0xff]
      %v3123 = vld [vmem:[%s3094 + $0xe0] sm:$0xff]
      %v3124 = vld [vmem:[%s3094 + $0xe8] sm:$0xff]
      %v3125 = vld [vmem:[%s3094 + $0xf0] sm:$0xff]
      %v3126 = vld [vmem:[%s3094 + $0xf8] sm:$0xff]
      %vm3127 = vsmask.f32 6400
      %v3129 = vshrl.u32 %v2716, 16
      %v3131 = vrot.slane %v3129, 1
      %v3132 = vshll.u32 %v2716, 16
      %v3134 = vrot.slane %v3132, 2
      %v3135 = vor.u32 %v3131, %v3134
      %v3137 = vshrl.u32 %v2718, 16
      %v3139 = vrot.slane %v3137, 1
      %v3140 = vshll.u32 %v2718, 16
      %v3142 = vrot.slane %v3140, 2
      %v3143 = vor.u32 %v3139, %v3142
      %v3144 = vsel %vm3127, %v3135, %v3143
      %v3146 = vshrl.u32 %v2717, 16
      %v3148 = vrot.slane %v3146, 1
      %v3149 = vshll.u32 %v2717, 16
      %v3151 = vrot.slane %v3149, 2
      %v3152 = vor.u32 %v3148, %v3151
      %v3154 = vshrl.u32 %v2719, 16
      %v3156 = vrot.slane %v3154, 1
      %v3157 = vshll.u32 %v2719, 16
      %v3159 = vrot.slane %v3157, 2
      %v3160 = vor.u32 %v3156, %v3159
      %v3161 = vsel %vm3127, %v3152, %v3160
      %v3163 = vshrl.u32 %v2720, 16
      %v3165 = vrot.slane %v3163, 1
      %v3166 = vshll.u32 %v2720, 16
      %v3168 = vrot.slane %v3166, 2
      %v3169 = vor.u32 %v3165, %v3168
      %v3170 = vsel %vm3127, %v3143, %v3169
      %v3172 = vshrl.u32 %v2721, 16
      %v3174 = vrot.slane %v3172, 1
      %v3175 = vshll.u32 %v2721, 16
      %v3177 = vrot.slane %v3175, 2
      %v3178 = vor.u32 %v3174, %v3177
      %v3179 = vsel %vm3127, %v3160, %v3178
      %v3181 = vshrl.u32 %v2722, 16
      %v3183 = vrot.slane %v3181, 1
      %v3184 = vshll.u32 %v2722, 16
      %v3186 = vrot.slane %v3184, 2
      %v3187 = vor.u32 %v3183, %v3186
      %v3188 = vsel %vm3127, %v3169, %v3187
      %v3190 = vshrl.u32 %v2723, 16
      %v3192 = vrot.slane %v3190, 1
      %v3193 = vshll.u32 %v2723, 16
      %v3195 = vrot.slane %v3193, 2
      %v3196 = vor.u32 %v3192, %v3195
      %v3197 = vsel %vm3127, %v3178, %v3196
      %v3199 = vshrl.u32 %v2724, 16
      %v3201 = vrot.slane %v3199, 1
      %v3202 = vshll.u32 %v2724, 16
      %v3204 = vrot.slane %v3202, 2
      %v3205 = vor.u32 %v3201, %v3204
      %v3206 = vsel %vm3127, %v3187, %v3205
      %v3208 = vshrl.u32 %v2725, 16
      %v3210 = vrot.slane %v3208, 1
      %v3211 = vshll.u32 %v2725, 16
      %v3213 = vrot.slane %v3211, 2
      %v3214 = vor.u32 %v3210, %v3213
      %v3215 = vsel %vm3127, %v3196, %v3214
      %v3217 = vshrl.u32 %v2726, 16
      %v3219 = vrot.slane %v3217, 1
      %v3220 = vshll.u32 %v2726, 16
      %v3222 = vrot.slane %v3220, 2
      %v3223 = vor.u32 %v3219, %v3222
      %v3224 = vsel %vm3127, %v3205, %v3223
      %v3226 = vshrl.u32 %v2727, 16
      %v3228 = vrot.slane %v3226, 1
      %v3229 = vshll.u32 %v2727, 16
      %v3231 = vrot.slane %v3229, 2
      %v3232 = vor.u32 %v3228, %v3231
      %v3233 = vsel %vm3127, %v3214, %v3232
      %v3235 = vshrl.u32 %v3092, 16
      %v3237 = vrot.slane %v3235, 1
      %v3238 = vshll.u32 %v3092, 16
      %v3240 = vrot.slane %v3238, 2
      %v3241 = vor.u32 %v3237, %v3240
      %v3242 = vsel %vm3127, %v3223, %v3241
      %v3244 = vshrl.u32 %v3093, 16
      %v3246 = vrot.slane %v3244, 1
      %v3247 = vshll.u32 %v3093, 16
      %v3249 = vrot.slane %v3247, 2
      %v3250 = vor.u32 %v3246, %v3249
      %v3251 = vsel %vm3127, %v3232, %v3250
      %v3296 = vunpack.c.l.b16 %v3095
      %v3297 = vunpack.c.h.b16 %v3095
      %v3298 = vunpack.c.l.b16 %v3096
      %v3299 = vunpack.c.h.b16 %v3096
      %v3300 = vunpack.c.l.b16 %v3097
      %v3301 = vunpack.c.h.b16 %v3097
      %v3302 = vunpack.c.l.b16 %v3098
      %v3303 = vunpack.c.h.b16 %v3098
      %v3304 = vunpack.c.l.b16 %v3099
      %v3305 = vunpack.c.h.b16 %v3099
      %v3306 = vunpack.c.l.b16 %v3100
      %v3307 = vunpack.c.h.b16 %v3100
      %v3308 = vunpack.c.l.b16 %v3101
      %v3309 = vunpack.c.h.b16 %v3101
      %v3310 = vunpack.c.l.b16 %v3102
      %v3311 = vunpack.c.h.b16 %v3102
      %v3312 = vunpack.c.l.b16 %v3103
      %v3313 = vunpack.c.h.b16 %v3103
      %v3314 = vunpack.c.l.b16 %v3104
      %v3315 = vunpack.c.h.b16 %v3104
      %v3316 = vunpack.c.l.b16 %v3105
      %v3317 = vunpack.c.h.b16 %v3105
      %v3318 = vunpack.c.l.b16 %v3106
      %v3319 = vunpack.c.h.b16 %v3106
      %v3320 = vunpack.c.l.b16 %v3107
      %v3321 = vunpack.c.h.b16 %v3107
      %v3322 = vunpack.c.l.b16 %v3108
      %v3323 = vunpack.c.h.b16 %v3108
      %v3324 = vunpack.c.l.b16 %v3109
      %v3325 = vunpack.c.h.b16 %v3109
      %v3326 = vunpack.c.l.b16 %v3110
      %v3327 = vunpack.c.h.b16 %v3110
      %v3328 = vunpack.c.l.b16 %v3111
      %v3329 = vunpack.c.h.b16 %v3111
      %v3330 = vunpack.c.l.b16 %v3112
      %v3331 = vunpack.c.h.b16 %v3112
      %v3332 = vunpack.c.l.b16 %v3113
      %v3333 = vunpack.c.h.b16 %v3113
      %v3334 = vunpack.c.l.b16 %v3114
      %v3335 = vunpack.c.h.b16 %v3114
      %v3336 = vunpack.c.l.b16 %v3115
      %v3337 = vunpack.c.h.b16 %v3115
      %v3338 = vunpack.c.l.b16 %v3116
      %v3339 = vunpack.c.h.b16 %v3116
      %v3340 = vunpack.c.l.b16 %v3117
      %v3341 = vunpack.c.h.b16 %v3117
      %v3342 = vunpack.c.l.b16 %v3118
      %v3343 = vunpack.c.h.b16 %v3118
      %v3344 = vunpack.c.l.b16 %v3119
      %v3345 = vunpack.c.h.b16 %v3119
      %v3346 = vunpack.c.l.b16 %v3120
      %v3347 = vunpack.c.h.b16 %v3120
      %v3348 = vunpack.c.l.b16 %v3121
      %v3349 = vunpack.c.h.b16 %v3121
      %v3350 = vunpack.c.l.b16 %v3122
      %v3351 = vunpack.c.h.b16 %v3122
      %v3352 = vunpack.c.l.b16 %v3123
      %v3353 = vunpack.c.h.b16 %v3123
      %v3354 = vunpack.c.l.b16 %v3124
      %v3355 = vunpack.c.h.b16 %v3124
      %v3356 = vunpack.c.l.b16 %v3125
      %v3357 = vunpack.c.h.b16 %v3125
      %v3358 = vunpack.c.l.b16 %v3126
      %v3359 = vunpack.c.h.b16 %v3126
      %v3360 = vpack.c.b16 %v3298, %v3296
      %v3361 = vpack.c.b16 %v3299, %v3297
      %v3362 = vpack.c.b16 %v3302, %v3300
      %v3363 = vpack.c.b16 %v3303, %v3301
      %v3364 = vpack.c.b16 %v3306, %v3304
      %v3365 = vpack.c.b16 %v3307, %v3305
      %v3366 = vpack.c.b16 %v3310, %v3308
      %v3367 = vpack.c.b16 %v3311, %v3309
      %v3368 = vpack.c.b16 %v3314, %v3312
      %v3369 = vpack.c.b16 %v3315, %v3313
      %v3370 = vpack.c.b16 %v3318, %v3316
      %v3371 = vpack.c.b16 %v3319, %v3317
      %v3372 = vpack.c.b16 %v3322, %v3320
      %v3373 = vpack.c.b16 %v3323, %v3321
      %v3374 = vpack.c.b16 %v3326, %v3324
      %v3375 = vpack.c.b16 %v3327, %v3325
      %v3376 = vpack.c.b16 %v3330, %v3328
      %v3377 = vpack.c.b16 %v3331, %v3329
      %v3378 = vpack.c.b16 %v3334, %v3332
      %v3379 = vpack.c.b16 %v3335, %v3333
      %v3380 = vpack.c.b16 %v3338, %v3336
      %v3381 = vpack.c.b16 %v3339, %v3337
      %v3382 = vpack.c.b16 %v3342, %v3340
      %v3383 = vpack.c.b16 %v3343, %v3341
      %v3384 = vpack.c.b16 %v3346, %v3344
      %v3385 = vpack.c.b16 %v3347, %v3345
      %v3386 = vpack.c.b16 %v3350, %v3348
      %v3387 = vpack.c.b16 %v3351, %v3349
      %v3388 = vpack.c.b16 %v3354, %v3352
      %v3389 = vpack.c.b16 %v3355, %v3353
      %v3390 = vpack.c.b16 %v3358, %v3356
      %v3391 = vpack.c.b16 %v3359, %v3357
      %3424 = vmatprep.subr.bf16.mxu0 %v3361
      %3425 = vmatpush1.bf16.msra.mxu0 %v3360
      %3426 = vmatprep.subr.bf16.mxu0 %v3363
      %3427 = vmatpush1.bf16.msra.mxu0 %v3362
      %3428 = vmatprep.subr.bf16.mxu0 %v3365
      %3429 = vmatpush1.bf16.msra.mxu0 %v3364
      %3430 = vmatprep.subr.bf16.mxu0 %v3367
      %3431 = vmatpush1.bf16.msra.mxu0 %v3366
      %3432 = vmatprep.subr.bf16.mxu0 %v3369
      %3433 = vmatpush1.bf16.msra.mxu0 %v3368
      %3434 = vmatprep.subr.bf16.mxu0 %v3371
      %3435 = vmatpush1.bf16.msra.mxu0 %v3370
      %3436 = vmatprep.subr.bf16.mxu0 %v3373
      %3437 = vmatpush1.bf16.msra.mxu0 %v3372
      %3438 = vmatprep.subr.bf16.mxu0 %v3375
      %3439 = vmatpush1.bf16.msra.mxu0 %v3374
      %3440 = vmatprep.subr.bf16.mxu0 %v3377
      %3441 = vmatpush1.bf16.msra.mxu0 %v3376
      %3442 = vmatprep.subr.bf16.mxu0 %v3379
      %3443 = vmatpush1.bf16.msra.mxu0 %v3378
      %3444 = vmatprep.subr.bf16.mxu0 %v3381
      %3445 = vmatpush1.bf16.msra.mxu0 %v3380
      %3446 = vmatprep.subr.bf16.mxu0 %v3383
      %3447 = vmatpush1.bf16.msra.mxu0 %v3382
      %3448 = vmatprep.subr.bf16.mxu0 %v3385
      %3449 = vmatpush1.bf16.msra.mxu0 %v3384
      %3450 = vmatprep.subr.bf16.mxu0 %v3387
      %3451 = vmatpush1.bf16.msra.mxu0 %v3386
      %3452 = vmatprep.subr.bf16.mxu0 %v3389
      %3453 = vmatpush1.bf16.msra.mxu0 %v3388
      %3454 = vmatprep.subr.bf16.mxu0 %v3391
      %3455 = vmatpush1.bf16.msra.mxu0 %v3390
      %3456 = vmatprep.mubr.bf16.mxu0 %v3161
      %3457 = vmatmul.mubr.bf16.gmra.mrb[0].mxu0 %v3144
      %v3458 = vpop.f32.mrb[0].mxu0
      %v3459 = vadd.f32 0.0, %v3458
      %v3460 = vpop.f32.mrb[0].mxu0
      %v3461 = vadd.f32 0.0, %v3460
      %v3462 = vpop.f32.mrb[0].mxu0
      %v3463 = vadd.f32 0.0, %v3462
      %v3464 = vpop.f32.mrb[0].mxu0
      %v3465 = vadd.f32 0.0, %v3464
      %3466 = vmatprep.mubr.bf16.mxu0 %v3179
      %3467 = vmatmul.mubr.bf16.gmra.mrb[0].mxu0 %v3170
      %v3468 = vpop.f32.mrb[0].mxu0
      %v3469 = vadd.f32 0.0, %v3468
      %v3470 = vpop.f32.mrb[0].mxu0
      %v3471 = vadd.f32 0.0, %v3470
      %v3472 = vpop.f32.mrb[0].mxu0
      %v3473 = vadd.f32 0.0, %v3472
      %v3474 = vpop.f32.mrb[0].mxu0
      %v3475 = vadd.f32 0.0, %v3474
      %3476 = vmatprep.mubr.bf16.mxu0 %v3197
      %3477 = vmatmul.mubr.bf16.gmra.mrb[0].mxu0 %v3188
      %v3478 = vpop.f32.mrb[0].mxu0
      %v3479 = vadd.f32 0.0, %v3478
      %v3480 = vpop.f32.mrb[0].mxu0
      %v3481 = vadd.f32 0.0, %v3480
      %v3482 = vpop.f32.mrb[0].mxu0
      %v3483 = vadd.f32 0.0, %v3482
      %v3484 = vpop.f32.mrb[0].mxu0
      %v3485 = vadd.f32 0.0, %v3484
      %3486 = vmatprep.mubr.bf16.mxu0 %v3215
      %3487 = vmatmul.mubr.bf16.gmra.mrb[0].mxu0 %v3206
      %v3488 = vpop.f32.mrb[0].mxu0
      %v3489 = vadd.f32 0.0, %v3488
      %v3490 = vpop.f32.mrb[0].mxu0
      %v3491 = vadd.f32 0.0, %v3490
      %v3492 = vpop.f32.mrb[0].mxu0
      %v3493 = vadd.f32 0.0, %v3492
      %v3494 = vpop.f32.mrb[0].mxu0
      %v3495 = vadd.f32 0.0, %v3494
      %3496 = vmatprep.mubr.bf16.mxu0 %v3233
      %3497 = vmatmul.mubr.bf16.gmra.mrb[0].mxu0 %v3224
      %v3498 = vpop.f32.mrb[0].mxu0
      %v3499 = vadd.f32 0.0, %v3498
      %v3500 = vpop.f32.mrb[0].mxu0
      %v3501 = vadd.f32 0.0, %v3500
      %v3502 = vpop.f32.mrb[0].mxu0
      %v3503 = vadd.f32 0.0, %v3502
      %v3504 = vpop.f32.mrb[0].mxu0
      %v3505 = vadd.f32 0.0, %v3504
      %3506 = vmatprep.mubr.bf16.mxu0 %v3251
      %3507 = vmatmul.mubr.bf16.gmra.mrb[0].mxu0 %v3242
      %v3508 = vpop.f32.mrb[0].mxu0
      %v3509 = vadd.f32 0.0, %v3508
      %v3510 = vpop.f32.mrb[0].mxu0
      %v3511 = vadd.f32 0.0, %v3510
      %v3512 = vpop.f32.mrb[0].mxu0
      %v3513 = vadd.f32 0.0, %v3512
      %v3514 = vpop.f32.mrb[0].mxu0
      %v3515 = vadd.f32 0.0, %v3514
      %3516 = vdwg.mxu0
      %v3517 = vadd.f32 %v3068, %v3459
      %v3518 = vadd.f32 %v3069, %v3461
      %v3519 = vadd.f32 %v3070, %v3463
      %v3520 = vadd.f32 %v3071, %v3465
      %v3521 = vadd.f32 %v3072, %v3469
      %v3522 = vadd.f32 %v3073, %v3471
      %v3523 = vadd.f32 %v3074, %v3473
      %v3524 = vadd.f32 %v3075, %v3475
      %v3525 = vadd.f32 %v3076, %v3479
      %v3526 = vadd.f32 %v3077, %v3481
      %v3527 = vadd.f32 %v3078, %v3483
      %v3528 = vadd.f32 %v3079, %v3485
      %v3529 = vadd.f32 %v3080, %v3489
      %v3530 = vadd.f32 %v3081, %v3491
      %v3531 = vadd.f32 %v3082, %v3493
      %v3532 = vadd.f32 %v3083, %v3495
      %v3533 = vadd.f32 %v3084, %v3499
      %v3534 = vadd.f32 %v3085, %v3501
      %v3535 = vadd.f32 %v3086, %v3503
      %v3536 = vadd.f32 %v3087, %v3505
      %v3537 = vadd.f32 %v3088, %v3509
      %v3538 = vadd.f32 %v3089, %v3511
      %v3539 = vadd.f32 %v3090, %v3513
      %v3540 = vadd.f32 %v3091, %v3515
      %v3541 = vld [vmem:[#allocation2 + $0x10] sm:$0xfc]
      %v3542 = vld [vmem:[#allocation2 + $0x18] sm:$0xfc]
      %s3543 = scalar_lea.vmem %s5, 1280
      %v3544 = vld [vmem:[%s3543] sm:$0xff]
      %v3545 = vld [vmem:[%s3543 + $0x8] sm:$0xff]
      %v3546 = vld [vmem:[%s3543 + $0x10] sm:$0xff]
      %v3547 = vld [vmem:[%s3543 + $0x18] sm:$0xff]
      %v3548 = vld [vmem:[%s3543 + $0x20] sm:$0xff]
      %v3549 = vld [vmem:[%s3543 + $0x28] sm:$0xff]
      %v3550 = vld [vmem:[%s3543 + $0x30] sm:$0xff]
      %v3551 = vld [vmem:[%s3543 + $0x38] sm:$0xff]
      %v3552 = vld [vmem:[%s3543 + $0x40] sm:$0xff]
      %v3553 = vld [vmem:[%s3543 + $0x48] sm:$0xff]
      %v3554 = vld [vmem:[%s3543 + $0x50] sm:$0xff]
      %v3555 = vld [vmem:[%s3543 + $0x58] sm:$0xff]
      %v3556 = vld [vmem:[%s3543 + $0x60] sm:$0xff]
      %v3557 = vld [vmem:[%s3543 + $0x68] sm:$0xff]
      %v3558 = vld [vmem:[%s3543 + $0x70] sm:$0xff]
      %v3559 = vld [vmem:[%s3543 + $0x78] sm:$0xff]
      %v3560 = vld [vmem:[%s3543 + $0x80] sm:$0xff]
      %v3561 = vld [vmem:[%s3543 + $0x88] sm:$0xff]
      %v3562 = vld [vmem:[%s3543 + $0x90] sm:$0xff]
      %v3563 = vld [vmem:[%s3543 + $0x98] sm:$0xff]
      %v3564 = vld [vmem:[%s3543 + $0xa0] sm:$0xff]
      %v3565 = vld [vmem:[%s3543 + $0xa8] sm:$0xff]
      %v3566 = vld [vmem:[%s3543 + $0xb0] sm:$0xff]
      %v3567 = vld [vmem:[%s3543 + $0xb8] sm:$0xff]
      %v3568 = vld [vmem:[%s3543 + $0xc0] sm:$0xff]
      %v3569 = vld [vmem:[%s3543 + $0xc8] sm:$0xff]
      %v3570 = vld [vmem:[%s3543 + $0xd0] sm:$0xff]
      %v3571 = vld [vmem:[%s3543 + $0xd8] sm:$0xff]
      %v3572 = vld [vmem:[%s3543 + $0xe0] sm:$0xff]
      %v3573 = vld [vmem:[%s3543 + $0xe8] sm:$0xff]
      %v3574 = vld [vmem:[%s3543 + $0xf0] sm:$0xff]
      %v3575 = vld [vmem:[%s3543 + $0xf8] sm:$0xff]
      %vm3580 = vcmask 1045504
      %v3581 = vrot.slane %v3541, 2
      %v3582 = vrot.slane %v2718, 2
      %v3583 = vsel %vm3580, %v3581, %v3582
      %v3584 = vrot.slane %v3542, 2
      %v3585 = vrot.slane %v2719, 2
      %v3586 = vsel %vm3580, %v3584, %v3585
      %v3587 = vrot.slane %v2720, 2
      %v3588 = vsel %vm3580, %v3582, %v3587
      %v3589 = vrot.slane %v2721, 2
      %v3590 = vsel %vm3580, %v3585, %v3589
      %v3591 = vrot.slane %v2722, 2
      %v3592 = vsel %vm3580, %v3587, %v3591
      %v3593 = vrot.slane %v2723, 2
      %v3594 = vsel %vm3580, %v3589, %v3593
      %v3595 = vrot.slane %v2724, 2
      %v3596 = vsel %vm3580, %v3591, %v3595
      %v3597 = vrot.slane %v2725, 2
      %v3598 = vsel %vm3580, %v3593, %v3597
      %v3599 = vrot.slane %v2726, 2
      %v3600 = vsel %vm3580, %v3595, %v3599
      %v3601 = vrot.slane %v2727, 2
      %v3602 = vsel %vm3580, %v3597, %v3601
      %v3603 = vrot.slane %v3092, 2
      %v3604 = vsel %vm3580, %v3599, %v3603
      %v3605 = vrot.slane %v3093, 2
      %v3606 = vsel %vm3580, %v3601, %v3605
      %v3651 = vunpack.c.l.b16 %v3544
      %v3652 = vunpack.c.h.b16 %v3544
      %v3653 = vunpack.c.l.b16 %v3545
      %v3654 = vunpack.c.h.b16 %v3545
      %v3655 = vunpack.c.l.b16 %v3546
      %v3656 = vunpack.c.h.b16 %v3546
      %v3657 = vunpack.c.l.b16 %v3547
      %v3658 = vunpack.c.h.b16 %v3547
      %v3659 = vunpack.c.l.b16 %v3548
      %v3660 = vunpack.c.h.b16 %v3548
      %v3661 = vunpack.c.l.b16 %v3549
      %v3662 = vunpack.c.h.b16 %v3549
      %v3663 = vunpack.c.l.b16 %v3550
      %v3664 = vunpack.c.h.b16 %v3550
      %v3665 = vunpack.c.l.b16 %v3551
      %v3666 = vunpack.c.h.b16 %v3551
      %v3667 = vunpack.c.l.b16 %v3552
      %v3668 = vunpack.c.h.b16 %v3552
      %v3669 = vunpack.c.l.b16 %v3553
      %v3670 = vunpack.c.h.b16 %v3553
      %v3671 = vunpack.c.l.b16 %v3554
      %v3672 = vunpack.c.h.b16 %v3554
      %v3673 = vunpack.c.l.b16 %v3555
      %v3674 = vunpack.c.h.b16 %v3555
      %v3675 = vunpack.c.l.b16 %v3556
      %v3676 = vunpack.c.h.b16 %v3556
      %v3677 = vunpack.c.l.b16 %v3557
      %v3678 = vunpack.c.h.b16 %v3557
      %v3679 = vunpack.c.l.b16 %v3558
      %v3680 = vunpack.c.h.b16 %v3558
      %v3681 = vunpack.c.l.b16 %v3559
      %v3682 = vunpack.c.h.b16 %v3559
      %v3683 = vunpack.c.l.b16 %v3560
      %v3684 = vunpack.c.h.b16 %v3560
      %v3685 = vunpack.c.l.b16 %v3561
      %v3686 = vunpack.c.h.b16 %v3561
      %v3687 = vunpack.c.l.b16 %v3562
      %v3688 = vunpack.c.h.b16 %v3562
      %v3689 = vunpack.c.l.b16 %v3563
      %v3690 = vunpack.c.h.b16 %v3563
      %v3691 = vunpack.c.l.b16 %v3564
      %v3692 = vunpack.c.h.b16 %v3564
      %v3693 = vunpack.c.l.b16 %v3565
      %v3694 = vunpack.c.h.b16 %v3565
      %v3695 = vunpack.c.l.b16 %v3566
      %v3696 = vunpack.c.h.b16 %v3566
      %v3697 = vunpack.c.l.b16 %v3567
      %v3698 = vunpack.c.h.b16 %v3567
      %v3699 = vunpack.c.l.b16 %v3568
      %v3700 = vunpack.c.h.b16 %v3568
      %v3701 = vunpack.c.l.b16 %v3569
      %v3702 = vunpack.c.h.b16 %v3569
      %v3703 = vunpack.c.l.b16 %v3570
      %v3704 = vunpack.c.h.b16 %v3570
      %v3705 = vunpack.c.l.b16 %v3571
      %v3706 = vunpack.c.h.b16 %v3571
      %v3707 = vunpack.c.l.b16 %v3572
      %v3708 = vunpack.c.h.b16 %v3572
      %v3709 = vunpack.c.l.b16 %v3573
      %v3710 = vunpack.c.h.b16 %v3573
      %v3711 = vunpack.c.l.b16 %v3574
      %v3712 = vunpack.c.h.b16 %v3574
      %v3713 = vunpack.c.l.b16 %v3575
      %v3714 = vunpack.c.h.b16 %v3575
      %v3715 = vpack.c.b16 %v3653, %v3651
      %v3716 = vpack.c.b16 %v3654, %v3652
      %v3717 = vpack.c.b16 %v3657, %v3655
      %v3718 = vpack.c.b16 %v3658, %v3656
      %v3719 = vpack.c.b16 %v3661, %v3659
      %v3720 = vpack.c.b16 %v3662, %v3660
      %v3721 = vpack.c.b16 %v3665, %v3663
      %v3722 = vpack.c.b16 %v3666, %v3664
      %v3723 = vpack.c.b16 %v3669, %v3667
      %v3724 = vpack.c.b16 %v3670, %v3668
      %v3725 = vpack.c.b16 %v3673, %v3671
      %v3726 = vpack.c.b16 %v3674, %v3672
      %v3727 = vpack.c.b16 %v3677, %v3675
      %v3728 = vpack.c.b16 %v3678, %v3676
      %v3729 = vpack.c.b16 %v3681, %v3679
      %v3730 = vpack.c.b16 %v3682, %v3680
      %v3731 = vpack.c.b16 %v3685, %v3683
      %v3732 = vpack.c.b16 %v3686, %v3684
      %v3733 = vpack.c.b16 %v3689, %v3687
      %v3734 = vpack.c.b16 %v3690, %v3688
      %v3735 = vpack.c.b16 %v3693, %v3691
      %v3736 = vpack.c.b16 %v3694, %v3692
      %v3737 = vpack.c.b16 %v3697, %v3695
      %v3738 = vpack.c.b16 %v3698, %v3696
      %v3739 = vpack.c.b16 %v3701, %v3699
      %v3740 = vpack.c.b16 %v3702, %v3700
      %v3741 = vpack.c.b16 %v3705, %v3703
      %v3742 = vpack.c.b16 %v3706, %v3704
      %v3743 = vpack.c.b16 %v3709, %v3707
      %v3744 = vpack.c.b16 %v3710, %v3708
      %v3745 = vpack.c.b16 %v3713, %v3711
      %v3746 = vpack.c.b16 %v3714, %v3712
      %3779 = vmatprep.subr.bf16.mxu0 %v3716
      %3780 = vmatpush1.bf16.msra.mxu0 %v3715
      %3781 = vmatprep.subr.bf16.mxu0 %v3718
      %3782 = vmatpush1.bf16.msra.mxu0 %v3717
      %3783 = vmatprep.subr.bf16.mxu0 %v3720
      %3784 = vmatpush1.bf16.msra.mxu0 %v3719
      %3785 = vmatprep.subr.bf16.mxu0 %v3722
      %3786 = vmatpush1.bf16.msra.mxu0 %v3721
      %3787 = vmatprep.subr.bf16.mxu0 %v3724
      %3788 = vmatpush1.bf16.msra.mxu0 %v3723
      %3789 = vmatprep.subr.bf16.mxu0 %v3726
      %3790 = vmatpush1.bf16.msra.mxu0 %v3725
      %3791 = vmatprep.subr.bf16.mxu0 %v3728
      %3792 = vmatpush1.bf16.msra.mxu0 %v3727
      %3793 = vmatprep.subr.bf16.mxu0 %v3730
      %3794 = vmatpush1.bf16.msra.mxu0 %v3729
      %3795 = vmatprep.subr.bf16.mxu0 %v3732
      %3796 = vmatpush1.bf16.msra.mxu0 %v3731
      %3797 = vmatprep.subr.bf16.mxu0 %v3734
      %3798 = vmatpush1.bf16.msra.mxu0 %v3733
      %3799 = vmatprep.subr.bf16.mxu0 %v3736
      %3800 = vmatpush1.bf16.msra.mxu0 %v3735
      %3801 = vmatprep.subr.bf16.mxu0 %v3738
      %3802 = vmatpush1.bf16.msra.mxu0 %v3737
      %3803 = vmatprep.subr.bf16.mxu0 %v3740
      %3804 = vmatpush1.bf16.msra.mxu0 %v3739
      %3805 = vmatprep.subr.bf16.mxu0 %v3742
      %3806 = vmatpush1.bf16.msra.mxu0 %v3741
      %3807 = vmatprep.subr.bf16.mxu0 %v3744
      %3808 = vmatpush1.bf16.msra.mxu0 %v3743
      %3809 = vmatprep.subr.bf16.mxu0 %v3746
      %3810 = vmatpush1.bf16.msra.mxu0 %v3745
      %3811 = vmatprep.mubr.bf16.mxu0 %v3586
      %3812 = vmatmul.mubr.bf16.gmra.mrb[0].mxu0 %v3583
      %v3813 = vpop.f32.mrb[0].mxu0
      %v3814 = vadd.f32 0.0, %v3813
      %v3815 = vpop.f32.mrb[0].mxu0
      %v3816 = vadd.f32 0.0, %v3815
      %v3817 = vpop.f32.mrb[0].mxu0
      %v3818 = vadd.f32 0.0, %v3817
      %v3819 = vpop.f32.mrb[0].mxu0
      %v3820 = vadd.f32 0.0, %v3819
      %3821 = vmatprep.mubr.bf16.mxu0 %v3590
      %3822 = vmatmul.mubr.bf16.gmra.mrb[0].mxu0 %v3588
      %v3823 = vpop.f32.mrb[0].mxu0
      %v3824 = vadd.f32 0.0, %v3823
      %v3825 = vpop.f32.mrb[0].mxu0
      %v3826 = vadd.f32 0.0, %v3825
      %v3827 = vpop.f32.mrb[0].mxu0
      %v3828 = vadd.f32 0.0, %v3827
      %v3829 = vpop.f32.mrb[0].mxu0
      %v3830 = vadd.f32 0.0, %v3829
      %3831 = vmatprep.mubr.bf16.mxu0 %v3594
      %3832 = vmatmul.mubr.bf16.gmra.mrb[0].mxu0 %v3592
      %v3833 = vpop.f32.mrb[0].mxu0
      %v3834 = vadd.f32 0.0, %v3833
      %v3835 = vpop.f32.mrb[0].mxu0
      %v3836 = vadd.f32 0.0, %v3835
      %v3837 = vpop.f32.mrb[0].mxu0
      %v3838 = vadd.f32 0.0, %v3837
      %v3839 = vpop.f32.mrb[0].mxu0
      %v3840 = vadd.f32 0.0, %v3839
      %3841 = vmatprep.mubr.bf16.mxu0 %v3598
      %3842 = vmatmul.mubr.bf16.gmra.mrb[0].mxu0 %v3596
      %v3843 = vpop.f32.mrb[0].mxu0
      %v3844 = vadd.f32 0.0, %v3843
      %v3845 = vpop.f32.mrb[0].mxu0
      %v3846 = vadd.f32 0.0, %v3845
      %v3847 = vpop.f32.mrb[0].mxu0
      %v3848 = vadd.f32 0.0, %v3847
      %v3849 = vpop.f32.mrb[0].mxu0
      %v3850 = vadd.f32 0.0, %v3849
      %3851 = vmatprep.mubr.bf16.mxu0 %v3602
      %3852 = vmatmul.mubr.bf16.gmra.mrb[0].mxu0 %v3600
      %v3853 = vpop.f32.mrb[0].mxu0
      %v3854 = vadd.f32 0.0, %v3853
      %v3855 = vpop.f32.mrb[0].mxu0
      %v3856 = vadd.f32 0.0, %v3855
      %v3857 = vpop.f32.mrb[0].mxu0
      %v3858 = vadd.f32 0.0, %v3857
      %v3859 = vpop.f32.mrb[0].mxu0
      %v3860 = vadd.f32 0.0, %v3859
      %3861 = vmatprep.mubr.bf16.mxu0 %v3606
      %3862 = vmatmul.mubr.bf16.gmra.mrb[0].mxu0 %v3604
      %v3863 = vpop.f32.mrb[0].mxu0
      %v3864 = vadd.f32 0.0, %v3863
      %v3865 = vpop.f32.mrb[0].mxu0
      %v3866 = vadd.f32 0.0, %v3865
      %v3867 = vpop.f32.mrb[0].mxu0
      %v3868 = vadd.f32 0.0, %v3867
      %v3869 = vpop.f32.mrb[0].mxu0
      %v3870 = vadd.f32 0.0, %v3869
      %3871 = vdwg.mxu0
      %v3872 = vadd.f32 %v3517, %v3814
      %v3873 = vadd.f32 %v3518, %v3816
      %v3874 = vadd.f32 %v3519, %v3818
      %v3875 = vadd.f32 %v3520, %v3820
      %v3876 = vadd.f32 %v3521, %v3824
      %v3877 = vadd.f32 %v3522, %v3826
      %v3878 = vadd.f32 %v3523, %v3828
      %v3879 = vadd.f32 %v3524, %v3830
      %v3880 = vadd.f32 %v3525, %v3834
      %v3881 = vadd.f32 %v3526, %v3836
      %v3882 = vadd.f32 %v3527, %v3838
      %v3883 = vadd.f32 %v3528, %v3840
      %v3884 = vadd.f32 %v3529, %v3844
      %v3885 = vadd.f32 %v3530, %v3846
      %v3886 = vadd.f32 %v3531, %v3848
      %v3887 = vadd.f32 %v3532, %v3850
      %v3888 = vadd.f32 %v3533, %v3854
      %v3889 = vadd.f32 %v3534, %v3856
      %v3890 = vadd.f32 %v3535, %v3858
      %v3891 = vadd.f32 %v3536, %v3860
      %v3892 = vadd.f32 %v3537, %v3864
      %v3893 = vadd.f32 %v3538, %v3866
      %v3894 = vadd.f32 %v3539, %v3868
      %v3895 = vadd.f32 %v3540, %v3870
      %v3896 = vld [vmem:[#allocation2 + $0x20] sm:$0xfc]
      %v3897 = vld [vmem:[#allocation2 + $0x28] sm:$0xfc]
      %v3898 = vld [vmem:[#allocation2 + $0x30] sm:$0xff]
      %v3899 = vld [vmem:[#allocation2 + $0x38] sm:$0xff]
      %v3900 = vld [vmem:[#allocation2 + $0x40] sm:$0xff]
      %v3901 = vld [vmem:[#allocation2 + $0x48] sm:$0xff]
      %v3902 = vld [vmem:[#allocation2 + $0x50] sm:$0xff]
      %v3903 = vld [vmem:[#allocation2 + $0x58] sm:$0xff]
      %v3904 = vld [vmem:[#allocation2 + $0x60] sm:$0xff]
      %v3905 = vld [vmem:[#allocation2 + $0x68] sm:$0xff]
      %v3906 = vld [vmem:[#allocation2 + $0x70] sm:$0xff]
      %v3907 = vld [vmem:[#allocation2 + $0x78] sm:$0xff]
      %v3908 = vld [vmem:[#allocation2 + $0x80] sm:$0x3]
      %v3909 = vld [vmem:[#allocation2 + $0x88] sm:$0x3]
      %s3910 = scalar_lea.vmem %s5, 1536
      %v3911 = vld [vmem:[%s3910] sm:$0xff]
      %v3912 = vld [vmem:[%s3910 + $0x8] sm:$0xff]
      %v3913 = vld [vmem:[%s3910 + $0x10] sm:$0xff]
      %v3914 = vld [vmem:[%s3910 + $0x18] sm:$0xff]
      %v3915 = vld [vmem:[%s3910 + $0x20] sm:$0xff]
      %v3916 = vld [vmem:[%s3910 + $0x28] sm:$0xff]
      %v3917 = vld [vmem:[%s3910 + $0x30] sm:$0xff]
      %v3918 = vld [vmem:[%s3910 + $0x38] sm:$0xff]
      %v3919 = vld [vmem:[%s3910 + $0x40] sm:$0xff]
      %v3920 = vld [vmem:[%s3910 + $0x48] sm:$0xff]
      %v3921 = vld [vmem:[%s3910 + $0x50] sm:$0xff]
      %v3922 = vld [vmem:[%s3910 + $0x58] sm:$0xff]
      %v3923 = vld [vmem:[%s3910 + $0x60] sm:$0xff]
      %v3924 = vld [vmem:[%s3910 + $0x68] sm:$0xff]
      %v3925 = vld [vmem:[%s3910 + $0x70] sm:$0xff]
      %v3926 = vld [vmem:[%s3910 + $0x78] sm:$0xff]
      %v3927 = vld [vmem:[%s3910 + $0x80] sm:$0xff]
      %v3928 = vld [vmem:[%s3910 + $0x88] sm:$0xff]
      %v3929 = vld [vmem:[%s3910 + $0x90] sm:$0xff]
      %v3930 = vld [vmem:[%s3910 + $0x98] sm:$0xff]
      %v3931 = vld [vmem:[%s3910 + $0xa0] sm:$0xff]
      %v3932 = vld [vmem:[%s3910 + $0xa8] sm:$0xff]
      %v3933 = vld [vmem:[%s3910 + $0xb0] sm:$0xff]
      %v3934 = vld [vmem:[%s3910 + $0xb8] sm:$0xff]
      %v3935 = vld [vmem:[%s3910 + $0xc0] sm:$0xff]
      %v3936 = vld [vmem:[%s3910 + $0xc8] sm:$0xff]
      %v3937 = vld [vmem:[%s3910 + $0xd0] sm:$0xff]
      %v3938 = vld [vmem:[%s3910 + $0xd8] sm:$0xff]
      %v3939 = vld [vmem:[%s3910 + $0xe0] sm:$0xff]
      %v3940 = vld [vmem:[%s3910 + $0xe8] sm:$0xff]
      %v3941 = vld [vmem:[%s3910 + $0xf0] sm:$0xff]
      %v3942 = vld [vmem:[%s3910 + $0xf8] sm:$0xff]
      %v3957 = vrot.slane %v3896, 2
      %v3958 = vrot.slane %v3898, 2
      %v3959 = vsel %vm3580, %v3957, %v3958
      %v3960 = vrot.slane %v3897, 2
      %v3961 = vrot.slane %v3899, 2
      %v3962 = vsel %vm3580, %v3960, %v3961
      %v3963 = vrot.slane %v3900, 2
      %v3964 = vsel %vm3580, %v3958, %v3963
      %v3965 = vrot.slane %v3901, 2
      %v3966 = vsel %vm3580, %v3961, %v3965
      %v3967 = vrot.slane %v3902, 2
      %v3968 = vsel %vm3580, %v3963, %v3967
      %v3969 = vrot.slane %v3903, 2
      %v3970 = vsel %vm3580, %v3965, %v3969
      %v3971 = vrot.slane %v3904, 2
      %v3972 = vsel %vm3580, %v3967, %v3971
      %v3973 = vrot.slane %v3905, 2
      %v3974 = vsel %vm3580, %v3969, %v3973
      %v3975 = vrot.slane %v3906, 2
      %v3976 = vsel %vm3580, %v3971, %v3975
      %v3977 = vrot.slane %v3907, 2
      %v3978 = vsel %vm3580, %v3973, %v3977
      %v3979 = vrot.slane %v3908, 2
      %v3980 = vsel %vm3580, %v3975, %v3979
      %v3981 = vrot.slane %v3909, 2
      %v3982 = vsel %vm3580, %v3977, %v3981
      %v4027 = vunpack.c.l.b16 %v3911
      %v4028 = vunpack.c.h.b16 %v3911
      %v4029 = vunpack.c.l.b16 %v3912
      %v4030 = vunpack.c.h.b16 %v3912
      %v4031 = vunpack.c.l.b16 %v3913
      %v4032 = vunpack.c.h.b16 %v3913
      %v4033 = vunpack.c.l.b16 %v3914
      %v4034 = vunpack.c.h.b16 %v3914
      %v4035 = vunpack.c.l.b16 %v3915
      %v4036 = vunpack.c.h.b16 %v3915
      %v4037 = vunpack.c.l.b16 %v3916
      %v4038 = vunpack.c.h.b16 %v3916
      %v4039 = vunpack.c.l.b16 %v3917
      %v4040 = vunpack.c.h.b16 %v3917
      %v4041 = vunpack.c.l.b16 %v3918
      %v4042 = vunpack.c.h.b16 %v3918
      %v4043 = vunpack.c.l.b16 %v3919
      %v4044 = vunpack.c.h.b16 %v3919
      %v4045 = vunpack.c.l.b16 %v3920
      %v4046 = vunpack.c.h.b16 %v3920
      %v4047 = vunpack.c.l.b16 %v3921
      %v4048 = vunpack.c.h.b16 %v3921
      %v4049 = vunpack.c.l.b16 %v3922
      %v4050 = vunpack.c.h.b16 %v3922
      %v4051 = vunpack.c.l.b16 %v3923
      %v4052 = vunpack.c.h.b16 %v3923
      %v4053 = vunpack.c.l.b16 %v3924
      %v4054 = vunpack.c.h.b16 %v3924
      %v4055 = vunpack.c.l.b16 %v3925
      %v4056 = vunpack.c.h.b16 %v3925
      %v4057 = vunpack.c.l.b16 %v3926
      %v4058 = vunpack.c.h.b16 %v3926
      %v4059 = vunpack.c.l.b16 %v3927
      %v4060 = vunpack.c.h.b16 %v3927
      %v4061 = vunpack.c.l.b16 %v3928
      %v4062 = vunpack.c.h.b16 %v3928
      %v4063 = vunpack.c.l.b16 %v3929
      %v4064 = vunpack.c.h.b16 %v3929
      %v4065 = vunpack.c.l.b16 %v3930
      %v4066 = vunpack.c.h.b16 %v3930
      %v4067 = vunpack.c.l.b16 %v3931
      %v4068 = vunpack.c.h.b16 %v3931
      %v4069 = vunpack.c.l.b16 %v3932
      %v4070 = vunpack.c.h.b16 %v3932
      %v4071 = vunpack.c.l.b16 %v3933
      %v4072 = vunpack.c.h.b16 %v3933
      %v4073 = vunpack.c.l.b16 %v3934
      %v4074 = vunpack.c.h.b16 %v3934
      %v4075 = vunpack.c.l.b16 %v3935
      %v4076 = vunpack.c.h.b16 %v3935
      %v4077 = vunpack.c.l.b16 %v3936
      %v4078 = vunpack.c.h.b16 %v3936
      %v4079 = vunpack.c.l.b16 %v3937
      %v4080 = vunpack.c.h.b16 %v3937
      %v4081 = vunpack.c.l.b16 %v3938
      %v4082 = vunpack.c.h.b16 %v3938
      %v4083 = vunpack.c.l.b16 %v3939
      %v4084 = vunpack.c.h.b16 %v3939
      %v4085 = vunpack.c.l.b16 %v3940
      %v4086 = vunpack.c.h.b16 %v3940
      %v4087 = vunpack.c.l.b16 %v3941
      %v4088 = vunpack.c.h.b16 %v3941
      %v4089 = vunpack.c.l.b16 %v3942
      %v4090 = vunpack.c.h.b16 %v3942
      %v4091 = vpack.c.b16 %v4029, %v4027
      %v4092 = vpack.c.b16 %v4030, %v4028
      %v4093 = vpack.c.b16 %v4033, %v4031
      %v4094 = vpack.c.b16 %v4034, %v4032
      %v4095 = vpack.c.b16 %v4037, %v4035
      %v4096 = vpack.c.b16 %v4038, %v4036
      %v4097 = vpack.c.b16 %v4041, %v4039
      %v4098 = vpack.c.b16 %v4042, %v4040
      %v4099 = vpack.c.b16 %v4045, %v4043
      %v4100 = vpack.c.b16 %v4046, %v4044
      %v4101 = vpack.c.b16 %v4049, %v4047
      %v4102 = vpack.c.b16 %v4050, %v4048
      %v4103 = vpack.c.b16 %v4053, %v4051
      %v4104 = vpack.c.b16 %v4054, %v4052
      %v4105 = vpack.c.b16 %v4057, %v4055
      %v4106 = vpack.c.b16 %v4058, %v4056
      %v4107 = vpack.c.b16 %v4061, %v4059
      %v4108 = vpack.c.b16 %v4062, %v4060
      %v4109 = vpack.c.b16 %v4065, %v4063
      %v4110 = vpack.c.b16 %v4066, %v4064
      %v4111 = vpack.c.b16 %v4069, %v4067
      %v4112 = vpack.c.b16 %v4070, %v4068
      %v4113 = vpack.c.b16 %v4073, %v4071
      %v4114 = vpack.c.b16 %v4074, %v4072
      %v4115 = vpack.c.b16 %v4077, %v4075
      %v4116 = vpack.c.b16 %v4078, %v4076
      %v4117 = vpack.c.b16 %v4081, %v4079
      %v4118 = vpack.c.b16 %v4082, %v4080
      %v4119 = vpack.c.b16 %v4085, %v4083
      %v4120 = vpack.c.b16 %v4086, %v4084
      %v4121 = vpack.c.b16 %v4089, %v4087
      %v4122 = vpack.c.b16 %v4090, %v4088
      %4155 = vmatprep.subr.bf16.mxu0 %v4092
      %4156 = vmatpush1.bf16.msra.mxu0 %v4091
      %4157 = vmatprep.subr.bf16.mxu0 %v4094
      %4158 = vmatpush1.bf16.msra.mxu0 %v4093
      %4159 = vmatprep.subr.bf16.mxu0 %v4096
      %4160 = vmatpush1.bf16.msra.mxu0 %v4095
      %4161 = vmatprep.subr.bf16.mxu0 %v4098
      %4162 = vmatpush1.bf16.msra.mxu0 %v4097
      %4163 = vmatprep.subr.bf16.mxu0 %v4100
      %4164 = vmatpush1.bf16.msra.mxu0 %v4099
      %4165 = vmatprep.subr.bf16.mxu0 %v4102
      %4166 = vmatpush1.bf16.msra.mxu0 %v4101
      %4167 = vmatprep.subr.bf16.mxu0 %v4104
      %4168 = vmatpush1.bf16.msra.mxu0 %v4103
      %4169 = vmatprep.subr.bf16.mxu0 %v4106
      %4170 = vmatpush1.bf16.msra.mxu0 %v4105
      %4171 = vmatprep.subr.bf16.mxu0 %v4108
      %4172 = vmatpush1.bf16.msra.mxu0 %v4107
      %4173 = vmatprep.subr.bf16.mxu0 %v4110
      %4174 = vmatpush1.bf16.msra.mxu0 %v4109
      %4175 = vmatprep.subr.bf16.mxu0 %v4112
      %4176 = vmatpush1.bf16.msra.mxu0 %v4111
      %4177 = vmatprep.subr.bf16.mxu0 %v4114
      %4178 = vmatpush1.bf16.msra.mxu0 %v4113
      %4179 = vmatprep.subr.bf16.mxu0 %v4116
      %4180 = vmatpush1.bf16.msra.mxu0 %v4115
      %4181 = vmatprep.subr.bf16.mxu0 %v4118
      %4182 = vmatpush1.bf16.msra.mxu0 %v4117
      %4183 = vmatprep.subr.bf16.mxu0 %v4120
      %4184 = vmatpush1.bf16.msra.mxu0 %v4119
      %4185 = vmatprep.subr.bf16.mxu0 %v4122
      %4186 = vmatpush1.bf16.msra.mxu0 %v4121
      %4187 = vmatprep.mubr.bf16.mxu0 %v3962
      %4188 = vmatmul.mubr.bf16.gmra.mrb[0].mxu0 %v3959
      %v4189 = vpop.f32.mrb[0].mxu0
      %v4190 = vadd.f32 0.0, %v4189
      %v4191 = vpop.f32.mrb[0].mxu0
      %v4192 = vadd.f32 0.0, %v4191
      %v4193 = vpop.f32.mrb[0].mxu0
      %v4194 = vadd.f32 0.0, %v4193
      %v4195 = vpop.f32.mrb[0].mxu0
      %v4196 = vadd.f32 0.0, %v4195
      %4197 = vmatprep.mubr.bf16.mxu0 %v3966
      %4198 = vmatmul.mubr.bf16.gmra.mrb[0].mxu0 %v3964
      %v4199 = vpop.f32.mrb[0].mxu0
      %v4200 = vadd.f32 0.0, %v4199
      %v4201 = vpop.f32.mrb[0].mxu0
      %v4202 = vadd.f32 0.0, %v4201
      %v4203 = vpop.f32.mrb[0].mxu0
      %v4204 = vadd.f32 0.0, %v4203
      %v4205 = vpop.f32.mrb[0].mxu0
      %v4206 = vadd.f32 0.0, %v4205
      %4207 = vmatprep.mubr.bf16.mxu0 %v3970
      %4208 = vmatmul.mubr.bf16.gmra.mrb[0].mxu0 %v3968
      %v4209 = vpop.f32.mrb[0].mxu0
      %v4210 = vadd.f32 0.0, %v4209
      %v4211 = vpop.f32.mrb[0].mxu0
      %v4212 = vadd.f32 0.0, %v4211
      %v4213 = vpop.f32.mrb[0].mxu0
      %v4214 = vadd.f32 0.0, %v4213
      %v4215 = vpop.f32.mrb[0].mxu0
      %v4216 = vadd.f32 0.0, %v4215
      %4217 = vmatprep.mubr.bf16.mxu0 %v3974
      %4218 = vmatmul.mubr.bf16.gmra.mrb[0].mxu0 %v3972
      %v4219 = vpop.f32.mrb[0].mxu0
      %v4220 = vadd.f32 0.0, %v4219
      %v4221 = vpop.f32.mrb[0].mxu0
      %v4222 = vadd.f32 0.0, %v4221
      %v4223 = vpop.f32.mrb[0].mxu0
      %v4224 = vadd.f32 0.0, %v4223
      %v4225 = vpop.f32.mrb[0].mxu0
      %v4226 = vadd.f32 0.0, %v4225
      %4227 = vmatprep.mubr.bf16.mxu0 %v3978
      %4228 = vmatmul.mubr.bf16.gmra.mrb[0].mxu0 %v3976
      %v4229 = vpop.f32.mrb[0].mxu0
      %v4230 = vadd.f32 0.0, %v4229
      %v4231 = vpop.f32.mrb[0].mxu0
      %v4232 = vadd.f32 0.0, %v4231
      %v4233 = vpop.f32.mrb[0].mxu0
      %v4234 = vadd.f32 0.0, %v4233
      %v4235 = vpop.f32.mrb[0].mxu0
      %v4236 = vadd.f32 0.0, %v4235
      %4237 = vmatprep.mubr.bf16.mxu0 %v3982
      %4238 = vmatmul.mubr.bf16.gmra.mrb[0].mxu0 %v3980
      %v4239 = vpop.f32.mrb[0].mxu0
      %v4240 = vadd.f32 0.0, %v4239
      %v4241 = vpop.f32.mrb[0].mxu0
      %v4242 = vadd.f32 0.0, %v4241
      %v4243 = vpop.f32.mrb[0].mxu0
      %v4244 = vadd.f32 0.0, %v4243
      %v4245 = vpop.f32.mrb[0].mxu0
      %v4246 = vadd.f32 0.0, %v4245
      %4247 = vdwg.mxu0
      %v4248 = vadd.f32 %v3872, %v4190
      %v4249 = vadd.f32 %v3873, %v4192
      %v4250 = vadd.f32 %v3874, %v4194
      %v4251 = vadd.f32 %v3875, %v4196
      %v4252 = vadd.f32 %v3876, %v4200
      %v4253 = vadd.f32 %v3877, %v4202
      %v4254 = vadd.f32 %v3878, %v4204
      %v4255 = vadd.f32 %v3879, %v4206
      %v4256 = vadd.f32 %v3880, %v4210
      %v4257 = vadd.f32 %v3881, %v4212
      %v4258 = vadd.f32 %v3882, %v4214
      %v4259 = vadd.f32 %v3883, %v4216
      %v4260 = vadd.f32 %v3884, %v4220
      %v4261 = vadd.f32 %v3885, %v4222
      %v4262 = vadd.f32 %v3886, %v4224
      %v4263 = vadd.f32 %v3887, %v4226
      %v4264 = vadd.f32 %v3888, %v4230
      %v4265 = vadd.f32 %v3889, %v4232
      %v4266 = vadd.f32 %v3890, %v4234
      %v4267 = vadd.f32 %v3891, %v4236
      %v4268 = vadd.f32 %v3892, %v4240
      %v4269 = vadd.f32 %v3893, %v4242
      %v4270 = vadd.f32 %v3894, %v4244
      %v4271 = vadd.f32 %v3895, %v4246
      %v4272 = vld [vmem:[#allocation2 + $0x80] sm:$0x7]
      %v4273 = vld [vmem:[#allocation2 + $0x88] sm:$0x7]
      %s4274 = scalar_lea.vmem %s5, 1792
      %v4275 = vld [vmem:[%s4274] sm:$0xff]
      %v4276 = vld [vmem:[%s4274 + $0x8] sm:$0xff]
      %v4277 = vld [vmem:[%s4274 + $0x10] sm:$0xff]
      %v4278 = vld [vmem:[%s4274 + $0x18] sm:$0xff]
      %v4279 = vld [vmem:[%s4274 + $0x20] sm:$0xff]
      %v4280 = vld [vmem:[%s4274 + $0x28] sm:$0xff]
      %v4281 = vld [vmem:[%s4274 + $0x30] sm:$0xff]
      %v4282 = vld [vmem:[%s4274 + $0x38] sm:$0xff]
      %v4283 = vld [vmem:[%s4274 + $0x40] sm:$0xff]
      %v4284 = vld [vmem:[%s4274 + $0x48] sm:$0xff]
      %v4285 = vld [vmem:[%s4274 + $0x50] sm:$0xff]
      %v4286 = vld [vmem:[%s4274 + $0x58] sm:$0xff]
      %v4287 = vld [vmem:[%s4274 + $0x60] sm:$0xff]
      %v4288 = vld [vmem:[%s4274 + $0x68] sm:$0xff]
      %v4289 = vld [vmem:[%s4274 + $0x70] sm:$0xff]
      %v4290 = vld [vmem:[%s4274 + $0x78] sm:$0xff]
      %v4291 = vld [vmem:[%s4274 + $0x80] sm:$0xff]
      %v4292 = vld [vmem:[%s4274 + $0x88] sm:$0xff]
      %v4293 = vld [vmem:[%s4274 + $0x90] sm:$0xff]
      %v4294 = vld [vmem:[%s4274 + $0x98] sm:$0xff]
      %v4295 = vld [vmem:[%s4274 + $0xa0] sm:$0xff]
      %v4296 = vld [vmem:[%s4274 + $0xa8] sm:$0xff]
      %v4297 = vld [vmem:[%s4274 + $0xb0] sm:$0xff]
      %v4298 = vld [vmem:[%s4274 + $0xb8] sm:$0xff]
      %v4299 = vld [vmem:[%s4274 + $0xc0] sm:$0xff]
      %v4300 = vld [vmem:[%s4274 + $0xc8] sm:$0xff]
      %v4301 = vld [vmem:[%s4274 + $0xd0] sm:$0xff]
      %v4302 = vld [vmem:[%s4274 + $0xd8] sm:$0xff]
      %v4303 = vld [vmem:[%s4274 + $0xe0] sm:$0xff]
      %v4304 = vld [vmem:[%s4274 + $0xe8] sm:$0xff]
      %v4305 = vld [vmem:[%s4274 + $0xf0] sm:$0xff]
      %v4306 = vld [vmem:[%s4274 + $0xf8] sm:$0xff]
      %vm4307 = vsmask.f32 5376
      %v4309 = vshrl.u32 %v3896, 16
      %v4311 = vrot.slane %v4309, 2
      %v4312 = vshll.u32 %v3896, 16
      %v4314 = vrot.slane %v4312, 3
      %v4315 = vor.u32 %v4311, %v4314
      %v4317 = vshrl.u32 %v3898, 16
      %v4319 = vrot.slane %v4317, 2
      %v4320 = vshll.u32 %v3898, 16
      %v4322 = vrot.slane %v4320, 3
      %v4323 = vor.u32 %v4319, %v4322
      %v4324 = vsel %vm4307, %v4315, %v4323
      %v4326 = vshrl.u32 %v3897, 16
      %v4328 = vrot.slane %v4326, 2
      %v4329 = vshll.u32 %v3897, 16
      %v4331 = vrot.slane %v4329, 3
      %v4332 = vor.u32 %v4328, %v4331
      %v4334 = vshrl.u32 %v3899, 16
      %v4336 = vrot.slane %v4334, 2
      %v4337 = vshll.u32 %v3899, 16
      %v4339 = vrot.slane %v4337, 3
      %v4340 = vor.u32 %v4336, %v4339
      %v4341 = vsel %vm4307, %v4332, %v4340
      %v4343 = vshrl.u32 %v3900, 16
      %v4345 = vrot.slane %v4343, 2
      %v4346 = vshll.u32 %v3900, 16
      %v4348 = vrot.slane %v4346, 3
      %v4349 = vor.u32 %v4345, %v4348
      %v4350 = vsel %vm4307, %v4323, %v4349
      %v4352 = vshrl.u32 %v3901, 16
      %v4354 = vrot.slane %v4352, 2
      %v4355 = vshll.u32 %v3901, 16
      %v4357 = vrot.slane %v4355, 3
      %v4358 = vor.u32 %v4354, %v4357
      %v4359 = vsel %vm4307, %v4340, %v4358
      %v4361 = vshrl.u32 %v3902, 16
      %v4363 = vrot.slane %v4361, 2
      %v4364 = vshll.u32 %v3902, 16
      %v4366 = vrot.slane %v4364, 3
      %v4367 = vor.u32 %v4363, %v4366
      %v4368 = vsel %vm4307, %v4349, %v4367
      %v4370 = vshrl.u32 %v3903, 16
      %v4372 = vrot.slane %v4370, 2
      %v4373 = vshll.u32 %v3903, 16
      %v4375 = vrot.slane %v4373, 3
      %v4376 = vor.u32 %v4372, %v4375
      %v4377 = vsel %vm4307, %v4358, %v4376
      %v4379 = vshrl.u32 %v3904, 16
      %v4381 = vrot.slane %v4379, 2
      %v4382 = vshll.u32 %v3904, 16
      %v4384 = vrot.slane %v4382, 3
      %v4385 = vor.u32 %v4381, %v4384
      %v4386 = vsel %vm4307, %v4367, %v4385
      %v4388 = vshrl.u32 %v3905, 16
      %v4390 = vrot.slane %v4388, 2
      %v4391 = vshll.u32 %v3905, 16
      %v4393 = vrot.slane %v4391, 3
      %v4394 = vor.u32 %v4390, %v4393
      %v4395 = vsel %vm4307, %v4376, %v4394
      %v4397 = vshrl.u32 %v3906, 16
      %v4399 = vrot.slane %v4397, 2
      %v4400 = vshll.u32 %v3906, 16
      %v4402 = vrot.slane %v4400, 3
      %v4403 = vor.u32 %v4399, %v4402
      %v4404 = vsel %vm4307, %v4385, %v4403
      %v4406 = vshrl.u32 %v3907, 16
      %v4408 = vrot.slane %v4406, 2
      %v4409 = vshll.u32 %v3907, 16
      %v4411 = vrot.slane %v4409, 3
      %v4412 = vor.u32 %v4408, %v4411
      %v4413 = vsel %vm4307, %v4394, %v4412
      %v4415 = vshrl.u32 %v4272, 16
      %v4417 = vrot.slane %v4415, 2
      %v4418 = vshll.u32 %v4272, 16
      %v4420 = vrot.slane %v4418, 3
      %v4421 = vor.u32 %v4417, %v4420
      %v4422 = vsel %vm4307, %v4403, %v4421
      %v4424 = vshrl.u32 %v4273, 16
      %v4426 = vrot.slane %v4424, 2
      %v4427 = vshll.u32 %v4273, 16
      %v4429 = vrot.slane %v4427, 3
      %v4430 = vor.u32 %v4426, %v4429
      %v4431 = vsel %vm4307, %v4412, %v4430
      %v4476 = vunpack.c.l.b16 %v4275
      %v4477 = vunpack.c.h.b16 %v4275
      %v4478 = vunpack.c.l.b16 %v4276
      %v4479 = vunpack.c.h.b16 %v4276
      %v4480 = vunpack.c.l.b16 %v4277
      %v4481 = vunpack.c.h.b16 %v4277
      %v4482 = vunpack.c.l.b16 %v4278
      %v4483 = vunpack.c.h.b16 %v4278
      %v4484 = vunpack.c.l.b16 %v4279
      %v4485 = vunpack.c.h.b16 %v4279
      %v4486 = vunpack.c.l.b16 %v4280
      %v4487 = vunpack.c.h.b16 %v4280
      %v4488 = vunpack.c.l.b16 %v4281
      %v4489 = vunpack.c.h.b16 %v4281
      %v4490 = vunpack.c.l.b16 %v4282
      %v4491 = vunpack.c.h.b16 %v4282
      %v4492 = vunpack.c.l.b16 %v4283
      %v4493 = vunpack.c.h.b16 %v4283
      %v4494 = vunpack.c.l.b16 %v4284
      %v4495 = vunpack.c.h.b16 %v4284
      %v4496 = vunpack.c.l.b16 %v4285
      %v4497 = vunpack.c.h.b16 %v4285
      %v4498 = vunpack.c.l.b16 %v4286
      %v4499 = vunpack.c.h.b16 %v4286
      %v4500 = vunpack.c.l.b16 %v4287
      %v4501 = vunpack.c.h.b16 %v4287
      %v4502 = vunpack.c.l.b16 %v4288
      %v4503 = vunpack.c.h.b16 %v4288
      %v4504 = vunpack.c.l.b16 %v4289
      %v4505 = vunpack.c.h.b16 %v4289
      %v4506 = vunpack.c.l.b16 %v4290
      %v4507 = vunpack.c.h.b16 %v4290
      %v4508 = vunpack.c.l.b16 %v4291
      %v4509 = vunpack.c.h.b16 %v4291
      %v4510 = vunpack.c.l.b16 %v4292
      %v4511 = vunpack.c.h.b16 %v4292
      %v4512 = vunpack.c.l.b16 %v4293
      %v4513 = vunpack.c.h.b16 %v4293
      %v4514 = vunpack.c.l.b16 %v4294
      %v4515 = vunpack.c.h.b16 %v4294
      %v4516 = vunpack.c.l.b16 %v4295
      %v4517 = vunpack.c.h.b16 %v4295
      %v4518 = vunpack.c.l.b16 %v4296
      %v4519 = vunpack.c.h.b16 %v4296
      %v4520 = vunpack.c.l.b16 %v4297
      %v4521 = vunpack.c.h.b16 %v4297
      %v4522 = vunpack.c.l.b16 %v4298
      %v4523 = vunpack.c.h.b16 %v4298
      %v4524 = vunpack.c.l.b16 %v4299
      %v4525 = vunpack.c.h.b16 %v4299
      %v4526 = vunpack.c.l.b16 %v4300
      %v4527 = vunpack.c.h.b16 %v4300
      %v4528 = vunpack.c.l.b16 %v4301
      %v4529 = vunpack.c.h.b16 %v4301
      %v4530 = vunpack.c.l.b16 %v4302
      %v4531 = vunpack.c.h.b16 %v4302
      %v4532 = vunpack.c.l.b16 %v4303
      %v4533 = vunpack.c.h.b16 %v4303
      %v4534 = vunpack.c.l.b16 %v4304
      %v4535 = vunpack.c.h.b16 %v4304
      %v4536 = vunpack.c.l.b16 %v4305
      %v4537 = vunpack.c.h.b16 %v4305
      %v4538 = vunpack.c.l.b16 %v4306
      %v4539 = vunpack.c.h.b16 %v4306
      %v4540 = vpack.c.b16 %v4478, %v4476
      %v4541 = vpack.c.b16 %v4479, %v4477
      %v4542 = vpack.c.b16 %v4482, %v4480
      %v4543 = vpack.c.b16 %v4483, %v4481
      %v4544 = vpack.c.b16 %v4486, %v4484
      %v4545 = vpack.c.b16 %v4487, %v4485
      %v4546 = vpack.c.b16 %v4490, %v4488
      %v4547 = vpack.c.b16 %v4491, %v4489
      %v4548 = vpack.c.b16 %v4494, %v4492
      %v4549 = vpack.c.b16 %v4495, %v4493
      %v4550 = vpack.c.b16 %v4498, %v4496
      %v4551 = vpack.c.b16 %v4499, %v4497
      %v4552 = vpack.c.b16 %v4502, %v4500
      %v4553 = vpack.c.b16 %v4503, %v4501
      %v4554 = vpack.c.b16 %v4506, %v4504
      %v4555 = vpack.c.b16 %v4507, %v4505
      %v4556 = vpack.c.b16 %v4510, %v4508
      %v4557 = vpack.c.b16 %v4511, %v4509
      %v4558 = vpack.c.b16 %v4514, %v4512
      %v4559 = vpack.c.b16 %v4515, %v4513
      %v4560 = vpack.c.b16 %v4518, %v4516
      %v4561 = vpack.c.b16 %v4519, %v4517
      %v4562 = vpack.c.b16 %v4522, %v4520
      %v4563 = vpack.c.b16 %v4523, %v4521
      %v4564 = vpack.c.b16 %v4526, %v4524
      %v4565 = vpack.c.b16 %v4527, %v4525
      %v4566 = vpack.c.b16 %v4530, %v4528
      %v4567 = vpack.c.b16 %v4531, %v4529
      %v4568 = vpack.c.b16 %v4534, %v4532
      %v4569 = vpack.c.b16 %v4535, %v4533
      %v4570 = vpack.c.b16 %v4538, %v4536
      %v4571 = vpack.c.b16 %v4539, %v4537
      %4604 = vmatprep.subr.bf16.mxu0 %v4541
      %4605 = vmatpush1.bf16.msra.mxu0 %v4540
      %4606 = vmatprep.subr.bf16.mxu0 %v4543
      %4607 = vmatpush1.bf16.msra.mxu0 %v4542
      %4608 = vmatprep.subr.bf16.mxu0 %v4545
      %4609 = vmatpush1.bf16.msra.mxu0 %v4544
      %4610 = vmatprep.subr.bf16.mxu0 %v4547
      %4611 = vmatpush1.bf16.msra.mxu0 %v4546
      %4612 = vmatprep.subr.bf16.mxu0 %v4549
      %4613 = vmatpush1.bf16.msra.mxu0 %v4548
      %4614 = vmatprep.subr.bf16.mxu0 %v4551
      %4615 = vmatpush1.bf16.msra.mxu0 %v4550
      %4616 = vmatprep.subr.bf16.mxu0 %v4553
      %4617 = vmatpush1.bf16.msra.mxu0 %v4552
      %4618 = vmatprep.subr.bf16.mxu0 %v4555
      %4619 = vmatpush1.bf16.msra.mxu0 %v4554
      %4620 = vmatprep.subr.bf16.mxu0 %v4557
      %4621 = vmatpush1.bf16.msra.mxu0 %v4556
      %4622 = vmatprep.subr.bf16.mxu0 %v4559
      %4623 = vmatpush1.bf16.msra.mxu0 %v4558
      %4624 = vmatprep.subr.bf16.mxu0 %v4561
      %4625 = vmatpush1.bf16.msra.mxu0 %v4560
      %4626 = vmatprep.subr.bf16.mxu0 %v4563
      %4627 = vmatpush1.bf16.msra.mxu0 %v4562
      %4628 = vmatprep.subr.bf16.mxu0 %v4565
      %4629 = vmatpush1.bf16.msra.mxu0 %v4564
      %4630 = vmatprep.subr.bf16.mxu0 %v4567
      %4631 = vmatpush1.bf16.msra.mxu0 %v4566
      %4632 = vmatprep.subr.bf16.mxu0 %v4569
      %4633 = vmatpush1.bf16.msra.mxu0 %v4568
      %4634 = vmatprep.subr.bf16.mxu0 %v4571
      %4635 = vmatpush1.bf16.msra.mxu0 %v4570
      %4636 = vmatprep.mubr.bf16.mxu0 %v4341
      %4637 = vmatmul.mubr.bf16.gmra.mrb[0].mxu0 %v4324
      %v4638 = vpop.f32.mrb[0].mxu0
      %v4639 = vadd.f32 0.0, %v4638
      %v4640 = vpop.f32.mrb[0].mxu0
      %v4641 = vadd.f32 0.0, %v4640
      %v4642 = vpop.f32.mrb[0].mxu0
      %v4643 = vadd.f32 0.0, %v4642
      %v4644 = vpop.f32.mrb[0].mxu0
      %v4645 = vadd.f32 0.0, %v4644
      %4646 = vmatprep.mubr.bf16.mxu0 %v4359
      %4647 = vmatmul.mubr.bf16.gmra.mrb[0].mxu0 %v4350
      %v4648 = vpop.f32.mrb[0].mxu0
      %v4649 = vadd.f32 0.0, %v4648
      %v4650 = vpop.f32.mrb[0].mxu0
      %v4651 = vadd.f32 0.0, %v4650
      %v4652 = vpop.f32.mrb[0].mxu0
      %v4653 = vadd.f32 0.0, %v4652
      %v4654 = vpop.f32.mrb[0].mxu0
      %v4655 = vadd.f32 0.0, %v4654
      %4656 = vmatprep.mubr.bf16.mxu0 %v4377
      %4657 = vmatmul.mubr.bf16.gmra.mrb[0].mxu0 %v4368
      %v4658 = vpop.f32.mrb[0].mxu0
      %v4659 = vadd.f32 0.0, %v4658
      %v4660 = vpop.f32.mrb[0].mxu0
      %v4661 = vadd.f32 0.0, %v4660
      %v4662 = vpop.f32.mrb[0].mxu0
      %v4663 = vadd.f32 0.0, %v4662
      %v4664 = vpop.f32.mrb[0].mxu0
      %v4665 = vadd.f32 0.0, %v4664
      %4666 = vmatprep.mubr.bf16.mxu0 %v4395
      %4667 = vmatmul.mubr.bf16.gmra.mrb[0].mxu0 %v4386
      %v4668 = vpop.f32.mrb[0].mxu0
      %v4669 = vadd.f32 0.0, %v4668
      %v4670 = vpop.f32.mrb[0].mxu0
      %v4671 = vadd.f32 0.0, %v4670
      %v4672 = vpop.f32.mrb[0].mxu0
      %v4673 = vadd.f32 0.0, %v4672
      %v4674 = vpop.f32.mrb[0].mxu0
      %v4675 = vadd.f32 0.0, %v4674
      %4676 = vmatprep.mubr.bf16.mxu0 %v4413
      %4677 = vmatmul.mubr.bf16.gmra.mrb[0].mxu0 %v4404
      %v4678 = vpop.f32.mrb[0].mxu0
      %v4679 = vadd.f32 0.0, %v4678
      %v4680 = vpop.f32.mrb[0].mxu0
      %v4681 = vadd.f32 0.0, %v4680
      %v4682 = vpop.f32.mrb[0].mxu0
      %v4683 = vadd.f32 0.0, %v4682
      %v4684 = vpop.f32.mrb[0].mxu0
      %v4685 = vadd.f32 0.0, %v4684
      %4686 = vmatprep.mubr.bf16.mxu0 %v4431
      %4687 = vmatmul.mubr.bf16.gmra.mrb[0].mxu0 %v4422
      %v4688 = vpop.f32.mrb[0].mxu0
      %v4689 = vadd.f32 0.0, %v4688
      %v4690 = vpop.f32.mrb[0].mxu0
      %v4691 = vadd.f32 0.0, %v4690
      %v4692 = vpop.f32.mrb[0].mxu0
      %v4693 = vadd.f32 0.0, %v4692
      %v4694 = vpop.f32.mrb[0].mxu0
      %v4695 = vadd.f32 0.0, %v4694
      %4696 = vdwg.mxu0
      %v4697 = vadd.f32 %v4248, %v4639
      %v4698 = vadd.f32 %v4249, %v4641
      %v4699 = vadd.f32 %v4250, %v4643
      %v4700 = vadd.f32 %v4251, %v4645
      %v4701 = vadd.f32 %v4252, %v4649
      %v4702 = vadd.f32 %v4253, %v4651
      %v4703 = vadd.f32 %v4254, %v4653
      %v4704 = vadd.f32 %v4255, %v4655
      %v4705 = vadd.f32 %v4256, %v4659
      %v4706 = vadd.f32 %v4257, %v4661
      %v4707 = vadd.f32 %v4258, %v4663
      %v4708 = vadd.f32 %v4259, %v4665
      %v4709 = vadd.f32 %v4260, %v4669
      %v4710 = vadd.f32 %v4261, %v4671
      %v4711 = vadd.f32 %v4262, %v4673
      %v4712 = vadd.f32 %v4263, %v4675
      %v4713 = vadd.f32 %v4264, %v4679
      %v4714 = vadd.f32 %v4265, %v4681
      %v4715 = vadd.f32 %v4266, %v4683
      %v4716 = vadd.f32 %v4267, %v4685
      %v4717 = vadd.f32 %v4268, %v4689
      %v4718 = vadd.f32 %v4269, %v4691
      %v4719 = vadd.f32 %v4270, %v4693
      %v4720 = vadd.f32 %v4271, %v4695
      %v4721 = vld [vmem:[#allocation2 + $0x20] sm:$0xf8]
      %v4722 = vld [vmem:[#allocation2 + $0x28] sm:$0xf8]
      %s4723 = scalar_lea.vmem %s5, 2048
      %v4724 = vld [vmem:[%s4723] sm:$0xff]
      %v4725 = vld [vmem:[%s4723 + $0x8] sm:$0xff]
      %v4726 = vld [vmem:[%s4723 + $0x10] sm:$0xff]
      %v4727 = vld [vmem:[%s4723 + $0x18] sm:$0xff]
      %v4728 = vld [vmem:[%s4723 + $0x20] sm:$0xff]
      %v4729 = vld [vmem:[%s4723 + $0x28] sm:$0xff]
      %v4730 = vld [vmem:[%s4723 + $0x30] sm:$0xff]
      %v4731 = vld [vmem:[%s4723 + $0x38] sm:$0xff]
      %v4732 = vld [vmem:[%s4723 + $0x40] sm:$0xff]
      %v4733 = vld [vmem:[%s4723 + $0x48] sm:$0xff]
      %v4734 = vld [vmem:[%s4723 + $0x50] sm:$0xff]
      %v4735 = vld [vmem:[%s4723 + $0x58] sm:$0xff]
      %v4736 = vld [vmem:[%s4723 + $0x60] sm:$0xff]
      %v4737 = vld [vmem:[%s4723 + $0x68] sm:$0xff]
      %v4738 = vld [vmem:[%s4723 + $0x70] sm:$0xff]
      %v4739 = vld [vmem:[%s4723 + $0x78] sm:$0xff]
      %v4740 = vld [vmem:[%s4723 + $0x80] sm:$0xff]
      %v4741 = vld [vmem:[%s4723 + $0x88] sm:$0xff]
      %v4742 = vld [vmem:[%s4723 + $0x90] sm:$0xff]
      %v4743 = vld [vmem:[%s4723 + $0x98] sm:$0xff]
      %v4744 = vld [vmem:[%s4723 + $0xa0] sm:$0xff]
      %v4745 = vld [vmem:[%s4723 + $0xa8] sm:$0xff]
      %v4746 = vld [vmem:[%s4723 + $0xb0] sm:$0xff]
      %v4747 = vld [vmem:[%s4723 + $0xb8] sm:$0xff]
      %v4748 = vld [vmem:[%s4723 + $0xc0] sm:$0xff]
      %v4749 = vld [vmem:[%s4723 + $0xc8] sm:$0xff]
      %v4750 = vld [vmem:[%s4723 + $0xd0] sm:$0xff]
      %v4751 = vld [vmem:[%s4723 + $0xd8] sm:$0xff]
      %v4752 = vld [vmem:[%s4723 + $0xe0] sm:$0xff]
      %v4753 = vld [vmem:[%s4723 + $0xe8] sm:$0xff]
      %v4754 = vld [vmem:[%s4723 + $0xf0] sm:$0xff]
      %v4755 = vld [vmem:[%s4723 + $0xf8] sm:$0xff]
      %vm4760 = vcmask 1044480
      %v4761 = vrot.slane %v4721, 3
      %v4762 = vrot.slane %v3898, 3
      %v4763 = vsel %vm4760, %v4761, %v4762
      %v4764 = vrot.slane %v4722, 3
      %v4765 = vrot.slane %v3899, 3
      %v4766 = vsel %vm4760, %v4764, %v4765
      %v4767 = vrot.slane %v3900, 3
      %v4768 = vsel %vm4760, %v4762, %v4767
      %v4769 = vrot.slane %v3901, 3
      %v4770 = vsel %vm4760, %v4765, %v4769
      %v4771 = vrot.slane %v3902, 3
      %v4772 = vsel %vm4760, %v4767, %v4771
      %v4773 = vrot.slane %v3903, 3
      %v4774 = vsel %vm4760, %v4769, %v4773
      %v4775 = vrot.slane %v3904, 3
      %v4776 = vsel %vm4760, %v4771, %v4775
      %v4777 = vrot.slane %v3905, 3
      %v4778 = vsel %vm4760, %v4773, %v4777
      %v4779 = vrot.slane %v3906, 3
      %v4780 = vsel %vm4760, %v4775, %v4779
      %v4781 = vrot.slane %v3907, 3
      %v4782 = vsel %vm4760, %v4777, %v4781
      %v4783 = vrot.slane %v4272, 3
      %v4784 = vsel %vm4760, %v4779, %v4783
      %v4785 = vrot.slane %v4273, 3
      %v4786 = vsel %vm4760, %v4781, %v4785
      %v4831 = vunpack.c.l.b16 %v4724
      %v4832 = vunpack.c.h.b16 %v4724
      %v4833 = vunpack.c.l.b16 %v4725
      %v4834 = vunpack.c.h.b16 %v4725
      %v4835 = vunpack.c.l.b16 %v4726
      %v4836 = vunpack.c.h.b16 %v4726
      %v4837 = vunpack.c.l.b16 %v4727
      %v4838 = vunpack.c.h.b16 %v4727
      %v4839 = vunpack.c.l.b16 %v4728
      %v4840 = vunpack.c.h.b16 %v4728
      %v4841 = vunpack.c.l.b16 %v4729
      %v4842 = vunpack.c.h.b16 %v4729
      %v4843 = vunpack.c.l.b16 %v4730
      %v4844 = vunpack.c.h.b16 %v4730
      %v4845 = vunpack.c.l.b16 %v4731
      %v4846 = vunpack.c.h.b16 %v4731
      %v4847 = vunpack.c.l.b16 %v4732
      %v4848 = vunpack.c.h.b16 %v4732
      %v4849 = vunpack.c.l.b16 %v4733
      %v4850 = vunpack.c.h.b16 %v4733
      %v4851 = vunpack.c.l.b16 %v4734
      %v4852 = vunpack.c.h.b16 %v4734
      %v4853 = vunpack.c.l.b16 %v4735
      %v4854 = vunpack.c.h.b16 %v4735
      %v4855 = vunpack.c.l.b16 %v4736
      %v4856 = vunpack.c.h.b16 %v4736
      %v4857 = vunpack.c.l.b16 %v4737
      %v4858 = vunpack.c.h.b16 %v4737
      %v4859 = vunpack.c.l.b16 %v4738
      %v4860 = vunpack.c.h.b16 %v4738
      %v4861 = vunpack.c.l.b16 %v4739
      %v4862 = vunpack.c.h.b16 %v4739
      %v4863 = vunpack.c.l.b16 %v4740
      %v4864 = vunpack.c.h.b16 %v4740
      %v4865 = vunpack.c.l.b16 %v4741
      %v4866 = vunpack.c.h.b16 %v4741
      %v4867 = vunpack.c.l.b16 %v4742
      %v4868 = vunpack.c.h.b16 %v4742
      %v4869 = vunpack.c.l.b16 %v4743
      %v4870 = vunpack.c.h.b16 %v4743
      %v4871 = vunpack.c.l.b16 %v4744
      %v4872 = vunpack.c.h.b16 %v4744
      %v4873 = vunpack.c.l.b16 %v4745
      %v4874 = vunpack.c.h.b16 %v4745
      %v4875 = vunpack.c.l.b16 %v4746
      %v4876 = vunpack.c.h.b16 %v4746
      %v4877 = vunpack.c.l.b16 %v4747
      %v4878 = vunpack.c.h.b16 %v4747
      %v4879 = vunpack.c.l.b16 %v4748
      %v4880 = vunpack.c.h.b16 %v4748
      %v4881 = vunpack.c.l.b16 %v4749
      %v4882 = vunpack.c.h.b16 %v4749
      %v4883 = vunpack.c.l.b16 %v4750
      %v4884 = vunpack.c.h.b16 %v4750
      %v4885 = vunpack.c.l.b16 %v4751
      %v4886 = vunpack.c.h.b16 %v4751
      %v4887 = vunpack.c.l.b16 %v4752
      %v4888 = vunpack.c.h.b16 %v4752
      %v4889 = vunpack.c.l.b16 %v4753
      %v4890 = vunpack.c.h.b16 %v4753
      %v4891 = vunpack.c.l.b16 %v4754
      %v4892 = vunpack.c.h.b16 %v4754
      %v4893 = vunpack.c.l.b16 %v4755
      %v4894 = vunpack.c.h.b16 %v4755
      %v4895 = vpack.c.b16 %v4833, %v4831
      %v4896 = vpack.c.b16 %v4834, %v4832
      %v4897 = vpack.c.b16 %v4837, %v4835
      %v4898 = vpack.c.b16 %v4838, %v4836
      %v4899 = vpack.c.b16 %v4841, %v4839
      %v4900 = vpack.c.b16 %v4842, %v4840
      %v4901 = vpack.c.b16 %v4845, %v4843
      %v4902 = vpack.c.b16 %v4846, %v4844
      %v4903 = vpack.c.b16 %v4849, %v4847
      %v4904 = vpack.c.b16 %v4850, %v4848
      %v4905 = vpack.c.b16 %v4853, %v4851
      %v4906 = vpack.c.b16 %v4854, %v4852
      %v4907 = vpack.c.b16 %v4857, %v4855
      %v4908 = vpack.c.b16 %v4858, %v4856
      %v4909 = vpack.c.b16 %v4861, %v4859
      %v4910 = vpack.c.b16 %v4862, %v4860
      %v4911 = vpack.c.b16 %v4865, %v4863
      %v4912 = vpack.c.b16 %v4866, %v4864
      %v4913 = vpack.c.b16 %v4869, %v4867
      %v4914 = vpack.c.b16 %v4870, %v4868
      %v4915 = vpack.c.b16 %v4873, %v4871
      %v4916 = vpack.c.b16 %v4874, %v4872
      %v4917 = vpack.c.b16 %v4877, %v4875
      %v4918 = vpack.c.b16 %v4878, %v4876
      %v4919 = vpack.c.b16 %v4881, %v4879
      %v4920 = vpack.c.b16 %v4882, %v4880
      %v4921 = vpack.c.b16 %v4885, %v4883
      %v4922 = vpack.c.b16 %v4886, %v4884
      %v4923 = vpack.c.b16 %v4889, %v4887
      %v4924 = vpack.c.b16 %v4890, %v4888
      %v4925 = vpack.c.b16 %v4893, %v4891
      %v4926 = vpack.c.b16 %v4894, %v4892
      %4959 = vmatprep.subr.bf16.mxu0 %v4896
      %4960 = vmatpush1.bf16.msra.mxu0 %v4895
      %4961 = vmatprep.subr.bf16.mxu0 %v4898
      %4962 = vmatpush1.bf16.msra.mxu0 %v4897
      %4963 = vmatprep.subr.bf16.mxu0 %v4900
      %4964 = vmatpush1.bf16.msra.mxu0 %v4899
      %4965 = vmatprep.subr.bf16.mxu0 %v4902
      %4966 = vmatpush1.bf16.msra.mxu0 %v4901
      %4967 = vmatprep.subr.bf16.mxu0 %v4904
      %4968 = vmatpush1.bf16.msra.mxu0 %v4903
      %4969 = vmatprep.subr.bf16.mxu0 %v4906
      %4970 = vmatpush1.bf16.msra.mxu0 %v4905
      %4971 = vmatprep.subr.bf16.mxu0 %v4908
      %4972 = vmatpush1.bf16.msra.mxu0 %v4907
      %4973 = vmatprep.subr.bf16.mxu0 %v4910
      %4974 = vmatpush1.bf16.msra.mxu0 %v4909
      %4975 = vmatprep.subr.bf16.mxu0 %v4912
      %4976 = vmatpush1.bf16.msra.mxu0 %v4911
      %4977 = vmatprep.subr.bf16.mxu0 %v4914
      %4978 = vmatpush1.bf16.msra.mxu0 %v4913
      %4979 = vmatprep.subr.bf16.mxu0 %v4916
      %4980 = vmatpush1.bf16.msra.mxu0 %v4915
      %4981 = vmatprep.subr.bf16.mxu0 %v4918
      %4982 = vmatpush1.bf16.msra.mxu0 %v4917
      %4983 = vmatprep.subr.bf16.mxu0 %v4920
      %4984 = vmatpush1.bf16.msra.mxu0 %v4919
      %4985 = vmatprep.subr.bf16.mxu0 %v4922
      %4986 = vmatpush1.bf16.msra.mxu0 %v4921
      %4987 = vmatprep.subr.bf16.mxu0 %v4924
      %4988 = vmatpush1.bf16.msra.mxu0 %v4923
      %4989 = vmatprep.subr.bf16.mxu0 %v4926
      %4990 = vmatpush1.bf16.msra.mxu0 %v4925
      %4991 = vmatprep.mubr.bf16.mxu0 %v4766
      %4992 = vmatmul.mubr.bf16.gmra.mrb[0].mxu0 %v4763
      %v4993 = vpop.f32.mrb[0].mxu0
      %v4994 = vadd.f32 0.0, %v4993
      %v4995 = vpop.f32.mrb[0].mxu0
      %v4996 = vadd.f32 0.0, %v4995
      %v4997 = vpop.f32.mrb[0].mxu0
      %v4998 = vadd.f32 0.0, %v4997
      %v4999 = vpop.f32.mrb[0].mxu0
      %v5000 = vadd.f32 0.0, %v4999
      %5001 = vmatprep.mubr.bf16.mxu0 %v4770
      %5002 = vmatmul.mubr.bf16.gmra.mrb[0].mxu0 %v4768
      %v5003 = vpop.f32.mrb[0].mxu0
      %v5004 = vadd.f32 0.0, %v5003
      %v5005 = vpop.f32.mrb[0].mxu0
      %v5006 = vadd.f32 0.0, %v5005
      %v5007 = vpop.f32.mrb[0].mxu0
      %v5008 = vadd.f32 0.0, %v5007
      %v5009 = vpop.f32.mrb[0].mxu0
      %v5010 = vadd.f32 0.0, %v5009
      %5011 = vmatprep.mubr.bf16.mxu0 %v4774
      %5012 = vmatmul.mubr.bf16.gmra.mrb[0].mxu0 %v4772
      %v5013 = vpop.f32.mrb[0].mxu0
      %v5014 = vadd.f32 0.0, %v5013
      %v5015 = vpop.f32.mrb[0].mxu0
      %v5016 = vadd.f32 0.0, %v5015
      %v5017 = vpop.f32.mrb[0].mxu0
      %v5018 = vadd.f32 0.0, %v5017
      %v5019 = vpop.f32.mrb[0].mxu0
      %v5020 = vadd.f32 0.0, %v5019
      %5021 = vmatprep.mubr.bf16.mxu0 %v4778
      %5022 = vmatmul.mubr.bf16.gmra.mrb[0].mxu0 %v4776
      %v5023 = vpop.f32.mrb[0].mxu0
      %v5024 = vadd.f32 0.0, %v5023
      %v5025 = vpop.f32.mrb[0].mxu0
      %v5026 = vadd.f32 0.0, %v5025
      %v5027 = vpop.f32.mrb[0].mxu0
      %v5028 = vadd.f32 0.0, %v5027
      %v5029 = vpop.f32.mrb[0].mxu0
      %v5030 = vadd.f32 0.0, %v5029
      %5031 = vmatprep.mubr.bf16.mxu0 %v4782
      %5032 = vmatmul.mubr.bf16.gmra.mrb[0].mxu0 %v4780
      %v5033 = vpop.f32.mrb[0].mxu0
      %v5034 = vadd.f32 0.0, %v5033
      %v5035 = vpop.f32.mrb[0].mxu0
      %v5036 = vadd.f32 0.0, %v5035
      %v5037 = vpop.f32.mrb[0].mxu0
      %v5038 = vadd.f32 0.0, %v5037
      %v5039 = vpop.f32.mrb[0].mxu0
      %v5040 = vadd.f32 0.0, %v5039
      %5041 = vmatprep.mubr.bf16.mxu0 %v4786
      %5042 = vmatmul.mubr.bf16.gmra.mrb[0].mxu0 %v4784
      %v5043 = vpop.f32.mrb[0].mxu0
      %v5044 = vadd.f32 0.0, %v5043
      %v5045 = vpop.f32.mrb[0].mxu0
      %v5046 = vadd.f32 0.0, %v5045
      %v5047 = vpop.f32.mrb[0].mxu0
      %v5048 = vadd.f32 0.0, %v5047
      %v5049 = vpop.f32.mrb[0].mxu0
      %v5050 = vadd.f32 0.0, %v5049
      %5051 = vdwg.mxu0
      %v5052 = vadd.f32 %v4697, %v4994
      %v5053 = vadd.f32 %v4698, %v4996
      %v5054 = vadd.f32 %v4699, %v4998
      %v5055 = vadd.f32 %v4700, %v5000
      %v5056 = vadd.f32 %v4701, %v5004
      %v5057 = vadd.f32 %v4702, %v5006
      %v5058 = vadd.f32 %v4703, %v5008
      %v5059 = vadd.f32 %v4704, %v5010
      %v5060 = vadd.f32 %v4705, %v5014
      %v5061 = vadd.f32 %v4706, %v5016
      %v5062 = vadd.f32 %v4707, %v5018
      %v5063 = vadd.f32 %v4708, %v5020
      %v5064 = vadd.f32 %v4709, %v5024
      %v5065 = vadd.f32 %v4710, %v5026
      %v5066 = vadd.f32 %v4711, %v5028
      %v5067 = vadd.f32 %v4712, %v5030
      %v5068 = vadd.f32 %v4713, %v5034
      %v5069 = vadd.f32 %v4714, %v5036
      %v5070 = vadd.f32 %v4715, %v5038
      %v5071 = vadd.f32 %v4716, %v5040
      %v5072 = vadd.f32 %v4717, %v5044
      %v5073 = vadd.f32 %v4718, %v5046
      %v5074 = vadd.f32 %v4719, %v5048
      %v5075 = vadd.f32 %v4720, %v5050
      %v5077 = vlaneseq
      %v5078 = vshrl.u32 %v5077, 7
      %v5079 = vsub.s32 0, %v5078
      %v5080 = vrot.slane %v1614, %v5079
      %v5081 = vlaneseq
      %v5082 = vshrl.u32 %v5081, 7
      %v5083 = vsub.s32 1, %v5082
      %v5084 = vrot.slane %v1614, %v5083
      %v5087 = vmul.f32 %v5052, %v5080
      %v5088 = vmul.f32 %v5053, %v5084
      %v5089 = vmul.f32 %v5054, %v5080
      %v5090 = vmul.f32 %v5055, %v5084
      %v5091 = vmul.f32 %v5056, %v5080
      %v5092 = vmul.f32 %v5057, %v5084
      %v5093 = vmul.f32 %v5058, %v5080
      %v5094 = vmul.f32 %v5059, %v5084
      %v5095 = vmul.f32 %v5060, %v5080
      %v5096 = vmul.f32 %v5061, %v5084
      %v5097 = vmul.f32 %v5062, %v5080
      %v5098 = vmul.f32 %v5063, %v5084
      %v5099 = vmul.f32 %v5064, %v5080
      %v5100 = vmul.f32 %v5065, %v5084
      %v5101 = vmul.f32 %v5066, %v5080
      %v5102 = vmul.f32 %v5067, %v5084
      %v5103 = vmul.f32 %v5068, %v5080
      %v5104 = vmul.f32 %v5069, %v5084
      %v5105 = vmul.f32 %v5070, %v5080
      %v5106 = vmul.f32 %v5071, %v5084
      %v5107 = vmul.f32 %v5072, %v5080
      %v5108 = vmul.f32 %v5073, %v5084
      %v5109 = vmul.f32 %v5074, %v5080
      %v5110 = vmul.f32 %v5075, %v5084
      %v5112 = vlaneseq
      %v5113 = vshrl.u32 %v5112, 7
      %v5114 = vsub.s32 0, %v5113
      %v5115 = vrot.slane %v1615, %v5114
      %v5116 = vlaneseq
      %v5117 = vshrl.u32 %v5116, 7
      %v5118 = vsub.s32 1, %v5117
      %v5119 = vrot.slane %v1615, %v5118
      %v5122 = vadd.f32 %v5087, %v5115
      %v5123 = vadd.f32 %v5088, %v5119
      %v5124 = vadd.f32 %v5089, %v5115
      %v5125 = vadd.f32 %v5090, %v5119
      %v5126 = vadd.f32 %v5091, %v5115
      %v5127 = vadd.f32 %v5092, %v5119
      %v5128 = vadd.f32 %v5093, %v5115
      %v5129 = vadd.f32 %v5094, %v5119
      %v5130 = vadd.f32 %v5095, %v5115
      %v5131 = vadd.f32 %v5096, %v5119
      %v5132 = vadd.f32 %v5097, %v5115
      %v5133 = vadd.f32 %v5098, %v5119
      %v5134 = vadd.f32 %v5099, %v5115
      %v5135 = vadd.f32 %v5100, %v5119
      %v5136 = vadd.f32 %v5101, %v5115
      %v5137 = vadd.f32 %v5102, %v5119
      %v5138 = vadd.f32 %v5103, %v5115
      %v5139 = vadd.f32 %v5104, %v5119
      %v5140 = vadd.f32 %v5105, %v5115
      %v5141 = vadd.f32 %v5106, %v5119
      %v5142 = vadd.f32 %v5107, %v5115
      %v5143 = vadd.f32 %v5108, %v5119
      %v5144 = vadd.f32 %v5109, %v5115
      %v5145 = vadd.f32 %v5110, %v5119
      %v5146 = vmax.f32 %v5122, 0.0
      %v5147 = vmax.f32 %v5123, 0.0
      %v5148 = vmax.f32 %v5124, 0.0
      %v5149 = vmax.f32 %v5125, 0.0
      %v5150 = vmax.f32 %v5126, 0.0
      %v5151 = vmax.f32 %v5127, 0.0
      %v5152 = vmax.f32 %v5128, 0.0
      %v5153 = vmax.f32 %v5129, 0.0
      %v5154 = vmax.f32 %v5130, 0.0
      %v5155 = vmax.f32 %v5131, 0.0
      %v5156 = vmax.f32 %v5132, 0.0
      %v5157 = vmax.f32 %v5133, 0.0
      %v5158 = vmax.f32 %v5134, 0.0
      %v5159 = vmax.f32 %v5135, 0.0
      %v5160 = vmax.f32 %v5136, 0.0
      %v5161 = vmax.f32 %v5137, 0.0
      %v5162 = vmax.f32 %v5138, 0.0
      %v5163 = vmax.f32 %v5139, 0.0
      %v5164 = vmax.f32 %v5140, 0.0
      %v5165 = vmax.f32 %v5141, 0.0
      %v5166 = vmax.f32 %v5142, 0.0
      %v5167 = vmax.f32 %v5143, 0.0
      %v5168 = vmax.f32 %v5144, 0.0
      %v5169 = vmax.f32 %v5145, 0.0
      %v5170 = vpack.c.bf16 %v5148, %v5146
      %v5171 = vpack.c.bf16 %v5149, %v5147
      %v5172 = vpack.c.bf16 %v5152, %v5150
      %v5173 = vpack.c.bf16 %v5153, %v5151
      %v5174 = vpack.c.bf16 %v5156, %v5154
      %v5175 = vpack.c.bf16 %v5157, %v5155
      %v5176 = vpack.c.bf16 %v5160, %v5158
      %v5177 = vpack.c.bf16 %v5161, %v5159
      %v5178 = vpack.c.bf16 %v5164, %v5162
      %v5179 = vpack.c.bf16 %v5165, %v5163
      %v5180 = vpack.c.bf16 %v5168, %v5166
      %v5181 = vpack.c.bf16 %v5169, %v5167
      %v5183 = vlaneseq
      %v5184 = vshrl.u32 %v5183, 7
      %v5185 = vsub.s32 0, %v5184
      %v5186 = vrot.slane %v1648, %v5185
      %v5220 = vunpack.c.l.b16 %v1616
      %v5221 = vunpack.c.l.b16 %v1617
      %v5222 = vunpack.c.l.b16 %v1618
      %v5223 = vunpack.c.l.b16 %v1619
      %v5224 = vunpack.c.l.b16 %v1620
      %v5225 = vunpack.c.l.b16 %v1621
      %v5226 = vunpack.c.l.b16 %v1622
      %v5227 = vunpack.c.l.b16 %v1623
      %v5228 = vunpack.c.l.b16 %v1624
      %v5229 = vunpack.c.l.b16 %v1625
      %v5230 = vunpack.c.l.b16 %v1626
      %v5231 = vunpack.c.l.b16 %v1627
      %v5232 = vunpack.c.l.b16 %v1628
      %v5233 = vunpack.c.l.b16 %v1629
      %v5234 = vunpack.c.l.b16 %v1630
      %v5235 = vunpack.c.l.b16 %v1631
      %v5236 = vunpack.c.l.b16 %v1632
      %v5237 = vunpack.c.l.b16 %v1633
      %v5238 = vunpack.c.l.b16 %v1634
      %v5239 = vunpack.c.l.b16 %v1635
      %v5240 = vunpack.c.l.b16 %v1636
      %v5241 = vunpack.c.l.b16 %v1637
      %v5242 = vunpack.c.l.b16 %v1638
      %v5243 = vunpack.c.l.b16 %v1639
      %v5244 = vunpack.c.l.b16 %v1640
      %v5245 = vunpack.c.l.b16 %v1641
      %v5246 = vunpack.c.l.b16 %v1642
      %v5247 = vunpack.c.l.b16 %v1643
      %v5248 = vunpack.c.l.b16 %v1644
      %v5249 = vunpack.c.l.b16 %v1645
      %v5250 = vunpack.c.l.b16 %v1646
      %v5251 = vunpack.c.l.b16 %v1647
      %v5252 = vpack.c.b16 %v5221, %v5220
      %v5253 = vpack.c.b16 %v5223, %v5222
      %v5254 = vpack.c.b16 %v5225, %v5224
      %v5255 = vpack.c.b16 %v5227, %v5226
      %v5256 = vpack.c.b16 %v5229, %v5228
      %v5257 = vpack.c.b16 %v5231, %v5230
      %v5258 = vpack.c.b16 %v5233, %v5232
      %v5259 = vpack.c.b16 %v5235, %v5234
      %v5260 = vpack.c.b16 %v5237, %v5236
      %v5261 = vpack.c.b16 %v5239, %v5238
      %v5262 = vpack.c.b16 %v5241, %v5240
      %v5263 = vpack.c.b16 %v5243, %v5242
      %v5264 = vpack.c.b16 %v5245, %v5244
      %v5265 = vpack.c.b16 %v5247, %v5246
      %v5266 = vpack.c.b16 %v5249, %v5248
      %v5267 = vpack.c.b16 %v5251, %v5250
      %5284 = vmatprep.subr.bf16.mxu0 0
      %5285 = vmatpush1.bf16.msra.mxu0 %v5252
      %5286 = vmatprep.subr.bf16.mxu0 0
      %5287 = vmatpush1.bf16.msra.mxu0 %v5253
      %5288 = vmatprep.subr.bf16.mxu0 0
      %5289 = vmatpush1.bf16.msra.mxu0 %v5254
      %5290 = vmatprep.subr.bf16.mxu0 0
      %5291 = vmatpush1.bf16.msra.mxu0 %v5255
      %5292 = vmatprep.subr.bf16.mxu0 0
      %5293 = vmatpush1.bf16.msra.mxu0 %v5256
      %5294 = vmatprep.subr.bf16.mxu0 0
      %5295 = vmatpush1.bf16.msra.mxu0 %v5257
      %5296 = vmatprep.subr.bf16.mxu0 0
      %5297 = vmatpush1.bf16.msra.mxu0 %v5258
      %5298 = vmatprep.subr.bf16.mxu0 0
      %5299 = vmatpush1.bf16.msra.mxu0 %v5259
      %5300 = vmatprep.subr.bf16.mxu0 0
      %5301 = vmatpush1.bf16.msra.mxu0 %v5260
      %5302 = vmatprep.subr.bf16.mxu0 0
      %5303 = vmatpush1.bf16.msra.mxu0 %v5261
      %5304 = vmatprep.subr.bf16.mxu0 0
      %5305 = vmatpush1.bf16.msra.mxu0 %v5262
      %5306 = vmatprep.subr.bf16.mxu0 0
      %5307 = vmatpush1.bf16.msra.mxu0 %v5263
      %5308 = vmatprep.subr.bf16.mxu0 0
      %5309 = vmatpush1.bf16.msra.mxu0 %v5264
      %5310 = vmatprep.subr.bf16.mxu0 0
      %5311 = vmatpush1.bf16.msra.mxu0 %v5265
      %5312 = vmatprep.subr.bf16.mxu0 0
      %5313 = vmatpush1.bf16.msra.mxu0 %v5266
      %5314 = vmatprep.subr.bf16.mxu0 0
      %5315 = vmatpush1.bf16.msra.mxu0 %v5267
      %5316 = vmatprep.mubr.bf16.mxu0 %v5171
      %5317 = vmatmul.mubr.bf16.gmra.mrb[0].mxu0 %v5170
      %v5318 = vpop.f32.mrb[0].mxu0
      %v5319 = vadd.f32 %v5186, %v5318
      %v5320 = vpop.f32.mrb[0].mxu0
      %v5321 = vpop.f32.mrb[0].mxu0
      %v5322 = vadd.f32 %v5186, %v5321
      %v5323 = vpop.f32.mrb[0].mxu0
      %5324 = vmatprep.mubr.bf16.mxu0 %v5173
      %5325 = vmatmul.mubr.bf16.gmra.mrb[0].mxu0 %v5172
      %v5326 = vpop.f32.mrb[0].mxu0
      %v5327 = vadd.f32 %v5186, %v5326
      %v5328 = vpop.f32.mrb[0].mxu0
      %v5329 = vpop.f32.mrb[0].mxu0
      %v5330 = vadd.f32 %v5186, %v5329
      %v5331 = vpop.f32.mrb[0].mxu0
      %5332 = vmatprep.mubr.bf16.mxu0 %v5175
      %5333 = vmatmul.mubr.bf16.gmra.mrb[0].mxu0 %v5174
      %v5334 = vpop.f32.mrb[0].mxu0
      %v5335 = vadd.f32 %v5186, %v5334
      %v5336 = vpop.f32.mrb[0].mxu0
      %v5337 = vpop.f32.mrb[0].mxu0
      %v5338 = vadd.f32 %v5186, %v5337
      %v5339 = vpop.f32.mrb[0].mxu0
      %5340 = vmatprep.mubr.bf16.mxu0 %v5177
      %5341 = vmatmul.mubr.bf16.gmra.mrb[0].mxu0 %v5176
      %v5342 = vpop.f32.mrb[0].mxu0
      %v5343 = vadd.f32 %v5186, %v5342
      %v5344 = vpop.f32.mrb[0].mxu0
      %v5345 = vpop.f32.mrb[0].mxu0
      %v5346 = vadd.f32 %v5186, %v5345
      %v5347 = vpop.f32.mrb[0].mxu0
      %5348 = vmatprep.mubr.bf16.mxu0 %v5179
      %5349 = vmatmul.mubr.bf16.gmra.mrb[0].mxu0 %v5178
      %v5350 = vpop.f32.mrb[0].mxu0
      %v5351 = vadd.f32 %v5186, %v5350
      %v5352 = vpop.f32.mrb[0].mxu0
      %v5353 = vpop.f32.mrb[0].mxu0
      %v5354 = vadd.f32 %v5186, %v5353
      %v5355 = vpop.f32.mrb[0].mxu0
      %5356 = vmatprep.mubr.bf16.mxu0 %v5181
      %5357 = vmatmul.mubr.bf16.gmra.mrb[0].mxu0 %v5180
      %v5358 = vpop.f32.mrb[0].mxu0
      %v5359 = vadd.f32 %v5186, %v5358
      %v5360 = vpop.f32.mrb[0].mxu0
      %v5361 = vpop.f32.mrb[0].mxu0
      %v5362 = vadd.f32 %v5186, %v5361
      %v5363 = vpop.f32.mrb[0].mxu0
      %5364 = vdwg.mxu0
      %5365 = vst [vmem:[%s359] sm:$0xff] %v5319
      %5366 = vst [vmem:[%s359 + $0x8] sm:$0xff] %v5322
      %5367 = vst [vmem:[%s359 + $0x10] sm:$0xff] %v5327
      %5368 = vst [vmem:[%s359 + $0x18] sm:$0xff] %v5330
      %5369 = vst [vmem:[%s359 + $0x20] sm:$0xff] %v5335
      %5370 = vst [vmem:[%s359 + $0x28] sm:$0xff] %v5338
      %5371 = vst [vmem:[%s359 + $0x30] sm:$0xff] %v5343
      %5372 = vst [vmem:[%s359 + $0x38] sm:$0xff] %v5346
      %5373 = vst [vmem:[%s359 + $0x40] sm:$0xff] %v5351
      %5374 = vst [vmem:[%s359 + $0x48] sm:$0xff] %v5354
      %5375 = vst [vmem:[%s359 + $0x50] sm:$0xff] %v5359
      %5376 = vst [vmem:[%s359 + $0x58] sm:$0xff] %v5362
      %v5377 = vld [vmem:[#allocation2 + $0x60] sm:$0xff]
      %v5378 = vld [vmem:[#allocation2 + $0x68] sm:$0xff]
      %v5379 = vld [vmem:[#allocation2 + $0x70] sm:$0xff]
      %v5380 = vld [vmem:[#allocation2 + $0x78] sm:$0xff]
      %v5381 = vld [vmem:[#allocation2 + $0x80] sm:$0xff]
      %v5382 = vld [vmem:[#allocation2 + $0x88] sm:$0xff]
      %v5383 = vld [vmem:[#allocation2 + $0x90] sm:$0xff]
      %v5384 = vld [vmem:[#allocation2 + $0x98] sm:$0xff]
      %v5385 = vld [vmem:[#allocation2 + $0xa0] sm:$0xff]
      %v5386 = vld [vmem:[#allocation2 + $0xa8] sm:$0xff]
      %v5387 = vld [vmem:[#allocation2 + $0xb0] sm:$0xff]
      %v5388 = vld [vmem:[#allocation2 + $0xb8] sm:$0xff]
      %v5389 = vld [vmem:[%s5] sm:$0xff]
      %v5390 = vld [vmem:[%s5 + $0x8] sm:$0xff]
      %v5391 = vld [vmem:[%s5 + $0x10] sm:$0xff]
      %v5392 = vld [vmem:[%s5 + $0x18] sm:$0xff]
      %v5393 = vld [vmem:[%s5 + $0x20] sm:$0xff]
      %v5394 = vld [vmem:[%s5 + $0x28] sm:$0xff]
      %v5395 = vld [vmem:[%s5 + $0x30] sm:$0xff]
      %v5396 = vld [vmem:[%s5 + $0x38] sm:$0xff]
      %v5397 = vld [vmem:[%s5 + $0x40] sm:$0xff]
      %v5398 = vld [vmem:[%s5 + $0x48] sm:$0xff]
      %v5399 = vld [vmem:[%s5 + $0x50] sm:$0xff]
      %v5400 = vld [vmem:[%s5 + $0x58] sm:$0xff]
      %v5401 = vld [vmem:[%s5 + $0x60] sm:$0xff]
      %v5402 = vld [vmem:[%s5 + $0x68] sm:$0xff]
      %v5403 = vld [vmem:[%s5 + $0x70] sm:$0xff]
      %v5404 = vld [vmem:[%s5 + $0x78] sm:$0xff]
      %v5405 = vld [vmem:[%s5 + $0x80] sm:$0xff]
      %v5406 = vld [vmem:[%s5 + $0x88] sm:$0xff]
      %v5407 = vld [vmem:[%s5 + $0x90] sm:$0xff]
      %v5408 = vld [vmem:[%s5 + $0x98] sm:$0xff]
      %v5409 = vld [vmem:[%s5 + $0xa0] sm:$0xff]
      %v5410 = vld [vmem:[%s5 + $0xa8] sm:$0xff]
      %v5411 = vld [vmem:[%s5 + $0xb0] sm:$0xff]
      %v5412 = vld [vmem:[%s5 + $0xb8] sm:$0xff]
      %v5413 = vld [vmem:[%s5 + $0xc0] sm:$0xff]
      %v5414 = vld [vmem:[%s5 + $0xc8] sm:$0xff]
      %v5415 = vld [vmem:[%s5 + $0xd0] sm:$0xff]
      %v5416 = vld [vmem:[%s5 + $0xd8] sm:$0xff]
      %v5417 = vld [vmem:[%s5 + $0xe0] sm:$0xff]
      %v5418 = vld [vmem:[%s5 + $0xe8] sm:$0xff]
      %v5419 = vld [vmem:[%s5 + $0xf0] sm:$0xff]
      %v5420 = vld [vmem:[%s5 + $0xf8] sm:$0xff]
      %v5421 = vld [vmem:[#allocation2 + $0xc0] sm:$0x1]
      %v5422 = vld [vmem:[#allocation2 + $0xc8] sm:$0x1]
      %v5423 = vld [vmem:[%s1695] sm:$0xff]
      %v5424 = vld [vmem:[%s1695 + $0x8] sm:$0xff]
      %v5425 = vld [vmem:[%s1695 + $0x10] sm:$0xff]
      %v5426 = vld [vmem:[%s1695 + $0x18] sm:$0xff]
      %v5427 = vld [vmem:[%s1695 + $0x20] sm:$0xff]
      %v5428 = vld [vmem:[%s1695 + $0x28] sm:$0xff]
      %v5429 = vld [vmem:[%s1695 + $0x30] sm:$0xff]
      %v5430 = vld [vmem:[%s1695 + $0x38] sm:$0xff]
      %v5431 = vld [vmem:[%s1695 + $0x40] sm:$0xff]
      %v5432 = vld [vmem:[%s1695 + $0x48] sm:$0xff]
      %v5433 = vld [vmem:[%s1695 + $0x50] sm:$0xff]
      %v5434 = vld [vmem:[%s1695 + $0x58] sm:$0xff]
      %v5435 = vld [vmem:[%s1695 + $0x60] sm:$0xff]
      %v5436 = vld [vmem:[%s1695 + $0x68] sm:$0xff]
      %v5437 = vld [vmem:[%s1695 + $0x70] sm:$0xff]
      %v5438 = vld [vmem:[%s1695 + $0x78] sm:$0xff]
      %v5439 = vld [vmem:[%s1695 + $0x80] sm:$0xff]
      %v5440 = vld [vmem:[%s1695 + $0x88] sm:$0xff]
      %v5441 = vld [vmem:[%s1695 + $0x90] sm:$0xff]
      %v5442 = vld [vmem:[%s1695 + $0x98] sm:$0xff]
      %v5443 = vld [vmem:[%s1695 + $0xa0] sm:$0xff]
      %v5444 = vld [vmem:[%s1695 + $0xa8] sm:$0xff]
      %v5445 = vld [vmem:[%s1695 + $0xb0] sm:$0xff]
      %v5446 = vld [vmem:[%s1695 + $0xb8] sm:$0xff]
      %v5447 = vld [vmem:[%s1695 + $0xc0] sm:$0xff]
      %v5448 = vld [vmem:[%s1695 + $0xc8] sm:$0xff]
      %v5449 = vld [vmem:[%s1695 + $0xd0] sm:$0xff]
      %v5450 = vld [vmem:[%s1695 + $0xd8] sm:$0xff]
      %v5451 = vld [vmem:[%s1695 + $0xe0] sm:$0xff]
      %v5452 = vld [vmem:[%s1695 + $0xe8] sm:$0xff]
      %v5453 = vld [vmem:[%s1695 + $0xf0] sm:$0xff]
      %v5454 = vld [vmem:[%s1695 + $0xf8] sm:$0xff]
      %v5456 = vshrl.u32 %v5377, 16
      %v5458 = vshll.u32 %v5377, 16
      %v5460 = vrot.slane %v5458, 1
      %v5461 = vor.u32 %v5456, %v5460
      %v5463 = vshll.u32 %v5379, 16
      %v5465 = vrot.slane %v5463, 1
      %v5466 = vsel %vm1728, %v5461, %v5465
      %v5468 = vshrl.u32 %v5378, 16
      %v5470 = vshll.u32 %v5378, 16
      %v5472 = vrot.slane %v5470, 1
      %v5473 = vor.u32 %v5468, %v5472
      %v5475 = vshll.u32 %v5380, 16
      %v5477 = vrot.slane %v5475, 1
      %v5478 = vsel %vm1728, %v5473, %v5477
      %v5479 = vshrl.u32 %v5379, 16
      %v5481 = vor.u32 %v5479, %v5465
      %v5483 = vshll.u32 %v5381, 16
      %v5485 = vrot.slane %v5483, 1
      %v5486 = vsel %vm1728, %v5481, %v5485
      %v5487 = vshrl.u32 %v5380, 16
      %v5489 = vor.u32 %v5487, %v5477
      %v5491 = vshll.u32 %v5382, 16
      %v5493 = vrot.slane %v5491, 1
      %v5494 = vsel %vm1728, %v5489, %v5493
      %v5495 = vshrl.u32 %v5381, 16
      %v5497 = vor.u32 %v5495, %v5485
      %v5499 = vshll.u32 %v5383, 16
      %v5501 = vrot.slane %v5499, 1
      %v5502 = vsel %vm1728, %v5497, %v5501
      %v5503 = vshrl.u32 %v5382, 16
      %v5505 = vor.u32 %v5503, %v5493
      %v5507 = vshll.u32 %v5384, 16
      %v5509 = vrot.slane %v5507, 1
      %v5510 = vsel %vm1728, %v5505, %v5509
      %v5511 = vshrl.u32 %v5383, 16
      %v5513 = vor.u32 %v5511, %v5501
      %v5515 = vshll.u32 %v5385, 16
      %v5517 = vrot.slane %v5515, 1
      %v5518 = vsel %vm1728, %v5513, %v5517
      %v5519 = vshrl.u32 %v5384, 16
      %v5521 = vor.u32 %v5519, %v5509
      %v5523 = vshll.u32 %v5386, 16
      %v5525 = vrot.slane %v5523, 1
      %v5526 = vsel %vm1728, %v5521, %v5525
      %v5527 = vshrl.u32 %v5385, 16
      %v5529 = vor.u32 %v5527, %v5517
      %v5531 = vshll.u32 %v5387, 16
      %v5533 = vrot.slane %v5531, 1
      %v5534 = vsel %vm1728, %v5529, %v5533
      %v5535 = vshrl.u32 %v5386, 16
      %v5537 = vor.u32 %v5535, %v5525
      %v5539 = vshll.u32 %v5388, 16
      %v5541 = vrot.slane %v5539, 1
      %v5542 = vsel %vm1728, %v5537, %v5541
      %v5543 = vshrl.u32 %v5387, 16
      %v5545 = vor.u32 %v5543, %v5533
      %v5547 = vshll.u32 %v5421, 16
      %v5549 = vrot.slane %v5547, 1
      %v5550 = vsel %vm1728, %v5545, %v5549
      %v5551 = vshrl.u32 %v5388, 16
      %v5553 = vor.u32 %v5551, %v5541
      %v5555 = vshll.u32 %v5422, 16
      %v5557 = vrot.slane %v5555, 1
      %v5558 = vsel %vm1728, %v5553, %v5557
      %v5603 = vunpack.c.l.b16 %v5423
      %v5604 = vunpack.c.h.b16 %v5423
      %v5605 = vunpack.c.l.b16 %v5424
      %v5606 = vunpack.c.h.b16 %v5424
      %v5607 = vunpack.c.l.b16 %v5425
      %v5608 = vunpack.c.h.b16 %v5425
      %v5609 = vunpack.c.l.b16 %v5426
      %v5610 = vunpack.c.h.b16 %v5426
      %v5611 = vunpack.c.l.b16 %v5427
      %v5612 = vunpack.c.h.b16 %v5427
      %v5613 = vunpack.c.l.b16 %v5428
      %v5614 = vunpack.c.h.b16 %v5428
      %v5615 = vunpack.c.l.b16 %v5429
      %v5616 = vunpack.c.h.b16 %v5429
      %v5617 = vunpack.c.l.b16 %v5430
      %v5618 = vunpack.c.h.b16 %v5430
      %v5619 = vunpack.c.l.b16 %v5431
      %v5620 = vunpack.c.h.b16 %v5431
      %v5621 = vunpack.c.l.b16 %v5432
      %v5622 = vunpack.c.h.b16 %v5432
      %v5623 = vunpack.c.l.b16 %v5433
      %v5624 = vunpack.c.h.b16 %v5433
      %v5625 = vunpack.c.l.b16 %v5434
      %v5626 = vunpack.c.h.b16 %v5434
      %v5627 = vunpack.c.l.b16 %v5435
      %v5628 = vunpack.c.h.b16 %v5435
      %v5629 = vunpack.c.l.b16 %v5436
      %v5630 = vunpack.c.h.b16 %v5436
      %v5631 = vunpack.c.l.b16 %v5437
      %v5632 = vunpack.c.h.b16 %v5437
      %v5633 = vunpack.c.l.b16 %v5438
      %v5634 = vunpack.c.h.b16 %v5438
      %v5635 = vunpack.c.l.b16 %v5439
      %v5636 = vunpack.c.h.b16 %v5439
      %v5637 = vunpack.c.l.b16 %v5440
      %v5638 = vunpack.c.h.b16 %v5440
      %v5639 = vunpack.c.l.b16 %v5441
      %v5640 = vunpack.c.h.b16 %v5441
      %v5641 = vunpack.c.l.b16 %v5442
      %v5642 = vunpack.c.h.b16 %v5442
      %v5643 = vunpack.c.l.b16 %v5443
      %v5644 = vunpack.c.h.b16 %v5443
      %v5645 = vunpack.c.l.b16 %v5444
      %v5646 = vunpack.c.h.b16 %v5444
      %v5647 = vunpack.c.l.b16 %v5445
      %v5648 = vunpack.c.h.b16 %v5445
      %v5649 = vunpack.c.l.b16 %v5446
      %v5650 = vunpack.c.h.b16 %v5446
      %v5651 = vunpack.c.l.b16 %v5447
      %v5652 = vunpack.c.h.b16 %v5447
      %v5653 = vunpack.c.l.b16 %v5448
      %v5654 = vunpack.c.h.b16 %v5448
      %v5655 = vunpack.c.l.b16 %v5449
      %v5656 = vunpack.c.h.b16 %v5449
      %v5657 = vunpack.c.l.b16 %v5450
      %v5658 = vunpack.c.h.b16 %v5450
      %v5659 = vunpack.c.l.b16 %v5451
      %v5660 = vunpack.c.h.b16 %v5451
      %v5661 = vunpack.c.l.b16 %v5452
      %v5662 = vunpack.c.h.b16 %v5452
      %v5663 = vunpack.c.l.b16 %v5453
      %v5664 = vunpack.c.h.b16 %v5453
      %v5665 = vunpack.c.l.b16 %v5454
      %v5666 = vunpack.c.h.b16 %v5454
      %v5667 = vpack.c.b16 %v5605, %v5603
      %v5668 = vpack.c.b16 %v5606, %v5604
      %v5669 = vpack.c.b16 %v5609, %v5607
      %v5670 = vpack.c.b16 %v5610, %v5608
      %v5671 = vpack.c.b16 %v5613, %v5611
      %v5672 = vpack.c.b16 %v5614, %v5612
      %v5673 = vpack.c.b16 %v5617, %v5615
      %v5674 = vpack.c.b16 %v5618, %v5616
      %v5675 = vpack.c.b16 %v5621, %v5619
      %v5676 = vpack.c.b16 %v5622, %v5620
      %v5677 = vpack.c.b16 %v5625, %v5623
      %v5678 = vpack.c.b16 %v5626, %v5624
      %v5679 = vpack.c.b16 %v5629, %v5627
      %v5680 = vpack.c.b16 %v5630, %v5628
      %v5681 = vpack.c.b16 %v5633, %v5631
      %v5682 = vpack.c.b16 %v5634, %v5632
      %v5683 = vpack.c.b16 %v5637, %v5635
      %v5684 = vpack.c.b16 %v5638, %v5636
      %v5685 = vpack.c.b16 %v5641, %v5639
      %v5686 = vpack.c.b16 %v5642, %v5640
      %v5687 = vpack.c.b16 %v5645, %v5643
      %v5688 = vpack.c.b16 %v5646, %v5644
      %v5689 = vpack.c.b16 %v5649, %v5647
      %v5690 = vpack.c.b16 %v5650, %v5648
      %v5691 = vpack.c.b16 %v5653, %v5651
      %v5692 = vpack.c.b16 %v5654, %v5652
      %v5693 = vpack.c.b16 %v5657, %v5655
      %v5694 = vpack.c.b16 %v5658, %v5656
      %v5695 = vpack.c.b16 %v5661, %v5659
      %v5696 = vpack.c.b16 %v5662, %v5660
      %v5697 = vpack.c.b16 %v5665, %v5663
      %v5698 = vpack.c.b16 %v5666, %v5664
      %5731 = vmatprep.subr.bf16.mxu0 %v5668
      %5732 = vmatpush1.bf16.msra.mxu0 %v5667
      %5733 = vmatprep.subr.bf16.mxu0 %v5670
      %5734 = vmatpush1.bf16.msra.mxu0 %v5669
      %5735 = vmatprep.subr.bf16.mxu0 %v5672
      %5736 = vmatpush1.bf16.msra.mxu0 %v5671
      %5737 = vmatprep.subr.bf16.mxu0 %v5674
      %5738 = vmatpush1.bf16.msra.mxu0 %v5673
      %5739 = vmatprep.subr.bf16.mxu0 %v5676
      %5740 = vmatpush1.bf16.msra.mxu0 %v5675
      %5741 = vmatprep.subr.bf16.mxu0 %v5678
      %5742 = vmatpush1.bf16.msra.mxu0 %v5677
      %5743 = vmatprep.subr.bf16.mxu0 %v5680
      %5744 = vmatpush1.bf16.msra.mxu0 %v5679
      %5745 = vmatprep.subr.bf16.mxu0 %v5682
      %5746 = vmatpush1.bf16.msra.mxu0 %v5681
      %5747 = vmatprep.subr.bf16.mxu0 %v5684
      %5748 = vmatpush1.bf16.msra.mxu0 %v5683
      %5749 = vmatprep.subr.bf16.mxu0 %v5686
      %5750 = vmatpush1.bf16.msra.mxu0 %v5685
      %5751 = vmatprep.subr.bf16.mxu0 %v5688
      %5752 = vmatpush1.bf16.msra.mxu0 %v5687
      %5753 = vmatprep.subr.bf16.mxu0 %v5690
      %5754 = vmatpush1.bf16.msra.mxu0 %v5689
      %5755 = vmatprep.subr.bf16.mxu0 %v5692
      %5756 = vmatpush1.bf16.msra.mxu0 %v5691
      %5757 = vmatprep.subr.bf16.mxu0 %v5694
      %5758 = vmatpush1.bf16.msra.mxu0 %v5693
      %5759 = vmatprep.subr.bf16.mxu0 %v5696
      %5760 = vmatpush1.bf16.msra.mxu0 %v5695
      %5761 = vmatprep.subr.bf16.mxu0 %v5698
      %5762 = vmatpush1.bf16.msra.mxu0 %v5697
      %5763 = vmatprep.mubr.bf16.mxu0 %v5478
      %5764 = vmatmul.mubr.bf16.gmra.mrb[0].mxu0 %v5466
      %v5765 = vpop.f32.mrb[0].mxu0
      %v5766 = vadd.f32 0.0, %v5765
      %v5767 = vpop.f32.mrb[0].mxu0
      %v5768 = vadd.f32 0.0, %v5767
      %v5769 = vpop.f32.mrb[0].mxu0
      %v5770 = vadd.f32 0.0, %v5769
      %v5771 = vpop.f32.mrb[0].mxu0
      %v5772 = vadd.f32 0.0, %v5771
      %5773 = vmatprep.mubr.bf16.mxu0 %v5494
      %5774 = vmatmul.mubr.bf16.gmra.mrb[0].mxu0 %v5486
      %v5775 = vpop.f32.mrb[0].mxu0
      %v5776 = vadd.f32 0.0, %v5775
      %v5777 = vpop.f32.mrb[0].mxu0
      %v5778 = vadd.f32 0.0, %v5777
      %v5779 = vpop.f32.mrb[0].mxu0
      %v5780 = vadd.f32 0.0, %v5779
      %v5781 = vpop.f32.mrb[0].mxu0
      %v5782 = vadd.f32 0.0, %v5781
      %5783 = vmatprep.mubr.bf16.mxu0 %v5510
      %5784 = vmatmul.mubr.bf16.gmra.mrb[0].mxu0 %v5502
      %v5785 = vpop.f32.mrb[0].mxu0
      %v5786 = vadd.f32 0.0, %v5785
      %v5787 = vpop.f32.mrb[0].mxu0
      %v5788 = vadd.f32 0.0, %v5787
      %v5789 = vpop.f32.mrb[0].mxu0
      %v5790 = vadd.f32 0.0, %v5789
      %v5791 = vpop.f32.mrb[0].mxu0
      %v5792 = vadd.f32 0.0, %v5791
      %5793 = vmatprep.mubr.bf16.mxu0 %v5526
      %5794 = vmatmul.mubr.bf16.gmra.mrb[0].mxu0 %v5518
      %v5795 = vpop.f32.mrb[0].mxu0
      %v5796 = vadd.f32 0.0, %v5795
      %v5797 = vpop.f32.mrb[0].mxu0
      %v5798 = vadd.f32 0.0, %v5797
      %v5799 = vpop.f32.mrb[0].mxu0
      %v5800 = vadd.f32 0.0, %v5799
      %v5801 = vpop.f32.mrb[0].mxu0
      %v5802 = vadd.f32 0.0, %v5801
      %5803 = vmatprep.mubr.bf16.mxu0 %v5542
      %5804 = vmatmul.mubr.bf16.gmra.mrb[0].mxu0 %v5534
      %v5805 = vpop.f32.mrb[0].mxu0
      %v5806 = vadd.f32 0.0, %v5805
      %v5807 = vpop.f32.mrb[0].mxu0
      %v5808 = vadd.f32 0.0, %v5807
      %v5809 = vpop.f32.mrb[0].mxu0
      %v5810 = vadd.f32 0.0, %v5809
      %v5811 = vpop.f32.mrb[0].mxu0
      %v5812 = vadd.f32 0.0, %v5811
      %5813 = vmatprep.mubr.bf16.mxu0 %v5558
      %5814 = vmatmul.mubr.bf16.gmra.mrb[0].mxu0 %v5550
      %v5815 = vpop.f32.mrb[0].mxu0
      %v5816 = vadd.f32 0.0, %v5815
      %v5817 = vpop.f32.mrb[0].mxu0
      %v5818 = vadd.f32 0.0, %v5817
      %v5819 = vpop.f32.mrb[0].mxu0
      %v5820 = vadd.f32 0.0, %v5819
      %v5821 = vpop.f32.mrb[0].mxu0
      %v5822 = vadd.f32 0.0, %v5821
      %5823 = vdwg.mxu0
      %v5856 = vunpack.c.l.b16 %v5389
      %v5857 = vunpack.c.h.b16 %v5389
      %v5858 = vunpack.c.l.b16 %v5390
      %v5859 = vunpack.c.h.b16 %v5390
      %v5860 = vunpack.c.l.b16 %v5391
      %v5861 = vunpack.c.h.b16 %v5391
      %v5862 = vunpack.c.l.b16 %v5392
      %v5863 = vunpack.c.h.b16 %v5392
      %v5864 = vunpack.c.l.b16 %v5393
      %v5865 = vunpack.c.h.b16 %v5393
      %v5866 = vunpack.c.l.b16 %v5394
      %v5867 = vunpack.c.h.b16 %v5394
      %v5868 = vunpack.c.l.b16 %v5395
      %v5869 = vunpack.c.h.b16 %v5395
      %v5870 = vunpack.c.l.b16 %v5396
      %v5871 = vunpack.c.h.b16 %v5396
      %v5872 = vunpack.c.l.b16 %v5397
      %v5873 = vunpack.c.h.b16 %v5397
      %v5874 = vunpack.c.l.b16 %v5398
      %v5875 = vunpack.c.h.b16 %v5398
      %v5876 = vunpack.c.l.b16 %v5399
      %v5877 = vunpack.c.h.b16 %v5399
      %v5878 = vunpack.c.l.b16 %v5400
      %v5879 = vunpack.c.h.b16 %v5400
      %v5880 = vunpack.c.l.b16 %v5401
      %v5881 = vunpack.c.h.b16 %v5401
      %v5882 = vunpack.c.l.b16 %v5402
      %v5883 = vunpack.c.h.b16 %v5402
      %v5884 = vunpack.c.l.b16 %v5403
      %v5885 = vunpack.c.h.b16 %v5403
      %v5886 = vunpack.c.l.b16 %v5404
      %v5887 = vunpack.c.h.b16 %v5404
      %v5888 = vunpack.c.l.b16 %v5405
      %v5889 = vunpack.c.h.b16 %v5405
      %v5890 = vunpack.c.l.b16 %v5406
      %v5891 = vunpack.c.h.b16 %v5406
      %v5892 = vunpack.c.l.b16 %v5407
      %v5893 = vunpack.c.h.b16 %v5407
      %v5894 = vunpack.c.l.b16 %v5408
      %v5895 = vunpack.c.h.b16 %v5408
      %v5896 = vunpack.c.l.b16 %v5409
      %v5897 = vunpack.c.h.b16 %v5409
      %v5898 = vunpack.c.l.b16 %v5410
      %v5899 = vunpack.c.h.b16 %v5410
      %v5900 = vunpack.c.l.b16 %v5411
      %v5901 = vunpack.c.h.b16 %v5411
      %v5902 = vunpack.c.l.b16 %v5412
      %v5903 = vunpack.c.h.b16 %v5412
      %v5904 = vunpack.c.l.b16 %v5413
      %v5905 = vunpack.c.h.b16 %v5413
      %v5906 = vunpack.c.l.b16 %v5414
      %v5907 = vunpack.c.h.b16 %v5414
      %v5908 = vunpack.c.l.b16 %v5415
      %v5909 = vunpack.c.h.b16 %v5415
      %v5910 = vunpack.c.l.b16 %v5416
      %v5911 = vunpack.c.h.b16 %v5416
      %v5912 = vunpack.c.l.b16 %v5417
      %v5913 = vunpack.c.h.b16 %v5417
      %v5914 = vunpack.c.l.b16 %v5418
      %v5915 = vunpack.c.h.b16 %v5418
      %v5916 = vunpack.c.l.b16 %v5419
      %v5917 = vunpack.c.h.b16 %v5419
      %v5918 = vunpack.c.l.b16 %v5420
      %v5919 = vunpack.c.h.b16 %v5420
      %v5920 = vpack.c.b16 %v5858, %v5856
      %v5921 = vpack.c.b16 %v5859, %v5857
      %v5922 = vpack.c.b16 %v5862, %v5860
      %v5923 = vpack.c.b16 %v5863, %v5861
      %v5924 = vpack.c.b16 %v5866, %v5864
      %v5925 = vpack.c.b16 %v5867, %v5865
      %v5926 = vpack.c.b16 %v5870, %v5868
      %v5927 = vpack.c.b16 %v5871, %v5869
      %v5928 = vpack.c.b16 %v5874, %v5872
      %v5929 = vpack.c.b16 %v5875, %v5873
      %v5930 = vpack.c.b16 %v5878, %v5876
      %v5931 = vpack.c.b16 %v5879, %v5877
      %v5932 = vpack.c.b16 %v5882, %v5880
      %v5933 = vpack.c.b16 %v5883, %v5881
      %v5934 = vpack.c.b16 %v5886, %v5884
      %v5935 = vpack.c.b16 %v5887, %v5885
      %v5936 = vpack.c.b16 %v5890, %v5888
      %v5937 = vpack.c.b16 %v5891, %v5889
      %v5938 = vpack.c.b16 %v5894, %v5892
      %v5939 = vpack.c.b16 %v5895, %v5893
      %v5940 = vpack.c.b16 %v5898, %v5896
      %v5941 = vpack.c.b16 %v5899, %v5897
      %v5942 = vpack.c.b16 %v5902, %v5900
      %v5943 = vpack.c.b16 %v5903, %v5901
      %v5944 = vpack.c.b16 %v5906, %v5904
      %v5945 = vpack.c.b16 %v5907, %v5905
      %v5946 = vpack.c.b16 %v5910, %v5908
      %v5947 = vpack.c.b16 %v5911, %v5909
      %v5948 = vpack.c.b16 %v5914, %v5912
      %v5949 = vpack.c.b16 %v5915, %v5913
      %v5950 = vpack.c.b16 %v5918, %v5916
      %v5951 = vpack.c.b16 %v5919, %v5917
      %5984 = vmatprep.subr.bf16.mxu0 %v5921
      %5985 = vmatpush1.bf16.msra.mxu0 %v5920
      %5986 = vmatprep.subr.bf16.mxu0 %v5923
      %5987 = vmatpush1.bf16.msra.mxu0 %v5922
      %5988 = vmatprep.subr.bf16.mxu0 %v5925
      %5989 = vmatpush1.bf16.msra.mxu0 %v5924
      %5990 = vmatprep.subr.bf16.mxu0 %v5927
      %5991 = vmatpush1.bf16.msra.mxu0 %v5926
      %5992 = vmatprep.subr.bf16.mxu0 %v5929
      %5993 = vmatpush1.bf16.msra.mxu0 %v5928
      %5994 = vmatprep.subr.bf16.mxu0 %v5931
      %5995 = vmatpush1.bf16.msra.mxu0 %v5930
      %5996 = vmatprep.subr.bf16.mxu0 %v5933
      %5997 = vmatpush1.bf16.msra.mxu0 %v5932
      %5998 = vmatprep.subr.bf16.mxu0 %v5935
      %5999 = vmatpush1.bf16.msra.mxu0 %v5934
      %6000 = vmatprep.subr.bf16.mxu0 %v5937
      %6001 = vmatpush1.bf16.msra.mxu0 %v5936
      %6002 = vmatprep.subr.bf16.mxu0 %v5939
      %6003 = vmatpush1.bf16.msra.mxu0 %v5938
      %6004 = vmatprep.subr.bf16.mxu0 %v5941
      %6005 = vmatpush1.bf16.msra.mxu0 %v5940
      %6006 = vmatprep.subr.bf16.mxu0 %v5943
      %6007 = vmatpush1.bf16.msra.mxu0 %v5942
      %6008 = vmatprep.subr.bf16.mxu0 %v5945
      %6009 = vmatpush1.bf16.msra.mxu0 %v5944
      %6010 = vmatprep.subr.bf16.mxu0 %v5947
      %6011 = vmatpush1.bf16.msra.mxu0 %v5946
      %6012 = vmatprep.subr.bf16.mxu0 %v5949
      %6013 = vmatpush1.bf16.msra.mxu0 %v5948
      %6014 = vmatprep.subr.bf16.mxu0 %v5951
      %6015 = vmatpush1.bf16.msra.mxu0 %v5950
      %6016 = vmatprep.mubr.bf16.mxu0 %v5378
      %6017 = vmatmul.mubr.bf16.gmra.mrb[0].mxu0 %v5377
      %v6018 = vpop.f32.mrb[0].mxu0
      %v6019 = vadd.f32 %v5766, %v6018
      %v6020 = vpop.f32.mrb[0].mxu0
      %v6021 = vadd.f32 %v5768, %v6020
      %v6022 = vpop.f32.mrb[0].mxu0
      %v6023 = vadd.f32 %v5770, %v6022
      %v6024 = vpop.f32.mrb[0].mxu0
      %v6025 = vadd.f32 %v5772, %v6024
      %6026 = vmatprep.mubr.bf16.mxu0 %v5380
      %6027 = vmatmul.mubr.bf16.gmra.mrb[0].mxu0 %v5379
      %v6028 = vpop.f32.mrb[0].mxu0
      %v6029 = vadd.f32 %v5776, %v6028
      %v6030 = vpop.f32.mrb[0].mxu0
      %v6031 = vadd.f32 %v5778, %v6030
      %v6032 = vpop.f32.mrb[0].mxu0
      %v6033 = vadd.f32 %v5780, %v6032
      %v6034 = vpop.f32.mrb[0].mxu0
      %v6035 = vadd.f32 %v5782, %v6034
      %6036 = vmatprep.mubr.bf16.mxu0 %v5382
      %6037 = vmatmul.mubr.bf16.gmra.mrb[0].mxu0 %v5381
      %v6038 = vpop.f32.mrb[0].mxu0
      %v6039 = vadd.f32 %v5786, %v6038
      %v6040 = vpop.f32.mrb[0].mxu0
      %v6041 = vadd.f32 %v5788, %v6040
      %v6042 = vpop.f32.mrb[0].mxu0
      %v6043 = vadd.f32 %v5790, %v6042
      %v6044 = vpop.f32.mrb[0].mxu0
      %v6045 = vadd.f32 %v5792, %v6044
      %6046 = vmatprep.mubr.bf16.mxu0 %v5384
      %6047 = vmatmul.mubr.bf16.gmra.mrb[0].mxu0 %v5383
      %v6048 = vpop.f32.mrb[0].mxu0
      %v6049 = vadd.f32 %v5796, %v6048
      %v6050 = vpop.f32.mrb[0].mxu0
      %v6051 = vadd.f32 %v5798, %v6050
      %v6052 = vpop.f32.mrb[0].mxu0
      %v6053 = vadd.f32 %v5800, %v6052
      %v6054 = vpop.f32.mrb[0].mxu0
      %v6055 = vadd.f32 %v5802, %v6054
      %6056 = vmatprep.mubr.bf16.mxu0 %v5386
      %6057 = vmatmul.mubr.bf16.gmra.mrb[0].mxu0 %v5385
      %v6058 = vpop.f32.mrb[0].mxu0
      %v6059 = vadd.f32 %v5806, %v6058
      %v6060 = vpop.f32.mrb[0].mxu0
      %v6061 = vadd.f32 %v5808, %v6060
      %v6062 = vpop.f32.mrb[0].mxu0
      %v6063 = vadd.f32 %v5810, %v6062
      %v6064 = vpop.f32.mrb[0].mxu0
      %v6065 = vadd.f32 %v5812, %v6064
      %6066 = vmatprep.mubr.bf16.mxu0 %v5388
      %6067 = vmatmul.mubr.bf16.gmra.mrb[0].mxu0 %v5387
      %v6068 = vpop.f32.mrb[0].mxu0
      %v6069 = vadd.f32 %v5816, %v6068
      %v6070 = vpop.f32.mrb[0].mxu0
      %v6071 = vadd.f32 %v5818, %v6070
      %v6072 = vpop.f32.mrb[0].mxu0
      %v6073 = vadd.f32 %v5820, %v6072
      %v6074 = vpop.f32.mrb[0].mxu0
      %v6075 = vadd.f32 %v5822, %v6074
      %6076 = vdwg.mxu0
      %v6077 = vld [vmem:[#allocation2 + $0x60] sm:$0xfe]
      %v6078 = vld [vmem:[#allocation2 + $0x68] sm:$0xfe]
      %v6079 = vld [vmem:[%s2353] sm:$0xff]
      %v6080 = vld [vmem:[%s2353 + $0x8] sm:$0xff]
      %v6081 = vld [vmem:[%s2353 + $0x10] sm:$0xff]
      %v6082 = vld [vmem:[%s2353 + $0x18] sm:$0xff]
      %v6083 = vld [vmem:[%s2353 + $0x20] sm:$0xff]
      %v6084 = vld [vmem:[%s2353 + $0x28] sm:$0xff]
      %v6085 = vld [vmem:[%s2353 + $0x30] sm:$0xff]
      %v6086 = vld [vmem:[%s2353 + $0x38] sm:$0xff]
      %v6087 = vld [vmem:[%s2353 + $0x40] sm:$0xff]
      %v6088 = vld [vmem:[%s2353 + $0x48] sm:$0xff]
      %v6089 = vld [vmem:[%s2353 + $0x50] sm:$0xff]
      %v6090 = vld [vmem:[%s2353 + $0x58] sm:$0xff]
      %v6091 = vld [vmem:[%s2353 + $0x60] sm:$0xff]
      %v6092 = vld [vmem:[%s2353 + $0x68] sm:$0xff]
      %v6093 = vld [vmem:[%s2353 + $0x70] sm:$0xff]
      %v6094 = vld [vmem:[%s2353 + $0x78] sm:$0xff]
      %v6095 = vld [vmem:[%s2353 + $0x80] sm:$0xff]
      %v6096 = vld [vmem:[%s2353 + $0x88] sm:$0xff]
      %v6097 = vld [vmem:[%s2353 + $0x90] sm:$0xff]
      %v6098 = vld [vmem:[%s2353 + $0x98] sm:$0xff]
      %v6099 = vld [vmem:[%s2353 + $0xa0] sm:$0xff]
      %v6100 = vld [vmem:[%s2353 + $0xa8] sm:$0xff]
      %v6101 = vld [vmem:[%s2353 + $0xb0] sm:$0xff]
      %v6102 = vld [vmem:[%s2353 + $0xb8] sm:$0xff]
      %v6103 = vld [vmem:[%s2353 + $0xc0] sm:$0xff]
      %v6104 = vld [vmem:[%s2353 + $0xc8] sm:$0xff]
      %v6105 = vld [vmem:[%s2353 + $0xd0] sm:$0xff]
      %v6106 = vld [vmem:[%s2353 + $0xd8] sm:$0xff]
      %v6107 = vld [vmem:[%s2353 + $0xe0] sm:$0xff]
      %v6108 = vld [vmem:[%s2353 + $0xe8] sm:$0xff]
      %v6109 = vld [vmem:[%s2353 + $0xf0] sm:$0xff]
      %v6110 = vld [vmem:[%s2353 + $0xf8] sm:$0xff]
      %v6125 = vrot.slane %v6077, 1
      %v6126 = vrot.slane %v5379, 1
      %v6127 = vsel %vm2400, %v6125, %v6126
      %v6128 = vrot.slane %v6078, 1
      %v6129 = vrot.slane %v5380, 1
      %v6130 = vsel %vm2400, %v6128, %v6129
      %v6131 = vrot.slane %v5381, 1
      %v6132 = vsel %vm2400, %v6126, %v6131
      %v6133 = vrot.slane %v5382, 1
      %v6134 = vsel %vm2400, %v6129, %v6133
      %v6135 = vrot.slane %v5383, 1
      %v6136 = vsel %vm2400, %v6131, %v6135
      %v6137 = vrot.slane %v5384, 1
      %v6138 = vsel %vm2400, %v6133, %v6137
      %v6139 = vrot.slane %v5385, 1
      %v6140 = vsel %vm2400, %v6135, %v6139
      %v6141 = vrot.slane %v5386, 1
      %v6142 = vsel %vm2400, %v6137, %v6141
      %v6143 = vrot.slane %v5387, 1
      %v6144 = vsel %vm2400, %v6139, %v6143
      %v6145 = vrot.slane %v5388, 1
      %v6146 = vsel %vm2400, %v6141, %v6145
      %v6147 = vrot.slane %v5421, 1
      %v6148 = vsel %vm2400, %v6143, %v6147
      %v6149 = vrot.slane %v5422, 1
      %v6150 = vsel %vm2400, %v6145, %v6149
      %v6195 = vunpack.c.l.b16 %v6079
      %v6196 = vunpack.c.h.b16 %v6079
      %v6197 = vunpack.c.l.b16 %v6080
      %v6198 = vunpack.c.h.b16 %v6080
      %v6199 = vunpack.c.l.b16 %v6081
      %v6200 = vunpack.c.h.b16 %v6081
      %v6201 = vunpack.c.l.b16 %v6082
      %v6202 = vunpack.c.h.b16 %v6082
      %v6203 = vunpack.c.l.b16 %v6083
      %v6204 = vunpack.c.h.b16 %v6083
      %v6205 = vunpack.c.l.b16 %v6084
      %v6206 = vunpack.c.h.b16 %v6084
      %v6207 = vunpack.c.l.b16 %v6085
      %v6208 = vunpack.c.h.b16 %v6085
      %v6209 = vunpack.c.l.b16 %v6086
      %v6210 = vunpack.c.h.b16 %v6086
      %v6211 = vunpack.c.l.b16 %v6087
      %v6212 = vunpack.c.h.b16 %v6087
      %v6213 = vunpack.c.l.b16 %v6088
      %v6214 = vunpack.c.h.b16 %v6088
      %v6215 = vunpack.c.l.b16 %v6089
      %v6216 = vunpack.c.h.b16 %v6089
      %v6217 = vunpack.c.l.b16 %v6090
      %v6218 = vunpack.c.h.b16 %v6090
      %v6219 = vunpack.c.l.b16 %v6091
      %v6220 = vunpack.c.h.b16 %v6091
      %v6221 = vunpack.c.l.b16 %v6092
      %v6222 = vunpack.c.h.b16 %v6092
      %v6223 = vunpack.c.l.b16 %v6093
      %v6224 = vunpack.c.h.b16 %v6093
      %v6225 = vunpack.c.l.b16 %v6094
      %v6226 = vunpack.c.h.b16 %v6094
      %v6227 = vunpack.c.l.b16 %v6095
      %v6228 = vunpack.c.h.b16 %v6095
      %v6229 = vunpack.c.l.b16 %v6096
      %v6230 = vunpack.c.h.b16 %v6096
      %v6231 = vunpack.c.l.b16 %v6097
      %v6232 = vunpack.c.h.b16 %v6097
      %v6233 = vunpack.c.l.b16 %v6098
      %v6234 = vunpack.c.h.b16 %v6098
      %v6235 = vunpack.c.l.b16 %v6099
      %v6236 = vunpack.c.h.b16 %v6099
      %v6237 = vunpack.c.l.b16 %v6100
      %v6238 = vunpack.c.h.b16 %v6100
      %v6239 = vunpack.c.l.b16 %v6101
      %v6240 = vunpack.c.h.b16 %v6101
      %v6241 = vunpack.c.l.b16 %v6102
      %v6242 = vunpack.c.h.b16 %v6102
      %v6243 = vunpack.c.l.b16 %v6103
      %v6244 = vunpack.c.h.b16 %v6103
      %v6245 = vunpack.c.l.b16 %v6104
      %v6246 = vunpack.c.h.b16 %v6104
      %v6247 = vunpack.c.l.b16 %v6105
      %v6248 = vunpack.c.h.b16 %v6105
      %v6249 = vunpack.c.l.b16 %v6106
      %v6250 = vunpack.c.h.b16 %v6106
      %v6251 = vunpack.c.l.b16 %v6107
      %v6252 = vunpack.c.h.b16 %v6107
      %v6253 = vunpack.c.l.b16 %v6108
      %v6254 = vunpack.c.h.b16 %v6108
      %v6255 = vunpack.c.l.b16 %v6109
      %v6256 = vunpack.c.h.b16 %v6109
      %v6257 = vunpack.c.l.b16 %v6110
      %v6258 = vunpack.c.h.b16 %v6110
      %v6259 = vpack.c.b16 %v6197, %v6195
      %v6260 = vpack.c.b16 %v6198, %v6196
      %v6261 = vpack.c.b16 %v6201, %v6199
      %v6262 = vpack.c.b16 %v6202, %v6200
      %v6263 = vpack.c.b16 %v6205, %v6203
      %v6264 = vpack.c.b16 %v6206, %v6204
      %v6265 = vpack.c.b16 %v6209, %v6207
      %v6266 = vpack.c.b16 %v6210, %v6208
      %v6267 = vpack.c.b16 %v6213, %v6211
      %v6268 = vpack.c.b16 %v6214, %v6212
      %v6269 = vpack.c.b16 %v6217, %v6215
      %v6270 = vpack.c.b16 %v6218, %v6216
      %v6271 = vpack.c.b16 %v6221, %v6219
      %v6272 = vpack.c.b16 %v6222, %v6220
      %v6273 = vpack.c.b16 %v6225, %v6223
      %v6274 = vpack.c.b16 %v6226, %v6224
      %v6275 = vpack.c.b16 %v6229, %v6227
      %v6276 = vpack.c.b16 %v6230, %v6228
      %v6277 = vpack.c.b16 %v6233, %v6231
      %v6278 = vpack.c.b16 %v6234, %v6232
      %v6279 = vpack.c.b16 %v6237, %v6235
      %v6280 = vpack.c.b16 %v6238, %v6236
      %v6281 = vpack.c.b16 %v6241, %v6239
      %v6282 = vpack.c.b16 %v6242, %v6240
      %v6283 = vpack.c.b16 %v6245, %v6243
      %v6284 = vpack.c.b16 %v6246, %v6244
      %v6285 = vpack.c.b16 %v6249, %v6247
      %v6286 = vpack.c.b16 %v6250, %v6248
      %v6287 = vpack.c.b16 %v6253, %v6251
      %v6288 = vpack.c.b16 %v6254, %v6252
      %v6289 = vpack.c.b16 %v6257, %v6255
      %v6290 = vpack.c.b16 %v6258, %v6256
      %6323 = vmatprep.subr.bf16.mxu0 %v6260
      %6324 = vmatpush1.bf16.msra.mxu0 %v6259
      %6325 = vmatprep.subr.bf16.mxu0 %v6262
      %6326 = vmatpush1.bf16.msra.mxu0 %v6261
      %6327 = vmatprep.subr.bf16.mxu0 %v6264
      %6328 = vmatpush1.bf16.msra.mxu0 %v6263
      %6329 = vmatprep.subr.bf16.mxu0 %v6266
      %6330 = vmatpush1.bf16.msra.mxu0 %v6265
      %6331 = vmatprep.subr.bf16.mxu0 %v6268
      %6332 = vmatpush1.bf16.msra.mxu0 %v6267
      %6333 = vmatprep.subr.bf16.mxu0 %v6270
      %6334 = vmatpush1.bf16.msra.mxu0 %v6269
      %6335 = vmatprep.subr.bf16.mxu0 %v6272
      %6336 = vmatpush1.bf16.msra.mxu0 %v6271
      %6337 = vmatprep.subr.bf16.mxu0 %v6274
      %6338 = vmatpush1.bf16.msra.mxu0 %v6273
      %6339 = vmatprep.subr.bf16.mxu0 %v6276
      %6340 = vmatpush1.bf16.msra.mxu0 %v6275
      %6341 = vmatprep.subr.bf16.mxu0 %v6278
      %6342 = vmatpush1.bf16.msra.mxu0 %v6277
      %6343 = vmatprep.subr.bf16.mxu0 %v6280
      %6344 = vmatpush1.bf16.msra.mxu0 %v6279
      %6345 = vmatprep.subr.bf16.mxu0 %v6282
      %6346 = vmatpush1.bf16.msra.mxu0 %v6281
      %6347 = vmatprep.subr.bf16.mxu0 %v6284
      %6348 = vmatpush1.bf16.msra.mxu0 %v6283
      %6349 = vmatprep.subr.bf16.mxu0 %v6286
      %6350 = vmatpush1.bf16.msra.mxu0 %v6285
      %6351 = vmatprep.subr.bf16.mxu0 %v6288
      %6352 = vmatpush1.bf16.msra.mxu0 %v6287
      %6353 = vmatprep.subr.bf16.mxu0 %v6290
      %6354 = vmatpush1.bf16.msra.mxu0 %v6289
      %6355 = vmatprep.mubr.bf16.mxu0 %v6130
      %6356 = vmatmul.mubr.bf16.gmra.mrb[0].mxu0 %v6127
      %v6357 = vpop.f32.mrb[0].mxu0
      %v6358 = vadd.f32 0.0, %v6357
      %v6359 = vpop.f32.mrb[0].mxu0
      %v6360 = vadd.f32 0.0, %v6359
      %v6361 = vpop.f32.mrb[0].mxu0
      %v6362 = vadd.f32 0.0, %v6361
      %v6363 = vpop.f32.mrb[0].mxu0
      %v6364 = vadd.f32 0.0, %v6363
      %6365 = vmatprep.mubr.bf16.mxu0 %v6134
      %6366 = vmatmul.mubr.bf16.gmra.mrb[0].mxu0 %v6132
      %v6367 = vpop.f32.mrb[0].mxu0
      %v6368 = vadd.f32 0.0, %v6367
      %v6369 = vpop.f32.mrb[0].mxu0
      %v6370 = vadd.f32 0.0, %v6369
      %v6371 = vpop.f32.mrb[0].mxu0
      %v6372 = vadd.f32 0.0, %v6371
      %v6373 = vpop.f32.mrb[0].mxu0
      %v6374 = vadd.f32 0.0, %v6373
      %6375 = vmatprep.mubr.bf16.mxu0 %v6138
      %6376 = vmatmul.mubr.bf16.gmra.mrb[0].mxu0 %v6136
      %v6377 = vpop.f32.mrb[0].mxu0
      %v6378 = vadd.f32 0.0, %v6377
      %v6379 = vpop.f32.mrb[0].mxu0
      %v6380 = vadd.f32 0.0, %v6379
      %v6381 = vpop.f32.mrb[0].mxu0
      %v6382 = vadd.f32 0.0, %v6381
      %v6383 = vpop.f32.mrb[0].mxu0
      %v6384 = vadd.f32 0.0, %v6383
      %6385 = vmatprep.mubr.bf16.mxu0 %v6142
      %6386 = vmatmul.mubr.bf16.gmra.mrb[0].mxu0 %v6140
      %v6387 = vpop.f32.mrb[0].mxu0
      %v6388 = vadd.f32 0.0, %v6387
      %v6389 = vpop.f32.mrb[0].mxu0
      %v6390 = vadd.f32 0.0, %v6389
      %v6391 = vpop.f32.mrb[0].mxu0
      %v6392 = vadd.f32 0.0, %v6391
      %v6393 = vpop.f32.mrb[0].mxu0
      %v6394 = vadd.f32 0.0, %v6393
      %6395 = vmatprep.mubr.bf16.mxu0 %v6146
      %6396 = vmatmul.mubr.bf16.gmra.mrb[0].mxu0 %v6144
      %v6397 = vpop.f32.mrb[0].mxu0
      %v6398 = vadd.f32 0.0, %v6397
      %v6399 = vpop.f32.mrb[0].mxu0
      %v6400 = vadd.f32 0.0, %v6399
      %v6401 = vpop.f32.mrb[0].mxu0
      %v6402 = vadd.f32 0.0, %v6401
      %v6403 = vpop.f32.mrb[0].mxu0
      %v6404 = vadd.f32 0.0, %v6403
      %6405 = vmatprep.mubr.bf16.mxu0 %v6150
      %6406 = vmatmul.mubr.bf16.gmra.mrb[0].mxu0 %v6148
      %v6407 = vpop.f32.mrb[0].mxu0
      %v6408 = vadd.f32 0.0, %v6407
      %v6409 = vpop.f32.mrb[0].mxu0
      %v6410 = vadd.f32 0.0, %v6409
      %v6411 = vpop.f32.mrb[0].mxu0
      %v6412 = vadd.f32 0.0, %v6411
      %v6413 = vpop.f32.mrb[0].mxu0
      %v6414 = vadd.f32 0.0, %v6413
      %6415 = vdwg.mxu0
      %v6416 = vadd.f32 %v6019, %v6358
      %v6417 = vadd.f32 %v6021, %v6360
      %v6418 = vadd.f32 %v6023, %v6362
      %v6419 = vadd.f32 %v6025, %v6364
      %v6420 = vadd.f32 %v6029, %v6368
      %v6421 = vadd.f32 %v6031, %v6370
      %v6422 = vadd.f32 %v6033, %v6372
      %v6423 = vadd.f32 %v6035, %v6374
      %v6424 = vadd.f32 %v6039, %v6378
      %v6425 = vadd.f32 %v6041, %v6380
      %v6426 = vadd.f32 %v6043, %v6382
      %v6427 = vadd.f32 %v6045, %v6384
      %v6428 = vadd.f32 %v6049, %v6388
      %v6429 = vadd.f32 %v6051, %v6390
      %v6430 = vadd.f32 %v6053, %v6392
      %v6431 = vadd.f32 %v6055, %v6394
      %v6432 = vadd.f32 %v6059, %v6398
      %v6433 = vadd.f32 %v6061, %v6400
      %v6434 = vadd.f32 %v6063, %v6402
      %v6435 = vadd.f32 %v6065, %v6404
      %v6436 = vadd.f32 %v6069, %v6408
      %v6437 = vadd.f32 %v6071, %v6410
      %v6438 = vadd.f32 %v6073, %v6412
      %v6439 = vadd.f32 %v6075, %v6414
      %v6440 = vld [vmem:[#allocation2 + $0x70] sm:$0xfe]
      %v6441 = vld [vmem:[#allocation2 + $0x78] sm:$0xfe]
      %v6442 = vld [vmem:[#allocation2 + $0x80] sm:$0xff]
      %v6443 = vld [vmem:[#allocation2 + $0x88] sm:$0xff]
      %v6444 = vld [vmem:[#allocation2 + $0x90] sm:$0xff]
      %v6445 = vld [vmem:[#allocation2 + $0x98] sm:$0xff]
      %v6446 = vld [vmem:[#allocation2 + $0xa0] sm:$0xff]
      %v6447 = vld [vmem:[#allocation2 + $0xa8] sm:$0xff]
      %v6448 = vld [vmem:[#allocation2 + $0xb0] sm:$0xff]
      %v6449 = vld [vmem:[#allocation2 + $0xb8] sm:$0xff]
      %v6450 = vld [vmem:[#allocation2 + $0xc0] sm:$0xff]
      %v6451 = vld [vmem:[#allocation2 + $0xc8] sm:$0xff]
      %v6452 = vld [vmem:[#allocation2 + $0xd0] sm:$0x1]
      %v6453 = vld [vmem:[#allocation2 + $0xd8] sm:$0x1]
      %v6454 = vld [vmem:[%s2730] sm:$0xff]
      %v6455 = vld [vmem:[%s2730 + $0x8] sm:$0xff]
      %v6456 = vld [vmem:[%s2730 + $0x10] sm:$0xff]
      %v6457 = vld [vmem:[%s2730 + $0x18] sm:$0xff]
      %v6458 = vld [vmem:[%s2730 + $0x20] sm:$0xff]
      %v6459 = vld [vmem:[%s2730 + $0x28] sm:$0xff]
      %v6460 = vld [vmem:[%s2730 + $0x30] sm:$0xff]
      %v6461 = vld [vmem:[%s2730 + $0x38] sm:$0xff]
      %v6462 = vld [vmem:[%s2730 + $0x40] sm:$0xff]
      %v6463 = vld [vmem:[%s2730 + $0x48] sm:$0xff]
      %v6464 = vld [vmem:[%s2730 + $0x50] sm:$0xff]
      %v6465 = vld [vmem:[%s2730 + $0x58] sm:$0xff]
      %v6466 = vld [vmem:[%s2730 + $0x60] sm:$0xff]
      %v6467 = vld [vmem:[%s2730 + $0x68] sm:$0xff]
      %v6468 = vld [vmem:[%s2730 + $0x70] sm:$0xff]
      %v6469 = vld [vmem:[%s2730 + $0x78] sm:$0xff]
      %v6470 = vld [vmem:[%s2730 + $0x80] sm:$0xff]
      %v6471 = vld [vmem:[%s2730 + $0x88] sm:$0xff]
      %v6472 = vld [vmem:[%s2730 + $0x90] sm:$0xff]
      %v6473 = vld [vmem:[%s2730 + $0x98] sm:$0xff]
      %v6474 = vld [vmem:[%s2730 + $0xa0] sm:$0xff]
      %v6475 = vld [vmem:[%s2730 + $0xa8] sm:$0xff]
      %v6476 = vld [vmem:[%s2730 + $0xb0] sm:$0xff]
      %v6477 = vld [vmem:[%s2730 + $0xb8] sm:$0xff]
      %v6478 = vld [vmem:[%s2730 + $0xc0] sm:$0xff]
      %v6479 = vld [vmem:[%s2730 + $0xc8] sm:$0xff]
      %v6480 = vld [vmem:[%s2730 + $0xd0] sm:$0xff]
      %v6481 = vld [vmem:[%s2730 + $0xd8] sm:$0xff]
      %v6482 = vld [vmem:[%s2730 + $0xe0] sm:$0xff]
      %v6483 = vld [vmem:[%s2730 + $0xe8] sm:$0xff]
      %v6484 = vld [vmem:[%s2730 + $0xf0] sm:$0xff]
      %v6485 = vld [vmem:[%s2730 + $0xf8] sm:$0xff]
      %v6500 = vrot.slane %v6440, 1
      %v6501 = vrot.slane %v6442, 1
      %v6502 = vsel %vm2400, %v6500, %v6501
      %v6503 = vrot.slane %v6441, 1
      %v6504 = vrot.slane %v6443, 1
      %v6505 = vsel %vm2400, %v6503, %v6504
      %v6506 = vrot.slane %v6444, 1
      %v6507 = vsel %vm2400, %v6501, %v6506
      %v6508 = vrot.slane %v6445, 1
      %v6509 = vsel %vm2400, %v6504, %v6508
      %v6510 = vrot.slane %v6446, 1
      %v6511 = vsel %vm2400, %v6506, %v6510
      %v6512 = vrot.slane %v6447, 1
      %v6513 = vsel %vm2400, %v6508, %v6512
      %v6514 = vrot.slane %v6448, 1
      %v6515 = vsel %vm2400, %v6510, %v6514
      %v6516 = vrot.slane %v6449, 1
      %v6517 = vsel %vm2400, %v6512, %v6516
      %v6518 = vrot.slane %v6450, 1
      %v6519 = vsel %vm2400, %v6514, %v6518
      %v6520 = vrot.slane %v6451, 1
      %v6521 = vsel %vm2400, %v6516, %v6520
      %v6522 = vrot.slane %v6452, 1
      %v6523 = vsel %vm2400, %v6518, %v6522
      %v6524 = vrot.slane %v6453, 1
      %v6525 = vsel %vm2400, %v6520, %v6524
      %v6570 = vunpack.c.l.b16 %v6454
      %v6571 = vunpack.c.h.b16 %v6454
      %v6572 = vunpack.c.l.b16 %v6455
      %v6573 = vunpack.c.h.b16 %v6455
      %v6574 = vunpack.c.l.b16 %v6456
      %v6575 = vunpack.c.h.b16 %v6456
      %v6576 = vunpack.c.l.b16 %v6457
      %v6577 = vunpack.c.h.b16 %v6457
      %v6578 = vunpack.c.l.b16 %v6458
      %v6579 = vunpack.c.h.b16 %v6458
      %v6580 = vunpack.c.l.b16 %v6459
      %v6581 = vunpack.c.h.b16 %v6459
      %v6582 = vunpack.c.l.b16 %v6460
      %v6583 = vunpack.c.h.b16 %v6460
      %v6584 = vunpack.c.l.b16 %v6461
      %v6585 = vunpack.c.h.b16 %v6461
      %v6586 = vunpack.c.l.b16 %v6462
      %v6587 = vunpack.c.h.b16 %v6462
      %v6588 = vunpack.c.l.b16 %v6463
      %v6589 = vunpack.c.h.b16 %v6463
      %v6590 = vunpack.c.l.b16 %v6464
      %v6591 = vunpack.c.h.b16 %v6464
      %v6592 = vunpack.c.l.b16 %v6465
      %v6593 = vunpack.c.h.b16 %v6465
      %v6594 = vunpack.c.l.b16 %v6466
      %v6595 = vunpack.c.h.b16 %v6466
      %v6596 = vunpack.c.l.b16 %v6467
      %v6597 = vunpack.c.h.b16 %v6467
      %v6598 = vunpack.c.l.b16 %v6468
      %v6599 = vunpack.c.h.b16 %v6468
      %v6600 = vunpack.c.l.b16 %v6469
      %v6601 = vunpack.c.h.b16 %v6469
      %v6602 = vunpack.c.l.b16 %v6470
      %v6603 = vunpack.c.h.b16 %v6470
      %v6604 = vunpack.c.l.b16 %v6471
      %v6605 = vunpack.c.h.b16 %v6471
      %v6606 = vunpack.c.l.b16 %v6472
      %v6607 = vunpack.c.h.b16 %v6472
      %v6608 = vunpack.c.l.b16 %v6473
      %v6609 = vunpack.c.h.b16 %v6473
      %v6610 = vunpack.c.l.b16 %v6474
      %v6611 = vunpack.c.h.b16 %v6474
      %v6612 = vunpack.c.l.b16 %v6475
      %v6613 = vunpack.c.h.b16 %v6475
      %v6614 = vunpack.c.l.b16 %v6476
      %v6615 = vunpack.c.h.b16 %v6476
      %v6616 = vunpack.c.l.b16 %v6477
      %v6617 = vunpack.c.h.b16 %v6477
      %v6618 = vunpack.c.l.b16 %v6478
      %v6619 = vunpack.c.h.b16 %v6478
      %v6620 = vunpack.c.l.b16 %v6479
      %v6621 = vunpack.c.h.b16 %v6479
      %v6622 = vunpack.c.l.b16 %v6480
      %v6623 = vunpack.c.h.b16 %v6480
      %v6624 = vunpack.c.l.b16 %v6481
      %v6625 = vunpack.c.h.b16 %v6481
      %v6626 = vunpack.c.l.b16 %v6482
      %v6627 = vunpack.c.h.b16 %v6482
      %v6628 = vunpack.c.l.b16 %v6483
      %v6629 = vunpack.c.h.b16 %v6483
      %v6630 = vunpack.c.l.b16 %v6484
      %v6631 = vunpack.c.h.b16 %v6484
      %v6632 = vunpack.c.l.b16 %v6485
      %v6633 = vunpack.c.h.b16 %v6485
      %v6634 = vpack.c.b16 %v6572, %v6570
      %v6635 = vpack.c.b16 %v6573, %v6571
      %v6636 = vpack.c.b16 %v6576, %v6574
      %v6637 = vpack.c.b16 %v6577, %v6575
      %v6638 = vpack.c.b16 %v6580, %v6578
      %v6639 = vpack.c.b16 %v6581, %v6579
      %v6640 = vpack.c.b16 %v6584, %v6582
      %v6641 = vpack.c.b16 %v6585, %v6583
      %v6642 = vpack.c.b16 %v6588, %v6586
      %v6643 = vpack.c.b16 %v6589, %v6587
      %v6644 = vpack.c.b16 %v6592, %v6590
      %v6645 = vpack.c.b16 %v6593, %v6591
      %v6646 = vpack.c.b16 %v6596, %v6594
      %v6647 = vpack.c.b16 %v6597, %v6595
      %v6648 = vpack.c.b16 %v6600, %v6598
      %v6649 = vpack.c.b16 %v6601, %v6599
      %v6650 = vpack.c.b16 %v6604, %v6602
      %v6651 = vpack.c.b16 %v6605, %v6603
      %v6652 = vpack.c.b16 %v6608, %v6606
      %v6653 = vpack.c.b16 %v6609, %v6607
      %v6654 = vpack.c.b16 %v6612, %v6610
      %v6655 = vpack.c.b16 %v6613, %v6611
      %v6656 = vpack.c.b16 %v6616, %v6614
      %v6657 = vpack.c.b16 %v6617, %v6615
      %v6658 = vpack.c.b16 %v6620, %v6618
      %v6659 = vpack.c.b16 %v6621, %v6619
      %v6660 = vpack.c.b16 %v6624, %v6622
      %v6661 = vpack.c.b16 %v6625, %v6623
      %v6662 = vpack.c.b16 %v6628, %v6626
      %v6663 = vpack.c.b16 %v6629, %v6627
      %v6664 = vpack.c.b16 %v6632, %v6630
      %v6665 = vpack.c.b16 %v6633, %v6631
      %6698 = vmatprep.subr.bf16.mxu0 %v6635
      %6699 = vmatpush1.bf16.msra.mxu0 %v6634
      %6700 = vmatprep.subr.bf16.mxu0 %v6637
      %6701 = vmatpush1.bf16.msra.mxu0 %v6636
      %6702 = vmatprep.subr.bf16.mxu0 %v6639
      %6703 = vmatpush1.bf16.msra.mxu0 %v6638
      %6704 = vmatprep.subr.bf16.mxu0 %v6641
      %6705 = vmatpush1.bf16.msra.mxu0 %v6640
      %6706 = vmatprep.subr.bf16.mxu0 %v6643
      %6707 = vmatpush1.bf16.msra.mxu0 %v6642
      %6708 = vmatprep.subr.bf16.mxu0 %v6645
      %6709 = vmatpush1.bf16.msra.mxu0 %v6644
      %6710 = vmatprep.subr.bf16.mxu0 %v6647
      %6711 = vmatpush1.bf16.msra.mxu0 %v6646
      %6712 = vmatprep.subr.bf16.mxu0 %v6649
      %6713 = vmatpush1.bf16.msra.mxu0 %v6648
      %6714 = vmatprep.subr.bf16.mxu0 %v6651
      %6715 = vmatpush1.bf16.msra.mxu0 %v6650
      %6716 = vmatprep.subr.bf16.mxu0 %v6653
      %6717 = vmatpush1.bf16.msra.mxu0 %v6652
      %6718 = vmatprep.subr.bf16.mxu0 %v6655
      %6719 = vmatpush1.bf16.msra.mxu0 %v6654
      %6720 = vmatprep.subr.bf16.mxu0 %v6657
      %6721 = vmatpush1.bf16.msra.mxu0 %v6656
      %6722 = vmatprep.subr.bf16.mxu0 %v6659
      %6723 = vmatpush1.bf16.msra.mxu0 %v6658
      %6724 = vmatprep.subr.bf16.mxu0 %v6661
      %6725 = vmatpush1.bf16.msra.mxu0 %v6660
      %6726 = vmatprep.subr.bf16.mxu0 %v6663
      %6727 = vmatpush1.bf16.msra.mxu0 %v6662
      %6728 = vmatprep.subr.bf16.mxu0 %v6665
      %6729 = vmatpush1.bf16.msra.mxu0 %v6664
      %6730 = vmatprep.mubr.bf16.mxu0 %v6505
      %6731 = vmatmul.mubr.bf16.gmra.mrb[0].mxu0 %v6502
      %v6732 = vpop.f32.mrb[0].mxu0
      %v6733 = vadd.f32 0.0, %v6732
      %v6734 = vpop.f32.mrb[0].mxu0
      %v6735 = vadd.f32 0.0, %v6734
      %v6736 = vpop.f32.mrb[0].mxu0
      %v6737 = vadd.f32 0.0, %v6736
      %v6738 = vpop.f32.mrb[0].mxu0
      %v6739 = vadd.f32 0.0, %v6738
      %6740 = vmatprep.mubr.bf16.mxu0 %v6509
      %6741 = vmatmul.mubr.bf16.gmra.mrb[0].mxu0 %v6507
      %v6742 = vpop.f32.mrb[0].mxu0
      %v6743 = vadd.f32 0.0, %v6742
      %v6744 = vpop.f32.mrb[0].mxu0
      %v6745 = vadd.f32 0.0, %v6744
      %v6746 = vpop.f32.mrb[0].mxu0
      %v6747 = vadd.f32 0.0, %v6746
      %v6748 = vpop.f32.mrb[0].mxu0
      %v6749 = vadd.f32 0.0, %v6748
      %6750 = vmatprep.mubr.bf16.mxu0 %v6513
      %6751 = vmatmul.mubr.bf16.gmra.mrb[0].mxu0 %v6511
      %v6752 = vpop.f32.mrb[0].mxu0
      %v6753 = vadd.f32 0.0, %v6752
      %v6754 = vpop.f32.mrb[0].mxu0
      %v6755 = vadd.f32 0.0, %v6754
      %v6756 = vpop.f32.mrb[0].mxu0
      %v6757 = vadd.f32 0.0, %v6756
      %v6758 = vpop.f32.mrb[0].mxu0
      %v6759 = vadd.f32 0.0, %v6758
      %6760 = vmatprep.mubr.bf16.mxu0 %v6517
      %6761 = vmatmul.mubr.bf16.gmra.mrb[0].mxu0 %v6515
      %v6762 = vpop.f32.mrb[0].mxu0
      %v6763 = vadd.f32 0.0, %v6762
      %v6764 = vpop.f32.mrb[0].mxu0
      %v6765 = vadd.f32 0.0, %v6764
      %v6766 = vpop.f32.mrb[0].mxu0
      %v6767 = vadd.f32 0.0, %v6766
      %v6768 = vpop.f32.mrb[0].mxu0
      %v6769 = vadd.f32 0.0, %v6768
      %6770 = vmatprep.mubr.bf16.mxu0 %v6521
      %6771 = vmatmul.mubr.bf16.gmra.mrb[0].mxu0 %v6519
      %v6772 = vpop.f32.mrb[0].mxu0
      %v6773 = vadd.f32 0.0, %v6772
      %v6774 = vpop.f32.mrb[0].mxu0
      %v6775 = vadd.f32 0.0, %v6774
      %v6776 = vpop.f32.mrb[0].mxu0
      %v6777 = vadd.f32 0.0, %v6776
      %v6778 = vpop.f32.mrb[0].mxu0
      %v6779 = vadd.f32 0.0, %v6778
      %6780 = vmatprep.mubr.bf16.mxu0 %v6525
      %6781 = vmatmul.mubr.bf16.gmra.mrb[0].mxu0 %v6523
      %v6782 = vpop.f32.mrb[0].mxu0
      %v6783 = vadd.f32 0.0, %v6782
      %v6784 = vpop.f32.mrb[0].mxu0
      %v6785 = vadd.f32 0.0, %v6784
      %v6786 = vpop.f32.mrb[0].mxu0
      %v6787 = vadd.f32 0.0, %v6786
      %v6788 = vpop.f32.mrb[0].mxu0
      %v6789 = vadd.f32 0.0, %v6788
      %6790 = vdwg.mxu0
      %v6791 = vadd.f32 %v6416, %v6733
      %v6792 = vadd.f32 %v6417, %v6735
      %v6793 = vadd.f32 %v6418, %v6737
      %v6794 = vadd.f32 %v6419, %v6739
      %v6795 = vadd.f32 %v6420, %v6743
      %v6796 = vadd.f32 %v6421, %v6745
      %v6797 = vadd.f32 %v6422, %v6747
      %v6798 = vadd.f32 %v6423, %v6749
      %v6799 = vadd.f32 %v6424, %v6753
      %v6800 = vadd.f32 %v6425, %v6755
      %v6801 = vadd.f32 %v6426, %v6757
      %v6802 = vadd.f32 %v6427, %v6759
      %v6803 = vadd.f32 %v6428, %v6763
      %v6804 = vadd.f32 %v6429, %v6765
      %v6805 = vadd.f32 %v6430, %v6767
      %v6806 = vadd.f32 %v6431, %v6769
      %v6807 = vadd.f32 %v6432, %v6773
      %v6808 = vadd.f32 %v6433, %v6775
      %v6809 = vadd.f32 %v6434, %v6777
      %v6810 = vadd.f32 %v6435, %v6779
      %v6811 = vadd.f32 %v6436, %v6783
      %v6812 = vadd.f32 %v6437, %v6785
      %v6813 = vadd.f32 %v6438, %v6787
      %v6814 = vadd.f32 %v6439, %v6789
      %v6815 = vld [vmem:[#allocation2 + $0xd0] sm:$0x3]
      %v6816 = vld [vmem:[#allocation2 + $0xd8] sm:$0x3]
      %v6817 = vld [vmem:[%s3094] sm:$0xff]
      %v6818 = vld [vmem:[%s3094 + $0x8] sm:$0xff]
      %v6819 = vld [vmem:[%s3094 + $0x10] sm:$0xff]
      %v6820 = vld [vmem:[%s3094 + $0x18] sm:$0xff]
      %v6821 = vld [vmem:[%s3094 + $0x20] sm:$0xff]
      %v6822 = vld [vmem:[%s3094 + $0x28] sm:$0xff]
      %v6823 = vld [vmem:[%s3094 + $0x30] sm:$0xff]
      %v6824 = vld [vmem:[%s3094 + $0x38] sm:$0xff]
      %v6825 = vld [vmem:[%s3094 + $0x40] sm:$0xff]
      %v6826 = vld [vmem:[%s3094 + $0x48] sm:$0xff]
      %v6827 = vld [vmem:[%s3094 + $0x50] sm:$0xff]
      %v6828 = vld [vmem:[%s3094 + $0x58] sm:$0xff]
      %v6829 = vld [vmem:[%s3094 + $0x60] sm:$0xff]
      %v6830 = vld [vmem:[%s3094 + $0x68] sm:$0xff]
      %v6831 = vld [vmem:[%s3094 + $0x70] sm:$0xff]
      %v6832 = vld [vmem:[%s3094 + $0x78] sm:$0xff]
      %v6833 = vld [vmem:[%s3094 + $0x80] sm:$0xff]
      %v6834 = vld [vmem:[%s3094 + $0x88] sm:$0xff]
      %v6835 = vld [vmem:[%s3094 + $0x90] sm:$0xff]
      %v6836 = vld [vmem:[%s3094 + $0x98] sm:$0xff]
      %v6837 = vld [vmem:[%s3094 + $0xa0] sm:$0xff]
      %v6838 = vld [vmem:[%s3094 + $0xa8] sm:$0xff]
      %v6839 = vld [vmem:[%s3094 + $0xb0] sm:$0xff]
      %v6840 = vld [vmem:[%s3094 + $0xb8] sm:$0xff]
      %v6841 = vld [vmem:[%s3094 + $0xc0] sm:$0xff]
      %v6842 = vld [vmem:[%s3094 + $0xc8] sm:$0xff]
      %v6843 = vld [vmem:[%s3094 + $0xd0] sm:$0xff]
      %v6844 = vld [vmem:[%s3094 + $0xd8] sm:$0xff]
      %v6845 = vld [vmem:[%s3094 + $0xe0] sm:$0xff]
      %v6846 = vld [vmem:[%s3094 + $0xe8] sm:$0xff]
      %v6847 = vld [vmem:[%s3094 + $0xf0] sm:$0xff]
      %v6848 = vld [vmem:[%s3094 + $0xf8] sm:$0xff]
      %v6850 = vshrl.u32 %v6440, 16
      %v6852 = vrot.slane %v6850, 1
      %v6853 = vshll.u32 %v6440, 16
      %v6855 = vrot.slane %v6853, 2
      %v6856 = vor.u32 %v6852, %v6855
      %v6858 = vshrl.u32 %v6442, 16
      %v6860 = vrot.slane %v6858, 1
      %v6861 = vshll.u32 %v6442, 16
      %v6863 = vrot.slane %v6861, 2
      %v6864 = vor.u32 %v6860, %v6863
      %v6865 = vsel %vm3127, %v6856, %v6864
      %v6867 = vshrl.u32 %v6441, 16
      %v6869 = vrot.slane %v6867, 1
      %v6870 = vshll.u32 %v6441, 16
      %v6872 = vrot.slane %v6870, 2
      %v6873 = vor.u32 %v6869, %v6872
      %v6875 = vshrl.u32 %v6443, 16
      %v6877 = vrot.slane %v6875, 1
      %v6878 = vshll.u32 %v6443, 16
      %v6880 = vrot.slane %v6878, 2
      %v6881 = vor.u32 %v6877, %v6880
      %v6882 = vsel %vm3127, %v6873, %v6881
      %v6884 = vshrl.u32 %v6444, 16
      %v6886 = vrot.slane %v6884, 1
      %v6887 = vshll.u32 %v6444, 16
      %v6889 = vrot.slane %v6887, 2
      %v6890 = vor.u32 %v6886, %v6889
      %v6891 = vsel %vm3127, %v6864, %v6890
      %v6893 = vshrl.u32 %v6445, 16
      %v6895 = vrot.slane %v6893, 1
      %v6896 = vshll.u32 %v6445, 16
      %v6898 = vrot.slane %v6896, 2
      %v6899 = vor.u32 %v6895, %v6898
      %v6900 = vsel %vm3127, %v6881, %v6899
      %v6902 = vshrl.u32 %v6446, 16
      %v6904 = vrot.slane %v6902, 1
      %v6905 = vshll.u32 %v6446, 16
      %v6907 = vrot.slane %v6905, 2
      %v6908 = vor.u32 %v6904, %v6907
      %v6909 = vsel %vm3127, %v6890, %v6908
      %v6911 = vshrl.u32 %v6447, 16
      %v6913 = vrot.slane %v6911, 1
      %v6914 = vshll.u32 %v6447, 16
      %v6916 = vrot.slane %v6914, 2
      %v6917 = vor.u32 %v6913, %v6916
      %v6918 = vsel %vm3127, %v6899, %v6917
      %v6920 = vshrl.u32 %v6448, 16
      %v6922 = vrot.slane %v6920, 1
      %v6923 = vshll.u32 %v6448, 16
      %v6925 = vrot.slane %v6923, 2
      %v6926 = vor.u32 %v6922, %v6925
      %v6927 = vsel %vm3127, %v6908, %v6926
      %v6929 = vshrl.u32 %v6449, 16
      %v6931 = vrot.slane %v6929, 1
      %v6932 = vshll.u32 %v6449, 16
      %v6934 = vrot.slane %v6932, 2
      %v6935 = vor.u32 %v6931, %v6934
      %v6936 = vsel %vm3127, %v6917, %v6935
      %v6938 = vshrl.u32 %v6450, 16
      %v6940 = vrot.slane %v6938, 1
      %v6941 = vshll.u32 %v6450, 16
      %v6943 = vrot.slane %v6941, 2
      %v6944 = vor.u32 %v6940, %v6943
      %v6945 = vsel %vm3127, %v6926, %v6944
      %v6947 = vshrl.u32 %v6451, 16
      %v6949 = vrot.slane %v6947, 1
      %v6950 = vshll.u32 %v6451, 16
      %v6952 = vrot.slane %v6950, 2
      %v6953 = vor.u32 %v6949, %v6952
      %v6954 = vsel %vm3127, %v6935, %v6953
      %v6956 = vshrl.u32 %v6815, 16
      %v6958 = vrot.slane %v6956, 1
      %v6959 = vshll.u32 %v6815, 16
      %v6961 = vrot.slane %v6959, 2
      %v6962 = vor.u32 %v6958, %v6961
      %v6963 = vsel %vm3127, %v6944, %v6962
      %v6965 = vshrl.u32 %v6816, 16
      %v6967 = vrot.slane %v6965, 1
      %v6968 = vshll.u32 %v6816, 16
      %v6970 = vrot.slane %v6968, 2
      %v6971 = vor.u32 %v6967, %v6970
      %v6972 = vsel %vm3127, %v6953, %v6971
      %v7017 = vunpack.c.l.b16 %v6817
      %v7018 = vunpack.c.h.b16 %v6817
      %v7019 = vunpack.c.l.b16 %v6818
      %v7020 = vunpack.c.h.b16 %v6818
      %v7021 = vunpack.c.l.b16 %v6819
      %v7022 = vunpack.c.h.b16 %v6819
      %v7023 = vunpack.c.l.b16 %v6820
      %v7024 = vunpack.c.h.b16 %v6820
      %v7025 = vunpack.c.l.b16 %v6821
      %v7026 = vunpack.c.h.b16 %v6821
      %v7027 = vunpack.c.l.b16 %v6822
      %v7028 = vunpack.c.h.b16 %v6822
      %v7029 = vunpack.c.l.b16 %v6823
      %v7030 = vunpack.c.h.b16 %v6823
      %v7031 = vunpack.c.l.b16 %v6824
      %v7032 = vunpack.c.h.b16 %v6824
      %v7033 = vunpack.c.l.b16 %v6825
      %v7034 = vunpack.c.h.b16 %v6825
      %v7035 = vunpack.c.l.b16 %v6826
      %v7036 = vunpack.c.h.b16 %v6826
      %v7037 = vunpack.c.l.b16 %v6827
      %v7038 = vunpack.c.h.b16 %v6827
      %v7039 = vunpack.c.l.b16 %v6828
      %v7040 = vunpack.c.h.b16 %v6828
      %v7041 = vunpack.c.l.b16 %v6829
      %v7042 = vunpack.c.h.b16 %v6829
      %v7043 = vunpack.c.l.b16 %v6830
      %v7044 = vunpack.c.h.b16 %v6830
      %v7045 = vunpack.c.l.b16 %v6831
      %v7046 = vunpack.c.h.b16 %v6831
      %v7047 = vunpack.c.l.b16 %v6832
      %v7048 = vunpack.c.h.b16 %v6832
      %v7049 = vunpack.c.l.b16 %v6833
      %v7050 = vunpack.c.h.b16 %v6833
      %v7051 = vunpack.c.l.b16 %v6834
      %v7052 = vunpack.c.h.b16 %v6834
      %v7053 = vunpack.c.l.b16 %v6835
      %v7054 = vunpack.c.h.b16 %v6835
      %v7055 = vunpack.c.l.b16 %v6836
      %v7056 = vunpack.c.h.b16 %v6836
      %v7057 = vunpack.c.l.b16 %v6837
      %v7058 = vunpack.c.h.b16 %v6837
      %v7059 = vunpack.c.l.b16 %v6838
      %v7060 = vunpack.c.h.b16 %v6838
      %v7061 = vunpack.c.l.b16 %v6839
      %v7062 = vunpack.c.h.b16 %v6839
      %v7063 = vunpack.c.l.b16 %v6840
      %v7064 = vunpack.c.h.b16 %v6840
      %v7065 = vunpack.c.l.b16 %v6841
      %v7066 = vunpack.c.h.b16 %v6841
      %v7067 = vunpack.c.l.b16 %v6842
      %v7068 = vunpack.c.h.b16 %v6842
      %v7069 = vunpack.c.l.b16 %v6843
      %v7070 = vunpack.c.h.b16 %v6843
      %v7071 = vunpack.c.l.b16 %v6844
      %v7072 = vunpack.c.h.b16 %v6844
      %v7073 = vunpack.c.l.b16 %v6845
      %v7074 = vunpack.c.h.b16 %v6845
      %v7075 = vunpack.c.l.b16 %v6846
      %v7076 = vunpack.c.h.b16 %v6846
      %v7077 = vunpack.c.l.b16 %v6847
      %v7078 = vunpack.c.h.b16 %v6847
      %v7079 = vunpack.c.l.b16 %v6848
      %v7080 = vunpack.c.h.b16 %v6848
      %v7081 = vpack.c.b16 %v7019, %v7017
      %v7082 = vpack.c.b16 %v7020, %v7018
      %v7083 = vpack.c.b16 %v7023, %v7021
      %v7084 = vpack.c.b16 %v7024, %v7022
      %v7085 = vpack.c.b16 %v7027, %v7025
      %v7086 = vpack.c.b16 %v7028, %v7026
      %v7087 = vpack.c.b16 %v7031, %v7029
      %v7088 = vpack.c.b16 %v7032, %v7030
      %v7089 = vpack.c.b16 %v7035, %v7033
      %v7090 = vpack.c.b16 %v7036, %v7034
      %v7091 = vpack.c.b16 %v7039, %v7037
      %v7092 = vpack.c.b16 %v7040, %v7038
      %v7093 = vpack.c.b16 %v7043, %v7041
      %v7094 = vpack.c.b16 %v7044, %v7042
      %v7095 = vpack.c.b16 %v7047, %v7045
      %v7096 = vpack.c.b16 %v7048, %v7046
      %v7097 = vpack.c.b16 %v7051, %v7049
      %v7098 = vpack.c.b16 %v7052, %v7050
      %v7099 = vpack.c.b16 %v7055, %v7053
      %v7100 = vpack.c.b16 %v7056, %v7054
      %v7101 = vpack.c.b16 %v7059, %v7057
      %v7102 = vpack.c.b16 %v7060, %v7058
      %v7103 = vpack.c.b16 %v7063, %v7061
      %v7104 = vpack.c.b16 %v7064, %v7062
      %v7105 = vpack.c.b16 %v7067, %v7065
      %v7106 = vpack.c.b16 %v7068, %v7066
      %v7107 = vpack.c.b16 %v7071, %v7069
      %v7108 = vpack.c.b16 %v7072, %v7070
      %v7109 = vpack.c.b16 %v7075, %v7073
      %v7110 = vpack.c.b16 %v7076, %v7074
      %v7111 = vpack.c.b16 %v7079, %v7077
      %v7112 = vpack.c.b16 %v7080, %v7078
      %7145 = vmatprep.subr.bf16.mxu0 %v7082
      %7146 = vmatpush1.bf16.msra.mxu0 %v7081
      %7147 = vmatprep.subr.bf16.mxu0 %v7084
      %7148 = vmatpush1.bf16.msra.mxu0 %v7083
      %7149 = vmatprep.subr.bf16.mxu0 %v7086
      %7150 = vmatpush1.bf16.msra.mxu0 %v7085
      %7151 = vmatprep.subr.bf16.mxu0 %v7088
      %7152 = vmatpush1.bf16.msra.mxu0 %v7087
      %7153 = vmatprep.subr.bf16.mxu0 %v7090
      %7154 = vmatpush1.bf16.msra.mxu0 %v7089
      %7155 = vmatprep.subr.bf16.mxu0 %v7092
      %7156 = vmatpush1.bf16.msra.mxu0 %v7091
      %7157 = vmatprep.subr.bf16.mxu0 %v7094
      %7158 = vmatpush1.bf16.msra.mxu0 %v7093
      %7159 = vmatprep.subr.bf16.mxu0 %v7096
      %7160 = vmatpush1.bf16.msra.mxu0 %v7095
      %7161 = vmatprep.subr.bf16.mxu0 %v7098
      %7162 = vmatpush1.bf16.msra.mxu0 %v7097
      %7163 = vmatprep.subr.bf16.mxu0 %v7100
      %7164 = vmatpush1.bf16.msra.mxu0 %v7099
      %7165 = vmatprep.subr.bf16.mxu0 %v7102
      %7166 = vmatpush1.bf16.msra.mxu0 %v7101
      %7167 = vmatprep.subr.bf16.mxu0 %v7104
      %7168 = vmatpush1.bf16.msra.mxu0 %v7103
      %7169 = vmatprep.subr.bf16.mxu0 %v7106
      %7170 = vmatpush1.bf16.msra.mxu0 %v7105
      %7171 = vmatprep.subr.bf16.mxu0 %v7108
      %7172 = vmatpush1.bf16.msra.mxu0 %v7107
      %7173 = vmatprep.subr.bf16.mxu0 %v7110
      %7174 = vmatpush1.bf16.msra.mxu0 %v7109
      %7175 = vmatprep.subr.bf16.mxu0 %v7112
      %7176 = vmatpush1.bf16.msra.mxu0 %v7111
      %7177 = vmatprep.mubr.bf16.mxu0 %v6882
      %7178 = vmatmul.mubr.bf16.gmra.mrb[0].mxu0 %v6865
      %v7179 = vpop.f32.mrb[0].mxu0
      %v7180 = vadd.f32 0.0, %v7179
      %v7181 = vpop.f32.mrb[0].mxu0
      %v7182 = vadd.f32 0.0, %v7181
      %v7183 = vpop.f32.mrb[0].mxu0
      %v7184 = vadd.f32 0.0, %v7183
      %v7185 = vpop.f32.mrb[0].mxu0
      %v7186 = vadd.f32 0.0, %v7185
      %7187 = vmatprep.mubr.bf16.mxu0 %v6900
      %7188 = vmatmul.mubr.bf16.gmra.mrb[0].mxu0 %v6891
      %v7189 = vpop.f32.mrb[0].mxu0
      %v7190 = vadd.f32 0.0, %v7189
      %v7191 = vpop.f32.mrb[0].mxu0
      %v7192 = vadd.f32 0.0, %v7191
      %v7193 = vpop.f32.mrb[0].mxu0
      %v7194 = vadd.f32 0.0, %v7193
      %v7195 = vpop.f32.mrb[0].mxu0
      %v7196 = vadd.f32 0.0, %v7195
      %7197 = vmatprep.mubr.bf16.mxu0 %v6918
      %7198 = vmatmul.mubr.bf16.gmra.mrb[0].mxu0 %v6909
      %v7199 = vpop.f32.mrb[0].mxu0
      %v7200 = vadd.f32 0.0, %v7199
      %v7201 = vpop.f32.mrb[0].mxu0
      %v7202 = vadd.f32 0.0, %v7201
      %v7203 = vpop.f32.mrb[0].mxu0
      %v7204 = vadd.f32 0.0, %v7203
      %v7205 = vpop.f32.mrb[0].mxu0
      %v7206 = vadd.f32 0.0, %v7205
      %7207 = vmatprep.mubr.bf16.mxu0 %v6936
      %7208 = vmatmul.mubr.bf16.gmra.mrb[0].mxu0 %v6927
      %v7209 = vpop.f32.mrb[0].mxu0
      %v7210 = vadd.f32 0.0, %v7209
      %v7211 = vpop.f32.mrb[0].mxu0
      %v7212 = vadd.f32 0.0, %v7211
      %v7213 = vpop.f32.mrb[0].mxu0
      %v7214 = vadd.f32 0.0, %v7213
      %v7215 = vpop.f32.mrb[0].mxu0
      %v7216 = vadd.f32 0.0, %v7215
      %7217 = vmatprep.mubr.bf16.mxu0 %v6954
      %7218 = vmatmul.mubr.bf16.gmra.mrb[0].mxu0 %v6945
      %v7219 = vpop.f32.mrb[0].mxu0
      %v7220 = vadd.f32 0.0, %v7219
      %v7221 = vpop.f32.mrb[0].mxu0
      %v7222 = vadd.f32 0.0, %v7221
      %v7223 = vpop.f32.mrb[0].mxu0
      %v7224 = vadd.f32 0.0, %v7223
      %v7225 = vpop.f32.mrb[0].mxu0
      %v7226 = vadd.f32 0.0, %v7225
      %7227 = vmatprep.mubr.bf16.mxu0 %v6972
      %7228 = vmatmul.mubr.bf16.gmra.mrb[0].mxu0 %v6963
      %v7229 = vpop.f32.mrb[0].mxu0
      %v7230 = vadd.f32 0.0, %v7229
      %v7231 = vpop.f32.mrb[0].mxu0
      %v7232 = vadd.f32 0.0, %v7231
      %v7233 = vpop.f32.mrb[0].mxu0
      %v7234 = vadd.f32 0.0, %v7233
      %v7235 = vpop.f32.mrb[0].mxu0
      %v7236 = vadd.f32 0.0, %v7235
      %7237 = vdwg.mxu0
      %v7238 = vadd.f32 %v6791, %v7180
      %v7239 = vadd.f32 %v6792, %v7182
      %v7240 = vadd.f32 %v6793, %v7184
      %v7241 = vadd.f32 %v6794, %v7186
      %v7242 = vadd.f32 %v6795, %v7190
      %v7243 = vadd.f32 %v6796, %v7192
      %v7244 = vadd.f32 %v6797, %v7194
      %v7245 = vadd.f32 %v6798, %v7196
      %v7246 = vadd.f32 %v6799, %v7200
      %v7247 = vadd.f32 %v6800, %v7202
      %v7248 = vadd.f32 %v6801, %v7204
      %v7249 = vadd.f32 %v6802, %v7206
      %v7250 = vadd.f32 %v6803, %v7210
      %v7251 = vadd.f32 %v6804, %v7212
      %v7252 = vadd.f32 %v6805, %v7214
      %v7253 = vadd.f32 %v6806, %v7216
      %v7254 = vadd.f32 %v6807, %v7220
      %v7255 = vadd.f32 %v6808, %v7222
      %v7256 = vadd.f32 %v6809, %v7224
      %v7257 = vadd.f32 %v6810, %v7226
      %v7258 = vadd.f32 %v6811, %v7230
      %v7259 = vadd.f32 %v6812, %v7232
      %v7260 = vadd.f32 %v6813, %v7234
      %v7261 = vadd.f32 %v6814, %v7236
      %v7262 = vld [vmem:[#allocation2 + $0x70] sm:$0xfc]
      %v7263 = vld [vmem:[#allocation2 + $0x78] sm:$0xfc]
      %v7264 = vld [vmem:[%s3543] sm:$0xff]
      %v7265 = vld [vmem:[%s3543 + $0x8] sm:$0xff]
      %v7266 = vld [vmem:[%s3543 + $0x10] sm:$0xff]
      %v7267 = vld [vmem:[%s3543 + $0x18] sm:$0xff]
      %v7268 = vld [vmem:[%s3543 + $0x20] sm:$0xff]
      %v7269 = vld [vmem:[%s3543 + $0x28] sm:$0xff]
      %v7270 = vld [vmem:[%s3543 + $0x30] sm:$0xff]
      %v7271 = vld [vmem:[%s3543 + $0x38] sm:$0xff]
      %v7272 = vld [vmem:[%s3543 + $0x40] sm:$0xff]
      %v7273 = vld [vmem:[%s3543 + $0x48] sm:$0xff]
      %v7274 = vld [vmem:[%s3543 + $0x50] sm:$0xff]
      %v7275 = vld [vmem:[%s3543 + $0x58] sm:$0xff]
      %v7276 = vld [vmem:[%s3543 + $0x60] sm:$0xff]
      %v7277 = vld [vmem:[%s3543 + $0x68] sm:$0xff]
      %v7278 = vld [vmem:[%s3543 + $0x70] sm:$0xff]
      %v7279 = vld [vmem:[%s3543 + $0x78] sm:$0xff]
      %v7280 = vld [vmem:[%s3543 + $0x80] sm:$0xff]
      %v7281 = vld [vmem:[%s3543 + $0x88] sm:$0xff]
      %v7282 = vld [vmem:[%s3543 + $0x90] sm:$0xff]
      %v7283 = vld [vmem:[%s3543 + $0x98] sm:$0xff]
      %v7284 = vld [vmem:[%s3543 + $0xa0] sm:$0xff]
      %v7285 = vld [vmem:[%s3543 + $0xa8] sm:$0xff]
      %v7286 = vld [vmem:[%s3543 + $0xb0] sm:$0xff]
      %v7287 = vld [vmem:[%s3543 + $0xb8] sm:$0xff]
      %v7288 = vld [vmem:[%s3543 + $0xc0] sm:$0xff]
      %v7289 = vld [vmem:[%s3543 + $0xc8] sm:$0xff]
      %v7290 = vld [vmem:[%s3543 + $0xd0] sm:$0xff]
      %v7291 = vld [vmem:[%s3543 + $0xd8] sm:$0xff]
      %v7292 = vld [vmem:[%s3543 + $0xe0] sm:$0xff]
      %v7293 = vld [vmem:[%s3543 + $0xe8] sm:$0xff]
      %v7294 = vld [vmem:[%s3543 + $0xf0] sm:$0xff]
      %v7295 = vld [vmem:[%s3543 + $0xf8] sm:$0xff]
      %v7300 = vrot.slane %v7262, 2
      %v7301 = vrot.slane %v6442, 2
      %v7302 = vsel %vm3580, %v7300, %v7301
      %v7303 = vrot.slane %v7263, 2
      %v7304 = vrot.slane %v6443, 2
      %v7305 = vsel %vm3580, %v7303, %v7304
      %v7306 = vrot.slane %v6444, 2
      %v7307 = vsel %vm3580, %v7301, %v7306
      %v7308 = vrot.slane %v6445, 2
      %v7309 = vsel %vm3580, %v7304, %v7308
      %v7310 = vrot.slane %v6446, 2
      %v7311 = vsel %vm3580, %v7306, %v7310
      %v7312 = vrot.slane %v6447, 2
      %v7313 = vsel %vm3580, %v7308, %v7312
      %v7314 = vrot.slane %v6448, 2
      %v7315 = vsel %vm3580, %v7310, %v7314
      %v7316 = vrot.slane %v6449, 2
      %v7317 = vsel %vm3580, %v7312, %v7316
      %v7318 = vrot.slane %v6450, 2
      %v7319 = vsel %vm3580, %v7314, %v7318
      %v7320 = vrot.slane %v6451, 2
      %v7321 = vsel %vm3580, %v7316, %v7320
      %v7322 = vrot.slane %v6815, 2
      %v7323 = vsel %vm3580, %v7318, %v7322
      %v7324 = vrot.slane %v6816, 2
      %v7325 = vsel %vm3580, %v7320, %v7324
      %v7370 = vunpack.c.l.b16 %v7264
      %v7371 = vunpack.c.h.b16 %v7264
      %v7372 = vunpack.c.l.b16 %v7265
      %v7373 = vunpack.c.h.b16 %v7265
      %v7374 = vunpack.c.l.b16 %v7266
      %v7375 = vunpack.c.h.b16 %v7266
      %v7376 = vunpack.c.l.b16 %v7267
      %v7377 = vunpack.c.h.b16 %v7267
      %v7378 = vunpack.c.l.b16 %v7268
      %v7379 = vunpack.c.h.b16 %v7268
      %v7380 = vunpack.c.l.b16 %v7269
      %v7381 = vunpack.c.h.b16 %v7269
      %v7382 = vunpack.c.l.b16 %v7270
      %v7383 = vunpack.c.h.b16 %v7270
      %v7384 = vunpack.c.l.b16 %v7271
      %v7385 = vunpack.c.h.b16 %v7271
      %v7386 = vunpack.c.l.b16 %v7272
      %v7387 = vunpack.c.h.b16 %v7272
      %v7388 = vunpack.c.l.b16 %v7273
      %v7389 = vunpack.c.h.b16 %v7273
      %v7390 = vunpack.c.l.b16 %v7274
      %v7391 = vunpack.c.h.b16 %v7274
      %v7392 = vunpack.c.l.b16 %v7275
      %v7393 = vunpack.c.h.b16 %v7275
      %v7394 = vunpack.c.l.b16 %v7276
      %v7395 = vunpack.c.h.b16 %v7276
      %v7396 = vunpack.c.l.b16 %v7277
      %v7397 = vunpack.c.h.b16 %v7277
      %v7398 = vunpack.c.l.b16 %v7278
      %v7399 = vunpack.c.h.b16 %v7278
      %v7400 = vunpack.c.l.b16 %v7279
      %v7401 = vunpack.c.h.b16 %v7279
      %v7402 = vunpack.c.l.b16 %v7280
      %v7403 = vunpack.c.h.b16 %v7280
      %v7404 = vunpack.c.l.b16 %v7281
      %v7405 = vunpack.c.h.b16 %v7281
      %v7406 = vunpack.c.l.b16 %v7282
      %v7407 = vunpack.c.h.b16 %v7282
      %v7408 = vunpack.c.l.b16 %v7283
      %v7409 = vunpack.c.h.b16 %v7283
      %v7410 = vunpack.c.l.b16 %v7284
      %v7411 = vunpack.c.h.b16 %v7284
      %v7412 = vunpack.c.l.b16 %v7285
      %v7413 = vunpack.c.h.b16 %v7285
      %v7414 = vunpack.c.l.b16 %v7286
      %v7415 = vunpack.c.h.b16 %v7286
      %v7416 = vunpack.c.l.b16 %v7287
      %v7417 = vunpack.c.h.b16 %v7287
      %v7418 = vunpack.c.l.b16 %v7288
      %v7419 = vunpack.c.h.b16 %v7288
      %v7420 = vunpack.c.l.b16 %v7289
      %v7421 = vunpack.c.h.b16 %v7289
      %v7422 = vunpack.c.l.b16 %v7290
      %v7423 = vunpack.c.h.b16 %v7290
      %v7424 = vunpack.c.l.b16 %v7291
      %v7425 = vunpack.c.h.b16 %v7291
      %v7426 = vunpack.c.l.b16 %v7292
      %v7427 = vunpack.c.h.b16 %v7292
      %v7428 = vunpack.c.l.b16 %v7293
      %v7429 = vunpack.c.h.b16 %v7293
      %v7430 = vunpack.c.l.b16 %v7294
      %v7431 = vunpack.c.h.b16 %v7294
      %v7432 = vunpack.c.l.b16 %v7295
      %v7433 = vunpack.c.h.b16 %v7295
      %v7434 = vpack.c.b16 %v7372, %v7370
      %v7435 = vpack.c.b16 %v7373, %v7371
      %v7436 = vpack.c.b16 %v7376, %v7374
      %v7437 = vpack.c.b16 %v7377, %v7375
      %v7438 = vpack.c.b16 %v7380, %v7378
      %v7439 = vpack.c.b16 %v7381, %v7379
      %v7440 = vpack.c.b16 %v7384, %v7382
      %v7441 = vpack.c.b16 %v7385, %v7383
      %v7442 = vpack.c.b16 %v7388, %v7386
      %v7443 = vpack.c.b16 %v7389, %v7387
      %v7444 = vpack.c.b16 %v7392, %v7390
      %v7445 = vpack.c.b16 %v7393, %v7391
      %v7446 = vpack.c.b16 %v7396, %v7394
      %v7447 = vpack.c.b16 %v7397, %v7395
      %v7448 = vpack.c.b16 %v7400, %v7398
      %v7449 = vpack.c.b16 %v7401, %v7399
      %v7450 = vpack.c.b16 %v7404, %v7402
      %v7451 = vpack.c.b16 %v7405, %v7403
      %v7452 = vpack.c.b16 %v7408, %v7406
      %v7453 = vpack.c.b16 %v7409, %v7407
      %v7454 = vpack.c.b16 %v7412, %v7410
      %v7455 = vpack.c.b16 %v7413, %v7411
      %v7456 = vpack.c.b16 %v7416, %v7414
      %v7457 = vpack.c.b16 %v7417, %v7415
      %v7458 = vpack.c.b16 %v7420, %v7418
      %v7459 = vpack.c.b16 %v7421, %v7419
      %v7460 = vpack.c.b16 %v7424, %v7422
      %v7461 = vpack.c.b16 %v7425, %v7423
      %v7462 = vpack.c.b16 %v7428, %v7426
      %v7463 = vpack.c.b16 %v7429, %v7427
      %v7464 = vpack.c.b16 %v7432, %v7430
      %v7465 = vpack.c.b16 %v7433, %v7431
      %7498 = vmatprep.subr.bf16.mxu0 %v7435
      %7499 = vmatpush1.bf16.msra.mxu0 %v7434
      %7500 = vmatprep.subr.bf16.mxu0 %v7437
      %7501 = vmatpush1.bf16.msra.mxu0 %v7436
      %7502 = vmatprep.subr.bf16.mxu0 %v7439
      %7503 = vmatpush1.bf16.msra.mxu0 %v7438
      %7504 = vmatprep.subr.bf16.mxu0 %v7441
      %7505 = vmatpush1.bf16.msra.mxu0 %v7440
      %7506 = vmatprep.subr.bf16.mxu0 %v7443
      %7507 = vmatpush1.bf16.msra.mxu0 %v7442
      %7508 = vmatprep.subr.bf16.mxu0 %v7445
      %7509 = vmatpush1.bf16.msra.mxu0 %v7444
      %7510 = vmatprep.subr.bf16.mxu0 %v7447
      %7511 = vmatpush1.bf16.msra.mxu0 %v7446
      %7512 = vmatprep.subr.bf16.mxu0 %v7449
      %7513 = vmatpush1.bf16.msra.mxu0 %v7448
      %7514 = vmatprep.subr.bf16.mxu0 %v7451
      %7515 = vmatpush1.bf16.msra.mxu0 %v7450
      %7516 = vmatprep.subr.bf16.mxu0 %v7453
      %7517 = vmatpush1.bf16.msra.mxu0 %v7452
      %7518 = vmatprep.subr.bf16.mxu0 %v7455
      %7519 = vmatpush1.bf16.msra.mxu0 %v7454
      %7520 = vmatprep.subr.bf16.mxu0 %v7457
      %7521 = vmatpush1.bf16.msra.mxu0 %v7456
      %7522 = vmatprep.subr.bf16.mxu0 %v7459
      %7523 = vmatpush1.bf16.msra.mxu0 %v7458
      %7524 = vmatprep.subr.bf16.mxu0 %v7461
      %7525 = vmatpush1.bf16.msra.mxu0 %v7460
      %7526 = vmatprep.subr.bf16.mxu0 %v7463
      %7527 = vmatpush1.bf16.msra.mxu0 %v7462
      %7528 = vmatprep.subr.bf16.mxu0 %v7465
      %7529 = vmatpush1.bf16.msra.mxu0 %v7464
      %7530 = vmatprep.mubr.bf16.mxu0 %v7305
      %7531 = vmatmul.mubr.bf16.gmra.mrb[0].mxu0 %v7302
      %v7532 = vpop.f32.mrb[0].mxu0
      %v7533 = vadd.f32 0.0, %v7532
      %v7534 = vpop.f32.mrb[0].mxu0
      %v7535 = vadd.f32 0.0, %v7534
      %v7536 = vpop.f32.mrb[0].mxu0
      %v7537 = vadd.f32 0.0, %v7536
      %v7538 = vpop.f32.mrb[0].mxu0
      %v7539 = vadd.f32 0.0, %v7538
      %7540 = vmatprep.mubr.bf16.mxu0 %v7309
      %7541 = vmatmul.mubr.bf16.gmra.mrb[0].mxu0 %v7307
      %v7542 = vpop.f32.mrb[0].mxu0
      %v7543 = vadd.f32 0.0, %v7542
      %v7544 = vpop.f32.mrb[0].mxu0
      %v7545 = vadd.f32 0.0, %v7544
      %v7546 = vpop.f32.mrb[0].mxu0
      %v7547 = vadd.f32 0.0, %v7546
      %v7548 = vpop.f32.mrb[0].mxu0
      %v7549 = vadd.f32 0.0, %v7548
      %7550 = vmatprep.mubr.bf16.mxu0 %v7313
      %7551 = vmatmul.mubr.bf16.gmra.mrb[0].mxu0 %v7311
      %v7552 = vpop.f32.mrb[0].mxu0
      %v7553 = vadd.f32 0.0, %v7552
      %v7554 = vpop.f32.mrb[0].mxu0
      %v7555 = vadd.f32 0.0, %v7554
      %v7556 = vpop.f32.mrb[0].mxu0
      %v7557 = vadd.f32 0.0, %v7556
      %v7558 = vpop.f32.mrb[0].mxu0
      %v7559 = vadd.f32 0.0, %v7558
      %7560 = vmatprep.mubr.bf16.mxu0 %v7317
      %7561 = vmatmul.mubr.bf16.gmra.mrb[0].mxu0 %v7315
      %v7562 = vpop.f32.mrb[0].mxu0
      %v7563 = vadd.f32 0.0, %v7562
      %v7564 = vpop.f32.mrb[0].mxu0
      %v7565 = vadd.f32 0.0, %v7564
      %v7566 = vpop.f32.mrb[0].mxu0
      %v7567 = vadd.f32 0.0, %v7566
      %v7568 = vpop.f32.mrb[0].mxu0
      %v7569 = vadd.f32 0.0, %v7568
      %7570 = vmatprep.mubr.bf16.mxu0 %v7321
      %7571 = vmatmul.mubr.bf16.gmra.mrb[0].mxu0 %v7319
      %v7572 = vpop.f32.mrb[0].mxu0
      %v7573 = vadd.f32 0.0, %v7572
      %v7574 = vpop.f32.mrb[0].mxu0
      %v7575 = vadd.f32 0.0, %v7574
      %v7576 = vpop.f32.mrb[0].mxu0
      %v7577 = vadd.f32 0.0, %v7576
      %v7578 = vpop.f32.mrb[0].mxu0
      %v7579 = vadd.f32 0.0, %v7578
      %7580 = vmatprep.mubr.bf16.mxu0 %v7325
      %7581 = vmatmul.mubr.bf16.gmra.mrb[0].mxu0 %v7323
      %v7582 = vpop.f32.mrb[0].mxu0
      %v7583 = vadd.f32 0.0, %v7582
      %v7584 = vpop.f32.mrb[0].mxu0
      %v7585 = vadd.f32 0.0, %v7584
      %v7586 = vpop.f32.mrb[0].mxu0
      %v7587 = vadd.f32 0.0, %v7586
      %v7588 = vpop.f32.mrb[0].mxu0
      %v7589 = vadd.f32 0.0, %v7588
      %7590 = vdwg.mxu0
      %v7591 = vadd.f32 %v7238, %v7533
      %v7592 = vadd.f32 %v7239, %v7535
      %v7593 = vadd.f32 %v7240, %v7537
      %v7594 = vadd.f32 %v7241, %v7539
      %v7595 = vadd.f32 %v7242, %v7543
      %v7596 = vadd.f32 %v7243, %v7545
      %v7597 = vadd.f32 %v7244, %v7547
      %v7598 = vadd.f32 %v7245, %v7549
      %v7599 = vadd.f32 %v7246, %v7553
      %v7600 = vadd.f32 %v7247, %v7555
      %v7601 = vadd.f32 %v7248, %v7557
      %v7602 = vadd.f32 %v7249, %v7559
      %v7603 = vadd.f32 %v7250, %v7563
      %v7604 = vadd.f32 %v7251, %v7565
      %v7605 = vadd.f32 %v7252, %v7567
      %v7606 = vadd.f32 %v7253, %v7569
      %v7607 = vadd.f32 %v7254, %v7573
      %v7608 = vadd.f32 %v7255, %v7575
      %v7609 = vadd.f32 %v7256, %v7577
      %v7610 = vadd.f32 %v7257, %v7579
      %v7611 = vadd.f32 %v7258, %v7583
      %v7612 = vadd.f32 %v7259, %v7585
      %v7613 = vadd.f32 %v7260, %v7587
      %v7614 = vadd.f32 %v7261, %v7589
      %v7615 = vld [vmem:[#allocation2 + $0x80] sm:$0xfc]
      %v7616 = vld [vmem:[#allocation2 + $0x88] sm:$0xfc]
      %v7617 = vld [vmem:[#allocation2 + $0x90] sm:$0xff]
      %v7618 = vld [vmem:[#allocation2 + $0x98] sm:$0xff]
      %v7619 = vld [vmem:[#allocation2 + $0xa0] sm:$0xff]
      %v7620 = vld [vmem:[#allocation2 + $0xa8] sm:$0xff]
      %v7621 = vld [vmem:[#allocation2 + $0xb0] sm:$0xff]
      %v7622 = vld [vmem:[#allocation2 + $0xb8] sm:$0xff]
      %v7623 = vld [vmem:[#allocation2 + $0xc0] sm:$0xff]
      %v7624 = vld [vmem:[#allocation2 + $0xc8] sm:$0xff]
      %v7625 = vld [vmem:[#allocation2 + $0xd0] sm:$0xff]
      %v7626 = vld [vmem:[#allocation2 + $0xd8] sm:$0xff]
      %v7627 = vld [vmem:[#allocation2 + $0xe0] sm:$0x3]
      %v7628 = vld [vmem:[#allocation2 + $0xe8] sm:$0x3]
      %v7629 = vld [vmem:[%s3910] sm:$0xff]
      %v7630 = vld [vmem:[%s3910 + $0x8] sm:$0xff]
      %v7631 = vld [vmem:[%s3910 + $0x10] sm:$0xff]
      %v7632 = vld [vmem:[%s3910 + $0x18] sm:$0xff]
      %v7633 = vld [vmem:[%s3910 + $0x20] sm:$0xff]
      %v7634 = vld [vmem:[%s3910 + $0x28] sm:$0xff]
      %v7635 = vld [vmem:[%s3910 + $0x30] sm:$0xff]
      %v7636 = vld [vmem:[%s3910 + $0x38] sm:$0xff]
      %v7637 = vld [vmem:[%s3910 + $0x40] sm:$0xff]
      %v7638 = vld [vmem:[%s3910 + $0x48] sm:$0xff]
      %v7639 = vld [vmem:[%s3910 + $0x50] sm:$0xff]
      %v7640 = vld [vmem:[%s3910 + $0x58] sm:$0xff]
      %v7641 = vld [vmem:[%s3910 + $0x60] sm:$0xff]
      %v7642 = vld [vmem:[%s3910 + $0x68] sm:$0xff]
      %v7643 = vld [vmem:[%s3910 + $0x70] sm:$0xff]
      %v7644 = vld [vmem:[%s3910 + $0x78] sm:$0xff]
      %v7645 = vld [vmem:[%s3910 + $0x80] sm:$0xff]
      %v7646 = vld [vmem:[%s3910 + $0x88] sm:$0xff]
      %v7647 = vld [vmem:[%s3910 + $0x90] sm:$0xff]
      %v7648 = vld [vmem:[%s3910 + $0x98] sm:$0xff]
      %v7649 = vld [vmem:[%s3910 + $0xa0] sm:$0xff]
      %v7650 = vld [vmem:[%s3910 + $0xa8] sm:$0xff]
      %v7651 = vld [vmem:[%s3910 + $0xb0] sm:$0xff]
      %v7652 = vld [vmem:[%s3910 + $0xb8] sm:$0xff]
      %v7653 = vld [vmem:[%s3910 + $0xc0] sm:$0xff]
      %v7654 = vld [vmem:[%s3910 + $0xc8] sm:$0xff]
      %v7655 = vld [vmem:[%s3910 + $0xd0] sm:$0xff]
      %v7656 = vld [vmem:[%s3910 + $0xd8] sm:$0xff]
      %v7657 = vld [vmem:[%s3910 + $0xe0] sm:$0xff]
      %v7658 = vld [vmem:[%s3910 + $0xe8] sm:$0xff]
      %v7659 = vld [vmem:[%s3910 + $0xf0] sm:$0xff]
      %v7660 = vld [vmem:[%s3910 + $0xf8] sm:$0xff]
      %v7675 = vrot.slane %v7615, 2
      %v7676 = vrot.slane %v7617, 2
      %v7677 = vsel %vm3580, %v7675, %v7676
      %v7678 = vrot.slane %v7616, 2
      %v7679 = vrot.slane %v7618, 2
      %v7680 = vsel %vm3580, %v7678, %v7679
      %v7681 = vrot.slane %v7619, 2
      %v7682 = vsel %vm3580, %v7676, %v7681
      %v7683 = vrot.slane %v7620, 2
      %v7684 = vsel %vm3580, %v7679, %v7683
      %v7685 = vrot.slane %v7621, 2
      %v7686 = vsel %vm3580, %v7681, %v7685
      %v7687 = vrot.slane %v7622, 2
      %v7688 = vsel %vm3580, %v7683, %v7687
      %v7689 = vrot.slane %v7623, 2
      %v7690 = vsel %vm3580, %v7685, %v7689
      %v7691 = vrot.slane %v7624, 2
      %v7692 = vsel %vm3580, %v7687, %v7691
      %v7693 = vrot.slane %v7625, 2
      %v7694 = vsel %vm3580, %v7689, %v7693
      %v7695 = vrot.slane %v7626, 2
      %v7696 = vsel %vm3580, %v7691, %v7695
      %v7697 = vrot.slane %v7627, 2
      %v7698 = vsel %vm3580, %v7693, %v7697
      %v7699 = vrot.slane %v7628, 2
      %v7700 = vsel %vm3580, %v7695, %v7699
      %v7745 = vunpack.c.l.b16 %v7629
      %v7746 = vunpack.c.h.b16 %v7629
      %v7747 = vunpack.c.l.b16 %v7630
      %v7748 = vunpack.c.h.b16 %v7630
      %v7749 = vunpack.c.l.b16 %v7631
      %v7750 = vunpack.c.h.b16 %v7631
      %v7751 = vunpack.c.l.b16 %v7632
      %v7752 = vunpack.c.h.b16 %v7632
      %v7753 = vunpack.c.l.b16 %v7633
      %v7754 = vunpack.c.h.b16 %v7633
      %v7755 = vunpack.c.l.b16 %v7634
      %v7756 = vunpack.c.h.b16 %v7634
      %v7757 = vunpack.c.l.b16 %v7635
      %v7758 = vunpack.c.h.b16 %v7635
      %v7759 = vunpack.c.l.b16 %v7636
      %v7760 = vunpack.c.h.b16 %v7636
      %v7761 = vunpack.c.l.b16 %v7637
      %v7762 = vunpack.c.h.b16 %v7637
      %v7763 = vunpack.c.l.b16 %v7638
      %v7764 = vunpack.c.h.b16 %v7638
      %v7765 = vunpack.c.l.b16 %v7639
      %v7766 = vunpack.c.h.b16 %v7639
      %v7767 = vunpack.c.l.b16 %v7640
      %v7768 = vunpack.c.h.b16 %v7640
      %v7769 = vunpack.c.l.b16 %v7641
      %v7770 = vunpack.c.h.b16 %v7641
      %v7771 = vunpack.c.l.b16 %v7642
      %v7772 = vunpack.c.h.b16 %v7642
      %v7773 = vunpack.c.l.b16 %v7643
      %v7774 = vunpack.c.h.b16 %v7643
      %v7775 = vunpack.c.l.b16 %v7644
      %v7776 = vunpack.c.h.b16 %v7644
      %v7777 = vunpack.c.l.b16 %v7645
      %v7778 = vunpack.c.h.b16 %v7645
      %v7779 = vunpack.c.l.b16 %v7646
      %v7780 = vunpack.c.h.b16 %v7646
      %v7781 = vunpack.c.l.b16 %v7647
      %v7782 = vunpack.c.h.b16 %v7647
      %v7783 = vunpack.c.l.b16 %v7648
      %v7784 = vunpack.c.h.b16 %v7648
      %v7785 = vunpack.c.l.b16 %v7649
      %v7786 = vunpack.c.h.b16 %v7649
      %v7787 = vunpack.c.l.b16 %v7650
      %v7788 = vunpack.c.h.b16 %v7650
      %v7789 = vunpack.c.l.b16 %v7651
      %v7790 = vunpack.c.h.b16 %v7651
      %v7791 = vunpack.c.l.b16 %v7652
      %v7792 = vunpack.c.h.b16 %v7652
      %v7793 = vunpack.c.l.b16 %v7653
      %v7794 = vunpack.c.h.b16 %v7653
      %v7795 = vunpack.c.l.b16 %v7654
      %v7796 = vunpack.c.h.b16 %v7654
      %v7797 = vunpack.c.l.b16 %v7655
      %v7798 = vunpack.c.h.b16 %v7655
      %v7799 = vunpack.c.l.b16 %v7656
      %v7800 = vunpack.c.h.b16 %v7656
      %v7801 = vunpack.c.l.b16 %v7657
      %v7802 = vunpack.c.h.b16 %v7657
      %v7803 = vunpack.c.l.b16 %v7658
      %v7804 = vunpack.c.h.b16 %v7658
      %v7805 = vunpack.c.l.b16 %v7659
      %v7806 = vunpack.c.h.b16 %v7659
      %v7807 = vunpack.c.l.b16 %v7660
      %v7808 = vunpack.c.h.b16 %v7660
      %v7809 = vpack.c.b16 %v7747, %v7745
      %v7810 = vpack.c.b16 %v7748, %v7746
      %v7811 = vpack.c.b16 %v7751, %v7749
      %v7812 = vpack.c.b16 %v7752, %v7750
      %v7813 = vpack.c.b16 %v7755, %v7753
      %v7814 = vpack.c.b16 %v7756, %v7754
      %v7815 = vpack.c.b16 %v7759, %v7757
      %v7816 = vpack.c.b16 %v7760, %v7758
      %v7817 = vpack.c.b16 %v7763, %v7761
      %v7818 = vpack.c.b16 %v7764, %v7762
      %v7819 = vpack.c.b16 %v7767, %v7765
      %v7820 = vpack.c.b16 %v7768, %v7766
      %v7821 = vpack.c.b16 %v7771, %v7769
      %v7822 = vpack.c.b16 %v7772, %v7770
      %v7823 = vpack.c.b16 %v7775, %v7773
      %v7824 = vpack.c.b16 %v7776, %v7774
      %v7825 = vpack.c.b16 %v7779, %v7777
      %v7826 = vpack.c.b16 %v7780, %v7778
      %v7827 = vpack.c.b16 %v7783, %v7781
      %v7828 = vpack.c.b16 %v7784, %v7782
      %v7829 = vpack.c.b16 %v7787, %v7785
      %v7830 = vpack.c.b16 %v7788, %v7786
      %v7831 = vpack.c.b16 %v7791, %v7789
      %v7832 = vpack.c.b16 %v7792, %v7790
      %v7833 = vpack.c.b16 %v7795, %v7793
      %v7834 = vpack.c.b16 %v7796, %v7794
      %v7835 = vpack.c.b16 %v7799, %v7797
      %v7836 = vpack.c.b16 %v7800, %v7798
      %v7837 = vpack.c.b16 %v7803, %v7801
      %v7838 = vpack.c.b16 %v7804, %v7802
      %v7839 = vpack.c.b16 %v7807, %v7805
      %v7840 = vpack.c.b16 %v7808, %v7806
      %7873 = vmatprep.subr.bf16.mxu0 %v7810
      %7874 = vmatpush1.bf16.msra.mxu0 %v7809
      %7875 = vmatprep.subr.bf16.mxu0 %v7812
      %7876 = vmatpush1.bf16.msra.mxu0 %v7811
      %7877 = vmatprep.subr.bf16.mxu0 %v7814
      %7878 = vmatpush1.bf16.msra.mxu0 %v7813
      %7879 = vmatprep.subr.bf16.mxu0 %v7816
      %7880 = vmatpush1.bf16.msra.mxu0 %v7815
      %7881 = vmatprep.subr.bf16.mxu0 %v7818
      %7882 = vmatpush1.bf16.msra.mxu0 %v7817
      %7883 = vmatprep.subr.bf16.mxu0 %v7820
      %7884 = vmatpush1.bf16.msra.mxu0 %v7819
      %7885 = vmatprep.subr.bf16.mxu0 %v7822
      %7886 = vmatpush1.bf16.msra.mxu0 %v7821
      %7887 = vmatprep.subr.bf16.mxu0 %v7824
      %7888 = vmatpush1.bf16.msra.mxu0 %v7823
      %7889 = vmatprep.subr.bf16.mxu0 %v7826
      %7890 = vmatpush1.bf16.msra.mxu0 %v7825
      %7891 = vmatprep.subr.bf16.mxu0 %v7828
      %7892 = vmatpush1.bf16.msra.mxu0 %v7827
      %7893 = vmatprep.subr.bf16.mxu0 %v7830
      %7894 = vmatpush1.bf16.msra.mxu0 %v7829
      %7895 = vmatprep.subr.bf16.mxu0 %v7832
      %7896 = vmatpush1.bf16.msra.mxu0 %v7831
      %7897 = vmatprep.subr.bf16.mxu0 %v7834
      %7898 = vmatpush1.bf16.msra.mxu0 %v7833
      %7899 = vmatprep.subr.bf16.mxu0 %v7836
      %7900 = vmatpush1.bf16.msra.mxu0 %v7835
      %7901 = vmatprep.subr.bf16.mxu0 %v7838
      %7902 = vmatpush1.bf16.msra.mxu0 %v7837
      %7903 = vmatprep.subr.bf16.mxu0 %v7840
      %7904 = vmatpush1.bf16.msra.mxu0 %v7839
      %7905 = vmatprep.mubr.bf16.mxu0 %v7680
      %7906 = vmatmul.mubr.bf16.gmra.mrb[0].mxu0 %v7677
      %v7907 = vpop.f32.mrb[0].mxu0
      %v7908 = vadd.f32 0.0, %v7907
      %v7909 = vpop.f32.mrb[0].mxu0
      %v7910 = vadd.f32 0.0, %v7909
      %v7911 = vpop.f32.mrb[0].mxu0
      %v7912 = vadd.f32 0.0, %v7911
      %v7913 = vpop.f32.mrb[0].mxu0
      %v7914 = vadd.f32 0.0, %v7913
      %7915 = vmatprep.mubr.bf16.mxu0 %v7684
      %7916 = vmatmul.mubr.bf16.gmra.mrb[0].mxu0 %v7682
      %v7917 = vpop.f32.mrb[0].mxu0
      %v7918 = vadd.f32 0.0, %v7917
      %v7919 = vpop.f32.mrb[0].mxu0
      %v7920 = vadd.f32 0.0, %v7919
      %v7921 = vpop.f32.mrb[0].mxu0
      %v7922 = vadd.f32 0.0, %v7921
      %v7923 = vpop.f32.mrb[0].mxu0
      %v7924 = vadd.f32 0.0, %v7923
      %7925 = vmatprep.mubr.bf16.mxu0 %v7688
      %7926 = vmatmul.mubr.bf16.gmra.mrb[0].mxu0 %v7686
      %v7927 = vpop.f32.mrb[0].mxu0
      %v7928 = vadd.f32 0.0, %v7927
      %v7929 = vpop.f32.mrb[0].mxu0
      %v7930 = vadd.f32 0.0, %v7929
      %v7931 = vpop.f32.mrb[0].mxu0
      %v7932 = vadd.f32 0.0, %v7931
      %v7933 = vpop.f32.mrb[0].mxu0
      %v7934 = vadd.f32 0.0, %v7933
      %7935 = vmatprep.mubr.bf16.mxu0 %v7692
      %7936 = vmatmul.mubr.bf16.gmra.mrb[0].mxu0 %v7690
      %v7937 = vpop.f32.mrb[0].mxu0
      %v7938 = vadd.f32 0.0, %v7937
      %v7939 = vpop.f32.mrb[0].mxu0
      %v7940 = vadd.f32 0.0, %v7939
      %v7941 = vpop.f32.mrb[0].mxu0
      %v7942 = vadd.f32 0.0, %v7941
      %v7943 = vpop.f32.mrb[0].mxu0
      %v7944 = vadd.f32 0.0, %v7943
      %7945 = vmatprep.mubr.bf16.mxu0 %v7696
      %7946 = vmatmul.mubr.bf16.gmra.mrb[0].mxu0 %v7694
      %v7947 = vpop.f32.mrb[0].mxu0
      %v7948 = vadd.f32 0.0, %v7947
      %v7949 = vpop.f32.mrb[0].mxu0
      %v7950 = vadd.f32 0.0, %v7949
      %v7951 = vpop.f32.mrb[0].mxu0
      %v7952 = vadd.f32 0.0, %v7951
      %v7953 = vpop.f32.mrb[0].mxu0
      %v7954 = vadd.f32 0.0, %v7953
      %7955 = vmatprep.mubr.bf16.mxu0 %v7700
      %7956 = vmatmul.mubr.bf16.gmra.mrb[0].mxu0 %v7698
      %v7957 = vpop.f32.mrb[0].mxu0
      %v7958 = vadd.f32 0.0, %v7957
      %v7959 = vpop.f32.mrb[0].mxu0
      %v7960 = vadd.f32 0.0, %v7959
      %v7961 = vpop.f32.mrb[0].mxu0
      %v7962 = vadd.f32 0.0, %v7961
      %v7963 = vpop.f32.mrb[0].mxu0
      %v7964 = vadd.f32 0.0, %v7963
      %7965 = vdwg.mxu0
      %v7966 = vadd.f32 %v7591, %v7908
      %v7967 = vadd.f32 %v7592, %v7910
      %v7968 = vadd.f32 %v7593, %v7912
      %v7969 = vadd.f32 %v7594, %v7914
      %v7970 = vadd.f32 %v7595, %v7918
      %v7971 = vadd.f32 %v7596, %v7920
      %v7972 = vadd.f32 %v7597, %v7922
      %v7973 = vadd.f32 %v7598, %v7924
      %v7974 = vadd.f32 %v7599, %v7928
      %v7975 = vadd.f32 %v7600, %v7930
      %v7976 = vadd.f32 %v7601, %v7932
      %v7977 = vadd.f32 %v7602, %v7934
      %v7978 = vadd.f32 %v7603, %v7938
      %v7979 = vadd.f32 %v7604, %v7940
      %v7980 = vadd.f32 %v7605, %v7942
      %v7981 = vadd.f32 %v7606, %v7944
      %v7982 = vadd.f32 %v7607, %v7948
      %v7983 = vadd.f32 %v7608, %v7950
      %v7984 = vadd.f32 %v7609, %v7952
      %v7985 = vadd.f32 %v7610, %v7954
      %v7986 = vadd.f32 %v7611, %v7958
      %v7987 = vadd.f32 %v7612, %v7960
      %v7988 = vadd.f32 %v7613, %v7962
      %v7989 = vadd.f32 %v7614, %v7964
      %v7990 = vld [vmem:[#allocation2 + $0xe0] sm:$0x7]
      %v7991 = vld [vmem:[#allocation2 + $0xe8] sm:$0x7]
      %v7992 = vld [vmem:[%s4274] sm:$0xff]
      %v7993 = vld [vmem:[%s4274 + $0x8] sm:$0xff]
      %v7994 = vld [vmem:[%s4274 + $0x10] sm:$0xff]
      %v7995 = vld [vmem:[%s4274 + $0x18] sm:$0xff]
      %v7996 = vld [vmem:[%s4274 + $0x20] sm:$0xff]
      %v7997 = vld [vmem:[%s4274 + $0x28] sm:$0xff]
      %v7998 = vld [vmem:[%s4274 + $0x30] sm:$0xff]
      %v7999 = vld [vmem:[%s4274 + $0x38] sm:$0xff]
      %v8000 = vld [vmem:[%s4274 + $0x40] sm:$0xff]
      %v8001 = vld [vmem:[%s4274 + $0x48] sm:$0xff]
      %v8002 = vld [vmem:[%s4274 + $0x50] sm:$0xff]
      %v8003 = vld [vmem:[%s4274 + $0x58] sm:$0xff]
      %v8004 = vld [vmem:[%s4274 + $0x60] sm:$0xff]
      %v8005 = vld [vmem:[%s4274 + $0x68] sm:$0xff]
      %v8006 = vld [vmem:[%s4274 + $0x70] sm:$0xff]
      %v8007 = vld [vmem:[%s4274 + $0x78] sm:$0xff]
      %v8008 = vld [vmem:[%s4274 + $0x80] sm:$0xff]
      %v8009 = vld [vmem:[%s4274 + $0x88] sm:$0xff]
      %v8010 = vld [vmem:[%s4274 + $0x90] sm:$0xff]
      %v8011 = vld [vmem:[%s4274 + $0x98] sm:$0xff]
      %v8012 = vld [vmem:[%s4274 + $0xa0] sm:$0xff]
      %v8013 = vld [vmem:[%s4274 + $0xa8] sm:$0xff]
      %v8014 = vld [vmem:[%s4274 + $0xb0] sm:$0xff]
      %v8015 = vld [vmem:[%s4274 + $0xb8] sm:$0xff]
      %v8016 = vld [vmem:[%s4274 + $0xc0] sm:$0xff]
      %v8017 = vld [vmem:[%s4274 + $0xc8] sm:$0xff]
      %v8018 = vld [vmem:[%s4274 + $0xd0] sm:$0xff]
      %v8019 = vld [vmem:[%s4274 + $0xd8] sm:$0xff]
      %v8020 = vld [vmem:[%s4274 + $0xe0] sm:$0xff]
      %v8021 = vld [vmem:[%s4274 + $0xe8] sm:$0xff]
      %v8022 = vld [vmem:[%s4274 + $0xf0] sm:$0xff]
      %v8023 = vld [vmem:[%s4274 + $0xf8] sm:$0xff]
      %v8025 = vshrl.u32 %v7615, 16
      %v8027 = vrot.slane %v8025, 2
      %v8028 = vshll.u32 %v7615, 16
      %v8030 = vrot.slane %v8028, 3
      %v8031 = vor.u32 %v8027, %v8030
      %v8033 = vshrl.u32 %v7617, 16
      %v8035 = vrot.slane %v8033, 2
      %v8036 = vshll.u32 %v7617, 16
      %v8038 = vrot.slane %v8036, 3
      %v8039 = vor.u32 %v8035, %v8038
      %v8040 = vsel %vm4307, %v8031, %v8039
      %v8042 = vshrl.u32 %v7616, 16
      %v8044 = vrot.slane %v8042, 2
      %v8045 = vshll.u32 %v7616, 16
      %v8047 = vrot.slane %v8045, 3
      %v8048 = vor.u32 %v8044, %v8047
      %v8050 = vshrl.u32 %v7618, 16
      %v8052 = vrot.slane %v8050, 2
      %v8053 = vshll.u32 %v7618, 16
      %v8055 = vrot.slane %v8053, 3
      %v8056 = vor.u32 %v8052, %v8055
      %v8057 = vsel %vm4307, %v8048, %v8056
      %v8059 = vshrl.u32 %v7619, 16
      %v8061 = vrot.slane %v8059, 2
      %v8062 = vshll.u32 %v7619, 16
      %v8064 = vrot.slane %v8062, 3
      %v8065 = vor.u32 %v8061, %v8064
      %v8066 = vsel %vm4307, %v8039, %v8065
      %v8068 = vshrl.u32 %v7620, 16
      %v8070 = vrot.slane %v8068, 2
      %v8071 = vshll.u32 %v7620, 16
      %v8073 = vrot.slane %v8071, 3
      %v8074 = vor.u32 %v8070, %v8073
      %v8075 = vsel %vm4307, %v8056, %v8074
      %v8077 = vshrl.u32 %v7621, 16
      %v8079 = vrot.slane %v8077, 2
      %v8080 = vshll.u32 %v7621, 16
      %v8082 = vrot.slane %v8080, 3
      %v8083 = vor.u32 %v8079, %v8082
      %v8084 = vsel %vm4307, %v8065, %v8083
      %v8086 = vshrl.u32 %v7622, 16
      %v8088 = vrot.slane %v8086, 2
      %v8089 = vshll.u32 %v7622, 16
      %v8091 = vrot.slane %v8089, 3
      %v8092 = vor.u32 %v8088, %v8091
      %v8093 = vsel %vm4307, %v8074, %v8092
      %v8095 = vshrl.u32 %v7623, 16
      %v8097 = vrot.slane %v8095, 2
      %v8098 = vshll.u32 %v7623, 16
      %v8100 = vrot.slane %v8098, 3
      %v8101 = vor.u32 %v8097, %v8100
      %v8102 = vsel %vm4307, %v8083, %v8101
      %v8104 = vshrl.u32 %v7624, 16
      %v8106 = vrot.slane %v8104, 2
      %v8107 = vshll.u32 %v7624, 16
      %v8109 = vrot.slane %v8107, 3
      %v8110 = vor.u32 %v8106, %v8109
      %v8111 = vsel %vm4307, %v8092, %v8110
      %v8113 = vshrl.u32 %v7625, 16
      %v8115 = vrot.slane %v8113, 2
      %v8116 = vshll.u32 %v7625, 16
      %v8118 = vrot.slane %v8116, 3
      %v8119 = vor.u32 %v8115, %v8118
      %v8120 = vsel %vm4307, %v8101, %v8119
      %v8122 = vshrl.u32 %v7626, 16
      %v8124 = vrot.slane %v8122, 2
      %v8125 = vshll.u32 %v7626, 16
      %v8127 = vrot.slane %v8125, 3
      %v8128 = vor.u32 %v8124, %v8127
      %v8129 = vsel %vm4307, %v8110, %v8128
      %v8131 = vshrl.u32 %v7990, 16
      %v8133 = vrot.slane %v8131, 2
      %v8134 = vshll.u32 %v7990, 16
      %v8136 = vrot.slane %v8134, 3
      %v8137 = vor.u32 %v8133, %v8136
      %v8138 = vsel %vm4307, %v8119, %v8137
      %v8140 = vshrl.u32 %v7991, 16
      %v8142 = vrot.slane %v8140, 2
      %v8143 = vshll.u32 %v7991, 16
      %v8145 = vrot.slane %v8143, 3
      %v8146 = vor.u32 %v8142, %v8145
      %v8147 = vsel %vm4307, %v8128, %v8146
      %v8192 = vunpack.c.l.b16 %v7992
      %v8193 = vunpack.c.h.b16 %v7992
      %v8194 = vunpack.c.l.b16 %v7993
      %v8195 = vunpack.c.h.b16 %v7993
      %v8196 = vunpack.c.l.b16 %v7994
      %v8197 = vunpack.c.h.b16 %v7994
      %v8198 = vunpack.c.l.b16 %v7995
      %v8199 = vunpack.c.h.b16 %v7995
      %v8200 = vunpack.c.l.b16 %v7996
      %v8201 = vunpack.c.h.b16 %v7996
      %v8202 = vunpack.c.l.b16 %v7997
      %v8203 = vunpack.c.h.b16 %v7997
      %v8204 = vunpack.c.l.b16 %v7998
      %v8205 = vunpack.c.h.b16 %v7998
      %v8206 = vunpack.c.l.b16 %v7999
      %v8207 = vunpack.c.h.b16 %v7999
      %v8208 = vunpack.c.l.b16 %v8000
      %v8209 = vunpack.c.h.b16 %v8000
      %v8210 = vunpack.c.l.b16 %v8001
      %v8211 = vunpack.c.h.b16 %v8001
      %v8212 = vunpack.c.l.b16 %v8002
      %v8213 = vunpack.c.h.b16 %v8002
      %v8214 = vunpack.c.l.b16 %v8003
      %v8215 = vunpack.c.h.b16 %v8003
      %v8216 = vunpack.c.l.b16 %v8004
      %v8217 = vunpack.c.h.b16 %v8004
      %v8218 = vunpack.c.l.b16 %v8005
      %v8219 = vunpack.c.h.b16 %v8005
      %v8220 = vunpack.c.l.b16 %v8006
      %v8221 = vunpack.c.h.b16 %v8006
      %v8222 = vunpack.c.l.b16 %v8007
      %v8223 = vunpack.c.h.b16 %v8007
      %v8224 = vunpack.c.l.b16 %v8008
      %v8225 = vunpack.c.h.b16 %v8008
      %v8226 = vunpack.c.l.b16 %v8009
      %v8227 = vunpack.c.h.b16 %v8009
      %v8228 = vunpack.c.l.b16 %v8010
      %v8229 = vunpack.c.h.b16 %v8010
      %v8230 = vunpack.c.l.b16 %v8011
      %v8231 = vunpack.c.h.b16 %v8011
      %v8232 = vunpack.c.l.b16 %v8012
      %v8233 = vunpack.c.h.b16 %v8012
      %v8234 = vunpack.c.l.b16 %v8013
      %v8235 = vunpack.c.h.b16 %v8013
      %v8236 = vunpack.c.l.b16 %v8014
      %v8237 = vunpack.c.h.b16 %v8014
      %v8238 = vunpack.c.l.b16 %v8015
      %v8239 = vunpack.c.h.b16 %v8015
      %v8240 = vunpack.c.l.b16 %v8016
      %v8241 = vunpack.c.h.b16 %v8016
      %v8242 = vunpack.c.l.b16 %v8017
      %v8243 = vunpack.c.h.b16 %v8017
      %v8244 = vunpack.c.l.b16 %v8018
      %v8245 = vunpack.c.h.b16 %v8018
      %v8246 = vunpack.c.l.b16 %v8019
      %v8247 = vunpack.c.h.b16 %v8019
      %v8248 = vunpack.c.l.b16 %v8020
      %v8249 = vunpack.c.h.b16 %v8020
      %v8250 = vunpack.c.l.b16 %v8021
      %v8251 = vunpack.c.h.b16 %v8021
      %v8252 = vunpack.c.l.b16 %v8022
      %v8253 = vunpack.c.h.b16 %v8022
      %v8254 = vunpack.c.l.b16 %v8023
      %v8255 = vunpack.c.h.b16 %v8023
      %v8256 = vpack.c.b16 %v8194, %v8192
      %v8257 = vpack.c.b16 %v8195, %v8193
      %v8258 = vpack.c.b16 %v8198, %v8196
      %v8259 = vpack.c.b16 %v8199, %v8197
      %v8260 = vpack.c.b16 %v8202, %v8200
      %v8261 = vpack.c.b16 %v8203, %v8201
      %v8262 = vpack.c.b16 %v8206, %v8204
      %v8263 = vpack.c.b16 %v8207, %v8205
      %v8264 = vpack.c.b16 %v8210, %v8208
      %v8265 = vpack.c.b16 %v8211, %v8209
      %v8266 = vpack.c.b16 %v8214, %v8212
      %v8267 = vpack.c.b16 %v8215, %v8213
      %v8268 = vpack.c.b16 %v8218, %v8216
      %v8269 = vpack.c.b16 %v8219, %v8217
      %v8270 = vpack.c.b16 %v8222, %v8220
      %v8271 = vpack.c.b16 %v8223, %v8221
      %v8272 = vpack.c.b16 %v8226, %v8224
      %v8273 = vpack.c.b16 %v8227, %v8225
      %v8274 = vpack.c.b16 %v8230, %v8228
      %v8275 = vpack.c.b16 %v8231, %v8229
      %v8276 = vpack.c.b16 %v8234, %v8232
      %v8277 = vpack.c.b16 %v8235, %v8233
      %v8278 = vpack.c.b16 %v8238, %v8236
      %v8279 = vpack.c.b16 %v8239, %v8237
      %v8280 = vpack.c.b16 %v8242, %v8240
      %v8281 = vpack.c.b16 %v8243, %v8241
      %v8282 = vpack.c.b16 %v8246, %v8244
      %v8283 = vpack.c.b16 %v8247, %v8245
      %v8284 = vpack.c.b16 %v8250, %v8248
      %v8285 = vpack.c.b16 %v8251, %v8249
      %v8286 = vpack.c.b16 %v8254, %v8252
      %v8287 = vpack.c.b16 %v8255, %v8253
      %8320 = vmatprep.subr.bf16.mxu0 %v8257
      %8321 = vmatpush1.bf16.msra.mxu0 %v8256
      %8322 = vmatprep.subr.bf16.mxu0 %v8259
      %8323 = vmatpush1.bf16.msra.mxu0 %v8258
      %8324 = vmatprep.subr.bf16.mxu0 %v8261
      %8325 = vmatpush1.bf16.msra.mxu0 %v8260
      %8326 = vmatprep.subr.bf16.mxu0 %v8263
      %8327 = vmatpush1.bf16.msra.mxu0 %v8262
      %8328 = vmatprep.subr.bf16.mxu0 %v8265
      %8329 = vmatpush1.bf16.msra.mxu0 %v8264
      %8330 = vmatprep.subr.bf16.mxu0 %v8267
      %8331 = vmatpush1.bf16.msra.mxu0 %v8266
      %8332 = vmatprep.subr.bf16.mxu0 %v8269
      %8333 = vmatpush1.bf16.msra.mxu0 %v8268
      %8334 = vmatprep.subr.bf16.mxu0 %v8271
      %8335 = vmatpush1.bf16.msra.mxu0 %v8270
      %8336 = vmatprep.subr.bf16.mxu0 %v8273
      %8337 = vmatpush1.bf16.msra.mxu0 %v8272
      %8338 = vmatprep.subr.bf16.mxu0 %v8275
      %8339 = vmatpush1.bf16.msra.mxu0 %v8274
      %8340 = vmatprep.subr.bf16.mxu0 %v8277
      %8341 = vmatpush1.bf16.msra.mxu0 %v8276
      %8342 = vmatprep.subr.bf16.mxu0 %v8279
      %8343 = vmatpush1.bf16.msra.mxu0 %v8278
      %8344 = vmatprep.subr.bf16.mxu0 %v8281
      %8345 = vmatpush1.bf16.msra.mxu0 %v8280
      %8346 = vmatprep.subr.bf16.mxu0 %v8283
      %8347 = vmatpush1.bf16.msra.mxu0 %v8282
      %8348 = vmatprep.subr.bf16.mxu0 %v8285
      %8349 = vmatpush1.bf16.msra.mxu0 %v8284
      %8350 = vmatprep.subr.bf16.mxu0 %v8287
      %8351 = vmatpush1.bf16.msra.mxu0 %v8286
      %8352 = vmatprep.mubr.bf16.mxu0 %v8057
      %8353 = vmatmul.mubr.bf16.gmra.mrb[0].mxu0 %v8040
      %v8354 = vpop.f32.mrb[0].mxu0
      %v8355 = vadd.f32 0.0, %v8354
      %v8356 = vpop.f32.mrb[0].mxu0
      %v8357 = vadd.f32 0.0, %v8356
      %v8358 = vpop.f32.mrb[0].mxu0
      %v8359 = vadd.f32 0.0, %v8358
      %v8360 = vpop.f32.mrb[0].mxu0
      %v8361 = vadd.f32 0.0, %v8360
      %8362 = vmatprep.mubr.bf16.mxu0 %v8075
      %8363 = vmatmul.mubr.bf16.gmra.mrb[0].mxu0 %v8066
      %v8364 = vpop.f32.mrb[0].mxu0
      %v8365 = vadd.f32 0.0, %v8364
      %v8366 = vpop.f32.mrb[0].mxu0
      %v8367 = vadd.f32 0.0, %v8366
      %v8368 = vpop.f32.mrb[0].mxu0
      %v8369 = vadd.f32 0.0, %v8368
      %v8370 = vpop.f32.mrb[0].mxu0
      %v8371 = vadd.f32 0.0, %v8370
      %8372 = vmatprep.mubr.bf16.mxu0 %v8093
      %8373 = vmatmul.mubr.bf16.gmra.mrb[0].mxu0 %v8084
      %v8374 = vpop.f32.mrb[0].mxu0
      %v8375 = vadd.f32 0.0, %v8374
      %v8376 = vpop.f32.mrb[0].mxu0
      %v8377 = vadd.f32 0.0, %v8376
      %v8378 = vpop.f32.mrb[0].mxu0
      %v8379 = vadd.f32 0.0, %v8378
      %v8380 = vpop.f32.mrb[0].mxu0
      %v8381 = vadd.f32 0.0, %v8380
      %8382 = vmatprep.mubr.bf16.mxu0 %v8111
      %8383 = vmatmul.mubr.bf16.gmra.mrb[0].mxu0 %v8102
      %v8384 = vpop.f32.mrb[0].mxu0
      %v8385 = vadd.f32 0.0, %v8384
      %v8386 = vpop.f32.mrb[0].mxu0
      %v8387 = vadd.f32 0.0, %v8386
      %v8388 = vpop.f32.mrb[0].mxu0
      %v8389 = vadd.f32 0.0, %v8388
      %v8390 = vpop.f32.mrb[0].mxu0
      %v8391 = vadd.f32 0.0, %v8390
      %8392 = vmatprep.mubr.bf16.mxu0 %v8129
      %8393 = vmatmul.mubr.bf16.gmra.mrb[0].mxu0 %v8120
      %v8394 = vpop.f32.mrb[0].mxu0
      %v8395 = vadd.f32 0.0, %v8394
      %v8396 = vpop.f32.mrb[0].mxu0
      %v8397 = vadd.f32 0.0, %v8396
      %v8398 = vpop.f32.mrb[0].mxu0
      %v8399 = vadd.f32 0.0, %v8398
      %v8400 = vpop.f32.mrb[0].mxu0
      %v8401 = vadd.f32 0.0, %v8400
      %8402 = vmatprep.mubr.bf16.mxu0 %v8147
      %8403 = vmatmul.mubr.bf16.gmra.mrb[0].mxu0 %v8138
      %v8404 = vpop.f32.mrb[0].mxu0
      %v8405 = vadd.f32 0.0, %v8404
      %v8406 = vpop.f32.mrb[0].mxu0
      %v8407 = vadd.f32 0.0, %v8406
      %v8408 = vpop.f32.mrb[0].mxu0
      %v8409 = vadd.f32 0.0, %v8408
      %v8410 = vpop.f32.mrb[0].mxu0
      %v8411 = vadd.f32 0.0, %v8410
      %8412 = vdwg.mxu0
      %v8413 = vadd.f32 %v7966, %v8355
      %v8414 = vadd.f32 %v7967, %v8357
      %v8415 = vadd.f32 %v7968, %v8359
      %v8416 = vadd.f32 %v7969, %v8361
      %v8417 = vadd.f32 %v7970, %v8365
      %v8418 = vadd.f32 %v7971, %v8367
      %v8419 = vadd.f32 %v7972, %v8369
      %v8420 = vadd.f32 %v7973, %v8371
      %v8421 = vadd.f32 %v7974, %v8375
      %v8422 = vadd.f32 %v7975, %v8377
      %v8423 = vadd.f32 %v7976, %v8379
      %v8424 = vadd.f32 %v7977, %v8381
      %v8425 = vadd.f32 %v7978, %v8385
      %v8426 = vadd.f32 %v7979, %v8387
      %v8427 = vadd.f32 %v7980, %v8389
      %v8428 = vadd.f32 %v7981, %v8391
      %v8429 = vadd.f32 %v7982, %v8395
      %v8430 = vadd.f32 %v7983, %v8397
      %v8431 = vadd.f32 %v7984, %v8399
      %v8432 = vadd.f32 %v7985, %v8401
      %v8433 = vadd.f32 %v7986, %v8405
      %v8434 = vadd.f32 %v7987, %v8407
      %v8435 = vadd.f32 %v7988, %v8409
      %v8436 = vadd.f32 %v7989, %v8411
      %v8437 = vld [vmem:[#allocation2 + $0x80] sm:$0xf8]
      %v8438 = vld [vmem:[#allocation2 + $0x88] sm:$0xf8]
      %v8439 = vld [vmem:[%s4723] sm:$0xff]
      %v8440 = vld [vmem:[%s4723 + $0x8] sm:$0xff]
      %v8441 = vld [vmem:[%s4723 + $0x10] sm:$0xff]
      %v8442 = vld [vmem:[%s4723 + $0x18] sm:$0xff]
      %v8443 = vld [vmem:[%s4723 + $0x20] sm:$0xff]
      %v8444 = vld [vmem:[%s4723 + $0x28] sm:$0xff]
      %v8445 = vld [vmem:[%s4723 + $0x30] sm:$0xff]
      %v8446 = vld [vmem:[%s4723 + $0x38] sm:$0xff]
      %v8447 = vld [vmem:[%s4723 + $0x40] sm:$0xff]
      %v8448 = vld [vmem:[%s4723 + $0x48] sm:$0xff]
      %v8449 = vld [vmem:[%s4723 + $0x50] sm:$0xff]
      %v8450 = vld [vmem:[%s4723 + $0x58] sm:$0xff]
      %v8451 = vld [vmem:[%s4723 + $0x60] sm:$0xff]
      %v8452 = vld [vmem:[%s4723 + $0x68] sm:$0xff]
      %v8453 = vld [vmem:[%s4723 + $0x70] sm:$0xff]
      %v8454 = vld [vmem:[%s4723 + $0x78] sm:$0xff]
      %v8455 = vld [vmem:[%s4723 + $0x80] sm:$0xff]
      %v8456 = vld [vmem:[%s4723 + $0x88] sm:$0xff]
      %v8457 = vld [vmem:[%s4723 + $0x90] sm:$0xff]
      %v8458 = vld [vmem:[%s4723 + $0x98] sm:$0xff]
      %v8459 = vld [vmem:[%s4723 + $0xa0] sm:$0xff]
      %v8460 = vld [vmem:[%s4723 + $0xa8] sm:$0xff]
      %v8461 = vld [vmem:[%s4723 + $0xb0] sm:$0xff]
      %v8462 = vld [vmem:[%s4723 + $0xb8] sm:$0xff]
      %v8463 = vld [vmem:[%s4723 + $0xc0] sm:$0xff]
      %v8464 = vld [vmem:[%s4723 + $0xc8] sm:$0xff]
      %v8465 = vld [vmem:[%s4723 + $0xd0] sm:$0xff]
      %v8466 = vld [vmem:[%s4723 + $0xd8] sm:$0xff]
      %v8467 = vld [vmem:[%s4723 + $0xe0] sm:$0xff]
      %v8468 = vld [vmem:[%s4723 + $0xe8] sm:$0xff]
      %v8469 = vld [vmem:[%s4723 + $0xf0] sm:$0xff]
      %v8470 = vld [vmem:[%s4723 + $0xf8] sm:$0xff]
      %v8475 = vrot.slane %v8437, 3
      %v8476 = vrot.slane %v7617, 3
      %v8477 = vsel %vm4760, %v8475, %v8476
      %v8478 = vrot.slane %v8438, 3
      %v8479 = vrot.slane %v7618, 3
      %v8480 = vsel %vm4760, %v8478, %v8479
      %v8481 = vrot.slane %v7619, 3
      %v8482 = vsel %vm4760, %v8476, %v8481
      %v8483 = vrot.slane %v7620, 3
      %v8484 = vsel %vm4760, %v8479, %v8483
      %v8485 = vrot.slane %v7621, 3
      %v8486 = vsel %vm4760, %v8481, %v8485
      %v8487 = vrot.slane %v7622, 3
      %v8488 = vsel %vm4760, %v8483, %v8487
      %v8489 = vrot.slane %v7623, 3
      %v8490 = vsel %vm4760, %v8485, %v8489
      %v8491 = vrot.slane %v7624, 3
      %v8492 = vsel %vm4760, %v8487, %v8491
      %v8493 = vrot.slane %v7625, 3
      %v8494 = vsel %vm4760, %v8489, %v8493
      %v8495 = vrot.slane %v7626, 3
      %v8496 = vsel %vm4760, %v8491, %v8495
      %v8497 = vrot.slane %v7990, 3
      %v8498 = vsel %vm4760, %v8493, %v8497
      %v8499 = vrot.slane %v7991, 3
      %v8500 = vsel %vm4760, %v8495, %v8499
      %v8545 = vunpack.c.l.b16 %v8439
      %v8546 = vunpack.c.h.b16 %v8439
      %v8547 = vunpack.c.l.b16 %v8440
      %v8548 = vunpack.c.h.b16 %v8440
      %v8549 = vunpack.c.l.b16 %v8441
      %v8550 = vunpack.c.h.b16 %v8441
      %v8551 = vunpack.c.l.b16 %v8442
      %v8552 = vunpack.c.h.b16 %v8442
      %v8553 = vunpack.c.l.b16 %v8443
      %v8554 = vunpack.c.h.b16 %v8443
      %v8555 = vunpack.c.l.b16 %v8444
      %v8556 = vunpack.c.h.b16 %v8444
      %v8557 = vunpack.c.l.b16 %v8445
      %v8558 = vunpack.c.h.b16 %v8445
      %v8559 = vunpack.c.l.b16 %v8446
      %v8560 = vunpack.c.h.b16 %v8446
      %v8561 = vunpack.c.l.b16 %v8447
      %v8562 = vunpack.c.h.b16 %v8447
      %v8563 = vunpack.c.l.b16 %v8448
      %v8564 = vunpack.c.h.b16 %v8448
      %v8565 = vunpack.c.l.b16 %v8449
      %v8566 = vunpack.c.h.b16 %v8449
      %v8567 = vunpack.c.l.b16 %v8450
      %v8568 = vunpack.c.h.b16 %v8450
      %v8569 = vunpack.c.l.b16 %v8451
      %v8570 = vunpack.c.h.b16 %v8451
      %v8571 = vunpack.c.l.b16 %v8452
      %v8572 = vunpack.c.h.b16 %v8452
      %v8573 = vunpack.c.l.b16 %v8453
      %v8574 = vunpack.c.h.b16 %v8453
      %v8575 = vunpack.c.l.b16 %v8454
      %v8576 = vunpack.c.h.b16 %v8454
      %v8577 = vunpack.c.l.b16 %v8455
      %v8578 = vunpack.c.h.b16 %v8455
      %v8579 = vunpack.c.l.b16 %v8456
      %v8580 = vunpack.c.h.b16 %v8456
      %v8581 = vunpack.c.l.b16 %v8457
      %v8582 = vunpack.c.h.b16 %v8457
      %v8583 = vunpack.c.l.b16 %v8458
      %v8584 = vunpack.c.h.b16 %v8458
      %v8585 = vunpack.c.l.b16 %v8459
      %v8586 = vunpack.c.h.b16 %v8459
      %v8587 = vunpack.c.l.b16 %v8460
      %v8588 = vunpack.c.h.b16 %v8460
      %v8589 = vunpack.c.l.b16 %v8461
      %v8590 = vunpack.c.h.b16 %v8461
      %v8591 = vunpack.c.l.b16 %v8462
      %v8592 = vunpack.c.h.b16 %v8462
      %v8593 = vunpack.c.l.b16 %v8463
      %v8594 = vunpack.c.h.b16 %v8463
      %v8595 = vunpack.c.l.b16 %v8464
      %v8596 = vunpack.c.h.b16 %v8464
      %v8597 = vunpack.c.l.b16 %v8465
      %v8598 = vunpack.c.h.b16 %v8465
      %v8599 = vunpack.c.l.b16 %v8466
      %v8600 = vunpack.c.h.b16 %v8466
      %v8601 = vunpack.c.l.b16 %v8467
      %v8602 = vunpack.c.h.b16 %v8467
      %v8603 = vunpack.c.l.b16 %v8468
      %v8604 = vunpack.c.h.b16 %v8468
      %v8605 = vunpack.c.l.b16 %v8469
      %v8606 = vunpack.c.h.b16 %v8469
      %v8607 = vunpack.c.l.b16 %v8470
      %v8608 = vunpack.c.h.b16 %v8470
      %v8609 = vpack.c.b16 %v8547, %v8545
      %v8610 = vpack.c.b16 %v8548, %v8546
      %v8611 = vpack.c.b16 %v8551, %v8549
      %v8612 = vpack.c.b16 %v8552, %v8550
      %v8613 = vpack.c.b16 %v8555, %v8553
      %v8614 = vpack.c.b16 %v8556, %v8554
      %v8615 = vpack.c.b16 %v8559, %v8557
      %v8616 = vpack.c.b16 %v8560, %v8558
      %v8617 = vpack.c.b16 %v8563, %v8561
      %v8618 = vpack.c.b16 %v8564, %v8562
      %v8619 = vpack.c.b16 %v8567, %v8565
      %v8620 = vpack.c.b16 %v8568, %v8566
      %v8621 = vpack.c.b16 %v8571, %v8569
      %v8622 = vpack.c.b16 %v8572, %v8570
      %v8623 = vpack.c.b16 %v8575, %v8573
      %v8624 = vpack.c.b16 %v8576, %v8574
      %v8625 = vpack.c.b16 %v8579, %v8577
      %v8626 = vpack.c.b16 %v8580, %v8578
      %v8627 = vpack.c.b16 %v8583, %v8581
      %v8628 = vpack.c.b16 %v8584, %v8582
      %v8629 = vpack.c.b16 %v8587, %v8585
      %v8630 = vpack.c.b16 %v8588, %v8586
      %v8631 = vpack.c.b16 %v8591, %v8589
      %v8632 = vpack.c.b16 %v8592, %v8590
      %v8633 = vpack.c.b16 %v8595, %v8593
      %v8634 = vpack.c.b16 %v8596, %v8594
      %v8635 = vpack.c.b16 %v8599, %v8597
      %v8636 = vpack.c.b16 %v8600, %v8598
      %v8637 = vpack.c.b16 %v8603, %v8601
      %v8638 = vpack.c.b16 %v8604, %v8602
      %v8639 = vpack.c.b16 %v8607, %v8605
      %v8640 = vpack.c.b16 %v8608, %v8606
      %8673 = vmatprep.subr.bf16.mxu0 %v8610
      %8674 = vmatpush1.bf16.msra.mxu0 %v8609
      %8675 = vmatprep.subr.bf16.mxu0 %v8612
      %8676 = vmatpush1.bf16.msra.mxu0 %v8611
      %8677 = vmatprep.subr.bf16.mxu0 %v8614
      %8678 = vmatpush1.bf16.msra.mxu0 %v8613
      %8679 = vmatprep.subr.bf16.mxu0 %v8616
      %8680 = vmatpush1.bf16.msra.mxu0 %v8615
      %8681 = vmatprep.subr.bf16.mxu0 %v8618
      %8682 = vmatpush1.bf16.msra.mxu0 %v8617
      %8683 = vmatprep.subr.bf16.mxu0 %v8620
      %8684 = vmatpush1.bf16.msra.mxu0 %v8619
      %8685 = vmatprep.subr.bf16.mxu0 %v8622
      %8686 = vmatpush1.bf16.msra.mxu0 %v8621
      %8687 = vmatprep.subr.bf16.mxu0 %v8624
      %8688 = vmatpush1.bf16.msra.mxu0 %v8623
      %8689 = vmatprep.subr.bf16.mxu0 %v8626
      %8690 = vmatpush1.bf16.msra.mxu0 %v8625
      %8691 = vmatprep.subr.bf16.mxu0 %v8628
      %8692 = vmatpush1.bf16.msra.mxu0 %v8627
      %8693 = vmatprep.subr.bf16.mxu0 %v8630
      %8694 = vmatpush1.bf16.msra.mxu0 %v8629
      %8695 = vmatprep.subr.bf16.mxu0 %v8632
      %8696 = vmatpush1.bf16.msra.mxu0 %v8631
      %8697 = vmatprep.subr.bf16.mxu0 %v8634
      %8698 = vmatpush1.bf16.msra.mxu0 %v8633
      %8699 = vmatprep.subr.bf16.mxu0 %v8636
      %8700 = vmatpush1.bf16.msra.mxu0 %v8635
      %8701 = vmatprep.subr.bf16.mxu0 %v8638
      %8702 = vmatpush1.bf16.msra.mxu0 %v8637
      %8703 = vmatprep.subr.bf16.mxu0 %v8640
      %8704 = vmatpush1.bf16.msra.mxu0 %v8639
      %8705 = vmatprep.mubr.bf16.mxu0 %v8480
      %8706 = vmatmul.mubr.bf16.gmra.mrb[0].mxu0 %v8477
      %v8707 = vpop.f32.mrb[0].mxu0
      %v8708 = vadd.f32 0.0, %v8707
      %v8709 = vpop.f32.mrb[0].mxu0
      %v8710 = vadd.f32 0.0, %v8709
      %v8711 = vpop.f32.mrb[0].mxu0
      %v8712 = vadd.f32 0.0, %v8711
      %v8713 = vpop.f32.mrb[0].mxu0
      %v8714 = vadd.f32 0.0, %v8713
      %8715 = vmatprep.mubr.bf16.mxu0 %v8484
      %8716 = vmatmul.mubr.bf16.gmra.mrb[0].mxu0 %v8482
      %v8717 = vpop.f32.mrb[0].mxu0
      %v8718 = vadd.f32 0.0, %v8717
      %v8719 = vpop.f32.mrb[0].mxu0
      %v8720 = vadd.f32 0.0, %v8719
      %v8721 = vpop.f32.mrb[0].mxu0
      %v8722 = vadd.f32 0.0, %v8721
      %v8723 = vpop.f32.mrb[0].mxu0
      %v8724 = vadd.f32 0.0, %v8723
      %8725 = vmatprep.mubr.bf16.mxu0 %v8488
      %8726 = vmatmul.mubr.bf16.gmra.mrb[0].mxu0 %v8486
      %v8727 = vpop.f32.mrb[0].mxu0
      %v8728 = vadd.f32 0.0, %v8727
      %v8729 = vpop.f32.mrb[0].mxu0
      %v8730 = vadd.f32 0.0, %v8729
      %v8731 = vpop.f32.mrb[0].mxu0
      %v8732 = vadd.f32 0.0, %v8731
      %v8733 = vpop.f32.mrb[0].mxu0
      %v8734 = vadd.f32 0.0, %v8733
      %8735 = vmatprep.mubr.bf16.mxu0 %v8492
      %8736 = vmatmul.mubr.bf16.gmra.mrb[0].mxu0 %v8490
      %v8737 = vpop.f32.mrb[0].mxu0
      %v8738 = vadd.f32 0.0, %v8737
      %v8739 = vpop.f32.mrb[0].mxu0
      %v8740 = vadd.f32 0.0, %v8739
      %v8741 = vpop.f32.mrb[0].mxu0
      %v8742 = vadd.f32 0.0, %v8741
      %v8743 = vpop.f32.mrb[0].mxu0
      %v8744 = vadd.f32 0.0, %v8743
      %8745 = vmatprep.mubr.bf16.mxu0 %v8496
      %8746 = vmatmul.mubr.bf16.gmra.mrb[0].mxu0 %v8494
      %v8747 = vpop.f32.mrb[0].mxu0
      %v8748 = vadd.f32 0.0, %v8747
      %v8749 = vpop.f32.mrb[0].mxu0
      %v8750 = vadd.f32 0.0, %v8749
      %v8751 = vpop.f32.mrb[0].mxu0
      %v8752 = vadd.f32 0.0, %v8751
      %v8753 = vpop.f32.mrb[0].mxu0
      %v8754 = vadd.f32 0.0, %v8753
      %8755 = vmatprep.mubr.bf16.mxu0 %v8500
      %8756 = vmatmul.mubr.bf16.gmra.mrb[0].mxu0 %v8498
      %v8757 = vpop.f32.mrb[0].mxu0
      %v8758 = vadd.f32 0.0, %v8757
      %v8759 = vpop.f32.mrb[0].mxu0
      %v8760 = vadd.f32 0.0, %v8759
      %v8761 = vpop.f32.mrb[0].mxu0
      %v8762 = vadd.f32 0.0, %v8761
      %v8763 = vpop.f32.mrb[0].mxu0
      %v8764 = vadd.f32 0.0, %v8763
      %8765 = vdwg.mxu0
      %v8766 = vadd.f32 %v8413, %v8708
      %v8767 = vadd.f32 %v8414, %v8710
      %v8768 = vadd.f32 %v8415, %v8712
      %v8769 = vadd.f32 %v8416, %v8714
      %v8770 = vadd.f32 %v8417, %v8718
      %v8771 = vadd.f32 %v8418, %v8720
      %v8772 = vadd.f32 %v8419, %v8722
      %v8773 = vadd.f32 %v8420, %v8724
      %v8774 = vadd.f32 %v8421, %v8728
      %v8775 = vadd.f32 %v8422, %v8730
      %v8776 = vadd.f32 %v8423, %v8732
      %v8777 = vadd.f32 %v8424, %v8734
      %v8778 = vadd.f32 %v8425, %v8738
      %v8779 = vadd.f32 %v8426, %v8740
      %v8780 = vadd.f32 %v8427, %v8742
      %v8781 = vadd.f32 %v8428, %v8744
      %v8782 = vadd.f32 %v8429, %v8748
      %v8783 = vadd.f32 %v8430, %v8750
      %v8784 = vadd.f32 %v8431, %v8752
      %v8785 = vadd.f32 %v8432, %v8754
      %v8786 = vadd.f32 %v8433, %v8758
      %v8787 = vadd.f32 %v8434, %v8760
      %v8788 = vadd.f32 %v8435, %v8762
      %v8789 = vadd.f32 %v8436, %v8764
      %v8790 = vmul.f32 %v8766, %v5080
      %v8791 = vmul.f32 %v8767, %v5084
      %v8792 = vmul.f32 %v8768, %v5080
      %v8793 = vmul.f32 %v8769, %v5084
      %v8794 = vmul.f32 %v8770, %v5080
      %v8795 = vmul.f32 %v8771, %v5084
      %v8796 = vmul.f32 %v8772, %v5080
      %v8797 = vmul.f32 %v8773, %v5084
      %v8798 = vmul.f32 %v8774, %v5080
      %v8799 = vmul.f32 %v8775, %v5084
      %v8800 = vmul.f32 %v8776, %v5080
      %v8801 = vmul.f32 %v8777, %v5084
      %v8802 = vmul.f32 %v8778, %v5080
      %v8803 = vmul.f32 %v8779, %v5084
      %v8804 = vmul.f32 %v8780, %v5080
      %v8805 = vmul.f32 %v8781, %v5084
      %v8806 = vmul.f32 %v8782, %v5080
      %v8807 = vmul.f32 %v8783, %v5084
      %v8808 = vmul.f32 %v8784, %v5080
      %v8809 = vmul.f32 %v8785, %v5084
      %v8810 = vmul.f32 %v8786, %v5080
      %v8811 = vmul.f32 %v8787, %v5084
      %v8812 = vmul.f32 %v8788, %v5080
      %v8813 = vmul.f32 %v8789, %v5084
      %v8814 = vadd.f32 %v8790, %v5115
      %v8815 = vadd.f32 %v8791, %v5119
      %v8816 = vadd.f32 %v8792, %v5115
      %v8817 = vadd.f32 %v8793, %v5119
      %v8818 = vadd.f32 %v8794, %v5115
      %v8819 = vadd.f32 %v8795, %v5119
      %v8820 = vadd.f32 %v8796, %v5115
      %v8821 = vadd.f32 %v8797, %v5119
      %v8822 = vadd.f32 %v8798, %v5115
      %v8823 = vadd.f32 %v8799, %v5119
      %v8824 = vadd.f32 %v8800, %v5115
      %v8825 = vadd.f32 %v8801, %v5119
      %v8826 = vadd.f32 %v8802, %v5115
      %v8827 = vadd.f32 %v8803, %v5119
      %v8828 = vadd.f32 %v8804, %v5115
      %v8829 = vadd.f32 %v8805, %v5119
      %v8830 = vadd.f32 %v8806, %v5115
      %v8831 = vadd.f32 %v8807, %v5119
      %v8832 = vadd.f32 %v8808, %v5115
      %v8833 = vadd.f32 %v8809, %v5119
      %v8834 = vadd.f32 %v8810, %v5115
      %v8835 = vadd.f32 %v8811, %v5119
      %v8836 = vadd.f32 %v8812, %v5115
      %v8837 = vadd.f32 %v8813, %v5119
      %v8838 = vmax.f32 %v8814, 0.0
      %v8839 = vmax.f32 %v8815, 0.0
      %v8840 = vmax.f32 %v8816, 0.0
      %v8841 = vmax.f32 %v8817, 0.0
      %v8842 = vmax.f32 %v8818, 0.0
      %v8843 = vmax.f32 %v8819, 0.0
      %v8844 = vmax.f32 %v8820, 0.0
      %v8845 = vmax.f32 %v8821, 0.0
      %v8846 = vmax.f32 %v8822, 0.0
      %v8847 = vmax.f32 %v8823, 0.0
      %v8848 = vmax.f32 %v8824, 0.0
      %v8849 = vmax.f32 %v8825, 0.0
      %v8850 = vmax.f32 %v8826, 0.0
      %v8851 = vmax.f32 %v8827, 0.0
      %v8852 = vmax.f32 %v8828, 0.0
      %v8853 = vmax.f32 %v8829, 0.0
      %v8854 = vmax.f32 %v8830, 0.0
      %v8855 = vmax.f32 %v8831, 0.0
      %v8856 = vmax.f32 %v8832, 0.0
      %v8857 = vmax.f32 %v8833, 0.0
      %v8858 = vmax.f32 %v8834, 0.0
      %v8859 = vmax.f32 %v8835, 0.0
      %v8860 = vmax.f32 %v8836, 0.0
      %v8861 = vmax.f32 %v8837, 0.0
      %v8862 = vpack.c.bf16 %v8840, %v8838
      %v8863 = vpack.c.bf16 %v8841, %v8839
      %v8864 = vpack.c.bf16 %v8844, %v8842
      %v8865 = vpack.c.bf16 %v8845, %v8843
      %v8866 = vpack.c.bf16 %v8848, %v8846
      %v8867 = vpack.c.bf16 %v8849, %v8847
      %v8868 = vpack.c.bf16 %v8852, %v8850
      %v8869 = vpack.c.bf16 %v8853, %v8851
      %v8870 = vpack.c.bf16 %v8856, %v8854
      %v8871 = vpack.c.bf16 %v8857, %v8855
      %v8872 = vpack.c.bf16 %v8860, %v8858
      %v8873 = vpack.c.bf16 %v8861, %v8859
      %8874 = vmatprep.subr.bf16.mxu0 0
      %8875 = vmatpush1.bf16.msra.mxu0 %v5252
      %8876 = vmatprep.subr.bf16.mxu0 0
      %8877 = vmatpush1.bf16.msra.mxu0 %v5253
      %8878 = vmatprep.subr.bf16.mxu0 0
      %8879 = vmatpush1.bf16.msra.mxu0 %v5254
      %8880 = vmatprep.subr.bf16.mxu0 0
      %8881 = vmatpush1.bf16.msra.mxu0 %v5255
      %8882 = vmatprep.subr.bf16.mxu0 0
      %8883 = vmatpush1.bf16.msra.mxu0 %v5256
      %8884 = vmatprep.subr.bf16.mxu0 0
      %8885 = vmatpush1.bf16.msra.mxu0 %v5257
      %8886 = vmatprep.subr.bf16.mxu0 0
      %8887 = vmatpush1.bf16.msra.mxu0 %v5258
      %8888 = vmatprep.subr.bf16.mxu0 0
      %8889 = vmatpush1.bf16.msra.mxu0 %v5259
      %8890 = vmatprep.subr.bf16.mxu0 0
      %8891 = vmatpush1.bf16.msra.mxu0 %v5260
      %8892 = vmatprep.subr.bf16.mxu0 0
      %8893 = vmatpush1.bf16.msra.mxu0 %v5261
      %8894 = vmatprep.subr.bf16.mxu0 0
      %8895 = vmatpush1.bf16.msra.mxu0 %v5262
      %8896 = vmatprep.subr.bf16.mxu0 0
      %8897 = vmatpush1.bf16.msra.mxu0 %v5263
      %8898 = vmatprep.subr.bf16.mxu0 0
      %8899 = vmatpush1.bf16.msra.mxu0 %v5264
      %8900 = vmatprep.subr.bf16.mxu0 0
      %8901 = vmatpush1.bf16.msra.mxu0 %v5265
      %8902 = vmatprep.subr.bf16.mxu0 0
      %8903 = vmatpush1.bf16.msra.mxu0 %v5266
      %8904 = vmatprep.subr.bf16.mxu0 0
      %8905 = vmatpush1.bf16.msra.mxu0 %v5267
      %8906 = vmatprep.mubr.bf16.mxu0 %v8863
      %8907 = vmatmul.mubr.bf16.gmra.mrb[0].mxu0 %v8862
      %v8908 = vpop.f32.mrb[0].mxu0
      %v8909 = vadd.f32 %v5186, %v8908
      %v8910 = vpop.f32.mrb[0].mxu0
      %v8911 = vpop.f32.mrb[0].mxu0
      %v8912 = vadd.f32 %v5186, %v8911
      %v8913 = vpop.f32.mrb[0].mxu0
      %8914 = vmatprep.mubr.bf16.mxu0 %v8865
      %8915 = vmatmul.mubr.bf16.gmra.mrb[0].mxu0 %v8864
      %v8916 = vpop.f32.mrb[0].mxu0
      %v8917 = vadd.f32 %v5186, %v8916
      %v8918 = vpop.f32.mrb[0].mxu0
      %v8919 = vpop.f32.mrb[0].mxu0
      %v8920 = vadd.f32 %v5186, %v8919
      %v8921 = vpop.f32.mrb[0].mxu0
      %8922 = vmatprep.mubr.bf16.mxu0 %v8867
      %8923 = vmatmul.mubr.bf16.gmra.mrb[0].mxu0 %v8866
      %v8924 = vpop.f32.mrb[0].mxu0
      %v8925 = vadd.f32 %v5186, %v8924
      %v8926 = vpop.f32.mrb[0].mxu0
      %v8927 = vpop.f32.mrb[0].mxu0
      %v8928 = vadd.f32 %v5186, %v8927
      %v8929 = vpop.f32.mrb[0].mxu0
      %8930 = vmatprep.mubr.bf16.mxu0 %v8869
      %8931 = vmatmul.mubr.bf16.gmra.mrb[0].mxu0 %v8868
      %v8932 = vpop.f32.mrb[0].mxu0
      %v8933 = vadd.f32 %v5186, %v8932
      %v8934 = vpop.f32.mrb[0].mxu0
      %v8935 = vpop.f32.mrb[0].mxu0
      %v8936 = vadd.f32 %v5186, %v8935
      %v8937 = vpop.f32.mrb[0].mxu0
      %8938 = vmatprep.mubr.bf16.mxu0 %v8871
      %8939 = vmatmul.mubr.bf16.gmra.mrb[0].mxu0 %v8870
      %v8940 = vpop.f32.mrb[0].mxu0
      %v8941 = vadd.f32 %v5186, %v8940
      %v8942 = vpop.f32.mrb[0].mxu0
      %v8943 = vpop.f32.mrb[0].mxu0
      %v8944 = vadd.f32 %v5186, %v8943
      %v8945 = vpop.f32.mrb[0].mxu0
      %8946 = vmatprep.mubr.bf16.mxu0 %v8873
      %8947 = vmatmul.mubr.bf16.gmra.mrb[0].mxu0 %v8872
      %v8948 = vpop.f32.mrb[0].mxu0
      %v8949 = vadd.f32 %v5186, %v8948
      %v8950 = vpop.f32.mrb[0].mxu0
      %v8951 = vpop.f32.mrb[0].mxu0
      %v8952 = vadd.f32 %v5186, %v8951
      %v8953 = vpop.f32.mrb[0].mxu0
      %8954 = vdwg.mxu0
      %8955 = vst [vmem:[%s359 + $0x60] sm:$0xff] %v8909
      %8956 = vst [vmem:[%s359 + $0x68] sm:$0xff] %v8912
      %8957 = vst [vmem:[%s359 + $0x70] sm:$0xff] %v8917
      %8958 = vst [vmem:[%s359 + $0x78] sm:$0xff] %v8920
      %8959 = vst [vmem:[%s359 + $0x80] sm:$0xff] %v8925
      %8960 = vst [vmem:[%s359 + $0x88] sm:$0xff] %v8928
      %8961 = vst [vmem:[%s359 + $0x90] sm:$0xff] %v8933
      %8962 = vst [vmem:[%s359 + $0x98] sm:$0xff] %v8936
      %8963 = vst [vmem:[%s359 + $0xa0] sm:$0xff] %v8941
      %8964 = vst [vmem:[%s359 + $0xa8] sm:$0xff] %v8944
      %8965 = vst [vmem:[%s359 + $0xb0] sm:$0xff] %v8949
      %8966 = vst [vmem:[%s359 + $0xb8] sm:$0xff] %v8952
      %v8967 = vld [vmem:[#allocation2 + $0xc0] sm:$0xff]
      %v8968 = vld [vmem:[#allocation2 + $0xc8] sm:$0xff]
      %v8969 = vld [vmem:[#allocation2 + $0xd0] sm:$0xff]
      %v8970 = vld [vmem:[#allocation2 + $0xd8] sm:$0xff]
      %v8971 = vld [vmem:[#allocation2 + $0xe0] sm:$0xff]
      %v8972 = vld [vmem:[#allocation2 + $0xe8] sm:$0xff]
      %v8973 = vld [vmem:[#allocation2 + $0xf0] sm:$0xff]
      %v8974 = vld [vmem:[#allocation2 + $0xf8] sm:$0xff]
      %v8975 = vld [vmem:[#allocation2 + $0x100] sm:$0xff]
      %v8976 = vld [vmem:[#allocation2 + $0x108] sm:$0xff]
      %v8977 = vld [vmem:[#allocation2 + $0x110] sm:$0xff]
      %v8978 = vld [vmem:[#allocation2 + $0x118] sm:$0xff]
      %v8979 = vld [vmem:[%s5] sm:$0xff]
      %v8980 = vld [vmem:[%s5 + $0x8] sm:$0xff]
      %v8981 = vld [vmem:[%s5 + $0x10] sm:$0xff]
      %v8982 = vld [vmem:[%s5 + $0x18] sm:$0xff]
      %v8983 = vld [vmem:[%s5 + $0x20] sm:$0xff]
      %v8984 = vld [vmem:[%s5 + $0x28] sm:$0xff]
      %v8985 = vld [vmem:[%s5 + $0x30] sm:$0xff]
      %v8986 = vld [vmem:[%s5 + $0x38] sm:$0xff]
      %v8987 = vld [vmem:[%s5 + $0x40] sm:$0xff]
      %v8988 = vld [vmem:[%s5 + $0x48] sm:$0xff]
      %v8989 = vld [vmem:[%s5 + $0x50] sm:$0xff]
      %v8990 = vld [vmem:[%s5 + $0x58] sm:$0xff]
      %v8991 = vld [vmem:[%s5 + $0x60] sm:$0xff]
      %v8992 = vld [vmem:[%s5 + $0x68] sm:$0xff]
      %v8993 = vld [vmem:[%s5 + $0x70] sm:$0xff]
      %v8994 = vld [vmem:[%s5 + $0x78] sm:$0xff]
      %v8995 = vld [vmem:[%s5 + $0x80] sm:$0xff]
      %v8996 = vld [vmem:[%s5 + $0x88] sm:$0xff]
      %v8997 = vld [vmem:[%s5 + $0x90] sm:$0xff]
      %v8998 = vld [vmem:[%s5 + $0x98] sm:$0xff]
      %v8999 = vld [vmem:[%s5 + $0xa0] sm:$0xff]
      %v9000 = vld [vmem:[%s5 + $0xa8] sm:$0xff]
      %v9001 = vld [vmem:[%s5 + $0xb0] sm:$0xff]
      %v9002 = vld [vmem:[%s5 + $0xb8] sm:$0xff]
      %v9003 = vld [vmem:[%s5 + $0xc0] sm:$0xff]
      %v9004 = vld [vmem:[%s5 + $0xc8] sm:$0xff]
      %v9005 = vld [vmem:[%s5 + $0xd0] sm:$0xff]
      %v9006 = vld [vmem:[%s5 + $0xd8] sm:$0xff]
      %v9007 = vld [vmem:[%s5 + $0xe0] sm:$0xff]
      %v9008 = vld [vmem:[%s5 + $0xe8] sm:$0xff]
      %v9009 = vld [vmem:[%s5 + $0xf0] sm:$0xff]
      %v9010 = vld [vmem:[%s5 + $0xf8] sm:$0xff]
      %v9011 = vld [vmem:[#allocation2 + $0x120] sm:$0x1]
      %v9012 = vld [vmem:[#allocation2 + $0x128] sm:$0x1]
      %v9013 = vld [vmem:[%s1695] sm:$0xff]
      %v9014 = vld [vmem:[%s1695 + $0x8] sm:$0xff]
      %v9015 = vld [vmem:[%s1695 + $0x10] sm:$0xff]
      %v9016 = vld [vmem:[%s1695 + $0x18] sm:$0xff]
      %v9017 = vld [vmem:[%s1695 + $0x20] sm:$0xff]
      %v9018 = vld [vmem:[%s1695 + $0x28] sm:$0xff]
      %v9019 = vld [vmem:[%s1695 + $0x30] sm:$0xff]
      %v9020 = vld [vmem:[%s1695 + $0x38] sm:$0xff]
      %v9021 = vld [vmem:[%s1695 + $0x40] sm:$0xff]
      %v9022 = vld [vmem:[%s1695 + $0x48] sm:$0xff]
      %v9023 = vld [vmem:[%s1695 + $0x50] sm:$0xff]
      %v9024 = vld [vmem:[%s1695 + $0x58] sm:$0xff]
      %v9025 = vld [vmem:[%s1695 + $0x60] sm:$0xff]
      %v9026 = vld [vmem:[%s1695 + $0x68] sm:$0xff]
      %v9027 = vld [vmem:[%s1695 + $0x70] sm:$0xff]
      %v9028 = vld [vmem:[%s1695 + $0x78] sm:$0xff]
      %v9029 = vld [vmem:[%s1695 + $0x80] sm:$0xff]
      %v9030 = vld [vmem:[%s1695 + $0x88] sm:$0xff]
      %v9031 = vld [vmem:[%s1695 + $0x90] sm:$0xff]
      %v9032 = vld [vmem:[%s1695 + $0x98] sm:$0xff]
      %v9033 = vld [vmem:[%s1695 + $0xa0] sm:$0xff]
      %v9034 = vld [vmem:[%s1695 + $0xa8] sm:$0xff]
      %v9035 = vld [vmem:[%s1695 + $0xb0] sm:$0xff]
      %v9036 = vld [vmem:[%s1695 + $0xb8] sm:$0xff]
      %v9037 = vld [vmem:[%s1695 + $0xc0] sm:$0xff]
      %v9038 = vld [vmem:[%s1695 + $0xc8] sm:$0xff]
      %v9039 = vld [vmem:[%s1695 + $0xd0] sm:$0xff]
      %v9040 = vld [vmem:[%s1695 + $0xd8] sm:$0xff]
      %v9041 = vld [vmem:[%s1695 + $0xe0] sm:$0xff]
      %v9042 = vld [vmem:[%s1695 + $0xe8] sm:$0xff]
      %v9043 = vld [vmem:[%s1695 + $0xf0] sm:$0xff]
      %v9044 = vld [vmem:[%s1695 + $0xf8] sm:$0xff]
      %v9046 = vshrl.u32 %v8967, 16
      %v9048 = vshll.u32 %v8967, 16
      %v9050 = vrot.slane %v9048, 1
      %v9051 = vor.u32 %v9046, %v9050
      %v9053 = vshll.u32 %v8969, 16
      %v9055 = vrot.slane %v9053, 1
      %v9056 = vsel %vm1728, %v9051, %v9055
      %v9058 = vshrl.u32 %v8968, 16
      %v9060 = vshll.u32 %v8968, 16
      %v9062 = vrot.slane %v9060, 1
      %v9063 = vor.u32 %v9058, %v9062
      %v9065 = vshll.u32 %v8970, 16
      %v9067 = vrot.slane %v9065, 1
      %v9068 = vsel %vm1728, %v9063, %v9067
      %v9069 = vshrl.u32 %v8969, 16
      %v9071 = vor.u32 %v9069, %v9055
      %v9073 = vshll.u32 %v8971, 16
      %v9075 = vrot.slane %v9073, 1
      %v9076 = vsel %vm1728, %v9071, %v9075
      %v9077 = vshrl.u32 %v8970, 16
      %v9079 = vor.u32 %v9077, %v9067
      %v9081 = vshll.u32 %v8972, 16
      %v9083 = vrot.slane %v9081, 1
      %v9084 = vsel %vm1728, %v9079, %v9083
      %v9085 = vshrl.u32 %v8971, 16
      %v9087 = vor.u32 %v9085, %v9075
      %v9089 = vshll.u32 %v8973, 16
      %v9091 = vrot.slane %v9089, 1
      %v9092 = vsel %vm1728, %v9087, %v9091
      %v9093 = vshrl.u32 %v8972, 16
      %v9095 = vor.u32 %v9093, %v9083
      %v9097 = vshll.u32 %v8974, 16
      %v9099 = vrot.slane %v9097, 1
      %v9100 = vsel %vm1728, %v9095, %v9099
      %v9101 = vshrl.u32 %v8973, 16
      %v9103 = vor.u32 %v9101, %v9091
      %v9105 = vshll.u32 %v8975, 16
      %v9107 = vrot.slane %v9105, 1
      %v9108 = vsel %vm1728, %v9103, %v9107
      %v9109 = vshrl.u32 %v8974, 16
      %v9111 = vor.u32 %v9109, %v9099
      %v9113 = vshll.u32 %v8976, 16
      %v9115 = vrot.slane %v9113, 1
      %v9116 = vsel %vm1728, %v9111, %v9115
      %v9117 = vshrl.u32 %v8975, 16
      %v9119 = vor.u32 %v9117, %v9107
      %v9121 = vshll.u32 %v8977, 16
      %v9123 = vrot.slane %v9121, 1
      %v9124 = vsel %vm1728, %v9119, %v9123
      %v9125 = vshrl.u32 %v8976, 16
      %v9127 = vor.u32 %v9125, %v9115
      %v9129 = vshll.u32 %v8978, 16
      %v9131 = vrot.slane %v9129, 1
      %v9132 = vsel %vm1728, %v9127, %v9131
      %v9133 = vshrl.u32 %v8977, 16
      %v9135 = vor.u32 %v9133, %v9123
      %v9137 = vshll.u32 %v9011, 16
      %v9139 = vrot.slane %v9137, 1
      %v9140 = vsel %vm1728, %v9135, %v9139
      %v9141 = vshrl.u32 %v8978, 16
      %v9143 = vor.u32 %v9141, %v9131
      %v9145 = vshll.u32 %v9012, 16
      %v9147 = vrot.slane %v9145, 1
      %v9148 = vsel %vm1728, %v9143, %v9147
      %v9193 = vunpack.c.l.b16 %v9013
      %v9194 = vunpack.c.h.b16 %v9013
      %v9195 = vunpack.c.l.b16 %v9014
      %v9196 = vunpack.c.h.b16 %v9014
      %v9197 = vunpack.c.l.b16 %v9015
      %v9198 = vunpack.c.h.b16 %v9015
      %v9199 = vunpack.c.l.b16 %v9016
      %v9200 = vunpack.c.h.b16 %v9016
      %v9201 = vunpack.c.l.b16 %v9017
      %v9202 = vunpack.c.h.b16 %v9017
      %v9203 = vunpack.c.l.b16 %v9018
      %v9204 = vunpack.c.h.b16 %v9018
      %v9205 = vunpack.c.l.b16 %v9019
      %v9206 = vunpack.c.h.b16 %v9019
      %v9207 = vunpack.c.l.b16 %v9020
      %v9208 = vunpack.c.h.b16 %v9020
      %v9209 = vunpack.c.l.b16 %v9021
      %v9210 = vunpack.c.h.b16 %v9021
      %v9211 = vunpack.c.l.b16 %v9022
      %v9212 = vunpack.c.h.b16 %v9022
      %v9213 = vunpack.c.l.b16 %v9023
      %v9214 = vunpack.c.h.b16 %v9023
      %v9215 = vunpack.c.l.b16 %v9024
      %v9216 = vunpack.c.h.b16 %v9024
      %v9217 = vunpack.c.l.b16 %v9025
      %v9218 = vunpack.c.h.b16 %v9025
      %v9219 = vunpack.c.l.b16 %v9026
      %v9220 = vunpack.c.h.b16 %v9026
      %v9221 = vunpack.c.l.b16 %v9027
      %v9222 = vunpack.c.h.b16 %v9027
      %v9223 = vunpack.c.l.b16 %v9028
      %v9224 = vunpack.c.h.b16 %v9028
      %v9225 = vunpack.c.l.b16 %v9029
      %v9226 = vunpack.c.h.b16 %v9029
      %v9227 = vunpack.c.l.b16 %v9030
      %v9228 = vunpack.c.h.b16 %v9030
      %v9229 = vunpack.c.l.b16 %v9031
      %v9230 = vunpack.c.h.b16 %v9031
      %v9231 = vunpack.c.l.b16 %v9032
      %v9232 = vunpack.c.h.b16 %v9032
      %v9233 = vunpack.c.l.b16 %v9033
      %v9234 = vunpack.c.h.b16 %v9033
      %v9235 = vunpack.c.l.b16 %v9034
      %v9236 = vunpack.c.h.b16 %v9034
      %v9237 = vunpack.c.l.b16 %v9035
      %v9238 = vunpack.c.h.b16 %v9035
      %v9239 = vunpack.c.l.b16 %v9036
      %v9240 = vunpack.c.h.b16 %v9036
      %v9241 = vunpack.c.l.b16 %v9037
      %v9242 = vunpack.c.h.b16 %v9037
      %v9243 = vunpack.c.l.b16 %v9038
      %v9244 = vunpack.c.h.b16 %v9038
      %v9245 = vunpack.c.l.b16 %v9039
      %v9246 = vunpack.c.h.b16 %v9039
      %v9247 = vunpack.c.l.b16 %v9040
      %v9248 = vunpack.c.h.b16 %v9040
      %v9249 = vunpack.c.l.b16 %v9041
      %v9250 = vunpack.c.h.b16 %v9041
      %v9251 = vunpack.c.l.b16 %v9042
      %v9252 = vunpack.c.h.b16 %v9042
      %v9253 = vunpack.c.l.b16 %v9043
      %v9254 = vunpack.c.h.b16 %v9043
      %v9255 = vunpack.c.l.b16 %v9044
      %v9256 = vunpack.c.h.b16 %v9044
      %v9257 = vpack.c.b16 %v9195, %v9193
      %v9258 = vpack.c.b16 %v9196, %v9194
      %v9259 = vpack.c.b16 %v9199, %v9197
      %v9260 = vpack.c.b16 %v9200, %v9198
      %v9261 = vpack.c.b16 %v9203, %v9201
      %v9262 = vpack.c.b16 %v9204, %v9202
      %v9263 = vpack.c.b16 %v9207, %v9205
      %v9264 = vpack.c.b16 %v9208, %v9206
      %v9265 = vpack.c.b16 %v9211, %v9209
      %v9266 = vpack.c.b16 %v9212, %v9210
      %v9267 = vpack.c.b16 %v9215, %v9213
      %v9268 = vpack.c.b16 %v9216, %v9214
      %v9269 = vpack.c.b16 %v9219, %v9217
      %v9270 = vpack.c.b16 %v9220, %v9218
      %v9271 = vpack.c.b16 %v9223, %v9221
      %v9272 = vpack.c.b16 %v9224, %v9222
      %v9273 = vpack.c.b16 %v9227, %v9225
      %v9274 = vpack.c.b16 %v9228, %v9226
      %v9275 = vpack.c.b16 %v9231, %v9229
      %v9276 = vpack.c.b16 %v9232, %v9230
      %v9277 = vpack.c.b16 %v9235, %v9233
      %v9278 = vpack.c.b16 %v9236, %v9234
      %v9279 = vpack.c.b16 %v9239, %v9237
      %v9280 = vpack.c.b16 %v9240, %v9238
      %v9281 = vpack.c.b16 %v9243, %v9241
      %v9282 = vpack.c.b16 %v9244, %v9242
      %v9283 = vpack.c.b16 %v9247, %v9245
      %v9284 = vpack.c.b16 %v9248, %v9246
      %v9285 = vpack.c.b16 %v9251, %v9249
      %v9286 = vpack.c.b16 %v9252, %v9250
      %v9287 = vpack.c.b16 %v9255, %v9253
      %v9288 = vpack.c.b16 %v9256, %v9254
      %9321 = vmatprep.subr.bf16.mxu0 %v9258
      %9322 = vmatpush1.bf16.msra.mxu0 %v9257
      %9323 = vmatprep.subr.bf16.mxu0 %v9260
      %9324 = vmatpush1.bf16.msra.mxu0 %v9259
      %9325 = vmatprep.subr.bf16.mxu0 %v9262
      %9326 = vmatpush1.bf16.msra.mxu0 %v9261
      %9327 = vmatprep.subr.bf16.mxu0 %v9264
      %9328 = vmatpush1.bf16.msra.mxu0 %v9263
      %9329 = vmatprep.subr.bf16.mxu0 %v9266
      %9330 = vmatpush1.bf16.msra.mxu0 %v9265
      %9331 = vmatprep.subr.bf16.mxu0 %v9268
      %9332 = vmatpush1.bf16.msra.mxu0 %v9267
      %9333 = vmatprep.subr.bf16.mxu0 %v9270
      %9334 = vmatpush1.bf16.msra.mxu0 %v9269
      %9335 = vmatprep.subr.bf16.mxu0 %v9272
      %9336 = vmatpush1.bf16.msra.mxu0 %v9271
      %9337 = vmatprep.subr.bf16.mxu0 %v9274
      %9338 = vmatpush1.bf16.msra.mxu0 %v9273
      %9339 = vmatprep.subr.bf16.mxu0 %v9276
      %9340 = vmatpush1.bf16.msra.mxu0 %v9275
      %9341 = vmatprep.subr.bf16.mxu0 %v9278
      %9342 = vmatpush1.bf16.msra.mxu0 %v9277
      %9343 = vmatprep.subr.bf16.mxu0 %v9280
      %9344 = vmatpush1.bf16.msra.mxu0 %v9279
      %9345 = vmatprep.subr.bf16.mxu0 %v9282
      %9346 = vmatpush1.bf16.msra.mxu0 %v9281
      %9347 = vmatprep.subr.bf16.mxu0 %v9284
      %9348 = vmatpush1.bf16.msra.mxu0 %v9283
      %9349 = vmatprep.subr.bf16.mxu0 %v9286
      %9350 = vmatpush1.bf16.msra.mxu0 %v9285
      %9351 = vmatprep.subr.bf16.mxu0 %v9288
      %9352 = vmatpush1.bf16.msra.mxu0 %v9287
      %9353 = vmatprep.mubr.bf16.mxu0 %v9068
      %9354 = vmatmul.mubr.bf16.gmra.mrb[0].mxu0 %v9056
      %v9355 = vpop.f32.mrb[0].mxu0
      %v9356 = vadd.f32 0.0, %v9355
      %v9357 = vpop.f32.mrb[0].mxu0
      %v9358 = vadd.f32 0.0, %v9357
      %v9359 = vpop.f32.mrb[0].mxu0
      %v9360 = vadd.f32 0.0, %v9359
      %v9361 = vpop.f32.mrb[0].mxu0
      %v9362 = vadd.f32 0.0, %v9361
      %9363 = vmatprep.mubr.bf16.mxu0 %v9084
      %9364 = vmatmul.mubr.bf16.gmra.mrb[0].mxu0 %v9076
      %v9365 = vpop.f32.mrb[0].mxu0
      %v9366 = vadd.f32 0.0, %v9365
      %v9367 = vpop.f32.mrb[0].mxu0
      %v9368 = vadd.f32 0.0, %v9367
      %v9369 = vpop.f32.mrb[0].mxu0
      %v9370 = vadd.f32 0.0, %v9369
      %v9371 = vpop.f32.mrb[0].mxu0
      %v9372 = vadd.f32 0.0, %v9371
      %9373 = vmatprep.mubr.bf16.mxu0 %v9100
      %9374 = vmatmul.mubr.bf16.gmra.mrb[0].mxu0 %v9092
      %v9375 = vpop.f32.mrb[0].mxu0
      %v9376 = vadd.f32 0.0, %v9375
      %v9377 = vpop.f32.mrb[0].mxu0
      %v9378 = vadd.f32 0.0, %v9377
      %v9379 = vpop.f32.mrb[0].mxu0
      %v9380 = vadd.f32 0.0, %v9379
      %v9381 = vpop.f32.mrb[0].mxu0
      %v9382 = vadd.f32 0.0, %v9381
      %9383 = vmatprep.mubr.bf16.mxu0 %v9116
      %9384 = vmatmul.mubr.bf16.gmra.mrb[0].mxu0 %v9108
      %v9385 = vpop.f32.mrb[0].mxu0
      %v9386 = vadd.f32 0.0, %v9385
      %v9387 = vpop.f32.mrb[0].mxu0
      %v9388 = vadd.f32 0.0, %v9387
      %v9389 = vpop.f32.mrb[0].mxu0
      %v9390 = vadd.f32 0.0, %v9389
      %v9391 = vpop.f32.mrb[0].mxu0
      %v9392 = vadd.f32 0.0, %v9391
      %9393 = vmatprep.mubr.bf16.mxu0 %v9132
      %9394 = vmatmul.mubr.bf16.gmra.mrb[0].mxu0 %v9124
      %v9395 = vpop.f32.mrb[0].mxu0
      %v9396 = vadd.f32 0.0, %v9395
      %v9397 = vpop.f32.mrb[0].mxu0
      %v9398 = vadd.f32 0.0, %v9397
      %v9399 = vpop.f32.mrb[0].mxu0
      %v9400 = vadd.f32 0.0, %v9399
      %v9401 = vpop.f32.mrb[0].mxu0
      %v9402 = vadd.f32 0.0, %v9401
      %9403 = vmatprep.mubr.bf16.mxu0 %v9148
      %9404 = vmatmul.mubr.bf16.gmra.mrb[0].mxu0 %v9140
      %v9405 = vpop.f32.mrb[0].mxu0
      %v9406 = vadd.f32 0.0, %v9405
      %v9407 = vpop.f32.mrb[0].mxu0
      %v9408 = vadd.f32 0.0, %v9407
      %v9409 = vpop.f32.mrb[0].mxu0
      %v9410 = vadd.f32 0.0, %v9409
      %v9411 = vpop.f32.mrb[0].mxu0
      %v9412 = vadd.f32 0.0, %v9411
      %9413 = vdwg.mxu0
      %v9446 = vunpack.c.l.b16 %v8979
      %v9447 = vunpack.c.h.b16 %v8979
      %v9448 = vunpack.c.l.b16 %v8980
      %v9449 = vunpack.c.h.b16 %v8980
      %v9450 = vunpack.c.l.b16 %v8981
      %v9451 = vunpack.c.h.b16 %v8981
      %v9452 = vunpack.c.l.b16 %v8982
      %v9453 = vunpack.c.h.b16 %v8982
      %v9454 = vunpack.c.l.b16 %v8983
      %v9455 = vunpack.c.h.b16 %v8983
      %v9456 = vunpack.c.l.b16 %v8984
      %v9457 = vunpack.c.h.b16 %v8984
      %v9458 = vunpack.c.l.b16 %v8985
      %v9459 = vunpack.c.h.b16 %v8985
      %v9460 = vunpack.c.l.b16 %v8986
      %v9461 = vunpack.c.h.b16 %v8986
      %v9462 = vunpack.c.l.b16 %v8987
      %v9463 = vunpack.c.h.b16 %v8987
      %v9464 = vunpack.c.l.b16 %v8988
      %v9465 = vunpack.c.h.b16 %v8988
      %v9466 = vunpack.c.l.b16 %v8989
      %v9467 = vunpack.c.h.b16 %v8989
      %v9468 = vunpack.c.l.b16 %v8990
      %v9469 = vunpack.c.h.b16 %v8990
      %v9470 = vunpack.c.l.b16 %v8991
      %v9471 = vunpack.c.h.b16 %v8991
      %v9472 = vunpack.c.l.b16 %v8992
      %v9473 = vunpack.c.h.b16 %v8992
      %v9474 = vunpack.c.l.b16 %v8993
      %v9475 = vunpack.c.h.b16 %v8993
      %v9476 = vunpack.c.l.b16 %v8994
      %v9477 = vunpack.c.h.b16 %v8994
      %v9478 = vunpack.c.l.b16 %v8995
      %v9479 = vunpack.c.h.b16 %v8995
      %v9480 = vunpack.c.l.b16 %v8996
      %v9481 = vunpack.c.h.b16 %v8996
      %v9482 = vunpack.c.l.b16 %v8997
      %v9483 = vunpack.c.h.b16 %v8997
      %v9484 = vunpack.c.l.b16 %v8998
      %v9485 = vunpack.c.h.b16 %v8998
      %v9486 = vunpack.c.l.b16 %v8999
      %v9487 = vunpack.c.h.b16 %v8999
      %v9488 = vunpack.c.l.b16 %v9000
      %v9489 = vunpack.c.h.b16 %v9000
      %v9490 = vunpack.c.l.b16 %v9001
      %v9491 = vunpack.c.h.b16 %v9001
      %v9492 = vunpack.c.l.b16 %v9002
      %v9493 = vunpack.c.h.b16 %v9002
      %v9494 = vunpack.c.l.b16 %v9003
      %v9495 = vunpack.c.h.b16 %v9003
      %v9496 = vunpack.c.l.b16 %v9004
      %v9497 = vunpack.c.h.b16 %v9004
      %v9498 = vunpack.c.l.b16 %v9005
      %v9499 = vunpack.c.h.b16 %v9005
      %v9500 = vunpack.c.l.b16 %v9006
      %v9501 = vunpack.c.h.b16 %v9006
      %v9502 = vunpack.c.l.b16 %v9007
      %v9503 = vunpack.c.h.b16 %v9007
      %v9504 = vunpack.c.l.b16 %v9008
      %v9505 = vunpack.c.h.b16 %v9008
      %v9506 = vunpack.c.l.b16 %v9009
      %v9507 = vunpack.c.h.b16 %v9009
      %v9508 = vunpack.c.l.b16 %v9010
      %v9509 = vunpack.c.h.b16 %v9010
      %v9510 = vpack.c.b16 %v9448, %v9446
      %v9511 = vpack.c.b16 %v9449, %v9447
      %v9512 = vpack.c.b16 %v9452, %v9450
      %v9513 = vpack.c.b16 %v9453, %v9451
      %v9514 = vpack.c.b16 %v9456, %v9454
      %v9515 = vpack.c.b16 %v9457, %v9455
      %v9516 = vpack.c.b16 %v9460, %v9458
      %v9517 = vpack.c.b16 %v9461, %v9459
      %v9518 = vpack.c.b16 %v9464, %v9462
      %v9519 = vpack.c.b16 %v9465, %v9463
      %v9520 = vpack.c.b16 %v9468, %v9466
      %v9521 = vpack.c.b16 %v9469, %v9467
      %v9522 = vpack.c.b16 %v9472, %v9470
      %v9523 = vpack.c.b16 %v9473, %v9471
      %v9524 = vpack.c.b16 %v9476, %v9474
      %v9525 = vpack.c.b16 %v9477, %v9475
      %v9526 = vpack.c.b16 %v9480, %v9478
      %v9527 = vpack.c.b16 %v9481, %v9479
      %v9528 = vpack.c.b16 %v9484, %v9482
      %v9529 = vpack.c.b16 %v9485, %v9483
      %v9530 = vpack.c.b16 %v9488, %v9486
      %v9531 = vpack.c.b16 %v9489, %v9487
      %v9532 = vpack.c.b16 %v9492, %v9490
      %v9533 = vpack.c.b16 %v9493, %v9491
      %v9534 = vpack.c.b16 %v9496, %v9494
      %v9535 = vpack.c.b16 %v9497, %v9495
      %v9536 = vpack.c.b16 %v9500, %v9498
      %v9537 = vpack.c.b16 %v9501, %v9499
      %v9538 = vpack.c.b16 %v9504, %v9502
      %v9539 = vpack.c.b16 %v9505, %v9503
      %v9540 = vpack.c.b16 %v9508, %v9506
      %v9541 = vpack.c.b16 %v9509, %v9507
      %9574 = vmatprep.subr.bf16.mxu0 %v9511
      %9575 = vmatpush1.bf16.msra.mxu0 %v9510
      %9576 = vmatprep.subr.bf16.mxu0 %v9513
      %9577 = vmatpush1.bf16.msra.mxu0 %v9512
      %9578 = vmatprep.subr.bf16.mxu0 %v9515
      %9579 = vmatpush1.bf16.msra.mxu0 %v9514
      %9580 = vmatprep.subr.bf16.mxu0 %v9517
      %9581 = vmatpush1.bf16.msra.mxu0 %v9516
      %9582 = vmatprep.subr.bf16.mxu0 %v9519
      %9583 = vmatpush1.bf16.msra.mxu0 %v9518
      %9584 = vmatprep.subr.bf16.mxu0 %v9521
      %9585 = vmatpush1.bf16.msra.mxu0 %v9520
      %9586 = vmatprep.subr.bf16.mxu0 %v9523
      %9587 = vmatpush1.bf16.msra.mxu0 %v9522
      %9588 = vmatprep.subr.bf16.mxu0 %v9525
      %9589 = vmatpush1.bf16.msra.mxu0 %v9524
      %9590 = vmatprep.subr.bf16.mxu0 %v9527
      %9591 = vmatpush1.bf16.msra.mxu0 %v9526
      %9592 = vmatprep.subr.bf16.mxu0 %v9529
      %9593 = vmatpush1.bf16.msra.mxu0 %v9528
      %9594 = vmatprep.subr.bf16.mxu0 %v9531
      %9595 = vmatpush1.bf16.msra.mxu0 %v9530
      %9596 = vmatprep.subr.bf16.mxu0 %v9533
      %9597 = vmatpush1.bf16.msra.mxu0 %v9532
      %9598 = vmatprep.subr.bf16.mxu0 %v9535
      %9599 = vmatpush1.bf16.msra.mxu0 %v9534
      %9600 = vmatprep.subr.bf16.mxu0 %v9537
      %9601 = vmatpush1.bf16.msra.mxu0 %v9536
      %9602 = vmatprep.subr.bf16.mxu0 %v9539
      %9603 = vmatpush1.bf16.msra.mxu0 %v9538
      %9604 = vmatprep.subr.bf16.mxu0 %v9541
      %9605 = vmatpush1.bf16.msra.mxu0 %v9540
      %9606 = vmatprep.mubr.bf16.mxu0 %v8968
      %9607 = vmatmul.mubr.bf16.gmra.mrb[0].mxu0 %v8967
      %v9608 = vpop.f32.mrb[0].mxu0
      %v9609 = vadd.f32 %v9356, %v9608
      %v9610 = vpop.f32.mrb[0].mxu0
      %v9611 = vadd.f32 %v9358, %v9610
      %v9612 = vpop.f32.mrb[0].mxu0
      %v9613 = vadd.f32 %v9360, %v9612
      %v9614 = vpop.f32.mrb[0].mxu0
      %v9615 = vadd.f32 %v9362, %v9614
      %9616 = vmatprep.mubr.bf16.mxu0 %v8970
      %9617 = vmatmul.mubr.bf16.gmra.mrb[0].mxu0 %v8969
      %v9618 = vpop.f32.mrb[0].mxu0
      %v9619 = vadd.f32 %v9366, %v9618
      %v9620 = vpop.f32.mrb[0].mxu0
      %v9621 = vadd.f32 %v9368, %v9620
      %v9622 = vpop.f32.mrb[0].mxu0
      %v9623 = vadd.f32 %v9370, %v9622
      %v9624 = vpop.f32.mrb[0].mxu0
      %v9625 = vadd.f32 %v9372, %v9624
      %9626 = vmatprep.mubr.bf16.mxu0 %v8972
      %9627 = vmatmul.mubr.bf16.gmra.mrb[0].mxu0 %v8971
      %v9628 = vpop.f32.mrb[0].mxu0
      %v9629 = vadd.f32 %v9376, %v9628
      %v9630 = vpop.f32.mrb[0].mxu0
      %v9631 = vadd.f32 %v9378, %v9630
      %v9632 = vpop.f32.mrb[0].mxu0
      %v9633 = vadd.f32 %v9380, %v9632
      %v9634 = vpop.f32.mrb[0].mxu0
      %v9635 = vadd.f32 %v9382, %v9634
      %9636 = vmatprep.mubr.bf16.mxu0 %v8974
      %9637 = vmatmul.mubr.bf16.gmra.mrb[0].mxu0 %v8973
      %v9638 = vpop.f32.mrb[0].mxu0
      %v9639 = vadd.f32 %v9386, %v9638
      %v9640 = vpop.f32.mrb[0].mxu0
      %v9641 = vadd.f32 %v9388, %v9640
      %v9642 = vpop.f32.mrb[0].mxu0
      %v9643 = vadd.f32 %v9390, %v9642
      %v9644 = vpop.f32.mrb[0].mxu0
      %v9645 = vadd.f32 %v9392, %v9644
      %9646 = vmatprep.mubr.bf16.mxu0 %v8976
      %9647 = vmatmul.mubr.bf16.gmra.mrb[0].mxu0 %v8975
      %v9648 = vpop.f32.mrb[0].mxu0
      %v9649 = vadd.f32 %v9396, %v9648
      %v9650 = vpop.f32.mrb[0].mxu0
      %v9651 = vadd.f32 %v9398, %v9650
      %v9652 = vpop.f32.mrb[0].mxu0
      %v9653 = vadd.f32 %v9400, %v9652
      %v9654 = vpop.f32.mrb[0].mxu0
      %v9655 = vadd.f32 %v9402, %v9654
      %9656 = vmatprep.mubr.bf16.mxu0 %v8978
      %9657 = vmatmul.mubr.bf16.gmra.mrb[0].mxu0 %v8977
      %v9658 = vpop.f32.mrb[0].mxu0
      %v9659 = vadd.f32 %v9406, %v9658
      %v9660 = vpop.f32.mrb[0].mxu0
      %v9661 = vadd.f32 %v9408, %v9660
      %v9662 = vpop.f32.mrb[0].mxu0
      %v9663 = vadd.f32 %v9410, %v9662
      %v9664 = vpop.f32.mrb[0].mxu0
      %v9665 = vadd.f32 %v9412, %v9664
      %9666 = vdwg.mxu0
      %v9667 = vld [vmem:[#allocation2 + $0xc0] sm:$0xfe]
      %v9668 = vld [vmem:[#allocation2 + $0xc8] sm:$0xfe]
      %v9669 = vld [vmem:[%s2353] sm:$0xff]
      %v9670 = vld [vmem:[%s2353 + $0x8] sm:$0xff]
      %v9671 = vld [vmem:[%s2353 + $0x10] sm:$0xff]
      %v9672 = vld [vmem:[%s2353 + $0x18] sm:$0xff]
      %v9673 = vld [vmem:[%s2353 + $0x20] sm:$0xff]
      %v9674 = vld [vmem:[%s2353 + $0x28] sm:$0xff]
      %v9675 = vld [vmem:[%s2353 + $0x30] sm:$0xff]
      %v9676 = vld [vmem:[%s2353 + $0x38] sm:$0xff]
      %v9677 = vld [vmem:[%s2353 + $0x40] sm:$0xff]
      %v9678 = vld [vmem:[%s2353 + $0x48] sm:$0xff]
      %v9679 = vld [vmem:[%s2353 + $0x50] sm:$0xff]
      %v9680 = vld [vmem:[%s2353 + $0x58] sm:$0xff]
      %v9681 = vld [vmem:[%s2353 + $0x60] sm:$0xff]
      %v9682 = vld [vmem:[%s2353 + $0x68] sm:$0xff]
      %v9683 = vld [vmem:[%s2353 + $0x70] sm:$0xff]
      %v9684 = vld [vmem:[%s2353 + $0x78] sm:$0xff]
      %v9685 = vld [vmem:[%s2353 + $0x80] sm:$0xff]
      %v9686 = vld [vmem:[%s2353 + $0x88] sm:$0xff]
      %v9687 = vld [vmem:[%s2353 + $0x90] sm:$0xff]
      %v9688 = vld [vmem:[%s2353 + $0x98] sm:$0xff]
      %v9689 = vld [vmem:[%s2353 + $0xa0] sm:$0xff]
      %v9690 = vld [vmem:[%s2353 + $0xa8] sm:$0xff]
      %v9691 = vld [vmem:[%s2353 + $0xb0] sm:$0xff]
      %v9692 = vld [vmem:[%s2353 + $0xb8] sm:$0xff]
      %v9693 = vld [vmem:[%s2353 + $0xc0] sm:$0xff]
      %v9694 = vld [vmem:[%s2353 + $0xc8] sm:$0xff]
      %v9695 = vld [vmem:[%s2353 + $0xd0] sm:$0xff]
      %v9696 = vld [vmem:[%s2353 + $0xd8] sm:$0xff]
      %v9697 = vld [vmem:[%s2353 + $0xe0] sm:$0xff]
      %v9698 = vld [vmem:[%s2353 + $0xe8] sm:$0xff]
      %v9699 = vld [vmem:[%s2353 + $0xf0] sm:$0xff]
      %v9700 = vld [vmem:[%s2353 + $0xf8] sm:$0xff]
      %v9715 = vrot.slane %v9667, 1
      %v9716 = vrot.slane %v8969, 1
      %v9717 = vsel %vm2400, %v9715, %v9716
      %v9718 = vrot.slane %v9668, 1
      %v9719 = vrot.slane %v8970, 1
      %v9720 = vsel %vm2400, %v9718, %v9719
      %v9721 = vrot.slane %v8971, 1
      %v9722 = vsel %vm2400, %v9716, %v9721
      %v9723 = vrot.slane %v8972, 1
      %v9724 = vsel %vm2400, %v9719, %v9723
      %v9725 = vrot.slane %v8973, 1
      %v9726 = vsel %vm2400, %v9721, %v9725
      %v9727 = vrot.slane %v8974, 1
      %v9728 = vsel %vm2400, %v9723, %v9727
      %v9729 = vrot.slane %v8975, 1
      %v9730 = vsel %vm2400, %v9725, %v9729
      %v9731 = vrot.slane %v8976, 1
      %v9732 = vsel %vm2400, %v9727, %v9731
      %v9733 = vrot.slane %v8977, 1
      %v9734 = vsel %vm2400, %v9729, %v9733
      %v9735 = vrot.slane %v8978, 1
      %v9736 = vsel %vm2400, %v9731, %v9735
      %v9737 = vrot.slane %v9011, 1
      %v9738 = vsel %vm2400, %v9733, %v9737
      %v9739 = vrot.slane %v9012, 1
      %v9740 = vsel %vm2400, %v9735, %v9739
      %v9785 = vunpack.c.l.b16 %v9669
      %v9786 = vunpack.c.h.b16 %v9669
      %v9787 = vunpack.c.l.b16 %v9670
      %v9788 = vunpack.c.h.b16 %v9670
      %v9789 = vunpack.c.l.b16 %v9671
      %v9790 = vunpack.c.h.b16 %v9671
      %v9791 = vunpack.c.l.b16 %v9672
      %v9792 = vunpack.c.h.b16 %v9672
      %v9793 = vunpack.c.l.b16 %v9673
      %v9794 = vunpack.c.h.b16 %v9673
      %v9795 = vunpack.c.l.b16 %v9674
      %v9796 = vunpack.c.h.b16 %v9674
      %v9797 = vunpack.c.l.b16 %v9675
      %v9798 = vunpack.c.h.b16 %v9675
      %v9799 = vunpack.c.l.b16 %v9676
      %v9800 = vunpack.c.h.b16 %v9676
      %v9801 = vunpack.c.l.b16 %v9677
      %v9802 = vunpack.c.h.b16 %v9677
      %v9803 = vunpack.c.l.b16 %v9678
      %v9804 = vunpack.c.h.b16 %v9678
      %v9805 = vunpack.c.l.b16 %v9679
      %v9806 = vunpack.c.h.b16 %v9679
      %v9807 = vunpack.c.l.b16 %v9680
      %v9808 = vunpack.c.h.b16 %v9680
      %v9809 = vunpack.c.l.b16 %v9681
      %v9810 = vunpack.c.h.b16 %v9681
      %v9811 = vunpack.c.l.b16 %v9682
      %v9812 = vunpack.c.h.b16 %v9682
      %v9813 = vunpack.c.l.b16 %v9683
      %v9814 = vunpack.c.h.b16 %v9683
      %v9815 = vunpack.c.l.b16 %v9684
      %v9816 = vunpack.c.h.b16 %v9684
      %v9817 = vunpack.c.l.b16 %v9685
      %v9818 = vunpack.c.h.b16 %v9685
      %v9819 = vunpack.c.l.b16 %v9686
      %v9820 = vunpack.c.h.b16 %v9686
      %v9821 = vunpack.c.l.b16 %v9687
      %v9822 = vunpack.c.h.b16 %v9687
      %v9823 = vunpack.c.l.b16 %v9688
      %v9824 = vunpack.c.h.b16 %v9688
      %v9825 = vunpack.c.l.b16 %v9689
      %v9826 = vunpack.c.h.b16 %v9689
      %v9827 = vunpack.c.l.b16 %v9690
      %v9828 = vunpack.c.h.b16 %v9690
      %v9829 = vunpack.c.l.b16 %v9691
      %v9830 = vunpack.c.h.b16 %v9691
      %v9831 = vunpack.c.l.b16 %v9692
      %v9832 = vunpack.c.h.b16 %v9692
      %v9833 = vunpack.c.l.b16 %v9693
      %v9834 = vunpack.c.h.b16 %v9693
      %v9835 = vunpack.c.l.b16 %v9694
      %v9836 = vunpack.c.h.b16 %v9694
      %v9837 = vunpack.c.l.b16 %v9695
      %v9838 = vunpack.c.h.b16 %v9695
      %v9839 = vunpack.c.l.b16 %v9696
      %v9840 = vunpack.c.h.b16 %v9696
      %v9841 = vunpack.c.l.b16 %v9697
      %v9842 = vunpack.c.h.b16 %v9697
      %v9843 = vunpack.c.l.b16 %v9698
      %v9844 = vunpack.c.h.b16 %v9698
      %v9845 = vunpack.c.l.b16 %v9699
      %v9846 = vunpack.c.h.b16 %v9699
      %v9847 = vunpack.c.l.b16 %v9700
      %v9848 = vunpack.c.h.b16 %v9700
      %v9849 = vpack.c.b16 %v9787, %v9785
      %v9850 = vpack.c.b16 %v9788, %v9786
      %v9851 = vpack.c.b16 %v9791, %v9789
      %v9852 = vpack.c.b16 %v9792, %v9790
      %v9853 = vpack.c.b16 %v9795, %v9793
      %v9854 = vpack.c.b16 %v9796, %v9794
      %v9855 = vpack.c.b16 %v9799, %v9797
      %v9856 = vpack.c.b16 %v9800, %v9798
      %v9857 = vpack.c.b16 %v9803, %v9801
      %v9858 = vpack.c.b16 %v9804, %v9802
      %v9859 = vpack.c.b16 %v9807, %v9805
      %v9860 = vpack.c.b16 %v9808, %v9806
      %v9861 = vpack.c.b16 %v9811, %v9809
      %v9862 = vpack.c.b16 %v9812, %v9810
      %v9863 = vpack.c.b16 %v9815, %v9813
      %v9864 = vpack.c.b16 %v9816, %v9814
      %v9865 = vpack.c.b16 %v9819, %v9817
      %v9866 = vpack.c.b16 %v9820, %v9818
      %v9867 = vpack.c.b16 %v9823, %v9821
      %v9868 = vpack.c.b16 %v9824, %v9822
      %v9869 = vpack.c.b16 %v9827, %v9825
      %v9870 = vpack.c.b16 %v9828, %v9826
      %v9871 = vpack.c.b16 %v9831, %v9829
      %v9872 = vpack.c.b16 %v9832, %v9830
      %v9873 = vpack.c.b16 %v9835, %v9833
      %v9874 = vpack.c.b16 %v9836, %v9834
      %v9875 = vpack.c.b16 %v9839, %v9837
      %v9876 = vpack.c.b16 %v9840, %v9838
      %v9877 = vpack.c.b16 %v9843, %v9841
      %v9878 = vpack.c.b16 %v9844, %v9842
      %v9879 = vpack.c.b16 %v9847, %v9845
      %v9880 = vpack.c.b16 %v9848, %v9846
      %9913 = vmatprep.subr.bf16.mxu0 %v9850
      %9914 = vmatpush1.bf16.msra.mxu0 %v9849
      %9915 = vmatprep.subr.bf16.mxu0 %v9852
      %9916 = vmatpush1.bf16.msra.mxu0 %v9851
      %9917 = vmatprep.subr.bf16.mxu0 %v9854
      %9918 = vmatpush1.bf16.msra.mxu0 %v9853
      %9919 = vmatprep.subr.bf16.mxu0 %v9856
      %9920 = vmatpush1.bf16.msra.mxu0 %v9855
      %9921 = vmatprep.subr.bf16.mxu0 %v9858
      %9922 = vmatpush1.bf16.msra.mxu0 %v9857
      %9923 = vmatprep.subr.bf16.mxu0 %v9860
      %9924 = vmatpush1.bf16.msra.mxu0 %v9859
      %9925 = vmatprep.subr.bf16.mxu0 %v9862
      %9926 = vmatpush1.bf16.msra.mxu0 %v9861
      %9927 = vmatprep.subr.bf16.mxu0 %v9864
      %9928 = vmatpush1.bf16.msra.mxu0 %v9863
      %9929 = vmatprep.subr.bf16.mxu0 %v9866
      %9930 = vmatpush1.bf16.msra.mxu0 %v9865
      %9931 = vmatprep.subr.bf16.mxu0 %v9868
      %9932 = vmatpush1.bf16.msra.mxu0 %v9867
      %9933 = vmatprep.subr.bf16.mxu0 %v9870
      %9934 = vmatpush1.bf16.msra.mxu0 %v9869
      %9935 = vmatprep.subr.bf16.mxu0 %v9872
      %9936 = vmatpush1.bf16.msra.mxu0 %v9871
      %9937 = vmatprep.subr.bf16.mxu0 %v9874
      %9938 = vmatpush1.bf16.msra.mxu0 %v9873
      %9939 = vmatprep.subr.bf16.mxu0 %v9876
      %9940 = vmatpush1.bf16.msra.mxu0 %v9875
      %9941 = vmatprep.subr.bf16.mxu0 %v9878
      %9942 = vmatpush1.bf16.msra.mxu0 %v9877
      %9943 = vmatprep.subr.bf16.mxu0 %v9880
      %9944 = vmatpush1.bf16.msra.mxu0 %v9879
      %9945 = vmatprep.mubr.bf16.mxu0 %v9720
      %9946 = vmatmul.mubr.bf16.gmra.mrb[0].mxu0 %v9717
      %v9947 = vpop.f32.mrb[0].mxu0
      %v9948 = vadd.f32 0.0, %v9947
      %v9949 = vpop.f32.mrb[0].mxu0
      %v9950 = vadd.f32 0.0, %v9949
      %v9951 = vpop.f32.mrb[0].mxu0
      %v9952 = vadd.f32 0.0, %v9951
      %v9953 = vpop.f32.mrb[0].mxu0
      %v9954 = vadd.f32 0.0, %v9953
      %9955 = vmatprep.mubr.bf16.mxu0 %v9724
      %9956 = vmatmul.mubr.bf16.gmra.mrb[0].mxu0 %v9722
      %v9957 = vpop.f32.mrb[0].mxu0
      %v9958 = vadd.f32 0.0, %v9957
      %v9959 = vpop.f32.mrb[0].mxu0
      %v9960 = vadd.f32 0.0, %v9959
      %v9961 = vpop.f32.mrb[0].mxu0
      %v9962 = vadd.f32 0.0, %v9961
      %v9963 = vpop.f32.mrb[0].mxu0
      %v9964 = vadd.f32 0.0, %v9963
      %9965 = vmatprep.mubr.bf16.mxu0 %v9728
      %9966 = vmatmul.mubr.bf16.gmra.mrb[0].mxu0 %v9726
      %v9967 = vpop.f32.mrb[0].mxu0
      %v9968 = vadd.f32 0.0, %v9967
      %v9969 = vpop.f32.mrb[0].mxu0
      %v9970 = vadd.f32 0.0, %v9969
      %v9971 = vpop.f32.mrb[0].mxu0
      %v9972 = vadd.f32 0.0, %v9971
      %v9973 = vpop.f32.mrb[0].mxu0
      %v9974 = vadd.f32 0.0, %v9973
      %9975 = vmatprep.mubr.bf16.mxu0 %v9732
      %9976 = vmatmul.mubr.bf16.gmra.mrb[0].mxu0 %v9730
      %v9977 = vpop.f32.mrb[0].mxu0
      %v9978 = vadd.f32 0.0, %v9977
      %v9979 = vpop.f32.mrb[0].mxu0
      %v9980 = vadd.f32 0.0, %v9979
      %v9981 = vpop.f32.mrb[0].mxu0
      %v9982 = vadd.f32 0.0, %v9981
      %v9983 = vpop.f32.mrb[0].mxu0
      %v9984 = vadd.f32 0.0, %v9983
      %9985 = vmatprep.mubr.bf16.mxu0 %v9736
      %9986 = vmatmul.mubr.bf16.gmra.mrb[0].mxu0 %v9734
      %v9987 = vpop.f32.mrb[0].mxu0
      %v9988 = vadd.f32 0.0, %v9987
      %v9989 = vpop.f32.mrb[0].mxu0
      %v9990 = vadd.f32 0.0, %v9989
      %v9991 = vpop.f32.mrb[0].mxu0
      %v9992 = vadd.f32 0.0, %v9991
      %v9993 = vpop.f32.mrb[0].mxu0
      %v9994 = vadd.f32 0.0, %v9993
      %9995 = vmatprep.mubr.bf16.mxu0 %v9740
      %9996 = vmatmul.mubr.bf16.gmra.mrb[0].mxu0 %v9738
      %v9997 = vpop.f32.mrb[0].mxu0
      %v9998 = vadd.f32 0.0, %v9997
      %v9999 = vpop.f32.mrb[0].mxu0
      %v10000 = vadd.f32 0.0, %v9999
      %v10001 = vpop.f32.mrb[0].mxu0
      %v10002 = vadd.f32 0.0, %v10001
      %v10003 = vpop.f32.mrb[0].mxu0
      %v10004 = vadd.f32 0.0, %v10003
      %10005 = vdwg.mxu0
      %v10006 = vadd.f32 %v9609, %v9948
      %v10007 = vadd.f32 %v9611, %v9950
      %v10008 = vadd.f32 %v9613, %v9952
      %v10009 = vadd.f32 %v9615, %v9954
      %v10010 = vadd.f32 %v9619, %v9958
      %v10011 = vadd.f32 %v9621, %v9960
      %v10012 = vadd.f32 %v9623, %v9962
      %v10013 = vadd.f32 %v9625, %v9964
      %v10014 = vadd.f32 %v9629, %v9968
      %v10015 = vadd.f32 %v9631, %v9970
      %v10016 = vadd.f32 %v9633, %v9972
      %v10017 = vadd.f32 %v9635, %v9974
      %v10018 = vadd.f32 %v9639, %v9978
      %v10019 = vadd.f32 %v9641, %v9980
      %v10020 = vadd.f32 %v9643, %v9982
      %v10021 = vadd.f32 %v9645, %v9984
      %v10022 = vadd.f32 %v9649, %v9988
      %v10023 = vadd.f32 %v9651, %v9990
      %v10024 = vadd.f32 %v9653, %v9992
      %v10025 = vadd.f32 %v9655, %v9994
      %v10026 = vadd.f32 %v9659, %v9998
      %v10027 = vadd.f32 %v9661, %v10000
      %v10028 = vadd.f32 %v9663, %v10002
      %v10029 = vadd.f32 %v9665, %v10004
      %v10030 = vld [vmem:[#allocation2 + $0xd0] sm:$0xfe]
      %v10031 = vld [vmem:[#allocation2 + $0xd8] sm:$0xfe]
      %v10032 = vld [vmem:[#allocation2 + $0xe0] sm:$0xff]
      %v10033 = vld [vmem:[#allocation2 + $0xe8] sm:$0xff]
      %v10034 = vld [vmem:[#allocation2 + $0xf0] sm:$0xff]
      %v10035 = vld [vmem:[#allocation2 + $0xf8] sm:$0xff]
      %v10036 = vld [vmem:[#allocation2 + $0x100] sm:$0xff]
      %v10037 = vld [vmem:[#allocation2 + $0x108] sm:$0xff]
      %v10038 = vld [vmem:[#allocation2 + $0x110] sm:$0xff]
      %v10039 = vld [vmem:[#allocation2 + $0x118] sm:$0xff]
      %v10040 = vld [vmem:[#allocation2 + $0x120] sm:$0xff]
      %v10041 = vld [vmem:[#allocation2 + $0x128] sm:$0xff]
      %v10042 = vld [vmem:[#allocation2 + $0x130] sm:$0x1]
      %v10043 = vld [vmem:[#allocation2 + $0x138] sm:$0x1]
      %v10044 = vld [vmem:[%s2730] sm:$0xff]
      %v10045 = vld [vmem:[%s2730 + $0x8] sm:$0xff]
      %v10046 = vld [vmem:[%s2730 + $0x10] sm:$0xff]
      %v10047 = vld [vmem:[%s2730 + $0x18] sm:$0xff]
      %v10048 = vld [vmem:[%s2730 + $0x20] sm:$0xff]
      %v10049 = vld [vmem:[%s2730 + $0x28] sm:$0xff]
      %v10050 = vld [vmem:[%s2730 + $0x30] sm:$0xff]
      %v10051 = vld [vmem:[%s2730 + $0x38] sm:$0xff]
      %v10052 = vld [vmem:[%s2730 + $0x40] sm:$0xff]
      %v10053 = vld [vmem:[%s2730 + $0x48] sm:$0xff]
      %v10054 = vld [vmem:[%s2730 + $0x50] sm:$0xff]
      %v10055 = vld [vmem:[%s2730 + $0x58] sm:$0xff]
      %v10056 = vld [vmem:[%s2730 + $0x60] sm:$0xff]
      %v10057 = vld [vmem:[%s2730 + $0x68] sm:$0xff]
      %v10058 = vld [vmem:[%s2730 + $0x70] sm:$0xff]
      %v10059 = vld [vmem:[%s2730 + $0x78] sm:$0xff]
      %v10060 = vld [vmem:[%s2730 + $0x80] sm:$0xff]
      %v10061 = vld [vmem:[%s2730 + $0x88] sm:$0xff]
      %v10062 = vld [vmem:[%s2730 + $0x90] sm:$0xff]
      %v10063 = vld [vmem:[%s2730 + $0x98] sm:$0xff]
      %v10064 = vld [vmem:[%s2730 + $0xa0] sm:$0xff]
      %v10065 = vld [vmem:[%s2730 + $0xa8] sm:$0xff]
      %v10066 = vld [vmem:[%s2730 + $0xb0] sm:$0xff]
      %v10067 = vld [vmem:[%s2730 + $0xb8] sm:$0xff]
      %v10068 = vld [vmem:[%s2730 + $0xc0] sm:$0xff]
      %v10069 = vld [vmem:[%s2730 + $0xc8] sm:$0xff]
      %v10070 = vld [vmem:[%s2730 + $0xd0] sm:$0xff]
      %v10071 = vld [vmem:[%s2730 + $0xd8] sm:$0xff]
      %v10072 = vld [vmem:[%s2730 + $0xe0] sm:$0xff]
      %v10073 = vld [vmem:[%s2730 + $0xe8] sm:$0xff]
      %v10074 = vld [vmem:[%s2730 + $0xf0] sm:$0xff]
      %v10075 = vld [vmem:[%s2730 + $0xf8] sm:$0xff]
      %v10090 = vrot.slane %v10030, 1
      %v10091 = vrot.slane %v10032, 1
      %v10092 = vsel %vm2400, %v10090, %v10091
      %v10093 = vrot.slane %v10031, 1
      %v10094 = vrot.slane %v10033, 1
      %v10095 = vsel %vm2400, %v10093, %v10094
      %v10096 = vrot.slane %v10034, 1
      %v10097 = vsel %vm2400, %v10091, %v10096
      %v10098 = vrot.slane %v10035, 1
      %v10099 = vsel %vm2400, %v10094, %v10098
      %v10100 = vrot.slane %v10036, 1
      %v10101 = vsel %vm2400, %v10096, %v10100
      %v10102 = vrot.slane %v10037, 1
      %v10103 = vsel %vm2400, %v10098, %v10102
      %v10104 = vrot.slane %v10038, 1
      %v10105 = vsel %vm2400, %v10100, %v10104
      %v10106 = vrot.slane %v10039, 1
      %v10107 = vsel %vm2400, %v10102, %v10106
      %v10108 = vrot.slane %v10040, 1
      %v10109 = vsel %vm2400, %v10104, %v10108
      %v10110 = vrot.slane %v10041, 1
      %v10111 = vsel %vm2400, %v10106, %v10110
      %v10112 = vrot.slane %v10042, 1
      %v10113 = vsel %vm2400, %v10108, %v10112
      %v10114 = vrot.slane %v10043, 1
      %v10115 = vsel %vm2400, %v10110, %v10114
      %v10160 = vunpack.c.l.b16 %v10044
      %v10161 = vunpack.c.h.b16 %v10044
      %v10162 = vunpack.c.l.b16 %v10045
      %v10163 = vunpack.c.h.b16 %v10045
      %v10164 = vunpack.c.l.b16 %v10046
      %v10165 = vunpack.c.h.b16 %v10046
      %v10166 = vunpack.c.l.b16 %v10047
      %v10167 = vunpack.c.h.b16 %v10047
      %v10168 = vunpack.c.l.b16 %v10048
      %v10169 = vunpack.c.h.b16 %v10048
      %v10170 = vunpack.c.l.b16 %v10049
      %v10171 = vunpack.c.h.b16 %v10049
      %v10172 = vunpack.c.l.b16 %v10050
      %v10173 = vunpack.c.h.b16 %v10050
      %v10174 = vunpack.c.l.b16 %v10051
      %v10175 = vunpack.c.h.b16 %v10051
      %v10176 = vunpack.c.l.b16 %v10052
      %v10177 = vunpack.c.h.b16 %v10052
      %v10178 = vunpack.c.l.b16 %v10053
      %v10179 = vunpack.c.h.b16 %v10053
      %v10180 = vunpack.c.l.b16 %v10054
      %v10181 = vunpack.c.h.b16 %v10054
      %v10182 = vunpack.c.l.b16 %v10055
      %v10183 = vunpack.c.h.b16 %v10055
      %v10184 = vunpack.c.l.b16 %v10056
      %v10185 = vunpack.c.h.b16 %v10056
      %v10186 = vunpack.c.l.b16 %v10057
      %v10187 = vunpack.c.h.b16 %v10057
      %v10188 = vunpack.c.l.b16 %v10058
      %v10189 = vunpack.c.h.b16 %v10058
      %v10190 = vunpack.c.l.b16 %v10059
      %v10191 = vunpack.c.h.b16 %v10059
      %v10192 = vunpack.c.l.b16 %v10060
      %v10193 = vunpack.c.h.b16 %v10060
      %v10194 = vunpack.c.l.b16 %v10061
      %v10195 = vunpack.c.h.b16 %v10061
      %v10196 = vunpack.c.l.b16 %v10062
      %v10197 = vunpack.c.h.b16 %v10062
      %v10198 = vunpack.c.l.b16 %v10063
      %v10199 = vunpack.c.h.b16 %v10063
      %v10200 = vunpack.c.l.b16 %v10064
      %v10201 = vunpack.c.h.b16 %v10064
      %v10202 = vunpack.c.l.b16 %v10065
      %v10203 = vunpack.c.h.b16 %v10065
      %v10204 = vunpack.c.l.b16 %v10066
      %v10205 = vunpack.c.h.b16 %v10066
      %v10206 = vunpack.c.l.b16 %v10067
      %v10207 = vunpack.c.h.b16 %v10067
      %v10208 = vunpack.c.l.b16 %v10068
      %v10209 = vunpack.c.h.b16 %v10068
      %v10210 = vunpack.c.l.b16 %v10069
      %v10211 = vunpack.c.h.b16 %v10069
      %v10212 = vunpack.c.l.b16 %v10070
      %v10213 = vunpack.c.h.b16 %v10070
      %v10214 = vunpack.c.l.b16 %v10071
      %v10215 = vunpack.c.h.b16 %v10071
      %v10216 = vunpack.c.l.b16 %v10072
      %v10217 = vunpack.c.h.b16 %v10072
      %v10218 = vunpack.c.l.b16 %v10073
      %v10219 = vunpack.c.h.b16 %v10073
      %v10220 = vunpack.c.l.b16 %v10074
      %v10221 = vunpack.c.h.b16 %v10074
      %v10222 = vunpack.c.l.b16 %v10075
      %v10223 = vunpack.c.h.b16 %v10075
      %v10224 = vpack.c.b16 %v10162, %v10160
      %v10225 = vpack.c.b16 %v10163, %v10161
      %v10226 = vpack.c.b16 %v10166, %v10164
      %v10227 = vpack.c.b16 %v10167, %v10165
      %v10228 = vpack.c.b16 %v10170, %v10168
      %v10229 = vpack.c.b16 %v10171, %v10169
      %v10230 = vpack.c.b16 %v10174, %v10172
      %v10231 = vpack.c.b16 %v10175, %v10173
      %v10232 = vpack.c.b16 %v10178, %v10176
      %v10233 = vpack.c.b16 %v10179, %v10177
      %v10234 = vpack.c.b16 %v10182, %v10180
      %v10235 = vpack.c.b16 %v10183, %v10181
      %v10236 = vpack.c.b16 %v10186, %v10184
      %v10237 = vpack.c.b16 %v10187, %v10185
      %v10238 = vpack.c.b16 %v10190, %v10188
      %v10239 = vpack.c.b16 %v10191, %v10189
      %v10240 = vpack.c.b16 %v10194, %v10192
      %v10241 = vpack.c.b16 %v10195, %v10193
      %v10242 = vpack.c.b16 %v10198, %v10196
      %v10243 = vpack.c.b16 %v10199, %v10197
      %v10244 = vpack.c.b16 %v10202, %v10200
      %v10245 = vpack.c.b16 %v10203, %v10201
      %v10246 = vpack.c.b16 %v10206, %v10204
      %v10247 = vpack.c.b16 %v10207, %v10205
      %v10248 = vpack.c.b16 %v10210, %v10208
      %v10249 = vpack.c.b16 %v10211, %v10209
      %v10250 = vpack.c.b16 %v10214, %v10212
      %v10251 = vpack.c.b16 %v10215, %v10213
      %v10252 = vpack.c.b16 %v10218, %v10216
      %v10253 = vpack.c.b16 %v10219, %v10217
      %v10254 = vpack.c.b16 %v10222, %v10220
      %v10255 = vpack.c.b16 %v10223, %v10221
      %10288 = vmatprep.subr.bf16.mxu0 %v10225
      %10289 = vmatpush1.bf16.msra.mxu0 %v10224
      %10290 = vmatprep.subr.bf16.mxu0 %v10227
      %10291 = vmatpush1.bf16.msra.mxu0 %v10226
      %10292 = vmatprep.subr.bf16.mxu0 %v10229
      %10293 = vmatpush1.bf16.msra.mxu0 %v10228
      %10294 = vmatprep.subr.bf16.mxu0 %v10231
      %10295 = vmatpush1.bf16.msra.mxu0 %v10230
      %10296 = vmatprep.subr.bf16.mxu0 %v10233
      %10297 = vmatpush1.bf16.msra.mxu0 %v10232
      %10298 = vmatprep.subr.bf16.mxu0 %v10235
      %10299 = vmatpush1.bf16.msra.mxu0 %v10234
      %10300 = vmatprep.subr.bf16.mxu0 %v10237
      %10301 = vmatpush1.bf16.msra.mxu0 %v10236
      %10302 = vmatprep.subr.bf16.mxu0 %v10239
      %10303 = vmatpush1.bf16.msra.mxu0 %v10238
      %10304 = vmatprep.subr.bf16.mxu0 %v10241
      %10305 = vmatpush1.bf16.msra.mxu0 %v10240
      %10306 = vmatprep.subr.bf16.mxu0 %v10243
      %10307 = vmatpush1.bf16.msra.mxu0 %v10242
      %10308 = vmatprep.subr.bf16.mxu0 %v10245
      %10309 = vmatpush1.bf16.msra.mxu0 %v10244
      %10310 = vmatprep.subr.bf16.mxu0 %v10247
      %10311 = vmatpush1.bf16.msra.mxu0 %v10246
      %10312 = vmatprep.subr.bf16.mxu0 %v10249
      %10313 = vmatpush1.bf16.msra.mxu0 %v10248
      %10314 = vmatprep.subr.bf16.mxu0 %v10251
      %10315 = vmatpush1.bf16.msra.mxu0 %v10250
      %10316 = vmatprep.subr.bf16.mxu0 %v10253
      %10317 = vmatpush1.bf16.msra.mxu0 %v10252
      %10318 = vmatprep.subr.bf16.mxu0 %v10255
      %10319 = vmatpush1.bf16.msra.mxu0 %v10254
      %10320 = vmatprep.mubr.bf16.mxu0 %v10095
      %10321 = vmatmul.mubr.bf16.gmra.mrb[0].mxu0 %v10092
      %v10322 = vpop.f32.mrb[0].mxu0
      %v10323 = vadd.f32 0.0, %v10322
      %v10324 = vpop.f32.mrb[0].mxu0
      %v10325 = vadd.f32 0.0, %v10324
      %v10326 = vpop.f32.mrb[0].mxu0
      %v10327 = vadd.f32 0.0, %v10326
      %v10328 = vpop.f32.mrb[0].mxu0
      %v10329 = vadd.f32 0.0, %v10328
      %10330 = vmatprep.mubr.bf16.mxu0 %v10099
      %10331 = vmatmul.mubr.bf16.gmra.mrb[0].mxu0 %v10097
      %v10332 = vpop.f32.mrb[0].mxu0
      %v10333 = vadd.f32 0.0, %v10332
      %v10334 = vpop.f32.mrb[0].mxu0
      %v10335 = vadd.f32 0.0, %v10334
      %v10336 = vpop.f32.mrb[0].mxu0
      %v10337 = vadd.f32 0.0, %v10336
      %v10338 = vpop.f32.mrb[0].mxu0
      %v10339 = vadd.f32 0.0, %v10338
      %10340 = vmatprep.mubr.bf16.mxu0 %v10103
      %10341 = vmatmul.mubr.bf16.gmra.mrb[0].mxu0 %v10101
      %v10342 = vpop.f32.mrb[0].mxu0
      %v10343 = vadd.f32 0.0, %v10342
      %v10344 = vpop.f32.mrb[0].mxu0
      %v10345 = vadd.f32 0.0, %v10344
      %v10346 = vpop.f32.mrb[0].mxu0
      %v10347 = vadd.f32 0.0, %v10346
      %v10348 = vpop.f32.mrb[0].mxu0
      %v10349 = vadd.f32 0.0, %v10348
      %10350 = vmatprep.mubr.bf16.mxu0 %v10107
      %10351 = vmatmul.mubr.bf16.gmra.mrb[0].mxu0 %v10105
      %v10352 = vpop.f32.mrb[0].mxu0
      %v10353 = vadd.f32 0.0, %v10352
      %v10354 = vpop.f32.mrb[0].mxu0
      %v10355 = vadd.f32 0.0, %v10354
      %v10356 = vpop.f32.mrb[0].mxu0
      %v10357 = vadd.f32 0.0, %v10356
      %v10358 = vpop.f32.mrb[0].mxu0
      %v10359 = vadd.f32 0.0, %v10358
      %10360 = vmatprep.mubr.bf16.mxu0 %v10111
      %10361 = vmatmul.mubr.bf16.gmra.mrb[0].mxu0 %v10109
      %v10362 = vpop.f32.mrb[0].mxu0
      %v10363 = vadd.f32 0.0, %v10362
      %v10364 = vpop.f32.mrb[0].mxu0
      %v10365 = vadd.f32 0.0, %v10364
      %v10366 = vpop.f32.mrb[0].mxu0
      %v10367 = vadd.f32 0.0, %v10366
      %v10368 = vpop.f32.mrb[0].mxu0
      %v10369 = vadd.f32 0.0, %v10368
      %10370 = vmatprep.mubr.bf16.mxu0 %v10115
      %10371 = vmatmul.mubr.bf16.gmra.mrb[0].mxu0 %v10113
      %v10372 = vpop.f32.mrb[0].mxu0
      %v10373 = vadd.f32 0.0, %v10372
      %v10374 = vpop.f32.mrb[0].mxu0
      %v10375 = vadd.f32 0.0, %v10374
      %v10376 = vpop.f32.mrb[0].mxu0
      %v10377 = vadd.f32 0.0, %v10376
      %v10378 = vpop.f32.mrb[0].mxu0
      %v10379 = vadd.f32 0.0, %v10378
      %10380 = vdwg.mxu0
      %v10381 = vadd.f32 %v10006, %v10323
      %v10382 = vadd.f32 %v10007, %v10325
      %v10383 = vadd.f32 %v10008, %v10327
      %v10384 = vadd.f32 %v10009, %v10329
      %v10385 = vadd.f32 %v10010, %v10333
      %v10386 = vadd.f32 %v10011, %v10335
      %v10387 = vadd.f32 %v10012, %v10337
      %v10388 = vadd.f32 %v10013, %v10339
      %v10389 = vadd.f32 %v10014, %v10343
      %v10390 = vadd.f32 %v10015, %v10345
      %v10391 = vadd.f32 %v10016, %v10347
      %v10392 = vadd.f32 %v10017, %v10349
      %v10393 = vadd.f32 %v10018, %v10353
      %v10394 = vadd.f32 %v10019, %v10355
      %v10395 = vadd.f32 %v10020, %v10357
      %v10396 = vadd.f32 %v10021, %v10359
      %v10397 = vadd.f32 %v10022, %v10363
      %v10398 = vadd.f32 %v10023, %v10365
      %v10399 = vadd.f32 %v10024, %v10367
      %v10400 = vadd.f32 %v10025, %v10369
      %v10401 = vadd.f32 %v10026, %v10373
      %v10402 = vadd.f32 %v10027, %v10375
      %v10403 = vadd.f32 %v10028, %v10377
      %v10404 = vadd.f32 %v10029, %v10379
      %v10405 = vld [vmem:[#allocation2 + $0x130] sm:$0x3]
      %v10406 = vld [vmem:[#allocation2 + $0x138] sm:$0x3]
      %v10407 = vld [vmem:[%s3094] sm:$0xff]
      %v10408 = vld [vmem:[%s3094 + $0x8] sm:$0xff]
      %v10409 = vld [vmem:[%s3094 + $0x10] sm:$0xff]
      %v10410 = vld [vmem:[%s3094 + $0x18] sm:$0xff]
      %v10411 = vld [vmem:[%s3094 + $0x20] sm:$0xff]
      %v10412 = vld [vmem:[%s3094 + $0x28] sm:$0xff]
      %v10413 = vld [vmem:[%s3094 + $0x30] sm:$0xff]
      %v10414 = vld [vmem:[%s3094 + $0x38] sm:$0xff]
      %v10415 = vld [vmem:[%s3094 + $0x40] sm:$0xff]
      %v10416 = vld [vmem:[%s3094 + $0x48] sm:$0xff]
      %v10417 = vld [vmem:[%s3094 + $0x50] sm:$0xff]
      %v10418 = vld [vmem:[%s3094 + $0x58] sm:$0xff]
      %v10419 = vld [vmem:[%s3094 + $0x60] sm:$0xff]
      %v10420 = vld [vmem:[%s3094 + $0x68] sm:$0xff]
      %v10421 = vld [vmem:[%s3094 + $0x70] sm:$0xff]
      %v10422 = vld [vmem:[%s3094 + $0x78] sm:$0xff]
      %v10423 = vld [vmem:[%s3094 + $0x80] sm:$0xff]
      %v10424 = vld [vmem:[%s3094 + $0x88] sm:$0xff]
      %v10425 = vld [vmem:[%s3094 + $0x90] sm:$0xff]
      %v10426 = vld [vmem:[%s3094 + $0x98] sm:$0xff]
      %v10427 = vld [vmem:[%s3094 + $0xa0] sm:$0xff]
      %v10428 = vld [vmem:[%s3094 + $0xa8] sm:$0xff]
      %v10429 = vld [vmem:[%s3094 + $0xb0] sm:$0xff]
      %v10430 = vld [vmem:[%s3094 + $0xb8] sm:$0xff]
      %v10431 = vld [vmem:[%s3094 + $0xc0] sm:$0xff]
      %v10432 = vld [vmem:[%s3094 + $0xc8] sm:$0xff]
      %v10433 = vld [vmem:[%s3094 + $0xd0] sm:$0xff]
      %v10434 = vld [vmem:[%s3094 + $0xd8] sm:$0xff]
      %v10435 = vld [vmem:[%s3094 + $0xe0] sm:$0xff]
      %v10436 = vld [vmem:[%s3094 + $0xe8] sm:$0xff]
      %v10437 = vld [vmem:[%s3094 + $0xf0] sm:$0xff]
      %v10438 = vld [vmem:[%s3094 + $0xf8] sm:$0xff]
      %v10440 = vshrl.u32 %v10030, 16
      %v10442 = vrot.slane %v10440, 1
      %v10443 = vshll.u32 %v10030, 16
      %v10445 = vrot.slane %v10443, 2
      %v10446 = vor.u32 %v10442, %v10445
      %v10448 = vshrl.u32 %v10032, 16
      %v10450 = vrot.slane %v10448, 1
      %v10451 = vshll.u32 %v10032, 16
      %v10453 = vrot.slane %v10451, 2
      %v10454 = vor.u32 %v10450, %v10453
      %v10455 = vsel %vm3127, %v10446, %v10454
      %v10457 = vshrl.u32 %v10031, 16
      %v10459 = vrot.slane %v10457, 1
      %v10460 = vshll.u32 %v10031, 16
      %v10462 = vrot.slane %v10460, 2
      %v10463 = vor.u32 %v10459, %v10462
      %v10465 = vshrl.u32 %v10033, 16
      %v10467 = vrot.slane %v10465, 1
      %v10468 = vshll.u32 %v10033, 16
      %v10470 = vrot.slane %v10468, 2
      %v10471 = vor.u32 %v10467, %v10470
      %v10472 = vsel %vm3127, %v10463, %v10471
      %v10474 = vshrl.u32 %v10034, 16
      %v10476 = vrot.slane %v10474, 1
      %v10477 = vshll.u32 %v10034, 16
      %v10479 = vrot.slane %v10477, 2
      %v10480 = vor.u32 %v10476, %v10479
      %v10481 = vsel %vm3127, %v10454, %v10480
      %v10483 = vshrl.u32 %v10035, 16
      %v10485 = vrot.slane %v10483, 1
      %v10486 = vshll.u32 %v10035, 16
      %v10488 = vrot.slane %v10486, 2
      %v10489 = vor.u32 %v10485, %v10488
      %v10490 = vsel %vm3127, %v10471, %v10489
      %v10492 = vshrl.u32 %v10036, 16
      %v10494 = vrot.slane %v10492, 1
      %v10495 = vshll.u32 %v10036, 16
      %v10497 = vrot.slane %v10495, 2
      %v10498 = vor.u32 %v10494, %v10497
      %v10499 = vsel %vm3127, %v10480, %v10498
      %v10501 = vshrl.u32 %v10037, 16
      %v10503 = vrot.slane %v10501, 1
      %v10504 = vshll.u32 %v10037, 16
      %v10506 = vrot.slane %v10504, 2
      %v10507 = vor.u32 %v10503, %v10506
      %v10508 = vsel %vm3127, %v10489, %v10507
      %v10510 = vshrl.u32 %v10038, 16
      %v10512 = vrot.slane %v10510, 1
      %v10513 = vshll.u32 %v10038, 16
      %v10515 = vrot.slane %v10513, 2
      %v10516 = vor.u32 %v10512, %v10515
      %v10517 = vsel %vm3127, %v10498, %v10516
      %v10519 = vshrl.u32 %v10039, 16
      %v10521 = vrot.slane %v10519, 1
      %v10522 = vshll.u32 %v10039, 16
      %v10524 = vrot.slane %v10522, 2
      %v10525 = vor.u32 %v10521, %v10524
      %v10526 = vsel %vm3127, %v10507, %v10525
      %v10528 = vshrl.u32 %v10040, 16
      %v10530 = vrot.slane %v10528, 1
      %v10531 = vshll.u32 %v10040, 16
      %v10533 = vrot.slane %v10531, 2
      %v10534 = vor.u32 %v10530, %v10533
      %v10535 = vsel %vm3127, %v10516, %v10534
      %v10537 = vshrl.u32 %v10041, 16
      %v10539 = vrot.slane %v10537, 1
      %v10540 = vshll.u32 %v10041, 16
      %v10542 = vrot.slane %v10540, 2
      %v10543 = vor.u32 %v10539, %v10542
      %v10544 = vsel %vm3127, %v10525, %v10543
      %v10546 = vshrl.u32 %v10405, 16
      %v10548 = vrot.slane %v10546, 1
      %v10549 = vshll.u32 %v10405, 16
      %v10551 = vrot.slane %v10549, 2
      %v10552 = vor.u32 %v10548, %v10551
      %v10553 = vsel %vm3127, %v10534, %v10552
      %v10555 = vshrl.u32 %v10406, 16
      %v10557 = vrot.slane %v10555, 1
      %v10558 = vshll.u32 %v10406, 16
      %v10560 = vrot.slane %v10558, 2
      %v10561 = vor.u32 %v10557, %v10560
      %v10562 = vsel %vm3127, %v10543, %v10561
      %v10607 = vunpack.c.l.b16 %v10407
      %v10608 = vunpack.c.h.b16 %v10407
      %v10609 = vunpack.c.l.b16 %v10408
      %v10610 = vunpack.c.h.b16 %v10408
      %v10611 = vunpack.c.l.b16 %v10409
      %v10612 = vunpack.c.h.b16 %v10409
      %v10613 = vunpack.c.l.b16 %v10410
      %v10614 = vunpack.c.h.b16 %v10410
      %v10615 = vunpack.c.l.b16 %v10411
      %v10616 = vunpack.c.h.b16 %v10411
      %v10617 = vunpack.c.l.b16 %v10412
      %v10618 = vunpack.c.h.b16 %v10412
      %v10619 = vunpack.c.l.b16 %v10413
      %v10620 = vunpack.c.h.b16 %v10413
      %v10621 = vunpack.c.l.b16 %v10414
      %v10622 = vunpack.c.h.b16 %v10414
      %v10623 = vunpack.c.l.b16 %v10415
      %v10624 = vunpack.c.h.b16 %v10415
      %v10625 = vunpack.c.l.b16 %v10416
      %v10626 = vunpack.c.h.b16 %v10416
      %v10627 = vunpack.c.l.b16 %v10417
      %v10628 = vunpack.c.h.b16 %v10417
      %v10629 = vunpack.c.l.b16 %v10418
      %v10630 = vunpack.c.h.b16 %v10418
      %v10631 = vunpack.c.l.b16 %v10419
      %v10632 = vunpack.c.h.b16 %v10419
      %v10633 = vunpack.c.l.b16 %v10420
      %v10634 = vunpack.c.h.b16 %v10420
      %v10635 = vunpack.c.l.b16 %v10421
      %v10636 = vunpack.c.h.b16 %v10421
      %v10637 = vunpack.c.l.b16 %v10422
      %v10638 = vunpack.c.h.b16 %v10422
      %v10639 = vunpack.c.l.b16 %v10423
      %v10640 = vunpack.c.h.b16 %v10423
      %v10641 = vunpack.c.l.b16 %v10424
      %v10642 = vunpack.c.h.b16 %v10424
      %v10643 = vunpack.c.l.b16 %v10425
      %v10644 = vunpack.c.h.b16 %v10425
      %v10645 = vunpack.c.l.b16 %v10426
      %v10646 = vunpack.c.h.b16 %v10426
      %v10647 = vunpack.c.l.b16 %v10427
      %v10648 = vunpack.c.h.b16 %v10427
      %v10649 = vunpack.c.l.b16 %v10428
      %v10650 = vunpack.c.h.b16 %v10428
      %v10651 = vunpack.c.l.b16 %v10429
      %v10652 = vunpack.c.h.b16 %v10429
      %v10653 = vunpack.c.l.b16 %v10430
      %v10654 = vunpack.c.h.b16 %v10430
      %v10655 = vunpack.c.l.b16 %v10431
      %v10656 = vunpack.c.h.b16 %v10431
      %v10657 = vunpack.c.l.b16 %v10432
      %v10658 = vunpack.c.h.b16 %v10432
      %v10659 = vunpack.c.l.b16 %v10433
      %v10660 = vunpack.c.h.b16 %v10433
      %v10661 = vunpack.c.l.b16 %v10434
      %v10662 = vunpack.c.h.b16 %v10434
      %v10663 = vunpack.c.l.b16 %v10435
      %v10664 = vunpack.c.h.b16 %v10435
      %v10665 = vunpack.c.l.b16 %v10436
      %v10666 = vunpack.c.h.b16 %v10436
      %v10667 = vunpack.c.l.b16 %v10437
      %v10668 = vunpack.c.h.b16 %v10437
      %v10669 = vunpack.c.l.b16 %v10438
      %v10670 = vunpack.c.h.b16 %v10438
      %v10671 = vpack.c.b16 %v10609, %v10607
      %v10672 = vpack.c.b16 %v10610, %v10608
      %v10673 = vpack.c.b16 %v10613, %v10611
      %v10674 = vpack.c.b16 %v10614, %v10612
      %v10675 = vpack.c.b16 %v10617, %v10615
      %v10676 = vpack.c.b16 %v10618, %v10616
      %v10677 = vpack.c.b16 %v10621, %v10619
      %v10678 = vpack.c.b16 %v10622, %v10620
      %v10679 = vpack.c.b16 %v10625, %v10623
      %v10680 = vpack.c.b16 %v10626, %v10624
      %v10681 = vpack.c.b16 %v10629, %v10627
      %v10682 = vpack.c.b16 %v10630, %v10628
      %v10683 = vpack.c.b16 %v10633, %v10631
      %v10684 = vpack.c.b16 %v10634, %v10632
      %v10685 = vpack.c.b16 %v10637, %v10635
      %v10686 = vpack.c.b16 %v10638, %v10636
      %v10687 = vpack.c.b16 %v10641, %v10639
      %v10688 = vpack.c.b16 %v10642, %v10640
      %v10689 = vpack.c.b16 %v10645, %v10643
      %v10690 = vpack.c.b16 %v10646, %v10644
      %v10691 = vpack.c.b16 %v10649, %v10647
      %v10692 = vpack.c.b16 %v10650, %v10648
      %v10693 = vpack.c.b16 %v10653, %v10651
      %v10694 = vpack.c.b16 %v10654, %v10652
      %v10695 = vpack.c.b16 %v10657, %v10655
      %v10696 = vpack.c.b16 %v10658, %v10656
      %v10697 = vpack.c.b16 %v10661, %v10659
      %v10698 = vpack.c.b16 %v10662, %v10660
      %v10699 = vpack.c.b16 %v10665, %v10663
      %v10700 = vpack.c.b16 %v10666, %v10664
      %v10701 = vpack.c.b16 %v10669, %v10667
      %v10702 = vpack.c.b16 %v10670, %v10668
      %10735 = vmatprep.subr.bf16.mxu0 %v10672
      %10736 = vmatpush1.bf16.msra.mxu0 %v10671
      %10737 = vmatprep.subr.bf16.mxu0 %v10674
      %10738 = vmatpush1.bf16.msra.mxu0 %v10673
      %10739 = vmatprep.subr.bf16.mxu0 %v10676
      %10740 = vmatpush1.bf16.msra.mxu0 %v10675
      %10741 = vmatprep.subr.bf16.mxu0 %v10678
      %10742 = vmatpush1.bf16.msra.mxu0 %v10677
      %10743 = vmatprep.subr.bf16.mxu0 %v10680
      %10744 = vmatpush1.bf16.msra.mxu0 %v10679
      %10745 = vmatprep.subr.bf16.mxu0 %v10682
      %10746 = vmatpush1.bf16.msra.mxu0 %v10681
      %10747 = vmatprep.subr.bf16.mxu0 %v10684
      %10748 = vmatpush1.bf16.msra.mxu0 %v10683
      %10749 = vmatprep.subr.bf16.mxu0 %v10686
      %10750 = vmatpush1.bf16.msra.mxu0 %v10685
      %10751 = vmatprep.subr.bf16.mxu0 %v10688
      %10752 = vmatpush1.bf16.msra.mxu0 %v10687
      %10753 = vmatprep.subr.bf16.mxu0 %v10690
      %10754 = vmatpush1.bf16.msra.mxu0 %v10689
      %10755 = vmatprep.subr.bf16.mxu0 %v10692
      %10756 = vmatpush1.bf16.msra.mxu0 %v10691
      %10757 = vmatprep.subr.bf16.mxu0 %v10694
      %10758 = vmatpush1.bf16.msra.mxu0 %v10693
      %10759 = vmatprep.subr.bf16.mxu0 %v10696
      %10760 = vmatpush1.bf16.msra.mxu0 %v10695
      %10761 = vmatprep.subr.bf16.mxu0 %v10698
      %10762 = vmatpush1.bf16.msra.mxu0 %v10697
      %10763 = vmatprep.subr.bf16.mxu0 %v10700
      %10764 = vmatpush1.bf16.msra.mxu0 %v10699
      %10765 = vmatprep.subr.bf16.mxu0 %v10702
      %10766 = vmatpush1.bf16.msra.mxu0 %v10701
      %10767 = vmatprep.mubr.bf16.mxu0 %v10472
      %10768 = vmatmul.mubr.bf16.gmra.mrb[0].mxu0 %v10455
      %v10769 = vpop.f32.mrb[0].mxu0
      %v10770 = vadd.f32 0.0, %v10769
      %v10771 = vpop.f32.mrb[0].mxu0
      %v10772 = vadd.f32 0.0, %v10771
      %v10773 = vpop.f32.mrb[0].mxu0
      %v10774 = vadd.f32 0.0, %v10773
      %v10775 = vpop.f32.mrb[0].mxu0
      %v10776 = vadd.f32 0.0, %v10775
      %10777 = vmatprep.mubr.bf16.mxu0 %v10490
      %10778 = vmatmul.mubr.bf16.gmra.mrb[0].mxu0 %v10481
      %v10779 = vpop.f32.mrb[0].mxu0
      %v10780 = vadd.f32 0.0, %v10779
      %v10781 = vpop.f32.mrb[0].mxu0
      %v10782 = vadd.f32 0.0, %v10781
      %v10783 = vpop.f32.mrb[0].mxu0
      %v10784 = vadd.f32 0.0, %v10783
      %v10785 = vpop.f32.mrb[0].mxu0
      %v10786 = vadd.f32 0.0, %v10785
      %10787 = vmatprep.mubr.bf16.mxu0 %v10508
      %10788 = vmatmul.mubr.bf16.gmra.mrb[0].mxu0 %v10499
      %v10789 = vpop.f32.mrb[0].mxu0
      %v10790 = vadd.f32 0.0, %v10789
      %v10791 = vpop.f32.mrb[0].mxu0
      %v10792 = vadd.f32 0.0, %v10791
      %v10793 = vpop.f32.mrb[0].mxu0
      %v10794 = vadd.f32 0.0, %v10793
      %v10795 = vpop.f32.mrb[0].mxu0
      %v10796 = vadd.f32 0.0, %v10795
      %10797 = vmatprep.mubr.bf16.mxu0 %v10526
      %10798 = vmatmul.mubr.bf16.gmra.mrb[0].mxu0 %v10517
      %v10799 = vpop.f32.mrb[0].mxu0
      %v10800 = vadd.f32 0.0, %v10799
      %v10801 = vpop.f32.mrb[0].mxu0
      %v10802 = vadd.f32 0.0, %v10801
      %v10803 = vpop.f32.mrb[0].mxu0
      %v10804 = vadd.f32 0.0, %v10803
      %v10805 = vpop.f32.mrb[0].mxu0
      %v10806 = vadd.f32 0.0, %v10805
      %10807 = vmatprep.mubr.bf16.mxu0 %v10544
      %10808 = vmatmul.mubr.bf16.gmra.mrb[0].mxu0 %v10535
      %v10809 = vpop.f32.mrb[0].mxu0
      %v10810 = vadd.f32 0.0, %v10809
      %v10811 = vpop.f32.mrb[0].mxu0
      %v10812 = vadd.f32 0.0, %v10811
      %v10813 = vpop.f32.mrb[0].mxu0
      %v10814 = vadd.f32 0.0, %v10813
      %v10815 = vpop.f32.mrb[0].mxu0
      %v10816 = vadd.f32 0.0, %v10815
      %10817 = vmatprep.mubr.bf16.mxu0 %v10562
      %10818 = vmatmul.mubr.bf16.gmra.mrb[0].mxu0 %v10553
      %v10819 = vpop.f32.mrb[0].mxu0
      %v10820 = vadd.f32 0.0, %v10819
      %v10821 = vpop.f32.mrb[0].mxu0
      %v10822 = vadd.f32 0.0, %v10821
      %v10823 = vpop.f32.mrb[0].mxu0
      %v10824 = vadd.f32 0.0, %v10823
      %v10825 = vpop.f32.mrb[0].mxu0
      %v10826 = vadd.f32 0.0, %v10825
      %10827 = vdwg.mxu0
      %v10828 = vadd.f32 %v10381, %v10770
      %v10829 = vadd.f32 %v10382, %v10772
      %v10830 = vadd.f32 %v10383, %v10774
      %v10831 = vadd.f32 %v10384, %v10776
      %v10832 = vadd.f32 %v10385, %v10780
      %v10833 = vadd.f32 %v10386, %v10782
      %v10834 = vadd.f32 %v10387, %v10784
      %v10835 = vadd.f32 %v10388, %v10786
      %v10836 = vadd.f32 %v10389, %v10790
      %v10837 = vadd.f32 %v10390, %v10792
      %v10838 = vadd.f32 %v10391, %v10794
      %v10839 = vadd.f32 %v10392, %v10796
      %v10840 = vadd.f32 %v10393, %v10800
      %v10841 = vadd.f32 %v10394, %v10802
      %v10842 = vadd.f32 %v10395, %v10804
      %v10843 = vadd.f32 %v10396, %v10806
      %v10844 = vadd.f32 %v10397, %v10810
      %v10845 = vadd.f32 %v10398, %v10812
      %v10846 = vadd.f32 %v10399, %v10814
      %v10847 = vadd.f32 %v10400, %v10816
      %v10848 = vadd.f32 %v10401, %v10820
      %v10849 = vadd.f32 %v10402, %v10822
      %v10850 = vadd.f32 %v10403, %v10824
      %v10851 = vadd.f32 %v10404, %v10826
      %v10852 = vld [vmem:[#allocation2 + $0xd0] sm:$0xfc]
      %v10853 = vld [vmem:[#allocation2 + $0xd8] sm:$0xfc]
      %v10854 = vld [vmem:[%s3543] sm:$0xff]
      %v10855 = vld [vmem:[%s3543 + $0x8] sm:$0xff]
      %v10856 = vld [vmem:[%s3543 + $0x10] sm:$0xff]
      %v10857 = vld [vmem:[%s3543 + $0x18] sm:$0xff]
      %v10858 = vld [vmem:[%s3543 + $0x20] sm:$0xff]
      %v10859 = vld [vmem:[%s3543 + $0x28] sm:$0xff]
      %v10860 = vld [vmem:[%s3543 + $0x30] sm:$0xff]
      %v10861 = vld [vmem:[%s3543 + $0x38] sm:$0xff]
      %v10862 = vld [vmem:[%s3543 + $0x40] sm:$0xff]
      %v10863 = vld [vmem:[%s3543 + $0x48] sm:$0xff]
      %v10864 = vld [vmem:[%s3543 + $0x50] sm:$0xff]
      %v10865 = vld [vmem:[%s3543 + $0x58] sm:$0xff]
      %v10866 = vld [vmem:[%s3543 + $0x60] sm:$0xff]
      %v10867 = vld [vmem:[%s3543 + $0x68] sm:$0xff]
      %v10868 = vld [vmem:[%s3543 + $0x70] sm:$0xff]
      %v10869 = vld [vmem:[%s3543 + $0x78] sm:$0xff]
      %v10870 = vld [vmem:[%s3543 + $0x80] sm:$0xff]
      %v10871 = vld [vmem:[%s3543 + $0x88] sm:$0xff]
      %v10872 = vld [vmem:[%s3543 + $0x90] sm:$0xff]
      %v10873 = vld [vmem:[%s3543 + $0x98] sm:$0xff]
      %v10874 = vld [vmem:[%s3543 + $0xa0] sm:$0xff]
      %v10875 = vld [vmem:[%s3543 + $0xa8] sm:$0xff]
      %v10876 = vld [vmem:[%s3543 + $0xb0] sm:$0xff]
      %v10877 = vld [vmem:[%s3543 + $0xb8] sm:$0xff]
      %v10878 = vld [vmem:[%s3543 + $0xc0] sm:$0xff]
      %v10879 = vld [vmem:[%s3543 + $0xc8] sm:$0xff]
      %v10880 = vld [vmem:[%s3543 + $0xd0] sm:$0xff]
      %v10881 = vld [vmem:[%s3543 + $0xd8] sm:$0xff]
      %v10882 = vld [vmem:[%s3543 + $0xe0] sm:$0xff]
      %v10883 = vld [vmem:[%s3543 + $0xe8] sm:$0xff]
      %v10884 = vld [vmem:[%s3543 + $0xf0] sm:$0xff]
      %v10885 = vld [vmem:[%s3543 + $0xf8] sm:$0xff]
      %v10890 = vrot.slane %v10852, 2
      %v10891 = vrot.slane %v10032, 2
      %v10892 = vsel %vm3580, %v10890, %v10891
      %v10893 = vrot.slane %v10853, 2
      %v10894 = vrot.slane %v10033, 2
      %v10895 = vsel %vm3580, %v10893, %v10894
      %v10896 = vrot.slane %v10034, 2
      %v10897 = vsel %vm3580, %v10891, %v10896
      %v10898 = vrot.slane %v10035, 2
      %v10899 = vsel %vm3580, %v10894, %v10898
      %v10900 = vrot.slane %v10036, 2
      %v10901 = vsel %vm3580, %v10896, %v10900
      %v10902 = vrot.slane %v10037, 2
      %v10903 = vsel %vm3580, %v10898, %v10902
      %v10904 = vrot.slane %v10038, 2
      %v10905 = vsel %vm3580, %v10900, %v10904
      %v10906 = vrot.slane %v10039, 2
      %v10907 = vsel %vm3580, %v10902, %v10906
      %v10908 = vrot.slane %v10040, 2
      %v10909 = vsel %vm3580, %v10904, %v10908
      %v10910 = vrot.slane %v10041, 2
      %v10911 = vsel %vm3580, %v10906, %v10910
      %v10912 = vrot.slane %v10405, 2
      %v10913 = vsel %vm3580, %v10908, %v10912
      %v10914 = vrot.slane %v10406, 2
      %v10915 = vsel %vm3580, %v10910, %v10914
      %v10960 = vunpack.c.l.b16 %v10854
      %v10961 = vunpack.c.h.b16 %v10854
      %v10962 = vunpack.c.l.b16 %v10855
      %v10963 = vunpack.c.h.b16 %v10855
      %v10964 = vunpack.c.l.b16 %v10856
      %v10965 = vunpack.c.h.b16 %v10856
      %v10966 = vunpack.c.l.b16 %v10857
      %v10967 = vunpack.c.h.b16 %v10857
      %v10968 = vunpack.c.l.b16 %v10858
      %v10969 = vunpack.c.h.b16 %v10858
      %v10970 = vunpack.c.l.b16 %v10859
      %v10971 = vunpack.c.h.b16 %v10859
      %v10972 = vunpack.c.l.b16 %v10860
      %v10973 = vunpack.c.h.b16 %v10860
      %v10974 = vunpack.c.l.b16 %v10861
      %v10975 = vunpack.c.h.b16 %v10861
      %v10976 = vunpack.c.l.b16 %v10862
      %v10977 = vunpack.c.h.b16 %v10862
      %v10978 = vunpack.c.l.b16 %v10863
      %v10979 = vunpack.c.h.b16 %v10863
      %v10980 = vunpack.c.l.b16 %v10864
      %v10981 = vunpack.c.h.b16 %v10864
      %v10982 = vunpack.c.l.b16 %v10865
      %v10983 = vunpack.c.h.b16 %v10865
      %v10984 = vunpack.c.l.b16 %v10866
      %v10985 = vunpack.c.h.b16 %v10866
      %v10986 = vunpack.c.l.b16 %v10867
      %v10987 = vunpack.c.h.b16 %v10867
      %v10988 = vunpack.c.l.b16 %v10868
      %v10989 = vunpack.c.h.b16 %v10868
      %v10990 = vunpack.c.l.b16 %v10869
      %v10991 = vunpack.c.h.b16 %v10869
      %v10992 = vunpack.c.l.b16 %v10870
      %v10993 = vunpack.c.h.b16 %v10870
      %v10994 = vunpack.c.l.b16 %v10871
      %v10995 = vunpack.c.h.b16 %v10871
      %v10996 = vunpack.c.l.b16 %v10872
      %v10997 = vunpack.c.h.b16 %v10872
      %v10998 = vunpack.c.l.b16 %v10873
      %v10999 = vunpack.c.h.b16 %v10873
      %v11000 = vunpack.c.l.b16 %v10874
      %v11001 = vunpack.c.h.b16 %v10874
      %v11002 = vunpack.c.l.b16 %v10875
      %v11003 = vunpack.c.h.b16 %v10875
      %v11004 = vunpack.c.l.b16 %v10876
      %v11005 = vunpack.c.h.b16 %v10876
      %v11006 = vunpack.c.l.b16 %v10877
      %v11007 = vunpack.c.h.b16 %v10877
      %v11008 = vunpack.c.l.b16 %v10878
      %v11009 = vunpack.c.h.b16 %v10878
      %v11010 = vunpack.c.l.b16 %v10879
      %v11011 = vunpack.c.h.b16 %v10879
      %v11012 = vunpack.c.l.b16 %v10880
      %v11013 = vunpack.c.h.b16 %v10880
      %v11014 = vunpack.c.l.b16 %v10881
      %v11015 = vunpack.c.h.b16 %v10881
      %v11016 = vunpack.c.l.b16 %v10882
      %v11017 = vunpack.c.h.b16 %v10882
      %v11018 = vunpack.c.l.b16 %v10883
      %v11019 = vunpack.c.h.b16 %v10883
      %v11020 = vunpack.c.l.b16 %v10884
      %v11021 = vunpack.c.h.b16 %v10884
      %v11022 = vunpack.c.l.b16 %v10885
      %v11023 = vunpack.c.h.b16 %v10885
      %v11024 = vpack.c.b16 %v10962, %v10960
      %v11025 = vpack.c.b16 %v10963, %v10961
      %v11026 = vpack.c.b16 %v10966, %v10964
      %v11027 = vpack.c.b16 %v10967, %v10965
      %v11028 = vpack.c.b16 %v10970, %v10968
      %v11029 = vpack.c.b16 %v10971, %v10969
      %v11030 = vpack.c.b16 %v10974, %v10972
      %v11031 = vpack.c.b16 %v10975, %v10973
      %v11032 = vpack.c.b16 %v10978, %v10976
      %v11033 = vpack.c.b16 %v10979, %v10977
      %v11034 = vpack.c.b16 %v10982, %v10980
      %v11035 = vpack.c.b16 %v10983, %v10981
      %v11036 = vpack.c.b16 %v10986, %v10984
      %v11037 = vpack.c.b16 %v10987, %v10985
      %v11038 = vpack.c.b16 %v10990, %v10988
      %v11039 = vpack.c.b16 %v10991, %v10989
      %v11040 = vpack.c.b16 %v10994, %v10992
      %v11041 = vpack.c.b16 %v10995, %v10993
      %v11042 = vpack.c.b16 %v10998, %v10996
      %v11043 = vpack.c.b16 %v10999, %v10997
      %v11044 = vpack.c.b16 %v11002, %v11000
      %v11045 = vpack.c.b16 %v11003, %v11001
      %v11046 = vpack.c.b16 %v11006, %v11004
      %v11047 = vpack.c.b16 %v11007, %v11005
      %v11048 = vpack.c.b16 %v11010, %v11008
      %v11049 = vpack.c.b16 %v11011, %v11009
      %v11050 = vpack.c.b16 %v11014, %v11012
      %v11051 = vpack.c.b16 %v11015, %v11013
      %v11052 = vpack.c.b16 %v11018, %v11016
      %v11053 = vpack.c.b16 %v11019, %v11017
      %v11054 = vpack.c.b16 %v11022, %v11020
      %v11055 = vpack.c.b16 %v11023, %v11021
      %11088 = vmatprep.subr.bf16.mxu0 %v11025
      %11089 = vmatpush1.bf16.msra.mxu0 %v11024
      %11090 = vmatprep.subr.bf16.mxu0 %v11027
      %11091 = vmatpush1.bf16.msra.mxu0 %v11026
      %11092 = vmatprep.subr.bf16.mxu0 %v11029
      %11093 = vmatpush1.bf16.msra.mxu0 %v11028
      %11094 = vmatprep.subr.bf16.mxu0 %v11031
      %11095 = vmatpush1.bf16.msra.mxu0 %v11030
      %11096 = vmatprep.subr.bf16.mxu0 %v11033
      %11097 = vmatpush1.bf16.msra.mxu0 %v11032
      %11098 = vmatprep.subr.bf16.mxu0 %v11035
      %11099 = vmatpush1.bf16.msra.mxu0 %v11034
      %11100 = vmatprep.subr.bf16.mxu0 %v11037
      %11101 = vmatpush1.bf16.msra.mxu0 %v11036
      %11102 = vmatprep.subr.bf16.mxu0 %v11039
      %11103 = vmatpush1.bf16.msra.mxu0 %v11038
      %11104 = vmatprep.subr.bf16.mxu0 %v11041
      %11105 = vmatpush1.bf16.msra.mxu0 %v11040
      %11106 = vmatprep.subr.bf16.mxu0 %v11043
      %11107 = vmatpush1.bf16.msra.mxu0 %v11042
      %11108 = vmatprep.subr.bf16.mxu0 %v11045
      %11109 = vmatpush1.bf16.msra.mxu0 %v11044
      %11110 = vmatprep.subr.bf16.mxu0 %v11047
      %11111 = vmatpush1.bf16.msra.mxu0 %v11046
      %11112 = vmatprep.subr.bf16.mxu0 %v11049
      %11113 = vmatpush1.bf16.msra.mxu0 %v11048
      %11114 = vmatprep.subr.bf16.mxu0 %v11051
      %11115 = vmatpush1.bf16.msra.mxu0 %v11050
      %11116 = vmatprep.subr.bf16.mxu0 %v11053
      %11117 = vmatpush1.bf16.msra.mxu0 %v11052
      %11118 = vmatprep.subr.bf16.mxu0 %v11055
      %11119 = vmatpush1.bf16.msra.mxu0 %v11054
      %11120 = vmatprep.mubr.bf16.mxu0 %v10895
      %11121 = vmatmul.mubr.bf16.gmra.mrb[0].mxu0 %v10892
      %v11122 = vpop.f32.mrb[0].mxu0
      %v11123 = vadd.f32 0.0, %v11122
      %v11124 = vpop.f32.mrb[0].mxu0
      %v11125 = vadd.f32 0.0, %v11124
      %v11126 = vpop.f32.mrb[0].mxu0
      %v11127 = vadd.f32 0.0, %v11126
      %v11128 = vpop.f32.mrb[0].mxu0
      %v11129 = vadd.f32 0.0, %v11128
      %11130 = vmatprep.mubr.bf16.mxu0 %v10899
      %11131 = vmatmul.mubr.bf16.gmra.mrb[0].mxu0 %v10897
      %v11132 = vpop.f32.mrb[0].mxu0
      %v11133 = vadd.f32 0.0, %v11132
      %v11134 = vpop.f32.mrb[0].mxu0
      %v11135 = vadd.f32 0.0, %v11134
      %v11136 = vpop.f32.mrb[0].mxu0
      %v11137 = vadd.f32 0.0, %v11136
      %v11138 = vpop.f32.mrb[0].mxu0
      %v11139 = vadd.f32 0.0, %v11138
      %11140 = vmatprep.mubr.bf16.mxu0 %v10903
      %11141 = vmatmul.mubr.bf16.gmra.mrb[0].mxu0 %v10901
      %v11142 = vpop.f32.mrb[0].mxu0
      %v11143 = vadd.f32 0.0, %v11142
      %v11144 = vpop.f32.mrb[0].mxu0
      %v11145 = vadd.f32 0.0, %v11144
      %v11146 = vpop.f32.mrb[0].mxu0
      %v11147 = vadd.f32 0.0, %v11146
      %v11148 = vpop.f32.mrb[0].mxu0
      %v11149 = vadd.f32 0.0, %v11148
      %11150 = vmatprep.mubr.bf16.mxu0 %v10907
      %11151 = vmatmul.mubr.bf16.gmra.mrb[0].mxu0 %v10905
      %v11152 = vpop.f32.mrb[0].mxu0
      %v11153 = vadd.f32 0.0, %v11152
      %v11154 = vpop.f32.mrb[0].mxu0
      %v11155 = vadd.f32 0.0, %v11154
      %v11156 = vpop.f32.mrb[0].mxu0
      %v11157 = vadd.f32 0.0, %v11156
      %v11158 = vpop.f32.mrb[0].mxu0
      %v11159 = vadd.f32 0.0, %v11158
      %11160 = vmatprep.mubr.bf16.mxu0 %v10911
      %11161 = vmatmul.mubr.bf16.gmra.mrb[0].mxu0 %v10909
      %v11162 = vpop.f32.mrb[0].mxu0
      %v11163 = vadd.f32 0.0, %v11162
      %v11164 = vpop.f32.mrb[0].mxu0
      %v11165 = vadd.f32 0.0, %v11164
      %v11166 = vpop.f32.mrb[0].mxu0
      %v11167 = vadd.f32 0.0, %v11166
      %v11168 = vpop.f32.mrb[0].mxu0
      %v11169 = vadd.f32 0.0, %v11168
      %11170 = vmatprep.mubr.bf16.mxu0 %v10915
      %11171 = vmatmul.mubr.bf16.gmra.mrb[0].mxu0 %v10913
      %v11172 = vpop.f32.mrb[0].mxu0
      %v11173 = vadd.f32 0.0, %v11172
      %v11174 = vpop.f32.mrb[0].mxu0
      %v11175 = vadd.f32 0.0, %v11174
      %v11176 = vpop.f32.mrb[0].mxu0
      %v11177 = vadd.f32 0.0, %v11176
      %v11178 = vpop.f32.mrb[0].mxu0
      %v11179 = vadd.f32 0.0, %v11178
      %11180 = vdwg.mxu0
      %v11181 = vadd.f32 %v10828, %v11123
      %v11182 = vadd.f32 %v10829, %v11125
      %v11183 = vadd.f32 %v10830, %v11127
      %v11184 = vadd.f32 %v10831, %v11129
      %v11185 = vadd.f32 %v10832, %v11133
      %v11186 = vadd.f32 %v10833, %v11135
      %v11187 = vadd.f32 %v10834, %v11137
      %v11188 = vadd.f32 %v10835, %v11139
      %v11189 = vadd.f32 %v10836, %v11143
      %v11190 = vadd.f32 %v10837, %v11145
      %v11191 = vadd.f32 %v10838, %v11147
      %v11192 = vadd.f32 %v10839, %v11149
      %v11193 = vadd.f32 %v10840, %v11153
      %v11194 = vadd.f32 %v10841, %v11155
      %v11195 = vadd.f32 %v10842, %v11157
      %v11196 = vadd.f32 %v10843, %v11159
      %v11197 = vadd.f32 %v10844, %v11163
      %v11198 = vadd.f32 %v10845, %v11165
      %v11199 = vadd.f32 %v10846, %v11167
      %v11200 = vadd.f32 %v10847, %v11169
      %v11201 = vadd.f32 %v10848, %v11173
      %v11202 = vadd.f32 %v10849, %v11175
      %v11203 = vadd.f32 %v10850, %v11177
      %v11204 = vadd.f32 %v10851, %v11179
      %v11205 = vld [vmem:[#allocation2 + $0xe0] sm:$0xfc]
      %v11206 = vld [vmem:[#allocation2 + $0xe8] sm:$0xfc]
      %v11207 = vld [vmem:[#allocation2 + $0xf0] sm:$0xff]
      %v11208 = vld [vmem:[#allocation2 + $0xf8] sm:$0xff]
      %v11209 = vld [vmem:[#allocation2 + $0x100] sm:$0xff]
      %v11210 = vld [vmem:[#allocation2 + $0x108] sm:$0xff]
      %v11211 = vld [vmem:[#allocation2 + $0x110] sm:$0xff]
      %v11212 = vld [vmem:[#allocation2 + $0x118] sm:$0xff]
      %v11213 = vld [vmem:[#allocation2 + $0x120] sm:$0xff]
      %v11214 = vld [vmem:[#allocation2 + $0x128] sm:$0xff]
      %v11215 = vld [vmem:[#allocation2 + $0x130] sm:$0xff]
      %v11216 = vld [vmem:[#allocation2 + $0x138] sm:$0xff]
      %v11217 = vld [vmem:[#allocation2 + $0x140] sm:$0x3]
      %v11218 = vld [vmem:[#allocation2 + $0x148] sm:$0x3]
      %v11219 = vld [vmem:[%s3910] sm:$0xff]
      %v11220 = vld [vmem:[%s3910 + $0x8] sm:$0xff]
      %v11221 = vld [vmem:[%s3910 + $0x10] sm:$0xff]
      %v11222 = vld [vmem:[%s3910 + $0x18] sm:$0xff]
      %v11223 = vld [vmem:[%s3910 + $0x20] sm:$0xff]
      %v11224 = vld [vmem:[%s3910 + $0x28] sm:$0xff]
      %v11225 = vld [vmem:[%s3910 + $0x30] sm:$0xff]
      %v11226 = vld [vmem:[%s3910 + $0x38] sm:$0xff]
      %v11227 = vld [vmem:[%s3910 + $0x40] sm:$0xff]
      %v11228 = vld [vmem:[%s3910 + $0x48] sm:$0xff]
      %v11229 = vld [vmem:[%s3910 + $0x50] sm:$0xff]
      %v11230 = vld [vmem:[%s3910 + $0x58] sm:$0xff]
      %v11231 = vld [vmem:[%s3910 + $0x60] sm:$0xff]
      %v11232 = vld [vmem:[%s3910 + $0x68] sm:$0xff]
      %v11233 = vld [vmem:[%s3910 + $0x70] sm:$0xff]
      %v11234 = vld [vmem:[%s3910 + $0x78] sm:$0xff]
      %v11235 = vld [vmem:[%s3910 + $0x80] sm:$0xff]
      %v11236 = vld [vmem:[%s3910 + $0x88] sm:$0xff]
      %v11237 = vld [vmem:[%s3910 + $0x90] sm:$0xff]
      %v11238 = vld [vmem:[%s3910 + $0x98] sm:$0xff]
      %v11239 = vld [vmem:[%s3910 + $0xa0] sm:$0xff]
      %v11240 = vld [vmem:[%s3910 + $0xa8] sm:$0xff]
      %v11241 = vld [vmem:[%s3910 + $0xb0] sm:$0xff]
      %v11242 = vld [vmem:[%s3910 + $0xb8] sm:$0xff]
      %v11243 = vld [vmem:[%s3910 + $0xc0] sm:$0xff]
      %v11244 = vld [vmem:[%s3910 + $0xc8] sm:$0xff]
      %v11245 = vld [vmem:[%s3910 + $0xd0] sm:$0xff]
      %v11246 = vld [vmem:[%s3910 + $0xd8] sm:$0xff]
      %v11247 = vld [vmem:[%s3910 + $0xe0] sm:$0xff]
      %v11248 = vld [vmem:[%s3910 + $0xe8] sm:$0xff]
      %v11249 = vld [vmem:[%s3910 + $0xf0] sm:$0xff]
      %v11250 = vld [vmem:[%s3910 + $0xf8] sm:$0xff]
      %v11265 = vrot.slane %v11205, 2
      %v11266 = vrot.slane %v11207, 2
      %v11267 = vsel %vm3580, %v11265, %v11266
      %v11268 = vrot.slane %v11206, 2
      %v11269 = vrot.slane %v11208, 2
      %v11270 = vsel %vm3580, %v11268, %v11269
      %v11271 = vrot.slane %v11209, 2
      %v11272 = vsel %vm3580, %v11266, %v11271
      %v11273 = vrot.slane %v11210, 2
      %v11274 = vsel %vm3580, %v11269, %v11273
      %v11275 = vrot.slane %v11211, 2
      %v11276 = vsel %vm3580, %v11271, %v11275
      %v11277 = vrot.slane %v11212, 2
      %v11278 = vsel %vm3580, %v11273, %v11277
      %v11279 = vrot.slane %v11213, 2
      %v11280 = vsel %vm3580, %v11275, %v11279
      %v11281 = vrot.slane %v11214, 2
      %v11282 = vsel %vm3580, %v11277, %v11281
      %v11283 = vrot.slane %v11215, 2
      %v11284 = vsel %vm3580, %v11279, %v11283
      %v11285 = vrot.slane %v11216, 2
      %v11286 = vsel %vm3580, %v11281, %v11285
      %v11287 = vrot.slane %v11217, 2
      %v11288 = vsel %vm3580, %v11283, %v11287
      %v11289 = vrot.slane %v11218, 2
      %v11290 = vsel %vm3580, %v11285, %v11289
      %v11335 = vunpack.c.l.b16 %v11219
      %v11336 = vunpack.c.h.b16 %v11219
      %v11337 = vunpack.c.l.b16 %v11220
      %v11338 = vunpack.c.h.b16 %v11220
      %v11339 = vunpack.c.l.b16 %v11221
      %v11340 = vunpack.c.h.b16 %v11221
      %v11341 = vunpack.c.l.b16 %v11222
      %v11342 = vunpack.c.h.b16 %v11222
      %v11343 = vunpack.c.l.b16 %v11223
      %v11344 = vunpack.c.h.b16 %v11223
      %v11345 = vunpack.c.l.b16 %v11224
      %v11346 = vunpack.c.h.b16 %v11224
      %v11347 = vunpack.c.l.b16 %v11225
      %v11348 = vunpack.c.h.b16 %v11225
      %v11349 = vunpack.c.l.b16 %v11226
      %v11350 = vunpack.c.h.b16 %v11226
      %v11351 = vunpack.c.l.b16 %v11227
      %v11352 = vunpack.c.h.b16 %v11227
      %v11353 = vunpack.c.l.b16 %v11228
      %v11354 = vunpack.c.h.b16 %v11228
      %v11355 = vunpack.c.l.b16 %v11229
      %v11356 = vunpack.c.h.b16 %v11229
      %v11357 = vunpack.c.l.b16 %v11230
      %v11358 = vunpack.c.h.b16 %v11230
      %v11359 = vunpack.c.l.b16 %v11231
      %v11360 = vunpack.c.h.b16 %v11231
      %v11361 = vunpack.c.l.b16 %v11232
      %v11362 = vunpack.c.h.b16 %v11232
      %v11363 = vunpack.c.l.b16 %v11233
      %v11364 = vunpack.c.h.b16 %v11233
      %v11365 = vunpack.c.l.b16 %v11234
      %v11366 = vunpack.c.h.b16 %v11234
      %v11367 = vunpack.c.l.b16 %v11235
      %v11368 = vunpack.c.h.b16 %v11235
      %v11369 = vunpack.c.l.b16 %v11236
      %v11370 = vunpack.c.h.b16 %v11236
      %v11371 = vunpack.c.l.b16 %v11237
      %v11372 = vunpack.c.h.b16 %v11237
      %v11373 = vunpack.c.l.b16 %v11238
      %v11374 = vunpack.c.h.b16 %v11238
      %v11375 = vunpack.c.l.b16 %v11239
      %v11376 = vunpack.c.h.b16 %v11239
      %v11377 = vunpack.c.l.b16 %v11240
      %v11378 = vunpack.c.h.b16 %v11240
      %v11379 = vunpack.c.l.b16 %v11241
      %v11380 = vunpack.c.h.b16 %v11241
      %v11381 = vunpack.c.l.b16 %v11242
      %v11382 = vunpack.c.h.b16 %v11242
      %v11383 = vunpack.c.l.b16 %v11243
      %v11384 = vunpack.c.h.b16 %v11243
      %v11385 = vunpack.c.l.b16 %v11244
      %v11386 = vunpack.c.h.b16 %v11244
      %v11387 = vunpack.c.l.b16 %v11245
      %v11388 = vunpack.c.h.b16 %v11245
      %v11389 = vunpack.c.l.b16 %v11246
      %v11390 = vunpack.c.h.b16 %v11246
      %v11391 = vunpack.c.l.b16 %v11247
      %v11392 = vunpack.c.h.b16 %v11247
      %v11393 = vunpack.c.l.b16 %v11248
      %v11394 = vunpack.c.h.b16 %v11248
      %v11395 = vunpack.c.l.b16 %v11249
      %v11396 = vunpack.c.h.b16 %v11249
      %v11397 = vunpack.c.l.b16 %v11250
      %v11398 = vunpack.c.h.b16 %v11250
      %v11399 = vpack.c.b16 %v11337, %v11335
      %v11400 = vpack.c.b16 %v11338, %v11336
      %v11401 = vpack.c.b16 %v11341, %v11339
      %v11402 = vpack.c.b16 %v11342, %v11340
      %v11403 = vpack.c.b16 %v11345, %v11343
      %v11404 = vpack.c.b16 %v11346, %v11344
      %v11405 = vpack.c.b16 %v11349, %v11347
      %v11406 = vpack.c.b16 %v11350, %v11348
      %v11407 = vpack.c.b16 %v11353, %v11351
      %v11408 = vpack.c.b16 %v11354, %v11352
      %v11409 = vpack.c.b16 %v11357, %v11355
      %v11410 = vpack.c.b16 %v11358, %v11356
      %v11411 = vpack.c.b16 %v11361, %v11359
      %v11412 = vpack.c.b16 %v11362, %v11360
      %v11413 = vpack.c.b16 %v11365, %v11363
      %v11414 = vpack.c.b16 %v11366, %v11364
      %v11415 = vpack.c.b16 %v11369, %v11367
      %v11416 = vpack.c.b16 %v11370, %v11368
      %v11417 = vpack.c.b16 %v11373, %v11371
      %v11418 = vpack.c.b16 %v11374, %v11372
      %v11419 = vpack.c.b16 %v11377, %v11375
      %v11420 = vpack.c.b16 %v11378, %v11376
      %v11421 = vpack.c.b16 %v11381, %v11379
      %v11422 = vpack.c.b16 %v11382, %v11380
      %v11423 = vpack.c.b16 %v11385, %v11383
      %v11424 = vpack.c.b16 %v11386, %v11384
      %v11425 = vpack.c.b16 %v11389, %v11387
      %v11426 = vpack.c.b16 %v11390, %v11388
      %v11427 = vpack.c.b16 %v11393, %v11391
      %v11428 = vpack.c.b16 %v11394, %v11392
      %v11429 = vpack.c.b16 %v11397, %v11395
      %v11430 = vpack.c.b16 %v11398, %v11396
      %11463 = vmatprep.subr.bf16.mxu0 %v11400
      %11464 = vmatpush1.bf16.msra.mxu0 %v11399
      %11465 = vmatprep.subr.bf16.mxu0 %v11402
      %11466 = vmatpush1.bf16.msra.mxu0 %v11401
      %11467 = vmatprep.subr.bf16.mxu0 %v11404
      %11468 = vmatpush1.bf16.msra.mxu0 %v11403
      %11469 = vmatprep.subr.bf16.mxu0 %v11406
      %11470 = vmatpush1.bf16.msra.mxu0 %v11405
      %11471 = vmatprep.subr.bf16.mxu0 %v11408
      %11472 = vmatpush1.bf16.msra.mxu0 %v11407
      %11473 = vmatprep.subr.bf16.mxu0 %v11410
      %11474 = vmatpush1.bf16.msra.mxu0 %v11409
      %11475 = vmatprep.subr.bf16.mxu0 %v11412
      %11476 = vmatpush1.bf16.msra.mxu0 %v11411
      %11477 = vmatprep.subr.bf16.mxu0 %v11414
      %11478 = vmatpush1.bf16.msra.mxu0 %v11413
      %11479 = vmatprep.subr.bf16.mxu0 %v11416
      %11480 = vmatpush1.bf16.msra.mxu0 %v11415
      %11481 = vmatprep.subr.bf16.mxu0 %v11418
      %11482 = vmatpush1.bf16.msra.mxu0 %v11417
      %11483 = vmatprep.subr.bf16.mxu0 %v11420
      %11484 = vmatpush1.bf16.msra.mxu0 %v11419
      %11485 = vmatprep.subr.bf16.mxu0 %v11422
      %11486 = vmatpush1.bf16.msra.mxu0 %v11421
      %11487 = vmatprep.subr.bf16.mxu0 %v11424
      %11488 = vmatpush1.bf16.msra.mxu0 %v11423
      %11489 = vmatprep.subr.bf16.mxu0 %v11426
      %11490 = vmatpush1.bf16.msra.mxu0 %v11425
      %11491 = vmatprep.subr.bf16.mxu0 %v11428
      %11492 = vmatpush1.bf16.msra.mxu0 %v11427
      %11493 = vmatprep.subr.bf16.mxu0 %v11430
      %11494 = vmatpush1.bf16.msra.mxu0 %v11429
      %11495 = vmatprep.mubr.bf16.mxu0 %v11270
      %11496 = vmatmul.mubr.bf16.gmra.mrb[0].mxu0 %v11267
      %v11497 = vpop.f32.mrb[0].mxu0
      %v11498 = vadd.f32 0.0, %v11497
      %v11499 = vpop.f32.mrb[0].mxu0
      %v11500 = vadd.f32 0.0, %v11499
      %v11501 = vpop.f32.mrb[0].mxu0
      %v11502 = vadd.f32 0.0, %v11501
      %v11503 = vpop.f32.mrb[0].mxu0
      %v11504 = vadd.f32 0.0, %v11503
      %11505 = vmatprep.mubr.bf16.mxu0 %v11274
      %11506 = vmatmul.mubr.bf16.gmra.mrb[0].mxu0 %v11272
      %v11507 = vpop.f32.mrb[0].mxu0
      %v11508 = vadd.f32 0.0, %v11507
      %v11509 = vpop.f32.mrb[0].mxu0
      %v11510 = vadd.f32 0.0, %v11509
      %v11511 = vpop.f32.mrb[0].mxu0
      %v11512 = vadd.f32 0.0, %v11511
      %v11513 = vpop.f32.mrb[0].mxu0
      %v11514 = vadd.f32 0.0, %v11513
      %11515 = vmatprep.mubr.bf16.mxu0 %v11278
      %11516 = vmatmul.mubr.bf16.gmra.mrb[0].mxu0 %v11276
      %v11517 = vpop.f32.mrb[0].mxu0
      %v11518 = vadd.f32 0.0, %v11517
      %v11519 = vpop.f32.mrb[0].mxu0
      %v11520 = vadd.f32 0.0, %v11519
      %v11521 = vpop.f32.mrb[0].mxu0
      %v11522 = vadd.f32 0.0, %v11521
      %v11523 = vpop.f32.mrb[0].mxu0
      %v11524 = vadd.f32 0.0, %v11523
      %11525 = vmatprep.mubr.bf16.mxu0 %v11282
      %11526 = vmatmul.mubr.bf16.gmra.mrb[0].mxu0 %v11280
      %v11527 = vpop.f32.mrb[0].mxu0
      %v11528 = vadd.f32 0.0, %v11527
      %v11529 = vpop.f32.mrb[0].mxu0
      %v11530 = vadd.f32 0.0, %v11529
      %v11531 = vpop.f32.mrb[0].mxu0
      %v11532 = vadd.f32 0.0, %v11531
      %v11533 = vpop.f32.mrb[0].mxu0
      %v11534 = vadd.f32 0.0, %v11533
      %11535 = vmatprep.mubr.bf16.mxu0 %v11286
      %11536 = vmatmul.mubr.bf16.gmra.mrb[0].mxu0 %v11284
      %v11537 = vpop.f32.mrb[0].mxu0
      %v11538 = vadd.f32 0.0, %v11537
      %v11539 = vpop.f32.mrb[0].mxu0
      %v11540 = vadd.f32 0.0, %v11539
      %v11541 = vpop.f32.mrb[0].mxu0
      %v11542 = vadd.f32 0.0, %v11541
      %v11543 = vpop.f32.mrb[0].mxu0
      %v11544 = vadd.f32 0.0, %v11543
      %11545 = vmatprep.mubr.bf16.mxu0 %v11290
      %11546 = vmatmul.mubr.bf16.gmra.mrb[0].mxu0 %v11288
      %v11547 = vpop.f32.mrb[0].mxu0
      %v11548 = vadd.f32 0.0, %v11547
      %v11549 = vpop.f32.mrb[0].mxu0
      %v11550 = vadd.f32 0.0, %v11549
      %v11551 = vpop.f32.mrb[0].mxu0
      %v11552 = vadd.f32 0.0, %v11551
      %v11553 = vpop.f32.mrb[0].mxu0
      %v11554 = vadd.f32 0.0, %v11553
      %11555 = vdwg.mxu0
      %v11556 = vadd.f32 %v11181, %v11498
      %v11557 = vadd.f32 %v11182, %v11500
      %v11558 = vadd.f32 %v11183, %v11502
      %v11559 = vadd.f32 %v11184, %v11504
      %v11560 = vadd.f32 %v11185, %v11508
      %v11561 = vadd.f32 %v11186, %v11510
      %v11562 = vadd.f32 %v11187, %v11512
      %v11563 = vadd.f32 %v11188, %v11514
      %v11564 = vadd.f32 %v11189, %v11518
      %v11565 = vadd.f32 %v11190, %v11520
      %v11566 = vadd.f32 %v11191, %v11522
      %v11567 = vadd.f32 %v11192, %v11524
      %v11568 = vadd.f32 %v11193, %v11528
      %v11569 = vadd.f32 %v11194, %v11530
      %v11570 = vadd.f32 %v11195, %v11532
      %v11571 = vadd.f32 %v11196, %v11534
      %v11572 = vadd.f32 %v11197, %v11538
      %v11573 = vadd.f32 %v11198, %v11540
      %v11574 = vadd.f32 %v11199, %v11542
      %v11575 = vadd.f32 %v11200, %v11544
      %v11576 = vadd.f32 %v11201, %v11548
      %v11577 = vadd.f32 %v11202, %v11550
      %v11578 = vadd.f32 %v11203, %v11552
      %v11579 = vadd.f32 %v11204, %v11554
      %v11580 = vld [vmem:[#allocation2 + $0x140] sm:$0x7]
      %v11581 = vld [vmem:[#allocation2 + $0x148] sm:$0x7]
      %v11582 = vld [vmem:[%s4274] sm:$0xff]
      %v11583 = vld [vmem:[%s4274 + $0x8] sm:$0xff]
      %v11584 = vld [vmem:[%s4274 + $0x10] sm:$0xff]
      %v11585 = vld [vmem:[%s4274 + $0x18] sm:$0xff]
      %v11586 = vld [vmem:[%s4274 + $0x20] sm:$0xff]
      %v11587 = vld [vmem:[%s4274 + $0x28] sm:$0xff]
      %v11588 = vld [vmem:[%s4274 + $0x30] sm:$0xff]
      %v11589 = vld [vmem:[%s4274 + $0x38] sm:$0xff]
      %v11590 = vld [vmem:[%s4274 + $0x40] sm:$0xff]
      %v11591 = vld [vmem:[%s4274 + $0x48] sm:$0xff]
      %v11592 = vld [vmem:[%s4274 + $0x50] sm:$0xff]
      %v11593 = vld [vmem:[%s4274 + $0x58] sm:$0xff]
      %v11594 = vld [vmem:[%s4274 + $0x60] sm:$0xff]
      %v11595 = vld [vmem:[%s4274 + $0x68] sm:$0xff]
      %v11596 = vld [vmem:[%s4274 + $0x70] sm:$0xff]
      %v11597 = vld [vmem:[%s4274 + $0x78] sm:$0xff]
      %v11598 = vld [vmem:[%s4274 + $0x80] sm:$0xff]
      %v11599 = vld [vmem:[%s4274 + $0x88] sm:$0xff]
      %v11600 = vld [vmem:[%s4274 + $0x90] sm:$0xff]
      %v11601 = vld [vmem:[%s4274 + $0x98] sm:$0xff]
      %v11602 = vld [vmem:[%s4274 + $0xa0] sm:$0xff]
      %v11603 = vld [vmem:[%s4274 + $0xa8] sm:$0xff]
      %v11604 = vld [vmem:[%s4274 + $0xb0] sm:$0xff]
      %v11605 = vld [vmem:[%s4274 + $0xb8] sm:$0xff]
      %v11606 = vld [vmem:[%s4274 + $0xc0] sm:$0xff]
      %v11607 = vld [vmem:[%s4274 + $0xc8] sm:$0xff]
      %v11608 = vld [vmem:[%s4274 + $0xd0] sm:$0xff]
      %v11609 = vld [vmem:[%s4274 + $0xd8] sm:$0xff]
      %v11610 = vld [vmem:[%s4274 + $0xe0] sm:$0xff]
      %v11611 = vld [vmem:[%s4274 + $0xe8] sm:$0xff]
      %v11612 = vld [vmem:[%s4274 + $0xf0] sm:$0xff]
      %v11613 = vld [vmem:[%s4274 + $0xf8] sm:$0xff]
      %v11615 = vshrl.u32 %v11205, 16
      %v11617 = vrot.slane %v11615, 2
      %v11618 = vshll.u32 %v11205, 16
      %v11620 = vrot.slane %v11618, 3
      %v11621 = vor.u32 %v11617, %v11620
      %v11623 = vshrl.u32 %v11207, 16
      %v11625 = vrot.slane %v11623, 2
      %v11626 = vshll.u32 %v11207, 16
      %v11628 = vrot.slane %v11626, 3
      %v11629 = vor.u32 %v11625, %v11628
      %v11630 = vsel %vm4307, %v11621, %v11629
      %v11632 = vshrl.u32 %v11206, 16
      %v11634 = vrot.slane %v11632, 2
      %v11635 = vshll.u32 %v11206, 16
      %v11637 = vrot.slane %v11635, 3
      %v11638 = vor.u32 %v11634, %v11637
      %v11640 = vshrl.u32 %v11208, 16
      %v11642 = vrot.slane %v11640, 2
      %v11643 = vshll.u32 %v11208, 16
      %v11645 = vrot.slane %v11643, 3
      %v11646 = vor.u32 %v11642, %v11645
      %v11647 = vsel %vm4307, %v11638, %v11646
      %v11649 = vshrl.u32 %v11209, 16
      %v11651 = vrot.slane %v11649, 2
      %v11652 = vshll.u32 %v11209, 16
      %v11654 = vrot.slane %v11652, 3
      %v11655 = vor.u32 %v11651, %v11654
      %v11656 = vsel %vm4307, %v11629, %v11655
      %v11658 = vshrl.u32 %v11210, 16
      %v11660 = vrot.slane %v11658, 2
      %v11661 = vshll.u32 %v11210, 16
      %v11663 = vrot.slane %v11661, 3
      %v11664 = vor.u32 %v11660, %v11663
      %v11665 = vsel %vm4307, %v11646, %v11664
      %v11667 = vshrl.u32 %v11211, 16
      %v11669 = vrot.slane %v11667, 2
      %v11670 = vshll.u32 %v11211, 16
      %v11672 = vrot.slane %v11670, 3
      %v11673 = vor.u32 %v11669, %v11672
      %v11674 = vsel %vm4307, %v11655, %v11673
      %v11676 = vshrl.u32 %v11212, 16
      %v11678 = vrot.slane %v11676, 2
      %v11679 = vshll.u32 %v11212, 16
      %v11681 = vrot.slane %v11679, 3
      %v11682 = vor.u32 %v11678, %v11681
      %v11683 = vsel %vm4307, %v11664, %v11682
      %v11685 = vshrl.u32 %v11213, 16
      %v11687 = vrot.slane %v11685, 2
      %v11688 = vshll.u32 %v11213, 16
      %v11690 = vrot.slane %v11688, 3
      %v11691 = vor.u32 %v11687, %v11690
      %v11692 = vsel %vm4307, %v11673, %v11691
      %v11694 = vshrl.u32 %v11214, 16
      %v11696 = vrot.slane %v11694, 2
      %v11697 = vshll.u32 %v11214, 16
      %v11699 = vrot.slane %v11697, 3
      %v11700 = vor.u32 %v11696, %v11699
      %v11701 = vsel %vm4307, %v11682, %v11700
      %v11703 = vshrl.u32 %v11215, 16
      %v11705 = vrot.slane %v11703, 2
      %v11706 = vshll.u32 %v11215, 16
      %v11708 = vrot.slane %v11706, 3
      %v11709 = vor.u32 %v11705, %v11708
      %v11710 = vsel %vm4307, %v11691, %v11709
      %v11712 = vshrl.u32 %v11216, 16
      %v11714 = vrot.slane %v11712, 2
      %v11715 = vshll.u32 %v11216, 16
      %v11717 = vrot.slane %v11715, 3
      %v11718 = vor.u32 %v11714, %v11717
      %v11719 = vsel %vm4307, %v11700, %v11718
      %v11721 = vshrl.u32 %v11580, 16
      %v11723 = vrot.slane %v11721, 2
      %v11724 = vshll.u32 %v11580, 16
      %v11726 = vrot.slane %v11724, 3
      %v11727 = vor.u32 %v11723, %v11726
      %v11728 = vsel %vm4307, %v11709, %v11727
      %v11730 = vshrl.u32 %v11581, 16
      %v11732 = vrot.slane %v11730, 2
      %v11733 = vshll.u32 %v11581, 16
      %v11735 = vrot.slane %v11733, 3
      %v11736 = vor.u32 %v11732, %v11735
      %v11737 = vsel %vm4307, %v11718, %v11736
      %v11782 = vunpack.c.l.b16 %v11582
      %v11783 = vunpack.c.h.b16 %v11582
      %v11784 = vunpack.c.l.b16 %v11583
      %v11785 = vunpack.c.h.b16 %v11583
      %v11786 = vunpack.c.l.b16 %v11584
      %v11787 = vunpack.c.h.b16 %v11584
      %v11788 = vunpack.c.l.b16 %v11585
      %v11789 = vunpack.c.h.b16 %v11585
      %v11790 = vunpack.c.l.b16 %v11586
      %v11791 = vunpack.c.h.b16 %v11586
      %v11792 = vunpack.c.l.b16 %v11587
      %v11793 = vunpack.c.h.b16 %v11587
      %v11794 = vunpack.c.l.b16 %v11588
      %v11795 = vunpack.c.h.b16 %v11588
      %v11796 = vunpack.c.l.b16 %v11589
      %v11797 = vunpack.c.h.b16 %v11589
      %v11798 = vunpack.c.l.b16 %v11590
      %v11799 = vunpack.c.h.b16 %v11590
      %v11800 = vunpack.c.l.b16 %v11591
      %v11801 = vunpack.c.h.b16 %v11591
      %v11802 = vunpack.c.l.b16 %v11592
      %v11803 = vunpack.c.h.b16 %v11592
      %v11804 = vunpack.c.l.b16 %v11593
      %v11805 = vunpack.c.h.b16 %v11593
      %v11806 = vunpack.c.l.b16 %v11594
      %v11807 = vunpack.c.h.b16 %v11594
      %v11808 = vunpack.c.l.b16 %v11595
      %v11809 = vunpack.c.h.b16 %v11595
      %v11810 = vunpack.c.l.b16 %v11596
      %v11811 = vunpack.c.h.b16 %v11596
      %v11812 = vunpack.c.l.b16 %v11597
      %v11813 = vunpack.c.h.b16 %v11597
      %v11814 = vunpack.c.l.b16 %v11598
      %v11815 = vunpack.c.h.b16 %v11598
      %v11816 = vunpack.c.l.b16 %v11599
      %v11817 = vunpack.c.h.b16 %v11599
      %v11818 = vunpack.c.l.b16 %v11600
      %v11819 = vunpack.c.h.b16 %v11600
      %v11820 = vunpack.c.l.b16 %v11601
      %v11821 = vunpack.c.h.b16 %v11601
      %v11822 = vunpack.c.l.b16 %v11602
      %v11823 = vunpack.c.h.b16 %v11602
      %v11824 = vunpack.c.l.b16 %v11603
      %v11825 = vunpack.c.h.b16 %v11603
      %v11826 = vunpack.c.l.b16 %v11604
      %v11827 = vunpack.c.h.b16 %v11604
      %v11828 = vunpack.c.l.b16 %v11605
      %v11829 = vunpack.c.h.b16 %v11605
      %v11830 = vunpack.c.l.b16 %v11606
      %v11831 = vunpack.c.h.b16 %v11606
      %v11832 = vunpack.c.l.b16 %v11607
      %v11833 = vunpack.c.h.b16 %v11607
      %v11834 = vunpack.c.l.b16 %v11608
      %v11835 = vunpack.c.h.b16 %v11608
      %v11836 = vunpack.c.l.b16 %v11609
      %v11837 = vunpack.c.h.b16 %v11609
      %v11838 = vunpack.c.l.b16 %v11610
      %v11839 = vunpack.c.h.b16 %v11610
      %v11840 = vunpack.c.l.b16 %v11611
      %v11841 = vunpack.c.h.b16 %v11611
      %v11842 = vunpack.c.l.b16 %v11612
      %v11843 = vunpack.c.h.b16 %v11612
      %v11844 = vunpack.c.l.b16 %v11613
      %v11845 = vunpack.c.h.b16 %v11613
      %v11846 = vpack.c.b16 %v11784, %v11782
      %v11847 = vpack.c.b16 %v11785, %v11783
      %v11848 = vpack.c.b16 %v11788, %v11786
      %v11849 = vpack.c.b16 %v11789, %v11787
      %v11850 = vpack.c.b16 %v11792, %v11790
      %v11851 = vpack.c.b16 %v11793, %v11791
      %v11852 = vpack.c.b16 %v11796, %v11794
      %v11853 = vpack.c.b16 %v11797, %v11795
      %v11854 = vpack.c.b16 %v11800, %v11798
      %v11855 = vpack.c.b16 %v11801, %v11799
      %v11856 = vpack.c.b16 %v11804, %v11802
      %v11857 = vpack.c.b16 %v11805, %v11803
      %v11858 = vpack.c.b16 %v11808, %v11806
      %v11859 = vpack.c.b16 %v11809, %v11807
      %v11860 = vpack.c.b16 %v11812, %v11810
      %v11861 = vpack.c.b16 %v11813, %v11811
      %v11862 = vpack.c.b16 %v11816, %v11814
      %v11863 = vpack.c.b16 %v11817, %v11815
      %v11864 = vpack.c.b16 %v11820, %v11818
      %v11865 = vpack.c.b16 %v11821, %v11819
      %v11866 = vpack.c.b16 %v11824, %v11822
      %v11867 = vpack.c.b16 %v11825, %v11823
      %v11868 = vpack.c.b16 %v11828, %v11826
      %v11869 = vpack.c.b16 %v11829, %v11827
      %v11870 = vpack.c.b16 %v11832, %v11830
      %v11871 = vpack.c.b16 %v11833, %v11831
      %v11872 = vpack.c.b16 %v11836, %v11834
      %v11873 = vpack.c.b16 %v11837, %v11835
      %v11874 = vpack.c.b16 %v11840, %v11838
      %v11875 = vpack.c.b16 %v11841, %v11839
      %v11876 = vpack.c.b16 %v11844, %v11842
      %v11877 = vpack.c.b16 %v11845, %v11843
      %11910 = vmatprep.subr.bf16.mxu0 %v11847
      %11911 = vmatpush1.bf16.msra.mxu0 %v11846
      %11912 = vmatprep.subr.bf16.mxu0 %v11849
      %11913 = vmatpush1.bf16.msra.mxu0 %v11848
      %11914 = vmatprep.subr.bf16.mxu0 %v11851
      %11915 = vmatpush1.bf16.msra.mxu0 %v11850
      %11916 = vmatprep.subr.bf16.mxu0 %v11853
      %11917 = vmatpush1.bf16.msra.mxu0 %v11852
      %11918 = vmatprep.subr.bf16.mxu0 %v11855
      %11919 = vmatpush1.bf16.msra.mxu0 %v11854
      %11920 = vmatprep.subr.bf16.mxu0 %v11857
      %11921 = vmatpush1.bf16.msra.mxu0 %v11856
      %11922 = vmatprep.subr.bf16.mxu0 %v11859
      %11923 = vmatpush1.bf16.msra.mxu0 %v11858
      %11924 = vmatprep.subr.bf16.mxu0 %v11861
      %11925 = vmatpush1.bf16.msra.mxu0 %v11860
      %11926 = vmatprep.subr.bf16.mxu0 %v11863
      %11927 = vmatpush1.bf16.msra.mxu0 %v11862
      %11928 = vmatprep.subr.bf16.mxu0 %v11865
      %11929 = vmatpush1.bf16.msra.mxu0 %v11864
      %11930 = vmatprep.subr.bf16.mxu0 %v11867
      %11931 = vmatpush1.bf16.msra.mxu0 %v11866
      %11932 = vmatprep.subr.bf16.mxu0 %v11869
      %11933 = vmatpush1.bf16.msra.mxu0 %v11868
      %11934 = vmatprep.subr.bf16.mxu0 %v11871
      %11935 = vmatpush1.bf16.msra.mxu0 %v11870
      %11936 = vmatprep.subr.bf16.mxu0 %v11873
      %11937 = vmatpush1.bf16.msra.mxu0 %v11872
      %11938 = vmatprep.subr.bf16.mxu0 %v11875
      %11939 = vmatpush1.bf16.msra.mxu0 %v11874
      %11940 = vmatprep.subr.bf16.mxu0 %v11877
      %11941 = vmatpush1.bf16.msra.mxu0 %v11876
      %11942 = vmatprep.mubr.bf16.mxu0 %v11647
      %11943 = vmatmul.mubr.bf16.gmra.mrb[0].mxu0 %v11630
      %v11944 = vpop.f32.mrb[0].mxu0
      %v11945 = vadd.f32 0.0, %v11944
      %v11946 = vpop.f32.mrb[0].mxu0
      %v11947 = vadd.f32 0.0, %v11946
      %v11948 = vpop.f32.mrb[0].mxu0
      %v11949 = vadd.f32 0.0, %v11948
      %v11950 = vpop.f32.mrb[0].mxu0
      %v11951 = vadd.f32 0.0, %v11950
      %11952 = vmatprep.mubr.bf16.mxu0 %v11665
      %11953 = vmatmul.mubr.bf16.gmra.mrb[0].mxu0 %v11656
      %v11954 = vpop.f32.mrb[0].mxu0
      %v11955 = vadd.f32 0.0, %v11954
      %v11956 = vpop.f32.mrb[0].mxu0
      %v11957 = vadd.f32 0.0, %v11956
      %v11958 = vpop.f32.mrb[0].mxu0
      %v11959 = vadd.f32 0.0, %v11958
      %v11960 = vpop.f32.mrb[0].mxu0
      %v11961 = vadd.f32 0.0, %v11960
      %11962 = vmatprep.mubr.bf16.mxu0 %v11683
      %11963 = vmatmul.mubr.bf16.gmra.mrb[0].mxu0 %v11674
      %v11964 = vpop.f32.mrb[0].mxu0
      %v11965 = vadd.f32 0.0, %v11964
      %v11966 = vpop.f32.mrb[0].mxu0
      %v11967 = vadd.f32 0.0, %v11966
      %v11968 = vpop.f32.mrb[0].mxu0
      %v11969 = vadd.f32 0.0, %v11968
      %v11970 = vpop.f32.mrb[0].mxu0
      %v11971 = vadd.f32 0.0, %v11970
      %11972 = vmatprep.mubr.bf16.mxu0 %v11701
      %11973 = vmatmul.mubr.bf16.gmra.mrb[0].mxu0 %v11692
      %v11974 = vpop.f32.mrb[0].mxu0
      %v11975 = vadd.f32 0.0, %v11974
      %v11976 = vpop.f32.mrb[0].mxu0
      %v11977 = vadd.f32 0.0, %v11976
      %v11978 = vpop.f32.mrb[0].mxu0
      %v11979 = vadd.f32 0.0, %v11978
      %v11980 = vpop.f32.mrb[0].mxu0
      %v11981 = vadd.f32 0.0, %v11980
      %11982 = vmatprep.mubr.bf16.mxu0 %v11719
      %11983 = vmatmul.mubr.bf16.gmra.mrb[0].mxu0 %v11710
      %v11984 = vpop.f32.mrb[0].mxu0
      %v11985 = vadd.f32 0.0, %v11984
      %v11986 = vpop.f32.mrb[0].mxu0
      %v11987 = vadd.f32 0.0, %v11986
      %v11988 = vpop.f32.mrb[0].mxu0
      %v11989 = vadd.f32 0.0, %v11988
      %v11990 = vpop.f32.mrb[0].mxu0
      %v11991 = vadd.f32 0.0, %v11990
      %11992 = vmatprep.mubr.bf16.mxu0 %v11737
      %11993 = vmatmul.mubr.bf16.gmra.mrb[0].mxu0 %v11728
      %v11994 = vpop.f32.mrb[0].mxu0
      %v11995 = vadd.f32 0.0, %v11994
      %v11996 = vpop.f32.mrb[0].mxu0
      %v11997 = vadd.f32 0.0, %v11996
      %v11998 = vpop.f32.mrb[0].mxu0
      %v11999 = vadd.f32 0.0, %v11998
      %v12000 = vpop.f32.mrb[0].mxu0
      %v12001 = vadd.f32 0.0, %v12000
      %12002 = vdwg.mxu0
      %v12003 = vadd.f32 %v11556, %v11945
      %v12004 = vadd.f32 %v11557, %v11947
      %v12005 = vadd.f32 %v11558, %v11949
      %v12006 = vadd.f32 %v11559, %v11951
      %v12007 = vadd.f32 %v11560, %v11955
      %v12008 = vadd.f32 %v11561, %v11957
      %v12009 = vadd.f32 %v11562, %v11959
      %v12010 = vadd.f32 %v11563, %v11961
      %v12011 = vadd.f32 %v11564, %v11965
      %v12012 = vadd.f32 %v11565, %v11967
      %v12013 = vadd.f32 %v11566, %v11969
      %v12014 = vadd.f32 %v11567, %v11971
      %v12015 = vadd.f32 %v11568, %v11975
      %v12016 = vadd.f32 %v11569, %v11977
      %v12017 = vadd.f32 %v11570, %v11979
      %v12018 = vadd.f32 %v11571, %v11981
      %v12019 = vadd.f32 %v11572, %v11985
      %v12020 = vadd.f32 %v11573, %v11987
      %v12021 = vadd.f32 %v11574, %v11989
      %v12022 = vadd.f32 %v11575, %v11991
      %v12023 = vadd.f32 %v11576, %v11995
      %v12024 = vadd.f32 %v11577, %v11997
      %v12025 = vadd.f32 %v11578, %v11999
      %v12026 = vadd.f32 %v11579, %v12001
      %v12027 = vld [vmem:[#allocation2 + $0xe0] sm:$0xf8]
      %v12028 = vld [vmem:[#allocation2 + $0xe8] sm:$0xf8]
      %v12029 = vld [vmem:[%s4723] sm:$0xff]
      %v12030 = vld [vmem:[%s4723 + $0x8] sm:$0xff]
      %v12031 = vld [vmem:[%s4723 + $0x10] sm:$0xff]
      %v12032 = vld [vmem:[%s4723 + $0x18] sm:$0xff]
      %v12033 = vld [vmem:[%s4723 + $0x20] sm:$0xff]
      %v12034 = vld [vmem:[%s4723 + $0x28] sm:$0xff]
      %v12035 = vld [vmem:[%s4723 + $0x30] sm:$0xff]
      %v12036 = vld [vmem:[%s4723 + $0x38] sm:$0xff]
      %v12037 = vld [vmem:[%s4723 + $0x40] sm:$0xff]
      %v12038 = vld [vmem:[%s4723 + $0x48] sm:$0xff]
      %v12039 = vld [vmem:[%s4723 + $0x50] sm:$0xff]
      %v12040 = vld [vmem:[%s4723 + $0x58] sm:$0xff]
      %v12041 = vld [vmem:[%s4723 + $0x60] sm:$0xff]
      %v12042 = vld [vmem:[%s4723 + $0x68] sm:$0xff]
      %v12043 = vld [vmem:[%s4723 + $0x70] sm:$0xff]
      %v12044 = vld [vmem:[%s4723 + $0x78] sm:$0xff]
      %v12045 = vld [vmem:[%s4723 + $0x80] sm:$0xff]
      %v12046 = vld [vmem:[%s4723 + $0x88] sm:$0xff]
      %v12047 = vld [vmem:[%s4723 + $0x90] sm:$0xff]
      %v12048 = vld [vmem:[%s4723 + $0x98] sm:$0xff]
      %v12049 = vld [vmem:[%s4723 + $0xa0] sm:$0xff]
      %v12050 = vld [vmem:[%s4723 + $0xa8] sm:$0xff]
      %v12051 = vld [vmem:[%s4723 + $0xb0] sm:$0xff]
      %v12052 = vld [vmem:[%s4723 + $0xb8] sm:$0xff]
      %v12053 = vld [vmem:[%s4723 + $0xc0] sm:$0xff]
      %v12054 = vld [vmem:[%s4723 + $0xc8] sm:$0xff]
      %v12055 = vld [vmem:[%s4723 + $0xd0] sm:$0xff]
      %v12056 = vld [vmem:[%s4723 + $0xd8] sm:$0xff]
      %v12057 = vld [vmem:[%s4723 + $0xe0] sm:$0xff]
      %v12058 = vld [vmem:[%s4723 + $0xe8] sm:$0xff]
      %v12059 = vld [vmem:[%s4723 + $0xf0] sm:$0xff]
      %v12060 = vld [vmem:[%s4723 + $0xf8] sm:$0xff]
      %v12065 = vrot.slane %v12027, 3
      %v12066 = vrot.slane %v11207, 3
      %v12067 = vsel %vm4760, %v12065, %v12066
      %v12068 = vrot.slane %v12028, 3
      %v12069 = vrot.slane %v11208, 3
      %v12070 = vsel %vm4760, %v12068, %v12069
      %v12071 = vrot.slane %v11209, 3
      %v12072 = vsel %vm4760, %v12066, %v12071
      %v12073 = vrot.slane %v11210, 3
      %v12074 = vsel %vm4760, %v12069, %v12073
      %v12075 = vrot.slane %v11211, 3
      %v12076 = vsel %vm4760, %v12071, %v12075
      %v12077 = vrot.slane %v11212, 3
      %v12078 = vsel %vm4760, %v12073, %v12077
      %v12079 = vrot.slane %v11213, 3
      %v12080 = vsel %vm4760, %v12075, %v12079
      %v12081 = vrot.slane %v11214, 3
      %v12082 = vsel %vm4760, %v12077, %v12081
      %v12083 = vrot.slane %v11215, 3
      %v12084 = vsel %vm4760, %v12079, %v12083
      %v12085 = vrot.slane %v11216, 3
      %v12086 = vsel %vm4760, %v12081, %v12085
      %v12087 = vrot.slane %v11580, 3
      %v12088 = vsel %vm4760, %v12083, %v12087
      %v12089 = vrot.slane %v11581, 3
      %v12090 = vsel %vm4760, %v12085, %v12089
      %v12135 = vunpack.c.l.b16 %v12029
      %v12136 = vunpack.c.h.b16 %v12029
      %v12137 = vunpack.c.l.b16 %v12030
      %v12138 = vunpack.c.h.b16 %v12030
      %v12139 = vunpack.c.l.b16 %v12031
      %v12140 = vunpack.c.h.b16 %v12031
      %v12141 = vunpack.c.l.b16 %v12032
      %v12142 = vunpack.c.h.b16 %v12032
      %v12143 = vunpack.c.l.b16 %v12033
      %v12144 = vunpack.c.h.b16 %v12033
      %v12145 = vunpack.c.l.b16 %v12034
      %v12146 = vunpack.c.h.b16 %v12034
      %v12147 = vunpack.c.l.b16 %v12035
      %v12148 = vunpack.c.h.b16 %v12035
      %v12149 = vunpack.c.l.b16 %v12036
      %v12150 = vunpack.c.h.b16 %v12036
      %v12151 = vunpack.c.l.b16 %v12037
      %v12152 = vunpack.c.h.b16 %v12037
      %v12153 = vunpack.c.l.b16 %v12038
      %v12154 = vunpack.c.h.b16 %v12038
      %v12155 = vunpack.c.l.b16 %v12039
      %v12156 = vunpack.c.h.b16 %v12039
      %v12157 = vunpack.c.l.b16 %v12040
      %v12158 = vunpack.c.h.b16 %v12040
      %v12159 = vunpack.c.l.b16 %v12041
      %v12160 = vunpack.c.h.b16 %v12041
      %v12161 = vunpack.c.l.b16 %v12042
      %v12162 = vunpack.c.h.b16 %v12042
      %v12163 = vunpack.c.l.b16 %v12043
      %v12164 = vunpack.c.h.b16 %v12043
      %v12165 = vunpack.c.l.b16 %v12044
      %v12166 = vunpack.c.h.b16 %v12044
      %v12167 = vunpack.c.l.b16 %v12045
      %v12168 = vunpack.c.h.b16 %v12045
      %v12169 = vunpack.c.l.b16 %v12046
      %v12170 = vunpack.c.h.b16 %v12046
      %v12171 = vunpack.c.l.b16 %v12047
      %v12172 = vunpack.c.h.b16 %v12047
      %v12173 = vunpack.c.l.b16 %v12048
      %v12174 = vunpack.c.h.b16 %v12048
      %v12175 = vunpack.c.l.b16 %v12049
      %v12176 = vunpack.c.h.b16 %v12049
      %v12177 = vunpack.c.l.b16 %v12050
      %v12178 = vunpack.c.h.b16 %v12050
      %v12179 = vunpack.c.l.b16 %v12051
      %v12180 = vunpack.c.h.b16 %v12051
      %v12181 = vunpack.c.l.b16 %v12052
      %v12182 = vunpack.c.h.b16 %v12052
      %v12183 = vunpack.c.l.b16 %v12053
      %v12184 = vunpack.c.h.b16 %v12053
      %v12185 = vunpack.c.l.b16 %v12054
      %v12186 = vunpack.c.h.b16 %v12054
      %v12187 = vunpack.c.l.b16 %v12055
      %v12188 = vunpack.c.h.b16 %v12055
      %v12189 = vunpack.c.l.b16 %v12056
      %v12190 = vunpack.c.h.b16 %v12056
      %v12191 = vunpack.c.l.b16 %v12057
      %v12192 = vunpack.c.h.b16 %v12057
      %v12193 = vunpack.c.l.b16 %v12058
      %v12194 = vunpack.c.h.b16 %v12058
      %v12195 = vunpack.c.l.b16 %v12059
      %v12196 = vunpack.c.h.b16 %v12059
      %v12197 = vunpack.c.l.b16 %v12060
      %v12198 = vunpack.c.h.b16 %v12060
      %v12199 = vpack.c.b16 %v12137, %v12135
      %v12200 = vpack.c.b16 %v12138, %v12136
      %v12201 = vpack.c.b16 %v12141, %v12139
      %v12202 = vpack.c.b16 %v12142, %v12140
      %v12203 = vpack.c.b16 %v12145, %v12143
      %v12204 = vpack.c.b16 %v12146, %v12144
      %v12205 = vpack.c.b16 %v12149, %v12147
      %v12206 = vpack.c.b16 %v12150, %v12148
      %v12207 = vpack.c.b16 %v12153, %v12151
      %v12208 = vpack.c.b16 %v12154, %v12152
      %v12209 = vpack.c.b16 %v12157, %v12155
      %v12210 = vpack.c.b16 %v12158, %v12156
      %v12211 = vpack.c.b16 %v12161, %v12159
      %v12212 = vpack.c.b16 %v12162, %v12160
      %v12213 = vpack.c.b16 %v12165, %v12163
      %v12214 = vpack.c.b16 %v12166, %v12164
      %v12215 = vpack.c.b16 %v12169, %v12167
      %v12216 = vpack.c.b16 %v12170, %v12168
      %v12217 = vpack.c.b16 %v12173, %v12171
      %v12218 = vpack.c.b16 %v12174, %v12172
      %v12219 = vpack.c.b16 %v12177, %v12175
      %v12220 = vpack.c.b16 %v12178, %v12176
      %v12221 = vpack.c.b16 %v12181, %v12179
      %v12222 = vpack.c.b16 %v12182, %v12180
      %v12223 = vpack.c.b16 %v12185, %v12183
      %v12224 = vpack.c.b16 %v12186, %v12184
      %v12225 = vpack.c.b16 %v12189, %v12187
      %v12226 = vpack.c.b16 %v12190, %v12188
      %v12227 = vpack.c.b16 %v12193, %v12191
      %v12228 = vpack.c.b16 %v12194, %v12192
      %v12229 = vpack.c.b16 %v12197, %v12195
      %v12230 = vpack.c.b16 %v12198, %v12196
      %12263 = vmatprep.subr.bf16.mxu0 %v12200
      %12264 = vmatpush1.bf16.msra.mxu0 %v12199
      %12265 = vmatprep.subr.bf16.mxu0 %v12202
      %12266 = vmatpush1.bf16.msra.mxu0 %v12201
      %12267 = vmatprep.subr.bf16.mxu0 %v12204
      %12268 = vmatpush1.bf16.msra.mxu0 %v12203
      %12269 = vmatprep.subr.bf16.mxu0 %v12206
      %12270 = vmatpush1.bf16.msra.mxu0 %v12205
      %12271 = vmatprep.subr.bf16.mxu0 %v12208
      %12272 = vmatpush1.bf16.msra.mxu0 %v12207
      %12273 = vmatprep.subr.bf16.mxu0 %v12210
      %12274 = vmatpush1.bf16.msra.mxu0 %v12209
      %12275 = vmatprep.subr.bf16.mxu0 %v12212
      %12276 = vmatpush1.bf16.msra.mxu0 %v12211
      %12277 = vmatprep.subr.bf16.mxu0 %v12214
      %12278 = vmatpush1.bf16.msra.mxu0 %v12213
      %12279 = vmatprep.subr.bf16.mxu0 %v12216
      %12280 = vmatpush1.bf16.msra.mxu0 %v12215
      %12281 = vmatprep.subr.bf16.mxu0 %v12218
      %12282 = vmatpush1.bf16.msra.mxu0 %v12217
      %12283 = vmatprep.subr.bf16.mxu0 %v12220
      %12284 = vmatpush1.bf16.msra.mxu0 %v12219
      %12285 = vmatprep.subr.bf16.mxu0 %v12222
      %12286 = vmatpush1.bf16.msra.mxu0 %v12221
      %12287 = vmatprep.subr.bf16.mxu0 %v12224
      %12288 = vmatpush1.bf16.msra.mxu0 %v12223
      %12289 = vmatprep.subr.bf16.mxu0 %v12226
      %12290 = vmatpush1.bf16.msra.mxu0 %v12225
      %12291 = vmatprep.subr.bf16.mxu0 %v12228
      %12292 = vmatpush1.bf16.msra.mxu0 %v12227
      %12293 = vmatprep.subr.bf16.mxu0 %v12230
      %12294 = vmatpush1.bf16.msra.mxu0 %v12229
      %12295 = vmatprep.mubr.bf16.mxu0 %v12070
      %12296 = vmatmul.mubr.bf16.gmra.mrb[0].mxu0 %v12067
      %v12297 = vpop.f32.mrb[0].mxu0
      %v12298 = vadd.f32 0.0, %v12297
      %v12299 = vpop.f32.mrb[0].mxu0
      %v12300 = vadd.f32 0.0, %v12299
      %v12301 = vpop.f32.mrb[0].mxu0
      %v12302 = vadd.f32 0.0, %v12301
      %v12303 = vpop.f32.mrb[0].mxu0
      %v12304 = vadd.f32 0.0, %v12303
      %12305 = vmatprep.mubr.bf16.mxu0 %v12074
      %12306 = vmatmul.mubr.bf16.gmra.mrb[0].mxu0 %v12072
      %v12307 = vpop.f32.mrb[0].mxu0
      %v12308 = vadd.f32 0.0, %v12307
      %v12309 = vpop.f32.mrb[0].mxu0
      %v12310 = vadd.f32 0.0, %v12309
      %v12311 = vpop.f32.mrb[0].mxu0
      %v12312 = vadd.f32 0.0, %v12311
      %v12313 = vpop.f32.mrb[0].mxu0
      %v12314 = vadd.f32 0.0, %v12313
      %12315 = vmatprep.mubr.bf16.mxu0 %v12078
      %12316 = vmatmul.mubr.bf16.gmra.mrb[0].mxu0 %v12076
      %v12317 = vpop.f32.mrb[0].mxu0
      %v12318 = vadd.f32 0.0, %v12317
      %v12319 = vpop.f32.mrb[0].mxu0
      %v12320 = vadd.f32 0.0, %v12319
      %v12321 = vpop.f32.mrb[0].mxu0
      %v12322 = vadd.f32 0.0, %v12321
      %v12323 = vpop.f32.mrb[0].mxu0
      %v12324 = vadd.f32 0.0, %v12323
      %12325 = vmatprep.mubr.bf16.mxu0 %v12082
      %12326 = vmatmul.mubr.bf16.gmra.mrb[0].mxu0 %v12080
      %v12327 = vpop.f32.mrb[0].mxu0
      %v12328 = vadd.f32 0.0, %v12327
      %v12329 = vpop.f32.mrb[0].mxu0
      %v12330 = vadd.f32 0.0, %v12329
      %v12331 = vpop.f32.mrb[0].mxu0
      %v12332 = vadd.f32 0.0, %v12331
      %v12333 = vpop.f32.mrb[0].mxu0
      %v12334 = vadd.f32 0.0, %v12333
      %12335 = vmatprep.mubr.bf16.mxu0 %v12086
      %12336 = vmatmul.mubr.bf16.gmra.mrb[0].mxu0 %v12084
      %v12337 = vpop.f32.mrb[0].mxu0
      %v12338 = vadd.f32 0.0, %v12337
      %v12339 = vpop.f32.mrb[0].mxu0
      %v12340 = vadd.f32 0.0, %v12339
      %v12341 = vpop.f32.mrb[0].mxu0
      %v12342 = vadd.f32 0.0, %v12341
      %v12343 = vpop.f32.mrb[0].mxu0
      %v12344 = vadd.f32 0.0, %v12343
      %12345 = vmatprep.mubr.bf16.mxu0 %v12090
      %12346 = vmatmul.mubr.bf16.gmra.mrb[0].mxu0 %v12088
      %v12347 = vpop.f32.mrb[0].mxu0
      %v12348 = vadd.f32 0.0, %v12347
      %v12349 = vpop.f32.mrb[0].mxu0
      %v12350 = vadd.f32 0.0, %v12349
      %v12351 = vpop.f32.mrb[0].mxu0
      %v12352 = vadd.f32 0.0, %v12351
      %v12353 = vpop.f32.mrb[0].mxu0
      %v12354 = vadd.f32 0.0, %v12353
      %12355 = vdwg.mxu0
      %v12356 = vadd.f32 %v12003, %v12298
      %v12357 = vadd.f32 %v12004, %v12300
      %v12358 = vadd.f32 %v12005, %v12302
      %v12359 = vadd.f32 %v12006, %v12304
      %v12360 = vadd.f32 %v12007, %v12308
      %v12361 = vadd.f32 %v12008, %v12310
      %v12362 = vadd.f32 %v12009, %v12312
      %v12363 = vadd.f32 %v12010, %v12314
      %v12364 = vadd.f32 %v12011, %v12318
      %v12365 = vadd.f32 %v12012, %v12320
      %v12366 = vadd.f32 %v12013, %v12322
      %v12367 = vadd.f32 %v12014, %v12324
      %v12368 = vadd.f32 %v12015, %v12328
      %v12369 = vadd.f32 %v12016, %v12330
      %v12370 = vadd.f32 %v12017, %v12332
      %v12371 = vadd.f32 %v12018, %v12334
      %v12372 = vadd.f32 %v12019, %v12338
      %v12373 = vadd.f32 %v12020, %v12340
      %v12374 = vadd.f32 %v12021, %v12342
      %v12375 = vadd.f32 %v12022, %v12344
      %v12376 = vadd.f32 %v12023, %v12348
      %v12377 = vadd.f32 %v12024, %v12350
      %v12378 = vadd.f32 %v12025, %v12352
      %v12379 = vadd.f32 %v12026, %v12354
      %v12380 = vmul.f32 %v12356, %v5080
      %v12381 = vmul.f32 %v12357, %v5084
      %v12382 = vmul.f32 %v12358, %v5080
      %v12383 = vmul.f32 %v12359, %v5084
      %v12384 = vmul.f32 %v12360, %v5080
      %v12385 = vmul.f32 %v12361, %v5084
      %v12386 = vmul.f32 %v12362, %v5080
      %v12387 = vmul.f32 %v12363, %v5084
      %v12388 = vmul.f32 %v12364, %v5080
      %v12389 = vmul.f32 %v12365, %v5084
      %v12390 = vmul.f32 %v12366, %v5080
      %v12391 = vmul.f32 %v12367, %v5084
      %v12392 = vmul.f32 %v12368, %v5080
      %v12393 = vmul.f32 %v12369, %v5084
      %v12394 = vmul.f32 %v12370, %v5080
      %v12395 = vmul.f32 %v12371, %v5084
      %v12396 = vmul.f32 %v12372, %v5080
      %v12397 = vmul.f32 %v12373, %v5084
      %v12398 = vmul.f32 %v12374, %v5080
      %v12399 = vmul.f32 %v12375, %v5084
      %v12400 = vmul.f32 %v12376, %v5080
      %v12401 = vmul.f32 %v12377, %v5084
      %v12402 = vmul.f32 %v12378, %v5080
      %v12403 = vmul.f32 %v12379, %v5084
      %v12404 = vadd.f32 %v12380, %v5115
      %v12405 = vadd.f32 %v12381, %v5119
      %v12406 = vadd.f32 %v12382, %v5115
      %v12407 = vadd.f32 %v12383, %v5119
      %v12408 = vadd.f32 %v12384, %v5115
      %v12409 = vadd.f32 %v12385, %v5119
      %v12410 = vadd.f32 %v12386, %v5115
      %v12411 = vadd.f32 %v12387, %v5119
      %v12412 = vadd.f32 %v12388, %v5115
      %v12413 = vadd.f32 %v12389, %v5119
      %v12414 = vadd.f32 %v12390, %v5115
      %v12415 = vadd.f32 %v12391, %v5119
      %v12416 = vadd.f32 %v12392, %v5115
      %v12417 = vadd.f32 %v12393, %v5119
      %v12418 = vadd.f32 %v12394, %v5115
      %v12419 = vadd.f32 %v12395, %v5119
      %v12420 = vadd.f32 %v12396, %v5115
      %v12421 = vadd.f32 %v12397, %v5119
      %v12422 = vadd.f32 %v12398, %v5115
      %v12423 = vadd.f32 %v12399, %v5119
      %v12424 = vadd.f32 %v12400, %v5115
      %v12425 = vadd.f32 %v12401, %v5119
      %v12426 = vadd.f32 %v12402, %v5115
      %v12427 = vadd.f32 %v12403, %v5119
      %v12428 = vmax.f32 %v12404, 0.0
      %v12429 = vmax.f32 %v12405, 0.0
      %v12430 = vmax.f32 %v12406, 0.0
      %v12431 = vmax.f32 %v12407, 0.0
      %v12432 = vmax.f32 %v12408, 0.0
      %v12433 = vmax.f32 %v12409, 0.0
      %v12434 = vmax.f32 %v12410, 0.0
      %v12435 = vmax.f32 %v12411, 0.0
      %v12436 = vmax.f32 %v12412, 0.0
      %v12437 = vmax.f32 %v12413, 0.0
      %v12438 = vmax.f32 %v12414, 0.0
      %v12439 = vmax.f32 %v12415, 0.0
      %v12440 = vmax.f32 %v12416, 0.0
      %v12441 = vmax.f32 %v12417, 0.0
      %v12442 = vmax.f32 %v12418, 0.0
      %v12443 = vmax.f32 %v12419, 0.0
      %v12444 = vmax.f32 %v12420, 0.0
      %v12445 = vmax.f32 %v12421, 0.0
      %v12446 = vmax.f32 %v12422, 0.0
      %v12447 = vmax.f32 %v12423, 0.0
      %v12448 = vmax.f32 %v12424, 0.0
      %v12449 = vmax.f32 %v12425, 0.0
      %v12450 = vmax.f32 %v12426, 0.0
      %v12451 = vmax.f32 %v12427, 0.0
      %v12452 = vpack.c.bf16 %v12430, %v12428
      %v12453 = vpack.c.bf16 %v12431, %v12429
      %v12454 = vpack.c.bf16 %v12434, %v12432
      %v12455 = vpack.c.bf16 %v12435, %v12433
      %v12456 = vpack.c.bf16 %v12438, %v12436
      %v12457 = vpack.c.bf16 %v12439, %v12437
      %v12458 = vpack.c.bf16 %v12442, %v12440
      %v12459 = vpack.c.bf16 %v12443, %v12441
      %v12460 = vpack.c.bf16 %v12446, %v12444
      %v12461 = vpack.c.bf16 %v12447, %v12445
      %v12462 = vpack.c.bf16 %v12450, %v12448
      %v12463 = vpack.c.bf16 %v12451, %v12449
      %12464 = vmatprep.subr.bf16.mxu0 0
      %12465 = vmatpush1.bf16.msra.mxu0 %v5252
      %12466 = vmatprep.subr.bf16.mxu0 0
      %12467 = vmatpush1.bf16.msra.mxu0 %v5253
      %12468 = vmatprep.subr.bf16.mxu0 0
      %12469 = vmatpush1.bf16.msra.mxu0 %v5254
      %12470 = vmatprep.subr.bf16.mxu0 0
      %12471 = vmatpush1.bf16.msra.mxu0 %v5255
      %12472 = vmatprep.subr.bf16.mxu0 0
      %12473 = vmatpush1.bf16.msra.mxu0 %v5256
      %12474 = vmatprep.subr.bf16.mxu0 0
      %12475 = vmatpush1.bf16.msra.mxu0 %v5257
      %12476 = vmatprep.subr.bf16.mxu0 0
      %12477 = vmatpush1.bf16.msra.mxu0 %v5258
      %12478 = vmatprep.subr.bf16.mxu0 0
      %12479 = vmatpush1.bf16.msra.mxu0 %v5259
      %12480 = vmatprep.subr.bf16.mxu0 0
      %12481 = vmatpush1.bf16.msra.mxu0 %v5260
      %12482 = vmatprep.subr.bf16.mxu0 0
      %12483 = vmatpush1.bf16.msra.mxu0 %v5261
      %12484 = vmatprep.subr.bf16.mxu0 0
      %12485 = vmatpush1.bf16.msra.mxu0 %v5262
      %12486 = vmatprep.subr.bf16.mxu0 0
      %12487 = vmatpush1.bf16.msra.mxu0 %v5263
      %12488 = vmatprep.subr.bf16.mxu0 0
      %12489 = vmatpush1.bf16.msra.mxu0 %v5264
      %12490 = vmatprep.subr.bf16.mxu0 0
      %12491 = vmatpush1.bf16.msra.mxu0 %v5265
      %12492 = vmatprep.subr.bf16.mxu0 0
      %12493 = vmatpush1.bf16.msra.mxu0 %v5266
      %12494 = vmatprep.subr.bf16.mxu0 0
      %12495 = vmatpush1.bf16.msra.mxu0 %v5267
      %12496 = vmatprep.mubr.bf16.mxu0 %v12453
      %12497 = vmatmul.mubr.bf16.gmra.mrb[0].mxu0 %v12452
      %v12498 = vpop.f32.mrb[0].mxu0
      %v12499 = vadd.f32 %v5186, %v12498
      %v12500 = vpop.f32.mrb[0].mxu0
      %v12501 = vpop.f32.mrb[0].mxu0
      %v12502 = vadd.f32 %v5186, %v12501
      %v12503 = vpop.f32.mrb[0].mxu0
      %12504 = vmatprep.mubr.bf16.mxu0 %v12455
      %12505 = vmatmul.mubr.bf16.gmra.mrb[0].mxu0 %v12454
      %v12506 = vpop.f32.mrb[0].mxu0
      %v12507 = vadd.f32 %v5186, %v12506
      %v12508 = vpop.f32.mrb[0].mxu0
      %v12509 = vpop.f32.mrb[0].mxu0
      %v12510 = vadd.f32 %v5186, %v12509
      %v12511 = vpop.f32.mrb[0].mxu0
      %12512 = vmatprep.mubr.bf16.mxu0 %v12457
      %12513 = vmatmul.mubr.bf16.gmra.mrb[0].mxu0 %v12456
      %v12514 = vpop.f32.mrb[0].mxu0
      %v12515 = vadd.f32 %v5186, %v12514
      %v12516 = vpop.f32.mrb[0].mxu0
      %v12517 = vpop.f32.mrb[0].mxu0
      %v12518 = vadd.f32 %v5186, %v12517
      %v12519 = vpop.f32.mrb[0].mxu0
      %12520 = vmatprep.mubr.bf16.mxu0 %v12459
      %12521 = vmatmul.mubr.bf16.gmra.mrb[0].mxu0 %v12458
      %v12522 = vpop.f32.mrb[0].mxu0
      %v12523 = vadd.f32 %v5186, %v12522
      %v12524 = vpop.f32.mrb[0].mxu0
      %v12525 = vpop.f32.mrb[0].mxu0
      %v12526 = vadd.f32 %v5186, %v12525
      %v12527 = vpop.f32.mrb[0].mxu0
      %12528 = vmatprep.mubr.bf16.mxu0 %v12461
      %12529 = vmatmul.mubr.bf16.gmra.mrb[0].mxu0 %v12460
      %v12530 = vpop.f32.mrb[0].mxu0
      %v12531 = vadd.f32 %v5186, %v12530
      %v12532 = vpop.f32.mrb[0].mxu0
      %v12533 = vpop.f32.mrb[0].mxu0
      %v12534 = vadd.f32 %v5186, %v12533
      %v12535 = vpop.f32.mrb[0].mxu0
      %12536 = vmatprep.mubr.bf16.mxu0 %v12463
      %12537 = vmatmul.mubr.bf16.gmra.mrb[0].mxu0 %v12462
      %v12538 = vpop.f32.mrb[0].mxu0
      %v12539 = vadd.f32 %v5186, %v12538
      %v12540 = vpop.f32.mrb[0].mxu0
      %v12541 = vpop.f32.mrb[0].mxu0
      %v12542 = vadd.f32 %v5186, %v12541
      %v12543 = vpop.f32.mrb[0].mxu0
      %12544 = vdwg.mxu0
      %12545 = vst [vmem:[%s359 + $0xc0] sm:$0xff] %v12499
      %12546 = vst [vmem:[%s359 + $0xc8] sm:$0xff] %v12502
      %12547 = vst [vmem:[%s359 + $0xd0] sm:$0xff] %v12507
      %12548 = vst [vmem:[%s359 + $0xd8] sm:$0xff] %v12510
      %12549 = vst [vmem:[%s359 + $0xe0] sm:$0xff] %v12515
      %12550 = vst [vmem:[%s359 + $0xe8] sm:$0xff] %v12518
      %12551 = vst [vmem:[%s359 + $0xf0] sm:$0xff] %v12523
      %12552 = vst [vmem:[%s359 + $0xf8] sm:$0xff] %v12526
      %12553 = vst [vmem:[%s359 + $0x100] sm:$0xff] %v12531
      %12554 = vst [vmem:[%s359 + $0x108] sm:$0xff] %v12534
      %12555 = vst [vmem:[%s359 + $0x110] sm:$0xff] %v12539
      %12556 = vst [vmem:[%s359 + $0x118] sm:$0xff] %v12542
      %p12557 = scmp.lt.s32.totalorder %s21, 1
      %s12558 = scalar_select %p12557, %s21, 1
      %s12559 = smul.addr %s12558, 36
      %s12560 = smul.addr %s12559, 8
      %s12561 = scalar_lea.vmem %s10, %s12560
      // Predicated region
      $region61: #{detection_head_forward.1} parent=59 // pred_check
        %p12562 = pneg %p254
      $region62: #{detection_head_forward.1} parent=59 // pred_check_branch
        %12564 = sbr.rel (%p12562) target = $region64
      $region63: #{detection_head_forward.1} parent=59 // pred_region
        _
      $region64: #{detection_head_forward.1} parent=59 // pred_fallthru
        _
    $region60: #{detection_head_forward.1} parent=5 // pred_fallthru
      _
    %p12565 = scmp.le.s32.totalorder 2, %s16
    // Predicated region
    $region65: #{detection_head_forward.1} parent=5 // pred_check
      %p12566 = pneg %p12565
    $region66: #{detection_head_forward.1} parent=5 // pred_check_branch
      %12568 = sbr.rel (%p12566) target = $region68
    $region67: #{detection_head_forward.1} parent=5 // pred_region
      %s12569 = ssub.s32 %s16, 2
      // Predicated region
      $region69: #{detection_head_forward.1} parent=67 // pred_check
        %p12570 = pneg %p260
      $region70: #{detection_head_forward.1} parent=67 // pred_check_branch
        %12572 = sbr.rel (%p12570) target = $region72
      $region71: #{detection_head_forward.1} parent=67 // pred_region
        %p12573 = scmp.lt.s32.totalorder %s22, 1
        %s12574 = scalar_select %p12573, %s22, 1
        %s12575 = smul.addr %s12574, 36
        %s12576 = smul.addr %s12575, 8
        %s12577 = scalar_lea.vmem %s10, %s12576
      $region72: #{detection_head_forward.1} parent=67 // pred_fallthru
        _
    $region68: #{detection_head_forward.1} parent=5 // pred_fallthru
      _
  $region6: #{detection_head_forward.1} parent=0 // loop_footer
    %s20 = sadd.s32 1, %s16
  $region7: #{detection_head_forward.1} parent=0 // loop_footer_branch
    %15 = sbr.rel target = $region3
  $region8: #{detection_head_forward.1} parent=0 // loop_exit
    _

</llo_original>
